<compile_context>
chip_gen: v6e
topology: v6e:2x2x1
jax: 0.10.0
libtpu: 0.0.40
codegen_flags: <defaults>
</compile_context>

<pallas_src>
import jax
import jax.numpy as jnp
from jax.experimental import pallas as pl
from jax.experimental.pallas import tpu as pltpu


# ----------------------------------------------------------------------------
# Pallas kernel: fused bidirectional multi-layer LSTM over the full sequence.
# ----------------------------------------------------------------------------
def make_bilstm_kernel(num_layers, T, E, Hp):
    S2 = 2 * Hp      # fused (fwd | bwd) state width
    G4 = 4 * Hp      # per-direction gate width
    G8 = 8 * Hp      # fused interleaved gate width

    def kernel(*refs):
        x_ref = refs[0]                                   # (T, E) embedded tokens
        w_refs = refs[1:1 + 5 * num_layers]               # per layer: wxf, wxb, bf, bb, whI
        out_ref, hf_ref, cf_ref, xr_ref, p_ref, hseq_ref = refs[1 + 5 * num_layers:]

        # Build the time-reversed input once in VMEM (backward direction, layer 0).
        for s in range(T):
            xr_ref[s:s + 1, :] = x_ref[T - 1 - s:T - s, :]

        for layer in range(num_layers):
            wxf = w_refs[5 * layer + 0][...]              # (in_p, 4*Hp)
            wxb = w_refs[5 * layer + 1][...]              # (in_p, 4*Hp)
            bf = w_refs[5 * layer + 2][...]               # (1, 4*Hp)
            bb = w_refs[5 * layer + 3][...]               # (1, 4*Hp)
            whI = w_refs[5 * layer + 4][...]              # (2*Hp, 8*Hp) block-diag, interleaved cols
            is_last = (layer == num_layers - 1)

            if layer == 0:
                inf = x_ref[...]                          # (T, E)   forward inputs (time order)
                inb = xr_ref[...]                         # (T, E)   backward inputs (step order)
            else:
                inf = hseq_ref[:, 0:Hp]                   # (T, Hp)  previous layer fwd outputs
                inb = hseq_ref[:, Hp:S2]                  # (T, Hp)  previous layer bwd outputs

            # Batched input projection over the whole sequence (hoisted out of the
            # recurrence): MXU sees M = T rows instead of 1.
            pf = jnp.dot(inf, wxf, preferred_element_type=jnp.float32) + bf   # (T, 4*Hp)
            pb = jnp.dot(inb, wxb, preferred_element_type=jnp.float32) + bb   # (T, 4*Hp)

            # Assemble the interleaved-gate projection buffer:
            # column blocks (each Hp lanes): [i_f i_b f_f f_b g_f g_b o_f o_b].
            for gi in range(4):
                p_ref[:, (2 * gi) * Hp:(2 * gi + 1) * Hp] = pf[:, gi * Hp:(gi + 1) * Hp]
                p_ref[:, (2 * gi + 1) * Hp:(2 * gi + 2) * Hp] = pb[:, gi * Hp:(gi + 1) * Hp]

            # Sequential recurrence; both directions fused into one (1, 2*Hp) state
            # and a single block-diagonal recurrent matmul per step.
            h = jnp.zeros((1, S2), jnp.float32)
            c = jnp.zeros((1, S2), jnp.float32)
            for s in range(T):
                gates = p_ref[s:s + 1, :] + jnp.dot(h, whI,
                                                    preferred_element_type=jnp.float32)  # (1, 8*Hp)
                i_g = jax.nn.sigmoid(gates[:, 0 * S2:1 * S2])
                f_g = jax.nn.sigmoid(gates[:, 1 * S2:2 * S2])
                g_g = jnp.tanh(gates[:, 2 * S2:3 * S2])
                o_g = jax.nn.sigmoid(gates[:, 3 * S2:4 * S2])
                c = f_g * c + i_g * g_g                   # (1, 2*Hp) = [c_f | c_b]
                h = o_g * jnp.tanh(c)                     # (1, 2*Hp) = [h_f | h_b]

                if is_last:
                    # forward output at time s; backward output time-aligned at T-1-s
                    out_ref[s:s + 1, 0:Hp] = h[:, 0:Hp]
                    out_ref[T - 1 - s:T - s, Hp:S2] = h[:, Hp:S2]
                else:
                    hseq_ref[s:s + 1, :] = h              # step-ordered, feeds next layer

            hf_ref[layer:layer + 1, :] = h                # final hidden, [fwd | bwd]
            cf_ref[layer:layer + 1, :] = c                # final cell,   [fwd | bwd]

    return kernel


def run_bilstm_pallas(x, packed_layers, Hp):
    """x: (T, E) embedded tokens. packed_layers: per-layer (wxf, wxb, bf, bb, whI).

    Returns: out (T, 2*Hp), final hidden (L, 2*Hp), final cell (L, 2*Hp).
    Layout of the last dim is [forward(Hp) | backward(Hp)], real data in [:H].
    """
    T, E = x.shape
    L = len(packed_layers)

    inputs = [x.astype(jnp.float32)]
    in_specs = [pl.BlockSpec((T, E), lambda i: (0, 0))]
    for lay in packed_layers:
        for arr in lay:
            inputs.append(arr)
            in_specs.append(pl.BlockSpec(arr.shape, lambda i: (0, 0)))

    out_shape = (
        jax.ShapeDtypeStruct((T, 2 * Hp), jnp.float32),   # per-token last-layer [h_f | h_b]
        jax.ShapeDtypeStruct((L, 2 * Hp), jnp.float32),   # final hidden per layer
        jax.ShapeDtypeStruct((L, 2 * Hp), jnp.float32),   # final cell per layer
    )
    out_specs = [
        pl.BlockSpec((T, 2 * Hp), lambda i: (0, 0)),
        pl.BlockSpec((L, 2 * Hp), lambda i: (0, 0)),
        pl.BlockSpec((L, 2 * Hp), lambda i: (0, 0)),
    ]

    out, hf, cf = pl.pallas_call(
        make_bilstm_kernel(L, T, E, Hp),
        out_shape=out_shape,
        grid_spec=pltpu.PrefetchScalarGridSpec(
            num_scalar_prefetch=0,
            grid=(1,),                                    # single step: everything VMEM-resident
            in_specs=in_specs,
            out_specs=out_specs,
            scratch_shapes=[
                pltpu.VMEM((T, E), jnp.float32),          # time-reversed input
                pltpu.VMEM((T, 8 * Hp), jnp.float32),     # fused gate projections (per layer)
                pltpu.VMEM((T, 2 * Hp), jnp.float32),     # layer output sequence [h_f | h_b]
            ],
        ),
        compiler_params=pltpu.CompilerParams(
            dimension_semantics=("arbitrary",),
        ),
    )(*inputs)
    return out, hf, cf


# ----------------------------------------------------------------------------
# Parameter creation (torch-like i,f,g,o layout) and packing for the kernel.
# ----------------------------------------------------------------------------
def create_multilayer_lstm_params(key, num_layers, input_size, hidden):
    params = []
    in_dim = input_size
    for _ in range(num_layers):
        key, k1, k2, k3 = jax.random.split(key, 4)
        Wx = jax.random.normal(k1, (in_dim, 4 * hidden), jnp.float32) * 0.1
        Wh = jax.random.normal(k2, (hidden, 4 * hidden), jnp.float32) * 0.1
        b = jax.random.normal(k3, (1, 4 * hidden), jnp.float32) * 0.1
        params.append((Wx, Wh, b))
        in_dim = hidden
    return params


def pack_bilstm_params(forward_lstms, backward_lstms, input_size, H, Hp):
    """Pad H->Hp (zero padding, exact) and build the fused/interleaved kernel weights."""
    packed = []
    for l in range(len(forward_lstms)):
        in_dim = input_size if l == 0 else H
        in_p = input_size if l == 0 else Hp
        Wx_f, Wh_f, b_f = forward_lstms[l]
        Wx_b, Wh_b, b_b = backward_lstms[l]

        wxf = jnp.zeros((in_p, 4 * Hp), jnp.float32)
        wxb = jnp.zeros((in_p, 4 * Hp), jnp.float32)
        bf = jnp.zeros((1, 4 * Hp), jnp.float32)
        bb = jnp.zeros((1, 4 * Hp), jnp.float32)
        whI = jnp.zeros((2 * Hp, 8 * Hp), jnp.float32)    # block-diag, interleaved gate columns

        for g in range(4):
            wxf = wxf.at[:in_dim, g * Hp:g * Hp + H].set(Wx_f[:, g * H:(g + 1) * H])
            wxb = wxb.at[:in_dim, g * Hp:g * Hp + H].set(Wx_b[:, g * H:(g + 1) * H])
            bf = bf.at[:, g * Hp:g * Hp + H].set(b_f[:, g * H:(g + 1) * H])
            bb = bb.at[:, g * Hp:g * Hp + H].set(b_b[:, g * H:(g + 1) * H])
            whI = whI.at[0:H, (2 * g) * Hp:(2 * g) * Hp + H].set(Wh_f[:, g * H:(g + 1) * H])
            whI = whI.at[Hp:Hp + H, (2 * g + 1) * Hp:(2 * g + 1) * Hp + H].set(
                Wh_b[:, g * H:(g + 1) * H])

        packed.append((wxf, wxb, bf, bb, whI))
    return packed


# ----------------------------------------------------------------------------
# Pure-JAX reference (same math, unpadded weights) for the correctness check.
# ----------------------------------------------------------------------------
def run_lstm_ref(x, params):
    L = len(params)
    H = params[0][1].shape[0]

    def step(carry, xt):
        hs, cs = carry
        inp = xt
        new_h, new_c = [], []
        for layer in range(L):
            Wx, Wh, b = params[layer]
            gates = inp @ Wx + hs[layer] @ Wh + b[0]
            i_g = jax.nn.sigmoid(gates[0:H])
            f_g = jax.nn.sigmoid(gates[H:2 * H])
            g_g = jnp.tanh(gates[2 * H:3 * H])
            o_g = jax.nn.sigmoid(gates[3 * H:4 * H])
            c = f_g * cs[layer] + i_g * g_g
            h = o_g * jnp.tanh(c)
            new_h.append(h)
            new_c.append(c)
            inp = h
        return (jnp.stack(new_h), jnp.stack(new_c)), inp

    init = (jnp.zeros((L, H), jnp.float32), jnp.zeros((L, H), jnp.float32))
    (hf, cf), outs = jax.lax.scan(step, init, x)
    return outs, hf, cf


# ----------------------------------------------------------------------------
# Encoder module (bidirectional forward pass).
# ----------------------------------------------------------------------------
class Encoder:
    """Bidirectional multi-layer LSTM encoder (fused Pallas TPU implementation)."""

    def __init__(self, key, num_layers, input_size, state_size):
        assert state_size % 2 == 0
        self.num_layers = num_layers
        self.input_size = input_size
        self.hidden = state_size // 2
        self.hidden_pad = ((self.hidden + 127) // 128) * 128
        kf, kb = jax.random.split(key)
        self.forward_lstms = create_multilayer_lstm_params(
            kf, num_layers, input_size, self.hidden)
        self.backward_lstms = create_multilayer_lstm_params(
            kb, num_layers, input_size, self.hidden)
        self.packed_layers = pack_bilstm_params(
            self.forward_lstms, self.backward_lstms,
            input_size, self.hidden, self.hidden_pad)

    def forward(self, embedded_toks):
        """embedded_toks: (T, E) already-embedded tokens (embedder applied in glue).

        Returns ((cell_memories, hidden_states), final_outputs):
          cell_memories, hidden_states: (num_layers, state_size)
          final_outputs: (T, state_size)
        """
        H, Hp = self.hidden, self.hidden_pad
        out, hf, cf = run_bilstm_pallas(embedded_toks, self.packed_layers, Hp)
        final_outputs = jnp.concatenate([out[:, :H], out[:, Hp:Hp + H]], axis=-1)
        hidden_states = jnp.concatenate([hf[:, :H], hf[:, Hp:Hp + H]], axis=-1)
        cell_memories = jnp.concatenate([cf[:, :H], cf[:, Hp:Hp + H]], axis=-1)
        return (cell_memories, hidden_states), final_outputs

    def forward_ref(self, embedded_toks):
        f_out, f_h, f_c = run_lstm_ref(embedded_toks, self.forward_lstms)
        b_out, b_h, b_c = run_lstm_ref(embedded_toks[::-1], self.backward_lstms)
        cell_memories = jnp.concatenate([f_c, b_c], axis=-1)
        hidden_states = jnp.concatenate([f_h, b_h], axis=-1)
        b_out = b_out[::-1]
        final_outputs = jnp.concatenate([f_out, b_out], axis=-1)
        return (cell_memories, hidden_states), final_outputs


if __name__ == "__main__":
    # Small, deterministic setup: num_layers=2, input_size=32, state_size=64, T=8.
    NUM_LAYERS = 2
    INPUT_SIZE = 32
    STATE_SIZE = 64
    SEQ_LEN = 8
    VOCAB = 16

    root = jax.random.PRNGKey(0)
    k_enc, k_tok, k_emb = jax.random.split(root, 3)

    encoder = Encoder(k_enc, NUM_LAYERS, INPUT_SIZE, STATE_SIZE)

    # Glue: embedder = deterministic embedding-table lookup.
    utterance_toks = jax.random.randint(k_tok, (SEQ_LEN,), 0, VOCAB)
    emb_table = jax.random.normal(k_emb, (VOCAB, INPUT_SIZE), jnp.float32) * 0.1
    embedded = emb_table[utterance_toks]                         # (T, E)

    (cell_memories, hidden_states), final_outputs = encoder.forward(embedded)
    jax.block_until_ready((cell_memories, hidden_states, final_outputs))

    # Correctness check against a pure-JAX reference of the same math.
    (cm_ref, hs_ref), out_ref = encoder.forward_ref(embedded)
    assert cell_memories.shape == (NUM_LAYERS, STATE_SIZE)
    assert hidden_states.shape == (NUM_LAYERS, STATE_SIZE)
    assert final_outputs.shape == (SEQ_LEN, STATE_SIZE)
    assert jnp.allclose(cell_memories, cm_ref, atol=1e-4)
    assert jnp.allclose(hidden_states, hs_ref, atol=1e-4)
    assert jnp.allclose(final_outputs, out_ref, atol=1e-4)

    print("KERNEL_OK")
</pallas_src>

<mosaic_0001>
module attributes {stable_mosaic.version = 11 : i64} {
  func.func @kernel(%arg0: i32, %arg1: memref<8x32xf32, #tpu.memory_space<vmem>>, %arg2: memref<32x512xf32, #tpu.memory_space<vmem>>, %arg3: memref<32x512xf32, #tpu.memory_space<vmem>>, %arg4: memref<1x512xf32, #tpu.memory_space<vmem>>, %arg5: memref<1x512xf32, #tpu.memory_space<vmem>>, %arg6: memref<256x1024xf32, #tpu.memory_space<vmem>>, %arg7: memref<128x512xf32, #tpu.memory_space<vmem>>, %arg8: memref<128x512xf32, #tpu.memory_space<vmem>>, %arg9: memref<1x512xf32, #tpu.memory_space<vmem>>, %arg10: memref<1x512xf32, #tpu.memory_space<vmem>>, %arg11: memref<256x1024xf32, #tpu.memory_space<vmem>>, %arg12: memref<8x256xf32, #tpu.memory_space<vmem>>, %arg13: memref<2x256xf32, #tpu.memory_space<vmem>>, %arg14: memref<2x256xf32, #tpu.memory_space<vmem>>, %arg15: memref<8x32xf32, #tpu.memory_space<vmem>>, %arg16: memref<8x1024xf32, #tpu.memory_space<vmem>>, %arg17: memref<8x256xf32, #tpu.memory_space<vmem>>) attributes {dimension_semantics = [#tpu.dimension_semantics<arbitrary>], iteration_bounds = array<i64: 1>, scalar_prefetch = 0 : i64, scratch_operands = 3 : i64, tpu.core_type = #tpu.core_type<tc>, window_params = [{pipeline_mode = #tpu.pipeline_mode<synchronous>, transform_indices = @transform_0, window_bounds = array<i64: 8, 32>}, {pipeline_mode = #tpu.pipeline_mode<synchronous>, transform_indices = @transform_1, window_bounds = array<i64: 32, 512>}, {pipeline_mode = #tpu.pipeline_mode<synchronous>, transform_indices = @transform_2, window_bounds = array<i64: 32, 512>}, {pipeline_mode = #tpu.pipeline_mode<synchronous>, transform_indices = @transform_3, window_bounds = array<i64: 1, 512>}, {pipeline_mode = #tpu.pipeline_mode<synchronous>, transform_indices = @transform_4, window_bounds = array<i64: 1, 512>}, {pipeline_mode = #tpu.pipeline_mode<synchronous>, transform_indices = @transform_5, window_bounds = array<i64: 256, 1024>}, {pipeline_mode = #tpu.pipeline_mode<synchronous>, transform_indices = @transform_6, window_bounds = array<i64: 128, 512>}, {pipeline_mode = #tpu.pipeline_mode<synchronous>, transform_indices = @transform_7, window_bounds = array<i64: 128, 512>}, {pipeline_mode = #tpu.pipeline_mode<synchronous>, transform_indices = @transform_8, window_bounds = array<i64: 1, 512>}, {pipeline_mode = #tpu.pipeline_mode<synchronous>, transform_indices = @transform_9, window_bounds = array<i64: 1, 512>}, {pipeline_mode = #tpu.pipeline_mode<synchronous>, transform_indices = @transform_10, window_bounds = array<i64: 256, 1024>}, {pipeline_mode = #tpu.pipeline_mode<synchronous>, transform_indices = @transform_11, window_bounds = array<i64: 8, 256>}, {pipeline_mode = #tpu.pipeline_mode<synchronous>, transform_indices = @transform_12, window_bounds = array<i64: 2, 256>}, {pipeline_mode = #tpu.pipeline_mode<synchronous>, transform_indices = @transform_13, window_bounds = array<i64: 2, 256>}]} {
    %c7 = arith.constant 7 : index
    %c0 = arith.constant 0 : index
    %0 = vector.load %arg1[%c7, %c0] : memref<8x32xf32, #tpu.memory_space<vmem>>, vector<1x32xf32>
    %c0_0 = arith.constant 0 : index
    %c0_1 = arith.constant 0 : index
    %1 = vector.load %arg15[%c0_0, %c0_1] : memref<8x32xf32, #tpu.memory_space<vmem>>, vector<1x32xf32>
    tpu.vector_store %arg15[%c0_0, %c0_1], %0 {strides = array<i32>} : memref<8x32xf32, #tpu.memory_space<vmem>>, vector<1x32xf32>,
    %c6 = arith.constant 6 : index
    %c0_2 = arith.constant 0 : index
    %2 = vector.load %arg1[%c6, %c0_2] : memref<8x32xf32, #tpu.memory_space<vmem>>, vector<1x32xf32>
    %c1 = arith.constant 1 : index
    %c0_3 = arith.constant 0 : index
    %3 = vector.load %arg15[%c1, %c0_3] : memref<8x32xf32, #tpu.memory_space<vmem>>, vector<1x32xf32>
    tpu.vector_store %arg15[%c1, %c0_3], %2 {strides = array<i32>} : memref<8x32xf32, #tpu.memory_space<vmem>>, vector<1x32xf32>,
    %c5 = arith.constant 5 : index
    %c0_4 = arith.constant 0 : index
    %4 = vector.load %arg1[%c5, %c0_4] : memref<8x32xf32, #tpu.memory_space<vmem>>, vector<1x32xf32>
    %c2 = arith.constant 2 : index
    %c0_5 = arith.constant 0 : index
    %5 = vector.load %arg15[%c2, %c0_5] : memref<8x32xf32, #tpu.memory_space<vmem>>, vector<1x32xf32>
    tpu.vector_store %arg15[%c2, %c0_5], %4 {strides = array<i32>} : memref<8x32xf32, #tpu.memory_space<vmem>>, vector<1x32xf32>,
    %c4 = arith.constant 4 : index
    %c0_6 = arith.constant 0 : index
    %6 = vector.load %arg1[%c4, %c0_6] : memref<8x32xf32, #tpu.memory_space<vmem>>, vector<1x32xf32>
    %c3 = arith.constant 3 : index
    %c0_7 = arith.constant 0 : index
    %7 = vector.load %arg15[%c3, %c0_7] : memref<8x32xf32, #tpu.memory_space<vmem>>, vector<1x32xf32>
    tpu.vector_store %arg15[%c3, %c0_7], %6 {strides = array<i32>} : memref<8x32xf32, #tpu.memory_space<vmem>>, vector<1x32xf32>,
    %c3_8 = arith.constant 3 : index
    %c0_9 = arith.constant 0 : index
    %8 = vector.load %arg1[%c3_8, %c0_9] : memref<8x32xf32, #tpu.memory_space<vmem>>, vector<1x32xf32>
    %c4_10 = arith.constant 4 : index
    %c0_11 = arith.constant 0 : index
    %9 = vector.load %arg15[%c4_10, %c0_11] : memref<8x32xf32, #tpu.memory_space<vmem>>, vector<1x32xf32>
    tpu.vector_store %arg15[%c4_10, %c0_11], %8 {strides = array<i32>} : memref<8x32xf32, #tpu.memory_space<vmem>>, vector<1x32xf32>,
    %c2_12 = arith.constant 2 : index
    %c0_13 = arith.constant 0 : index
    %10 = vector.load %arg1[%c2_12, %c0_13] : memref<8x32xf32, #tpu.memory_space<vmem>>, vector<1x32xf32>
    %c5_14 = arith.constant 5 : index
    %c0_15 = arith.constant 0 : index
    %11 = vector.load %arg15[%c5_14, %c0_15] : memref<8x32xf32, #tpu.memory_space<vmem>>, vector<1x32xf32>
    tpu.vector_store %arg15[%c5_14, %c0_15], %10 {strides = array<i32>} : memref<8x32xf32, #tpu.memory_space<vmem>>, vector<1x32xf32>,
    %c1_16 = arith.constant 1 : index
    %c0_17 = arith.constant 0 : index
    %12 = vector.load %arg1[%c1_16, %c0_17] : memref<8x32xf32, #tpu.memory_space<vmem>>, vector<1x32xf32>
    %c6_18 = arith.constant 6 : index
    %c0_19 = arith.constant 0 : index
    %13 = vector.load %arg15[%c6_18, %c0_19] : memref<8x32xf32, #tpu.memory_space<vmem>>, vector<1x32xf32>
    tpu.vector_store %arg15[%c6_18, %c0_19], %12 {strides = array<i32>} : memref<8x32xf32, #tpu.memory_space<vmem>>, vector<1x32xf32>,
    %c0_20 = arith.constant 0 : index
    %c0_21 = arith.constant 0 : index
    %14 = vector.load %arg1[%c0_20, %c0_21] : memref<8x32xf32, #tpu.memory_space<vmem>>, vector<1x32xf32>
    %c7_22 = arith.constant 7 : index
    %c0_23 = arith.constant 0 : index
    %15 = vector.load %arg15[%c7_22, %c0_23] : memref<8x32xf32, #tpu.memory_space<vmem>>, vector<1x32xf32>
    tpu.vector_store %arg15[%c7_22, %c0_23], %14 {strides = array<i32>} : memref<8x32xf32, #tpu.memory_space<vmem>>, vector<1x32xf32>,
    %c0_24 = arith.constant 0 : index
    %c0_25 = arith.constant 0 : index
    %16 = vector.load %arg2[%c0_24, %c0_25] : memref<32x512xf32, #tpu.memory_space<vmem>>, vector<32x512xf32>
    %c0_26 = arith.constant 0 : index
    %c0_27 = arith.constant 0 : index
    %17 = vector.load %arg3[%c0_26, %c0_27] : memref<32x512xf32, #tpu.memory_space<vmem>>, vector<32x512xf32>
    %c0_28 = arith.constant 0 : index
    %c0_29 = arith.constant 0 : index
    %18 = vector.load %arg4[%c0_28, %c0_29] : memref<1x512xf32, #tpu.memory_space<vmem>>, vector<1x512xf32>
    %c0_30 = arith.constant 0 : index
    %c0_31 = arith.constant 0 : index
    %19 = vector.load %arg5[%c0_30, %c0_31] : memref<1x512xf32, #tpu.memory_space<vmem>>, vector<1x512xf32>
    %c0_32 = arith.constant 0 : index
    %c0_33 = arith.constant 0 : index
    %20 = vector.load %arg6[%c0_32, %c0_33] : memref<256x1024xf32, #tpu.memory_space<vmem>>, vector<256x1024xf32>
    %c0_34 = arith.constant 0 : index
    %c0_35 = arith.constant 0 : index
    %21 = vector.load %arg1[%c0_34, %c0_35] : memref<8x32xf32, #tpu.memory_space<vmem>>, vector<8x32xf32>
    %c0_36 = arith.constant 0 : index
    %c0_37 = arith.constant 0 : index
    %22 = vector.load %arg15[%c0_36, %c0_37] : memref<8x32xf32, #tpu.memory_space<vmem>>, vector<8x32xf32>
    %cst = arith.constant dense<0.000000e+00> : vector<8x512xf32>
    %23 = tpu.matmul %21, %16, %cst {dimension_numbers = #tpu.dot_dimension_numbers<[1], [0], [0], [1], [0, 0, 1, 1], [], []>} : vector<8x32xf32>, vector<32x512xf32>, vector<8x512xf32> -> vector<8x512xf32>
    %24 = vector.broadcast %18 : vector<1x512xf32> to vector<8x512xf32>
    %25 = arith.addf %23, %24 : vector<8x512xf32>
    %cst_38 = arith.constant dense<0.000000e+00> : vector<8x512xf32>
    %26 = tpu.matmul %22, %17, %cst_38 {dimension_numbers = #tpu.dot_dimension_numbers<[1], [0], [0], [1], [0, 0, 1, 1], [], []>} : vector<8x32xf32>, vector<32x512xf32>, vector<8x512xf32> -> vector<8x512xf32>
    %27 = vector.broadcast %19 : vector<1x512xf32> to vector<8x512xf32>
    %28 = arith.addf %26, %27 : vector<8x512xf32>
    %29 = vector.extract_strided_slice %25 {offsets = [0, 0], sizes = [8, 128], strides = [1, 1]} : vector<8x512xf32> to vector<8x128xf32>
    %c0_39 = arith.constant 0 : index
    %c0_40 = arith.constant 0 : index
    %30 = vector.load %arg16[%c0_39, %c0_40] : memref<8x1024xf32, #tpu.memory_space<vmem>>, vector<8x128xf32>
    tpu.vector_store %arg16[%c0_39, %c0_40], %29 {strides = array<i32>} : memref<8x1024xf32, #tpu.memory_space<vmem>>, vector<8x128xf32>,
    %31 = vector.extract_strided_slice %28 {offsets = [0, 0], sizes = [8, 128], strides = [1, 1]} : vector<8x512xf32> to vector<8x128xf32>
    %c0_41 = arith.constant 0 : index
    %c128 = arith.constant 128 : index
    %32 = vector.load %arg16[%c0_41, %c128] : memref<8x1024xf32, #tpu.memory_space<vmem>>, vector<8x128xf32>
    tpu.vector_store %arg16[%c0_41, %c128], %31 {strides = array<i32>} : memref<8x1024xf32, #tpu.memory_space<vmem>>, vector<8x128xf32>,
    %33 = vector.extract_strided_slice %25 {offsets = [0, 128], sizes = [8, 128], strides = [1, 1]} : vector<8x512xf32> to vector<8x128xf32>
    %c0_42 = arith.constant 0 : index
    %c256 = arith.constant 256 : index
    %34 = vector.load %arg16[%c0_42, %c256] : memref<8x1024xf32, #tpu.memory_space<vmem>>, vector<8x128xf32>
    tpu.vector_store %arg16[%c0_42, %c256], %33 {strides = array<i32>} : memref<8x1024xf32, #tpu.memory_space<vmem>>, vector<8x128xf32>,
    %35 = vector.extract_strided_slice %28 {offsets = [0, 128], sizes = [8, 128], strides = [1, 1]} : vector<8x512xf32> to vector<8x128xf32>
    %c0_43 = arith.constant 0 : index
    %c384 = arith.constant 384 : index
    %36 = vector.load %arg16[%c0_43, %c384] : memref<8x1024xf32, #tpu.memory_space<vmem>>, vector<8x128xf32>
    tpu.vector_store %arg16[%c0_43, %c384], %35 {strides = array<i32>} : memref<8x1024xf32, #tpu.memory_space<vmem>>, vector<8x128xf32>,
    %37 = vector.extract_strided_slice %25 {offsets = [0, 256], sizes = [8, 128], strides = [1, 1]} : vector<8x512xf32> to vector<8x128xf32>
    %c0_44 = arith.constant 0 : index
    %c512 = arith.constant 512 : index
    %38 = vector.load %arg16[%c0_44, %c512] : memref<8x1024xf32, #tpu.memory_space<vmem>>, vector<8x128xf32>
    tpu.vector_store %arg16[%c0_44, %c512], %37 {strides = array<i32>} : memref<8x1024xf32, #tpu.memory_space<vmem>>, vector<8x128xf32>,
    %39 = vector.extract_strided_slice %28 {offsets = [0, 256], sizes = [8, 128], strides = [1, 1]} : vector<8x512xf32> to vector<8x128xf32>
    %c0_45 = arith.constant 0 : index
    %c640 = arith.constant 640 : index
    %40 = vector.load %arg16[%c0_45, %c640] : memref<8x1024xf32, #tpu.memory_space<vmem>>, vector<8x128xf32>
    tpu.vector_store %arg16[%c0_45, %c640], %39 {strides = array<i32>} : memref<8x1024xf32, #tpu.memory_space<vmem>>, vector<8x128xf32>,
    %41 = vector.extract_strided_slice %25 {offsets = [0, 384], sizes = [8, 128], strides = [1, 1]} : vector<8x512xf32> to vector<8x128xf32>
    %c0_46 = arith.constant 0 : index
    %c768 = arith.constant 768 : index
    %42 = vector.load %arg16[%c0_46, %c768] : memref<8x1024xf32, #tpu.memory_space<vmem>>, vector<8x128xf32>
    tpu.vector_store %arg16[%c0_46, %c768], %41 {strides = array<i32>} : memref<8x1024xf32, #tpu.memory_space<vmem>>, vector<8x128xf32>,
    %43 = vector.extract_strided_slice %28 {offsets = [0, 384], sizes = [8, 128], strides = [1, 1]} : vector<8x512xf32> to vector<8x128xf32>
    %c0_47 = arith.constant 0 : index
    %c896 = arith.constant 896 : index
    %44 = vector.load %arg16[%c0_47, %c896] : memref<8x1024xf32, #tpu.memory_space<vmem>>, vector<8x128xf32>
    tpu.vector_store %arg16[%c0_47, %c896], %43 {strides = array<i32>} : memref<8x1024xf32, #tpu.memory_space<vmem>>, vector<8x128xf32>,
    %cst_48 = arith.constant 0.000000e+00 : f32
    %45 = vector.broadcast %cst_48 : f32 to vector<1x256xf32>
    %cst_49 = arith.constant 0.000000e+00 : f32
    %46 = vector.broadcast %cst_49 : f32 to vector<1x256xf32>
    %c0_50 = arith.constant 0 : index
    %c0_51 = arith.constant 0 : index
    %47 = vector.load %arg16[%c0_50, %c0_51] : memref<8x1024xf32, #tpu.memory_space<vmem>>, vector<1x1024xf32>
    %cst_52 = arith.constant dense<0.000000e+00> : vector<1x1024xf32>
    %48 = tpu.matmul %45, %20, %cst_52 {dimension_numbers = #tpu.dot_dimension_numbers<[1], [0], [0], [1], [0, 0, 1, 1], [], []>} : vector<1x256xf32>, vector<256x1024xf32>, vector<1x1024xf32> -> vector<1x1024xf32>
    %49 = arith.addf %47, %48 : vector<1x1024xf32>
    %50 = vector.extract_strided_slice %49 {offsets = [0, 0], sizes = [1, 256], strides = [1, 1]} : vector<1x1024xf32> to vector<1x256xf32>
    %51 = arith.negf %50 : vector<1x256xf32>
    %52 = math.exp %51 : vector<1x256xf32>
    %cst_53 = arith.constant 1.000000e+00 : f32
    %53 = vector.broadcast %cst_53 : f32 to vector<1x256xf32>
    %54 = arith.addf %53, %52 : vector<1x256xf32>
    %55 = arith.divf %53, %54 : vector<1x256xf32>
    %56 = vector.extract_strided_slice %49 {offsets = [0, 256], sizes = [1, 256], strides = [1, 1]} : vector<1x1024xf32> to vector<1x256xf32>
    %57 = arith.negf %56 : vector<1x256xf32>
    %58 = math.exp %57 : vector<1x256xf32>
    %cst_54 = arith.constant 1.000000e+00 : f32
    %59 = vector.broadcast %cst_54 : f32 to vector<1x256xf32>
    %60 = arith.addf %59, %58 : vector<1x256xf32>
    %61 = arith.divf %59, %60 : vector<1x256xf32>
    %62 = vector.extract_strided_slice %49 {offsets = [0, 512], sizes = [1, 256], strides = [1, 1]} : vector<1x1024xf32> to vector<1x256xf32>
    %63 = math.tanh %62 : vector<1x256xf32>
    %64 = vector.extract_strided_slice %49 {offsets = [0, 768], sizes = [1, 256], strides = [1, 1]} : vector<1x1024xf32> to vector<1x256xf32>
    %65 = arith.negf %64 : vector<1x256xf32>
    %66 = math.exp %65 : vector<1x256xf32>
    %cst_55 = arith.constant 1.000000e+00 : f32
    %67 = vector.broadcast %cst_55 : f32 to vector<1x256xf32>
    %68 = arith.addf %67, %66 : vector<1x256xf32>
    %69 = arith.divf %67, %68 : vector<1x256xf32>
    %70 = arith.mulf %61, %46 : vector<1x256xf32>
    %71 = arith.mulf %55, %63 : vector<1x256xf32>
    %72 = arith.addf %70, %71 : vector<1x256xf32>
    %73 = math.tanh %72 : vector<1x256xf32>
    %74 = arith.mulf %69, %73 : vector<1x256xf32>
    %c0_56 = arith.constant 0 : index
    %c0_57 = arith.constant 0 : index
    %75 = vector.load %arg17[%c0_56, %c0_57] : memref<8x256xf32, #tpu.memory_space<vmem>>, vector<1x256xf32>
    tpu.vector_store %arg17[%c0_56, %c0_57], %74 {strides = array<i32>} : memref<8x256xf32, #tpu.memory_space<vmem>>, vector<1x256xf32>,
    %c1_58 = arith.constant 1 : index
    %c0_59 = arith.constant 0 : index
    %76 = vector.load %arg16[%c1_58, %c0_59] : memref<8x1024xf32, #tpu.memory_space<vmem>>, vector<1x1024xf32>
    %cst_60 = arith.constant dense<0.000000e+00> : vector<1x1024xf32>
    %77 = tpu.matmul %74, %20, %cst_60 {dimension_numbers = #tpu.dot_dimension_numbers<[1], [0], [0], [1], [0, 0, 1, 1], [], []>} : vector<1x256xf32>, vector<256x1024xf32>, vector<1x1024xf32> -> vector<1x1024xf32>
    %78 = arith.addf %76, %77 : vector<1x1024xf32>
    %79 = vector.extract_strided_slice %78 {offsets = [0, 0], sizes = [1, 256], strides = [1, 1]} : vector<1x1024xf32> to vector<1x256xf32>
    %80 = arith.negf %79 : vector<1x256xf32>
    %81 = math.exp %80 : vector<1x256xf32>
    %cst_61 = arith.constant 1.000000e+00 : f32
    %82 = vector.broadcast %cst_61 : f32 to vector<1x256xf32>
    %83 = arith.addf %82, %81 : vector<1x256xf32>
    %84 = arith.divf %82, %83 : vector<1x256xf32>
    %85 = vector.extract_strided_slice %78 {offsets = [0, 256], sizes = [1, 256], strides = [1, 1]} : vector<1x1024xf32> to vector<1x256xf32>
    %86 = arith.negf %85 : vector<1x256xf32>
    %87 = math.exp %86 : vector<1x256xf32>
    %cst_62 = arith.constant 1.000000e+00 : f32
    %88 = vector.broadcast %cst_62 : f32 to vector<1x256xf32>
    %89 = arith.addf %88, %87 : vector<1x256xf32>
    %90 = arith.divf %88, %89 : vector<1x256xf32>
    %91 = vector.extract_strided_slice %78 {offsets = [0, 512], sizes = [1, 256], strides = [1, 1]} : vector<1x1024xf32> to vector<1x256xf32>
    %92 = math.tanh %91 : vector<1x256xf32>
    %93 = vector.extract_strided_slice %78 {offsets = [0, 768], sizes = [1, 256], strides = [1, 1]} : vector<1x1024xf32> to vector<1x256xf32>
    %94 = arith.negf %93 : vector<1x256xf32>
    %95 = math.exp %94 : vector<1x256xf32>
    %cst_63 = arith.constant 1.000000e+00 : f32
    %96 = vector.broadcast %cst_63 : f32 to vector<1x256xf32>
    %97 = arith.addf %96, %95 : vector<1x256xf32>
    %98 = arith.divf %96, %97 : vector<1x256xf32>
    %99 = arith.mulf %90, %72 : vector<1x256xf32>
    %100 = arith.mulf %84, %92 : vector<1x256xf32>
    %101 = arith.addf %99, %100 : vector<1x256xf32>
    %102 = math.tanh %101 : vector<1x256xf32>
    %103 = arith.mulf %98, %102 : vector<1x256xf32>
    %c1_64 = arith.constant 1 : index
    %c0_65 = arith.constant 0 : index
    %104 = vector.load %arg17[%c1_64, %c0_65] : memref<8x256xf32, #tpu.memory_space<vmem>>, vector<1x256xf32>
    tpu.vector_store %arg17[%c1_64, %c0_65], %103 {strides = array<i32>} : memref<8x256xf32, #tpu.memory_space<vmem>>, vector<1x256xf32>,
    %c2_66 = arith.constant 2 : index
    %c0_67 = arith.constant 0 : index
    %105 = vector.load %arg16[%c2_66, %c0_67] : memref<8x1024xf32, #tpu.memory_space<vmem>>, vector<1x1024xf32>
    %cst_68 = arith.constant dense<0.000000e+00> : vector<1x1024xf32>
    %106 = tpu.matmul %103, %20, %cst_68 {dimension_numbers = #tpu.dot_dimension_numbers<[1], [0], [0], [1], [0, 0, 1, 1], [], []>} : vector<1x256xf32>, vector<256x1024xf32>, vector<1x1024xf32> -> vector<1x1024xf32>
    %107 = arith.addf %105, %106 : vector<1x1024xf32>
    %108 = vector.extract_strided_slice %107 {offsets = [0, 0], sizes = [1, 256], strides = [1, 1]} : vector<1x1024xf32> to vector<1x256xf32>
    %109 = arith.negf %108 : vector<1x256xf32>
    %110 = math.exp %109 : vector<1x256xf32>
    %cst_69 = arith.constant 1.000000e+00 : f32
    %111 = vector.broadcast %cst_69 : f32 to vector<1x256xf32>
    %112 = arith.addf %111, %110 : vector<1x256xf32>
    %113 = arith.divf %111, %112 : vector<1x256xf32>
    %114 = vector.extract_strided_slice %107 {offsets = [0, 256], sizes = [1, 256], strides = [1, 1]} : vector<1x1024xf32> to vector<1x256xf32>
    %115 = arith.negf %114 : vector<1x256xf32>
    %116 = math.exp %115 : vector<1x256xf32>
    %cst_70 = arith.constant 1.000000e+00 : f32
    %117 = vector.broadcast %cst_70 : f32 to vector<1x256xf32>
    %118 = arith.addf %117, %116 : vector<1x256xf32>
    %119 = arith.divf %117, %118 : vector<1x256xf32>
    %120 = vector.extract_strided_slice %107 {offsets = [0, 512], sizes = [1, 256], strides = [1, 1]} : vector<1x1024xf32> to vector<1x256xf32>
    %121 = math.tanh %120 : vector<1x256xf32>
    %122 = vector.extract_strided_slice %107 {offsets = [0, 768], sizes = [1, 256], strides = [1, 1]} : vector<1x1024xf32> to vector<1x256xf32>
    %123 = arith.negf %122 : vector<1x256xf32>
    %124 = math.exp %123 : vector<1x256xf32>
    %cst_71 = arith.constant 1.000000e+00 : f32
    %125 = vector.broadcast %cst_71 : f32 to vector<1x256xf32>
    %126 = arith.addf %125, %124 : vector<1x256xf32>
    %127 = arith.divf %125, %126 : vector<1x256xf32>
    %128 = arith.mulf %119, %101 : vector<1x256xf32>
    %129 = arith.mulf %113, %121 : vector<1x256xf32>
    %130 = arith.addf %128, %129 : vector<1x256xf32>
    %131 = math.tanh %130 : vector<1x256xf32>
    %132 = arith.mulf %127, %131 : vector<1x256xf32>
    %c2_72 = arith.constant 2 : index
    %c0_73 = arith.constant 0 : index
    %133 = vector.load %arg17[%c2_72, %c0_73] : memref<8x256xf32, #tpu.memory_space<vmem>>, vector<1x256xf32>
    tpu.vector_store %arg17[%c2_72, %c0_73], %132 {strides = array<i32>} : memref<8x256xf32, #tpu.memory_space<vmem>>, vector<1x256xf32>,
    %c3_74 = arith.constant 3 : index
    %c0_75 = arith.constant 0 : index
    %134 = vector.load %arg16[%c3_74, %c0_75] : memref<8x1024xf32, #tpu.memory_space<vmem>>, vector<1x1024xf32>
    %cst_76 = arith.constant dense<0.000000e+00> : vector<1x1024xf32>
    %135 = tpu.matmul %132, %20, %cst_76 {dimension_numbers = #tpu.dot_dimension_numbers<[1], [0], [0], [1], [0, 0, 1, 1], [], []>} : vector<1x256xf32>, vector<256x1024xf32>, vector<1x1024xf32> -> vector<1x1024xf32>
    %136 = arith.addf %134, %135 : vector<1x1024xf32>
    %137 = vector.extract_strided_slice %136 {offsets = [0, 0], sizes = [1, 256], strides = [1, 1]} : vector<1x1024xf32> to vector<1x256xf32>
    %138 = arith.negf %137 : vector<1x256xf32>
    %139 = math.exp %138 : vector<1x256xf32>
    %cst_77 = arith.constant 1.000000e+00 : f32
    %140 = vector.broadcast %cst_77 : f32 to vector<1x256xf32>
    %141 = arith.addf %140, %139 : vector<1x256xf32>
    %142 = arith.divf %140, %141 : vector<1x256xf32>
    %143 = vector.extract_strided_slice %136 {offsets = [0, 256], sizes = [1, 256], strides = [1, 1]} : vector<1x1024xf32> to vector<1x256xf32>
    %144 = arith.negf %143 : vector<1x256xf32>
    %145 = math.exp %144 : vector<1x256xf32>
    %cst_78 = arith.constant 1.000000e+00 : f32
    %146 = vector.broadcast %cst_78 : f32 to vector<1x256xf32>
    %147 = arith.addf %146, %145 : vector<1x256xf32>
    %148 = arith.divf %146, %147 : vector<1x256xf32>
    %149 = vector.extract_strided_slice %136 {offsets = [0, 512], sizes = [1, 256], strides = [1, 1]} : vector<1x1024xf32> to vector<1x256xf32>
    %150 = math.tanh %149 : vector<1x256xf32>
    %151 = vector.extract_strided_slice %136 {offsets = [0, 768], sizes = [1, 256], strides = [1, 1]} : vector<1x1024xf32> to vector<1x256xf32>
    %152 = arith.negf %151 : vector<1x256xf32>
    %153 = math.exp %152 : vector<1x256xf32>
    %cst_79 = arith.constant 1.000000e+00 : f32
    %154 = vector.broadcast %cst_79 : f32 to vector<1x256xf32>
    %155 = arith.addf %154, %153 : vector<1x256xf32>
    %156 = arith.divf %154, %155 : vector<1x256xf32>
    %157 = arith.mulf %148, %130 : vector<1x256xf32>
    %158 = arith.mulf %142, %150 : vector<1x256xf32>
    %159 = arith.addf %157, %158 : vector<1x256xf32>
    %160 = math.tanh %159 : vector<1x256xf32>
    %161 = arith.mulf %156, %160 : vector<1x256xf32>
    %c3_80 = arith.constant 3 : index
    %c0_81 = arith.constant 0 : index
    %162 = vector.load %arg17[%c3_80, %c0_81] : memref<8x256xf32, #tpu.memory_space<vmem>>, vector<1x256xf32>
    tpu.vector_store %arg17[%c3_80, %c0_81], %161 {strides = array<i32>} : memref<8x256xf32, #tpu.memory_space<vmem>>, vector<1x256xf32>,
    %c4_82 = arith.constant 4 : index
    %c0_83 = arith.constant 0 : index
    %163 = vector.load %arg16[%c4_82, %c0_83] : memref<8x1024xf32, #tpu.memory_space<vmem>>, vector<1x1024xf32>
    %cst_84 = arith.constant dense<0.000000e+00> : vector<1x1024xf32>
    %164 = tpu.matmul %161, %20, %cst_84 {dimension_numbers = #tpu.dot_dimension_numbers<[1], [0], [0], [1], [0, 0, 1, 1], [], []>} : vector<1x256xf32>, vector<256x1024xf32>, vector<1x1024xf32> -> vector<1x1024xf32>
    %165 = arith.addf %163, %164 : vector<1x1024xf32>
    %166 = vector.extract_strided_slice %165 {offsets = [0, 0], sizes = [1, 256], strides = [1, 1]} : vector<1x1024xf32> to vector<1x256xf32>
    %167 = arith.negf %166 : vector<1x256xf32>
    %168 = math.exp %167 : vector<1x256xf32>
    %cst_85 = arith.constant 1.000000e+00 : f32
    %169 = vector.broadcast %cst_85 : f32 to vector<1x256xf32>
    %170 = arith.addf %169, %168 : vector<1x256xf32>
    %171 = arith.divf %169, %170 : vector<1x256xf32>
    %172 = vector.extract_strided_slice %165 {offsets = [0, 256], sizes = [1, 256], strides = [1, 1]} : vector<1x1024xf32> to vector<1x256xf32>
    %173 = arith.negf %172 : vector<1x256xf32>
    %174 = math.exp %173 : vector<1x256xf32>
    %cst_86 = arith.constant 1.000000e+00 : f32
    %175 = vector.broadcast %cst_86 : f32 to vector<1x256xf32>
    %176 = arith.addf %175, %174 : vector<1x256xf32>
    %177 = arith.divf %175, %176 : vector<1x256xf32>
    %178 = vector.extract_strided_slice %165 {offsets = [0, 512], sizes = [1, 256], strides = [1, 1]} : vector<1x1024xf32> to vector<1x256xf32>
    %179 = math.tanh %178 : vector<1x256xf32>
    %180 = vector.extract_strided_slice %165 {offsets = [0, 768], sizes = [1, 256], strides = [1, 1]} : vector<1x1024xf32> to vector<1x256xf32>
    %181 = arith.negf %180 : vector<1x256xf32>
    %182 = math.exp %181 : vector<1x256xf32>
    %cst_87 = arith.constant 1.000000e+00 : f32
    %183 = vector.broadcast %cst_87 : f32 to vector<1x256xf32>
    %184 = arith.addf %183, %182 : vector<1x256xf32>
    %185 = arith.divf %183, %184 : vector<1x256xf32>
    %186 = arith.mulf %177, %159 : vector<1x256xf32>
    %187 = arith.mulf %171, %179 : vector<1x256xf32>
    %188 = arith.addf %186, %187 : vector<1x256xf32>
    %189 = math.tanh %188 : vector<1x256xf32>
    %190 = arith.mulf %185, %189 : vector<1x256xf32>
    %c4_88 = arith.constant 4 : index
    %c0_89 = arith.constant 0 : index
    %191 = vector.load %arg17[%c4_88, %c0_89] : memref<8x256xf32, #tpu.memory_space<vmem>>, vector<1x256xf32>
    tpu.vector_store %arg17[%c4_88, %c0_89], %190 {strides = array<i32>} : memref<8x256xf32, #tpu.memory_space<vmem>>, vector<1x256xf32>,
    %c5_90 = arith.constant 5 : index
    %c0_91 = arith.constant 0 : index
    %192 = vector.load %arg16[%c5_90, %c0_91] : memref<8x1024xf32, #tpu.memory_space<vmem>>, vector<1x1024xf32>
    %cst_92 = arith.constant dense<0.000000e+00> : vector<1x1024xf32>
    %193 = tpu.matmul %190, %20, %cst_92 {dimension_numbers = #tpu.dot_dimension_numbers<[1], [0], [0], [1], [0, 0, 1, 1], [], []>} : vector<1x256xf32>, vector<256x1024xf32>, vector<1x1024xf32> -> vector<1x1024xf32>
    %194 = arith.addf %192, %193 : vector<1x1024xf32>
    %195 = vector.extract_strided_slice %194 {offsets = [0, 0], sizes = [1, 256], strides = [1, 1]} : vector<1x1024xf32> to vector<1x256xf32>
    %196 = arith.negf %195 : vector<1x256xf32>
    %197 = math.exp %196 : vector<1x256xf32>
    %cst_93 = arith.constant 1.000000e+00 : f32
    %198 = vector.broadcast %cst_93 : f32 to vector<1x256xf32>
    %199 = arith.addf %198, %197 : vector<1x256xf32>
    %200 = arith.divf %198, %199 : vector<1x256xf32>
    %201 = vector.extract_strided_slice %194 {offsets = [0, 256], sizes = [1, 256], strides = [1, 1]} : vector<1x1024xf32> to vector<1x256xf32>
    %202 = arith.negf %201 : vector<1x256xf32>
    %203 = math.exp %202 : vector<1x256xf32>
    %cst_94 = arith.constant 1.000000e+00 : f32
    %204 = vector.broadcast %cst_94 : f32 to vector<1x256xf32>
    %205 = arith.addf %204, %203 : vector<1x256xf32>
    %206 = arith.divf %204, %205 : vector<1x256xf32>
    %207 = vector.extract_strided_slice %194 {offsets = [0, 512], sizes = [1, 256], strides = [1, 1]} : vector<1x1024xf32> to vector<1x256xf32>
    %208 = math.tanh %207 : vector<1x256xf32>
    %209 = vector.extract_strided_slice %194 {offsets = [0, 768], sizes = [1, 256], strides = [1, 1]} : vector<1x1024xf32> to vector<1x256xf32>
    %210 = arith.negf %209 : vector<1x256xf32>
    %211 = math.exp %210 : vector<1x256xf32>
    %cst_95 = arith.constant 1.000000e+00 : f32
    %212 = vector.broadcast %cst_95 : f32 to vector<1x256xf32>
    %213 = arith.addf %212, %211 : vector<1x256xf32>
    %214 = arith.divf %212, %213 : vector<1x256xf32>
    %215 = arith.mulf %206, %188 : vector<1x256xf32>
    %216 = arith.mulf %200, %208 : vector<1x256xf32>
    %217 = arith.addf %215, %216 : vector<1x256xf32>
    %218 = math.tanh %217 : vector<1x256xf32>
    %219 = arith.mulf %214, %218 : vector<1x256xf32>
    %c5_96 = arith.constant 5 : index
    %c0_97 = arith.constant 0 : index
    %220 = vector.load %arg17[%c5_96, %c0_97] : memref<8x256xf32, #tpu.memory_space<vmem>>, vector<1x256xf32>
    tpu.vector_store %arg17[%c5_96, %c0_97], %219 {strides = array<i32>} : memref<8x256xf32, #tpu.memory_space<vmem>>, vector<1x256xf32>,
    %c6_98 = arith.constant 6 : index
    %c0_99 = arith.constant 0 : index
    %221 = vector.load %arg16[%c6_98, %c0_99] : memref<8x1024xf32, #tpu.memory_space<vmem>>, vector<1x1024xf32>
    %cst_100 = arith.constant dense<0.000000e+00> : vector<1x1024xf32>
    %222 = tpu.matmul %219, %20, %cst_100 {dimension_numbers = #tpu.dot_dimension_numbers<[1], [0], [0], [1], [0, 0, 1, 1], [], []>} : vector<1x256xf32>, vector<256x1024xf32>, vector<1x1024xf32> -> vector<1x1024xf32>
    %223 = arith.addf %221, %222 : vector<1x1024xf32>
    %224 = vector.extract_strided_slice %223 {offsets = [0, 0], sizes = [1, 256], strides = [1, 1]} : vector<1x1024xf32> to vector<1x256xf32>
    %225 = arith.negf %224 : vector<1x256xf32>
    %226 = math.exp %225 : vector<1x256xf32>
    %cst_101 = arith.constant 1.000000e+00 : f32
    %227 = vector.broadcast %cst_101 : f32 to vector<1x256xf32>
    %228 = arith.addf %227, %226 : vector<1x256xf32>
    %229 = arith.divf %227, %228 : vector<1x256xf32>
    %230 = vector.extract_strided_slice %223 {offsets = [0, 256], sizes = [1, 256], strides = [1, 1]} : vector<1x1024xf32> to vector<1x256xf32>
    %231 = arith.negf %230 : vector<1x256xf32>
    %232 = math.exp %231 : vector<1x256xf32>
    %cst_102 = arith.constant 1.000000e+00 : f32
    %233 = vector.broadcast %cst_102 : f32 to vector<1x256xf32>
    %234 = arith.addf %233, %232 : vector<1x256xf32>
    %235 = arith.divf %233, %234 : vector<1x256xf32>
    %236 = vector.extract_strided_slice %223 {offsets = [0, 512], sizes = [1, 256], strides = [1, 1]} : vector<1x1024xf32> to vector<1x256xf32>
    %237 = math.tanh %236 : vector<1x256xf32>
    %238 = vector.extract_strided_slice %223 {offsets = [0, 768], sizes = [1, 256], strides = [1, 1]} : vector<1x1024xf32> to vector<1x256xf32>
    %239 = arith.negf %238 : vector<1x256xf32>
    %240 = math.exp %239 : vector<1x256xf32>
    %cst_103 = arith.constant 1.000000e+00 : f32
    %241 = vector.broadcast %cst_103 : f32 to vector<1x256xf32>
    %242 = arith.addf %241, %240 : vector<1x256xf32>
    %243 = arith.divf %241, %242 : vector<1x256xf32>
    %244 = arith.mulf %235, %217 : vector<1x256xf32>
    %245 = arith.mulf %229, %237 : vector<1x256xf32>
    %246 = arith.addf %244, %245 : vector<1x256xf32>
    %247 = math.tanh %246 : vector<1x256xf32>
    %248 = arith.mulf %243, %247 : vector<1x256xf32>
    %c6_104 = arith.constant 6 : index
    %c0_105 = arith.constant 0 : index
    %249 = vector.load %arg17[%c6_104, %c0_105] : memref<8x256xf32, #tpu.memory_space<vmem>>, vector<1x256xf32>
    tpu.vector_store %arg17[%c6_104, %c0_105], %248 {strides = array<i32>} : memref<8x256xf32, #tpu.memory_space<vmem>>, vector<1x256xf32>,
    %c7_106 = arith.constant 7 : index
    %c0_107 = arith.constant 0 : index
    %250 = vector.load %arg16[%c7_106, %c0_107] : memref<8x1024xf32, #tpu.memory_space<vmem>>, vector<1x1024xf32>
    %cst_108 = arith.constant dense<0.000000e+00> : vector<1x1024xf32>
    %251 = tpu.matmul %248, %20, %cst_108 {dimension_numbers = #tpu.dot_dimension_numbers<[1], [0], [0], [1], [0, 0, 1, 1], [], []>} : vector<1x256xf32>, vector<256x1024xf32>, vector<1x1024xf32> -> vector<1x1024xf32>
    %252 = arith.addf %250, %251 : vector<1x1024xf32>
    %253 = vector.extract_strided_slice %252 {offsets = [0, 0], sizes = [1, 256], strides = [1, 1]} : vector<1x1024xf32> to vector<1x256xf32>
    %254 = arith.negf %253 : vector<1x256xf32>
    %255 = math.exp %254 : vector<1x256xf32>
    %cst_109 = arith.constant 1.000000e+00 : f32
    %256 = vector.broadcast %cst_109 : f32 to vector<1x256xf32>
    %257 = arith.addf %256, %255 : vector<1x256xf32>
    %258 = arith.divf %256, %257 : vector<1x256xf32>
    %259 = vector.extract_strided_slice %252 {offsets = [0, 256], sizes = [1, 256], strides = [1, 1]} : vector<1x1024xf32> to vector<1x256xf32>
    %260 = arith.negf %259 : vector<1x256xf32>
    %261 = math.exp %260 : vector<1x256xf32>
    %cst_110 = arith.constant 1.000000e+00 : f32
    %262 = vector.broadcast %cst_110 : f32 to vector<1x256xf32>
    %263 = arith.addf %262, %261 : vector<1x256xf32>
    %264 = arith.divf %262, %263 : vector<1x256xf32>
    %265 = vector.extract_strided_slice %252 {offsets = [0, 512], sizes = [1, 256], strides = [1, 1]} : vector<1x1024xf32> to vector<1x256xf32>
    %266 = math.tanh %265 : vector<1x256xf32>
    %267 = vector.extract_strided_slice %252 {offsets = [0, 768], sizes = [1, 256], strides = [1, 1]} : vector<1x1024xf32> to vector<1x256xf32>
    %268 = arith.negf %267 : vector<1x256xf32>
    %269 = math.exp %268 : vector<1x256xf32>
    %cst_111 = arith.constant 1.000000e+00 : f32
    %270 = vector.broadcast %cst_111 : f32 to vector<1x256xf32>
    %271 = arith.addf %270, %269 : vector<1x256xf32>
    %272 = arith.divf %270, %271 : vector<1x256xf32>
    %273 = arith.mulf %264, %246 : vector<1x256xf32>
    %274 = arith.mulf %258, %266 : vector<1x256xf32>
    %275 = arith.addf %273, %274 : vector<1x256xf32>
    %276 = math.tanh %275 : vector<1x256xf32>
    %277 = arith.mulf %272, %276 : vector<1x256xf32>
    %c7_112 = arith.constant 7 : index
    %c0_113 = arith.constant 0 : index
    %278 = vector.load %arg17[%c7_112, %c0_113] : memref<8x256xf32, #tpu.memory_space<vmem>>, vector<1x256xf32>
    tpu.vector_store %arg17[%c7_112, %c0_113], %277 {strides = array<i32>} : memref<8x256xf32, #tpu.memory_space<vmem>>, vector<1x256xf32>,
    %c0_114 = arith.constant 0 : index
    %c0_115 = arith.constant 0 : index
    %279 = vector.load %arg13[%c0_114, %c0_115] : memref<2x256xf32, #tpu.memory_space<vmem>>, vector<1x256xf32>
    tpu.vector_store %arg13[%c0_114, %c0_115], %277 {strides = array<i32>} : memref<2x256xf32, #tpu.memory_space<vmem>>, vector<1x256xf32>,
    %c0_116 = arith.constant 0 : index
    %c0_117 = arith.constant 0 : index
    %280 = vector.load %arg14[%c0_116, %c0_117] : memref<2x256xf32, #tpu.memory_space<vmem>>, vector<1x256xf32>
    tpu.vector_store %arg14[%c0_116, %c0_117], %275 {strides = array<i32>} : memref<2x256xf32, #tpu.memory_space<vmem>>, vector<1x256xf32>,
    %c0_118 = arith.constant 0 : index
    %c0_119 = arith.constant 0 : index
    %281 = vector.load %arg7[%c0_118, %c0_119] : memref<128x512xf32, #tpu.memory_space<vmem>>, vector<128x512xf32>
    %c0_120 = arith.constant 0 : index
    %c0_121 = arith.constant 0 : index
    %282 = vector.load %arg8[%c0_120, %c0_121] : memref<128x512xf32, #tpu.memory_space<vmem>>, vector<128x512xf32>
    %c0_122 = arith.constant 0 : index
    %c0_123 = arith.constant 0 : index
    %283 = vector.load %arg9[%c0_122, %c0_123] : memref<1x512xf32, #tpu.memory_space<vmem>>, vector<1x512xf32>
    %c0_124 = arith.constant 0 : index
    %c0_125 = arith.constant 0 : index
    %284 = vector.load %arg10[%c0_124, %c0_125] : memref<1x512xf32, #tpu.memory_space<vmem>>, vector<1x512xf32>
    %c0_126 = arith.constant 0 : index
    %c0_127 = arith.constant 0 : index
    %285 = vector.load %arg11[%c0_126, %c0_127] : memref<256x1024xf32, #tpu.memory_space<vmem>>, vector<256x1024xf32>
    %c0_128 = arith.constant 0 : index
    %c0_129 = arith.constant 0 : index
    %286 = vector.load %arg17[%c0_128, %c0_129] : memref<8x256xf32, #tpu.memory_space<vmem>>, vector<8x128xf32>
    %c0_130 = arith.constant 0 : index
    %c128_131 = arith.constant 128 : index
    %287 = vector.load %arg17[%c0_130, %c128_131] : memref<8x256xf32, #tpu.memory_space<vmem>>, vector<8x128xf32>
    %cst_132 = arith.constant dense<0.000000e+00> : vector<8x512xf32>
    %288 = tpu.matmul %286, %281, %cst_132 {dimension_numbers = #tpu.dot_dimension_numbers<[1], [0], [0], [1], [0, 0, 1, 1], [], []>} : vector<8x128xf32>, vector<128x512xf32>, vector<8x512xf32> -> vector<8x512xf32>
    %289 = vector.broadcast %283 : vector<1x512xf32> to vector<8x512xf32>
    %290 = arith.addf %288, %289 : vector<8x512xf32>
    %cst_133 = arith.constant dense<0.000000e+00> : vector<8x512xf32>
    %291 = tpu.matmul %287, %282, %cst_133 {dimension_numbers = #tpu.dot_dimension_numbers<[1], [0], [0], [1], [0, 0, 1, 1], [], []>} : vector<8x128xf32>, vector<128x512xf32>, vector<8x512xf32> -> vector<8x512xf32>
    %292 = vector.broadcast %284 : vector<1x512xf32> to vector<8x512xf32>
    %293 = arith.addf %291, %292 : vector<8x512xf32>
    %294 = vector.extract_strided_slice %290 {offsets = [0, 0], sizes = [8, 128], strides = [1, 1]} : vector<8x512xf32> to vector<8x128xf32>
    %c0_134 = arith.constant 0 : index
    %c0_135 = arith.constant 0 : index
    %295 = vector.load %arg16[%c0_134, %c0_135] : memref<8x1024xf32, #tpu.memory_space<vmem>>, vector<8x128xf32>
    tpu.vector_store %arg16[%c0_134, %c0_135], %294 {strides = array<i32>} : memref<8x1024xf32, #tpu.memory_space<vmem>>, vector<8x128xf32>,
    %296 = vector.extract_strided_slice %293 {offsets = [0, 0], sizes = [8, 128], strides = [1, 1]} : vector<8x512xf32> to vector<8x128xf32>
    %c0_136 = arith.constant 0 : index
    %c128_137 = arith.constant 128 : index
    %297 = vector.load %arg16[%c0_136, %c128_137] : memref<8x1024xf32, #tpu.memory_space<vmem>>, vector<8x128xf32>
    tpu.vector_store %arg16[%c0_136, %c128_137], %296 {strides = array<i32>} : memref<8x1024xf32, #tpu.memory_space<vmem>>, vector<8x128xf32>,
    %298 = vector.extract_strided_slice %290 {offsets = [0, 128], sizes = [8, 128], strides = [1, 1]} : vector<8x512xf32> to vector<8x128xf32>
    %c0_138 = arith.constant 0 : index
    %c256_139 = arith.constant 256 : index
    %299 = vector.load %arg16[%c0_138, %c256_139] : memref<8x1024xf32, #tpu.memory_space<vmem>>, vector<8x128xf32>
    tpu.vector_store %arg16[%c0_138, %c256_139], %298 {strides = array<i32>} : memref<8x1024xf32, #tpu.memory_space<vmem>>, vector<8x128xf32>,
    %300 = vector.extract_strided_slice %293 {offsets = [0, 128], sizes = [8, 128], strides = [1, 1]} : vector<8x512xf32> to vector<8x128xf32>
    %c0_140 = arith.constant 0 : index
    %c384_141 = arith.constant 384 : index
    %301 = vector.load %arg16[%c0_140, %c384_141] : memref<8x1024xf32, #tpu.memory_space<vmem>>, vector<8x128xf32>
    tpu.vector_store %arg16[%c0_140, %c384_141], %300 {strides = array<i32>} : memref<8x1024xf32, #tpu.memory_space<vmem>>, vector<8x128xf32>,
    %302 = vector.extract_strided_slice %290 {offsets = [0, 256], sizes = [8, 128], strides = [1, 1]} : vector<8x512xf32> to vector<8x128xf32>
    %c0_142 = arith.constant 0 : index
    %c512_143 = arith.constant 512 : index
    %303 = vector.load %arg16[%c0_142, %c512_143] : memref<8x1024xf32, #tpu.memory_space<vmem>>, vector<8x128xf32>
    tpu.vector_store %arg16[%c0_142, %c512_143], %302 {strides = array<i32>} : memref<8x1024xf32, #tpu.memory_space<vmem>>, vector<8x128xf32>,
    %304 = vector.extract_strided_slice %293 {offsets = [0, 256], sizes = [8, 128], strides = [1, 1]} : vector<8x512xf32> to vector<8x128xf32>
    %c0_144 = arith.constant 0 : index
    %c640_145 = arith.constant 640 : index
    %305 = vector.load %arg16[%c0_144, %c640_145] : memref<8x1024xf32, #tpu.memory_space<vmem>>, vector<8x128xf32>
    tpu.vector_store %arg16[%c0_144, %c640_145], %304 {strides = array<i32>} : memref<8x1024xf32, #tpu.memory_space<vmem>>, vector<8x128xf32>,
    %306 = vector.extract_strided_slice %290 {offsets = [0, 384], sizes = [8, 128], strides = [1, 1]} : vector<8x512xf32> to vector<8x128xf32>
    %c0_146 = arith.constant 0 : index
    %c768_147 = arith.constant 768 : index
    %307 = vector.load %arg16[%c0_146, %c768_147] : memref<8x1024xf32, #tpu.memory_space<vmem>>, vector<8x128xf32>
    tpu.vector_store %arg16[%c0_146, %c768_147], %306 {strides = array<i32>} : memref<8x1024xf32, #tpu.memory_space<vmem>>, vector<8x128xf32>,
    %308 = vector.extract_strided_slice %293 {offsets = [0, 384], sizes = [8, 128], strides = [1, 1]} : vector<8x512xf32> to vector<8x128xf32>
    %c0_148 = arith.constant 0 : index
    %c896_149 = arith.constant 896 : index
    %309 = vector.load %arg16[%c0_148, %c896_149] : memref<8x1024xf32, #tpu.memory_space<vmem>>, vector<8x128xf32>
    tpu.vector_store %arg16[%c0_148, %c896_149], %308 {strides = array<i32>} : memref<8x1024xf32, #tpu.memory_space<vmem>>, vector<8x128xf32>,
    %cst_150 = arith.constant 0.000000e+00 : f32
    %310 = vector.broadcast %cst_150 : f32 to vector<1x256xf32>
    %cst_151 = arith.constant 0.000000e+00 : f32
    %311 = vector.broadcast %cst_151 : f32 to vector<1x256xf32>
    %c0_152 = arith.constant 0 : index
    %c0_153 = arith.constant 0 : index
    %312 = vector.load %arg16[%c0_152, %c0_153] : memref<8x1024xf32, #tpu.memory_space<vmem>>, vector<1x1024xf32>
    %cst_154 = arith.constant dense<0.000000e+00> : vector<1x1024xf32>
    %313 = tpu.matmul %310, %285, %cst_154 {dimension_numbers = #tpu.dot_dimension_numbers<[1], [0], [0], [1], [0, 0, 1, 1], [], []>} : vector<1x256xf32>, vector<256x1024xf32>, vector<1x1024xf32> -> vector<1x1024xf32>
    %314 = arith.addf %312, %313 : vector<1x1024xf32>
    %315 = vector.extract_strided_slice %314 {offsets = [0, 0], sizes = [1, 256], strides = [1, 1]} : vector<1x1024xf32> to vector<1x256xf32>
    %316 = arith.negf %315 : vector<1x256xf32>
    %317 = math.exp %316 : vector<1x256xf32>
    %cst_155 = arith.constant 1.000000e+00 : f32
    %318 = vector.broadcast %cst_155 : f32 to vector<1x256xf32>
    %319 = arith.addf %318, %317 : vector<1x256xf32>
    %320 = arith.divf %318, %319 : vector<1x256xf32>
    %321 = vector.extract_strided_slice %314 {offsets = [0, 256], sizes = [1, 256], strides = [1, 1]} : vector<1x1024xf32> to vector<1x256xf32>
    %322 = arith.negf %321 : vector<1x256xf32>
    %323 = math.exp %322 : vector<1x256xf32>
    %cst_156 = arith.constant 1.000000e+00 : f32
    %324 = vector.broadcast %cst_156 : f32 to vector<1x256xf32>
    %325 = arith.addf %324, %323 : vector<1x256xf32>
    %326 = arith.divf %324, %325 : vector<1x256xf32>
    %327 = vector.extract_strided_slice %314 {offsets = [0, 512], sizes = [1, 256], strides = [1, 1]} : vector<1x1024xf32> to vector<1x256xf32>
    %328 = math.tanh %327 : vector<1x256xf32>
    %329 = vector.extract_strided_slice %314 {offsets = [0, 768], sizes = [1, 256], strides = [1, 1]} : vector<1x1024xf32> to vector<1x256xf32>
    %330 = arith.negf %329 : vector<1x256xf32>
    %331 = math.exp %330 : vector<1x256xf32>
    %cst_157 = arith.constant 1.000000e+00 : f32
    %332 = vector.broadcast %cst_157 : f32 to vector<1x256xf32>
    %333 = arith.addf %332, %331 : vector<1x256xf32>
    %334 = arith.divf %332, %333 : vector<1x256xf32>
    %335 = arith.mulf %326, %311 : vector<1x256xf32>
    %336 = arith.mulf %320, %328 : vector<1x256xf32>
    %337 = arith.addf %335, %336 : vector<1x256xf32>
    %338 = math.tanh %337 : vector<1x256xf32>
    %339 = arith.mulf %334, %338 : vector<1x256xf32>
    %340 = vector.extract_strided_slice %339 {offsets = [0, 0], sizes = [1, 128], strides = [1, 1]} : vector<1x256xf32> to vector<1x128xf32>
    %c0_158 = arith.constant 0 : index
    %c0_159 = arith.constant 0 : index
    %341 = vector.load %arg12[%c0_158, %c0_159] : memref<8x256xf32, #tpu.memory_space<vmem>>, vector<1x128xf32>
    tpu.vector_store %arg12[%c0_158, %c0_159], %340 {strides = array<i32>} : memref<8x256xf32, #tpu.memory_space<vmem>>, vector<1x128xf32>,
    %342 = vector.extract_strided_slice %339 {offsets = [0, 128], sizes = [1, 128], strides = [1, 1]} : vector<1x256xf32> to vector<1x128xf32>
    %c7_160 = arith.constant 7 : index
    %c128_161 = arith.constant 128 : index
    %343 = vector.load %arg12[%c7_160, %c128_161] : memref<8x256xf32, #tpu.memory_space<vmem>>, vector<1x128xf32>
    tpu.vector_store %arg12[%c7_160, %c128_161], %342 {strides = array<i32>} : memref<8x256xf32, #tpu.memory_space<vmem>>, vector<1x128xf32>,
    %c1_162 = arith.constant 1 : index
    %c0_163 = arith.constant 0 : index
    %344 = vector.load %arg16[%c1_162, %c0_163] : memref<8x1024xf32, #tpu.memory_space<vmem>>, vector<1x1024xf32>
    %cst_164 = arith.constant dense<0.000000e+00> : vector<1x1024xf32>
    %345 = tpu.matmul %339, %285, %cst_164 {dimension_numbers = #tpu.dot_dimension_numbers<[1], [0], [0], [1], [0, 0, 1, 1], [], []>} : vector<1x256xf32>, vector<256x1024xf32>, vector<1x1024xf32> -> vector<1x1024xf32>
    %346 = arith.addf %344, %345 : vector<1x1024xf32>
    %347 = vector.extract_strided_slice %346 {offsets = [0, 0], sizes = [1, 256], strides = [1, 1]} : vector<1x1024xf32> to vector<1x256xf32>
    %348 = arith.negf %347 : vector<1x256xf32>
    %349 = math.exp %348 : vector<1x256xf32>
    %cst_165 = arith.constant 1.000000e+00 : f32
    %350 = vector.broadcast %cst_165 : f32 to vector<1x256xf32>
    %351 = arith.addf %350, %349 : vector<1x256xf32>
    %352 = arith.divf %350, %351 : vector<1x256xf32>
    %353 = vector.extract_strided_slice %346 {offsets = [0, 256], sizes = [1, 256], strides = [1, 1]} : vector<1x1024xf32> to vector<1x256xf32>
    %354 = arith.negf %353 : vector<1x256xf32>
    %355 = math.exp %354 : vector<1x256xf32>
    %cst_166 = arith.constant 1.000000e+00 : f32
    %356 = vector.broadcast %cst_166 : f32 to vector<1x256xf32>
    %357 = arith.addf %356, %355 : vector<1x256xf32>
    %358 = arith.divf %356, %357 : vector<1x256xf32>
    %359 = vector.extract_strided_slice %346 {offsets = [0, 512], sizes = [1, 256], strides = [1, 1]} : vector<1x1024xf32> to vector<1x256xf32>
    %360 = math.tanh %359 : vector<1x256xf32>
    %361 = vector.extract_strided_slice %346 {offsets = [0, 768], sizes = [1, 256], strides = [1, 1]} : vector<1x1024xf32> to vector<1x256xf32>
    %362 = arith.negf %361 : vector<1x256xf32>
    %363 = math.exp %362 : vector<1x256xf32>
    %cst_167 = arith.constant 1.000000e+00 : f32
    %364 = vector.broadcast %cst_167 : f32 to vector<1x256xf32>
    %365 = arith.addf %364, %363 : vector<1x256xf32>
    %366 = arith.divf %364, %365 : vector<1x256xf32>
    %367 = arith.mulf %358, %337 : vector<1x256xf32>
    %368 = arith.mulf %352, %360 : vector<1x256xf32>
    %369 = arith.addf %367, %368 : vector<1x256xf32>
    %370 = math.tanh %369 : vector<1x256xf32>
    %371 = arith.mulf %366, %370 : vector<1x256xf32>
    %372 = vector.extract_strided_slice %371 {offsets = [0, 0], sizes = [1, 128], strides = [1, 1]} : vector<1x256xf32> to vector<1x128xf32>
    %c1_168 = arith.constant 1 : index
    %c0_169 = arith.constant 0 : index
    %373 = vector.load %arg12[%c1_168, %c0_169] : memref<8x256xf32, #tpu.memory_space<vmem>>, vector<1x128xf32>
    tpu.vector_store %arg12[%c1_168, %c0_169], %372 {strides = array<i32>} : memref<8x256xf32, #tpu.memory_space<vmem>>, vector<1x128xf32>,
    %374 = vector.extract_strided_slice %371 {offsets = [0, 128], sizes = [1, 128], strides = [1, 1]} : vector<1x256xf32> to vector<1x128xf32>
    %c6_170 = arith.constant 6 : index
    %c128_171 = arith.constant 128 : index
    %375 = vector.load %arg12[%c6_170, %c128_171] : memref<8x256xf32, #tpu.memory_space<vmem>>, vector<1x128xf32>
    tpu.vector_store %arg12[%c6_170, %c128_171], %374 {strides = array<i32>} : memref<8x256xf32, #tpu.memory_space<vmem>>, vector<1x128xf32>,
    %c2_172 = arith.constant 2 : index
    %c0_173 = arith.constant 0 : index
    %376 = vector.load %arg16[%c2_172, %c0_173] : memref<8x1024xf32, #tpu.memory_space<vmem>>, vector<1x1024xf32>
    %cst_174 = arith.constant dense<0.000000e+00> : vector<1x1024xf32>
    %377 = tpu.matmul %371, %285, %cst_174 {dimension_numbers = #tpu.dot_dimension_numbers<[1], [0], [0], [1], [0, 0, 1, 1], [], []>} : vector<1x256xf32>, vector<256x1024xf32>, vector<1x1024xf32> -> vector<1x1024xf32>
    %378 = arith.addf %376, %377 : vector<1x1024xf32>
    %379 = vector.extract_strided_slice %378 {offsets = [0, 0], sizes = [1, 256], strides = [1, 1]} : vector<1x1024xf32> to vector<1x256xf32>
    %380 = arith.negf %379 : vector<1x256xf32>
    %381 = math.exp %380 : vector<1x256xf32>
    %cst_175 = arith.constant 1.000000e+00 : f32
    %382 = vector.broadcast %cst_175 : f32 to vector<1x256xf32>
    %383 = arith.addf %382, %381 : vector<1x256xf32>
    %384 = arith.divf %382, %383 : vector<1x256xf32>
    %385 = vector.extract_strided_slice %378 {offsets = [0, 256], sizes = [1, 256], strides = [1, 1]} : vector<1x1024xf32> to vector<1x256xf32>
    %386 = arith.negf %385 : vector<1x256xf32>
    %387 = math.exp %386 : vector<1x256xf32>
    %cst_176 = arith.constant 1.000000e+00 : f32
    %388 = vector.broadcast %cst_176 : f32 to vector<1x256xf32>
    %389 = arith.addf %388, %387 : vector<1x256xf32>
    %390 = arith.divf %388, %389 : vector<1x256xf32>
    %391 = vector.extract_strided_slice %378 {offsets = [0, 512], sizes = [1, 256], strides = [1, 1]} : vector<1x1024xf32> to vector<1x256xf32>
    %392 = math.tanh %391 : vector<1x256xf32>
    %393 = vector.extract_strided_slice %378 {offsets = [0, 768], sizes = [1, 256], strides = [1, 1]} : vector<1x1024xf32> to vector<1x256xf32>
    %394 = arith.negf %393 : vector<1x256xf32>
    %395 = math.exp %394 : vector<1x256xf32>
    %cst_177 = arith.constant 1.000000e+00 : f32
    %396 = vector.broadcast %cst_177 : f32 to vector<1x256xf32>
    %397 = arith.addf %396, %395 : vector<1x256xf32>
    %398 = arith.divf %396, %397 : vector<1x256xf32>
    %399 = arith.mulf %390, %369 : vector<1x256xf32>
    %400 = arith.mulf %384, %392 : vector<1x256xf32>
    %401 = arith.addf %399, %400 : vector<1x256xf32>
    %402 = math.tanh %401 : vector<1x256xf32>
    %403 = arith.mulf %398, %402 : vector<1x256xf32>
    %404 = vector.extract_strided_slice %403 {offsets = [0, 0], sizes = [1, 128], strides = [1, 1]} : vector<1x256xf32> to vector<1x128xf32>
    %c2_178 = arith.constant 2 : index
    %c0_179 = arith.constant 0 : index
    %405 = vector.load %arg12[%c2_178, %c0_179] : memref<8x256xf32, #tpu.memory_space<vmem>>, vector<1x128xf32>
    tpu.vector_store %arg12[%c2_178, %c0_179], %404 {strides = array<i32>} : memref<8x256xf32, #tpu.memory_space<vmem>>, vector<1x128xf32>,
    %406 = vector.extract_strided_slice %403 {offsets = [0, 128], sizes = [1, 128], strides = [1, 1]} : vector<1x256xf32> to vector<1x128xf32>
    %c5_180 = arith.constant 5 : index
    %c128_181 = arith.constant 128 : index
    %407 = vector.load %arg12[%c5_180, %c128_181] : memref<8x256xf32, #tpu.memory_space<vmem>>, vector<1x128xf32>
    tpu.vector_store %arg12[%c5_180, %c128_181], %406 {strides = array<i32>} : memref<8x256xf32, #tpu.memory_space<vmem>>, vector<1x128xf32>,
    %c3_182 = arith.constant 3 : index
    %c0_183 = arith.constant 0 : index
    %408 = vector.load %arg16[%c3_182, %c0_183] : memref<8x1024xf32, #tpu.memory_space<vmem>>, vector<1x1024xf32>
    %cst_184 = arith.constant dense<0.000000e+00> : vector<1x1024xf32>
    %409 = tpu.matmul %403, %285, %cst_184 {dimension_numbers = #tpu.dot_dimension_numbers<[1], [0], [0], [1], [0, 0, 1, 1], [], []>} : vector<1x256xf32>, vector<256x1024xf32>, vector<1x1024xf32> -> vector<1x1024xf32>
    %410 = arith.addf %408, %409 : vector<1x1024xf32>
    %411 = vector.extract_strided_slice %410 {offsets = [0, 0], sizes = [1, 256], strides = [1, 1]} : vector<1x1024xf32> to vector<1x256xf32>
    %412 = arith.negf %411 : vector<1x256xf32>
    %413 = math.exp %412 : vector<1x256xf32>
    %cst_185 = arith.constant 1.000000e+00 : f32
    %414 = vector.broadcast %cst_185 : f32 to vector<1x256xf32>
    %415 = arith.addf %414, %413 : vector<1x256xf32>
    %416 = arith.divf %414, %415 : vector<1x256xf32>
    %417 = vector.extract_strided_slice %410 {offsets = [0, 256], sizes = [1, 256], strides = [1, 1]} : vector<1x1024xf32> to vector<1x256xf32>
    %418 = arith.negf %417 : vector<1x256xf32>
    %419 = math.exp %418 : vector<1x256xf32>
    %cst_186 = arith.constant 1.000000e+00 : f32
    %420 = vector.broadcast %cst_186 : f32 to vector<1x256xf32>
    %421 = arith.addf %420, %419 : vector<1x256xf32>
    %422 = arith.divf %420, %421 : vector<1x256xf32>
    %423 = vector.extract_strided_slice %410 {offsets = [0, 512], sizes = [1, 256], strides = [1, 1]} : vector<1x1024xf32> to vector<1x256xf32>
    %424 = math.tanh %423 : vector<1x256xf32>
    %425 = vector.extract_strided_slice %410 {offsets = [0, 768], sizes = [1, 256], strides = [1, 1]} : vector<1x1024xf32> to vector<1x256xf32>
    %426 = arith.negf %425 : vector<1x256xf32>
    %427 = math.exp %426 : vector<1x256xf32>
    %cst_187 = arith.constant 1.000000e+00 : f32
    %428 = vector.broadcast %cst_187 : f32 to vector<1x256xf32>
    %429 = arith.addf %428, %427 : vector<1x256xf32>
    %430 = arith.divf %428, %429 : vector<1x256xf32>
    %431 = arith.mulf %422, %401 : vector<1x256xf32>
    %432 = arith.mulf %416, %424 : vector<1x256xf32>
    %433 = arith.addf %431, %432 : vector<1x256xf32>
    %434 = math.tanh %433 : vector<1x256xf32>
    %435 = arith.mulf %430, %434 : vector<1x256xf32>
    %436 = vector.extract_strided_slice %435 {offsets = [0, 0], sizes = [1, 128], strides = [1, 1]} : vector<1x256xf32> to vector<1x128xf32>
    %c3_188 = arith.constant 3 : index
    %c0_189 = arith.constant 0 : index
    %437 = vector.load %arg12[%c3_188, %c0_189] : memref<8x256xf32, #tpu.memory_space<vmem>>, vector<1x128xf32>
    tpu.vector_store %arg12[%c3_188, %c0_189], %436 {strides = array<i32>} : memref<8x256xf32, #tpu.memory_space<vmem>>, vector<1x128xf32>,
    %438 = vector.extract_strided_slice %435 {offsets = [0, 128], sizes = [1, 128], strides = [1, 1]} : vector<1x256xf32> to vector<1x128xf32>
    %c4_190 = arith.constant 4 : index
    %c128_191 = arith.constant 128 : index
    %439 = vector.load %arg12[%c4_190, %c128_191] : memref<8x256xf32, #tpu.memory_space<vmem>>, vector<1x128xf32>
    tpu.vector_store %arg12[%c4_190, %c128_191], %438 {strides = array<i32>} : memref<8x256xf32, #tpu.memory_space<vmem>>, vector<1x128xf32>,
    %c4_192 = arith.constant 4 : index
    %c0_193 = arith.constant 0 : index
    %440 = vector.load %arg16[%c4_192, %c0_193] : memref<8x1024xf32, #tpu.memory_space<vmem>>, vector<1x1024xf32>
    %cst_194 = arith.constant dense<0.000000e+00> : vector<1x1024xf32>
    %441 = tpu.matmul %435, %285, %cst_194 {dimension_numbers = #tpu.dot_dimension_numbers<[1], [0], [0], [1], [0, 0, 1, 1], [], []>} : vector<1x256xf32>, vector<256x1024xf32>, vector<1x1024xf32> -> vector<1x1024xf32>
    %442 = arith.addf %440, %441 : vector<1x1024xf32>
    %443 = vector.extract_strided_slice %442 {offsets = [0, 0], sizes = [1, 256], strides = [1, 1]} : vector<1x1024xf32> to vector<1x256xf32>
    %444 = arith.negf %443 : vector<1x256xf32>
    %445 = math.exp %444 : vector<1x256xf32>
    %cst_195 = arith.constant 1.000000e+00 : f32
    %446 = vector.broadcast %cst_195 : f32 to vector<1x256xf32>
    %447 = arith.addf %446, %445 : vector<1x256xf32>
    %448 = arith.divf %446, %447 : vector<1x256xf32>
    %449 = vector.extract_strided_slice %442 {offsets = [0, 256], sizes = [1, 256], strides = [1, 1]} : vector<1x1024xf32> to vector<1x256xf32>
    %450 = arith.negf %449 : vector<1x256xf32>
    %451 = math.exp %450 : vector<1x256xf32>
    %cst_196 = arith.constant 1.000000e+00 : f32
    %452 = vector.broadcast %cst_196 : f32 to vector<1x256xf32>
    %453 = arith.addf %452, %451 : vector<1x256xf32>
    %454 = arith.divf %452, %453 : vector<1x256xf32>
    %455 = vector.extract_strided_slice %442 {offsets = [0, 512], sizes = [1, 256], strides = [1, 1]} : vector<1x1024xf32> to vector<1x256xf32>
    %456 = math.tanh %455 : vector<1x256xf32>
    %457 = vector.extract_strided_slice %442 {offsets = [0, 768], sizes = [1, 256], strides = [1, 1]} : vector<1x1024xf32> to vector<1x256xf32>
    %458 = arith.negf %457 : vector<1x256xf32>
    %459 = math.exp %458 : vector<1x256xf32>
    %cst_197 = arith.constant 1.000000e+00 : f32
    %460 = vector.broadcast %cst_197 : f32 to vector<1x256xf32>
    %461 = arith.addf %460, %459 : vector<1x256xf32>
    %462 = arith.divf %460, %461 : vector<1x256xf32>
    %463 = arith.mulf %454, %433 : vector<1x256xf32>
    %464 = arith.mulf %448, %456 : vector<1x256xf32>
    %465 = arith.addf %463, %464 : vector<1x256xf32>
    %466 = math.tanh %465 : vector<1x256xf32>
    %467 = arith.mulf %462, %466 : vector<1x256xf32>
    %468 = vector.extract_strided_slice %467 {offsets = [0, 0], sizes = [1, 128], strides = [1, 1]} : vector<1x256xf32> to vector<1x128xf32>
    %c4_198 = arith.constant 4 : index
    %c0_199 = arith.constant 0 : index
    %469 = vector.load %arg12[%c4_198, %c0_199] : memref<8x256xf32, #tpu.memory_space<vmem>>, vector<1x128xf32>
    tpu.vector_store %arg12[%c4_198, %c0_199], %468 {strides = array<i32>} : memref<8x256xf32, #tpu.memory_space<vmem>>, vector<1x128xf32>,
    %470 = vector.extract_strided_slice %467 {offsets = [0, 128], sizes = [1, 128], strides = [1, 1]} : vector<1x256xf32> to vector<1x128xf32>
    %c3_200 = arith.constant 3 : index
    %c128_201 = arith.constant 128 : index
    %471 = vector.load %arg12[%c3_200, %c128_201] : memref<8x256xf32, #tpu.memory_space<vmem>>, vector<1x128xf32>
    tpu.vector_store %arg12[%c3_200, %c128_201], %470 {strides = array<i32>} : memref<8x256xf32, #tpu.memory_space<vmem>>, vector<1x128xf32>,
    %c5_202 = arith.constant 5 : index
    %c0_203 = arith.constant 0 : index
    %472 = vector.load %arg16[%c5_202, %c0_203] : memref<8x1024xf32, #tpu.memory_space<vmem>>, vector<1x1024xf32>
    %cst_204 = arith.constant dense<0.000000e+00> : vector<1x1024xf32>
    %473 = tpu.matmul %467, %285, %cst_204 {dimension_numbers = #tpu.dot_dimension_numbers<[1], [0], [0], [1], [0, 0, 1, 1], [], []>} : vector<1x256xf32>, vector<256x1024xf32>, vector<1x1024xf32> -> vector<1x1024xf32>
    %474 = arith.addf %472, %473 : vector<1x1024xf32>
    %475 = vector.extract_strided_slice %474 {offsets = [0, 0], sizes = [1, 256], strides = [1, 1]} : vector<1x1024xf32> to vector<1x256xf32>
    %476 = arith.negf %475 : vector<1x256xf32>
    %477 = math.exp %476 : vector<1x256xf32>
    %cst_205 = arith.constant 1.000000e+00 : f32
    %478 = vector.broadcast %cst_205 : f32 to vector<1x256xf32>
    %479 = arith.addf %478, %477 : vector<1x256xf32>
    %480 = arith.divf %478, %479 : vector<1x256xf32>
    %481 = vector.extract_strided_slice %474 {offsets = [0, 256], sizes = [1, 256], strides = [1, 1]} : vector<1x1024xf32> to vector<1x256xf32>
    %482 = arith.negf %481 : vector<1x256xf32>
    %483 = math.exp %482 : vector<1x256xf32>
    %cst_206 = arith.constant 1.000000e+00 : f32
    %484 = vector.broadcast %cst_206 : f32 to vector<1x256xf32>
    %485 = arith.addf %484, %483 : vector<1x256xf32>
    %486 = arith.divf %484, %485 : vector<1x256xf32>
    %487 = vector.extract_strided_slice %474 {offsets = [0, 512], sizes = [1, 256], strides = [1, 1]} : vector<1x1024xf32> to vector<1x256xf32>
    %488 = math.tanh %487 : vector<1x256xf32>
    %489 = vector.extract_strided_slice %474 {offsets = [0, 768], sizes = [1, 256], strides = [1, 1]} : vector<1x1024xf32> to vector<1x256xf32>
    %490 = arith.negf %489 : vector<1x256xf32>
    %491 = math.exp %490 : vector<1x256xf32>
    %cst_207 = arith.constant 1.000000e+00 : f32
    %492 = vector.broadcast %cst_207 : f32 to vector<1x256xf32>
    %493 = arith.addf %492, %491 : vector<1x256xf32>
    %494 = arith.divf %492, %493 : vector<1x256xf32>
    %495 = arith.mulf %486, %465 : vector<1x256xf32>
    %496 = arith.mulf %480, %488 : vector<1x256xf32>
    %497 = arith.addf %495, %496 : vector<1x256xf32>
    %498 = math.tanh %497 : vector<1x256xf32>
    %499 = arith.mulf %494, %498 : vector<1x256xf32>
    %500 = vector.extract_strided_slice %499 {offsets = [0, 0], sizes = [1, 128], strides = [1, 1]} : vector<1x256xf32> to vector<1x128xf32>
    %c5_208 = arith.constant 5 : index
    %c0_209 = arith.constant 0 : index
    %501 = vector.load %arg12[%c5_208, %c0_209] : memref<8x256xf32, #tpu.memory_space<vmem>>, vector<1x128xf32>
    tpu.vector_store %arg12[%c5_208, %c0_209], %500 {strides = array<i32>} : memref<8x256xf32, #tpu.memory_space<vmem>>, vector<1x128xf32>,
    %502 = vector.extract_strided_slice %499 {offsets = [0, 128], sizes = [1, 128], strides = [1, 1]} : vector<1x256xf32> to vector<1x128xf32>
    %c2_210 = arith.constant 2 : index
    %c128_211 = arith.constant 128 : index
    %503 = vector.load %arg12[%c2_210, %c128_211] : memref<8x256xf32, #tpu.memory_space<vmem>>, vector<1x128xf32>
    tpu.vector_store %arg12[%c2_210, %c128_211], %502 {strides = array<i32>} : memref<8x256xf32, #tpu.memory_space<vmem>>, vector<1x128xf32>,
    %c6_212 = arith.constant 6 : index
    %c0_213 = arith.constant 0 : index
    %504 = vector.load %arg16[%c6_212, %c0_213] : memref<8x1024xf32, #tpu.memory_space<vmem>>, vector<1x1024xf32>
    %cst_214 = arith.constant dense<0.000000e+00> : vector<1x1024xf32>
    %505 = tpu.matmul %499, %285, %cst_214 {dimension_numbers = #tpu.dot_dimension_numbers<[1], [0], [0], [1], [0, 0, 1, 1], [], []>} : vector<1x256xf32>, vector<256x1024xf32>, vector<1x1024xf32> -> vector<1x1024xf32>
    %506 = arith.addf %504, %505 : vector<1x1024xf32>
    %507 = vector.extract_strided_slice %506 {offsets = [0, 0], sizes = [1, 256], strides = [1, 1]} : vector<1x1024xf32> to vector<1x256xf32>
    %508 = arith.negf %507 : vector<1x256xf32>
    %509 = math.exp %508 : vector<1x256xf32>
    %cst_215 = arith.constant 1.000000e+00 : f32
    %510 = vector.broadcast %cst_215 : f32 to vector<1x256xf32>
    %511 = arith.addf %510, %509 : vector<1x256xf32>
    %512 = arith.divf %510, %511 : vector<1x256xf32>
    %513 = vector.extract_strided_slice %506 {offsets = [0, 256], sizes = [1, 256], strides = [1, 1]} : vector<1x1024xf32> to vector<1x256xf32>
    %514 = arith.negf %513 : vector<1x256xf32>
    %515 = math.exp %514 : vector<1x256xf32>
    %cst_216 = arith.constant 1.000000e+00 : f32
    %516 = vector.broadcast %cst_216 : f32 to vector<1x256xf32>
    %517 = arith.addf %516, %515 : vector<1x256xf32>
    %518 = arith.divf %516, %517 : vector<1x256xf32>
    %519 = vector.extract_strided_slice %506 {offsets = [0, 512], sizes = [1, 256], strides = [1, 1]} : vector<1x1024xf32> to vector<1x256xf32>
    %520 = math.tanh %519 : vector<1x256xf32>
    %521 = vector.extract_strided_slice %506 {offsets = [0, 768], sizes = [1, 256], strides = [1, 1]} : vector<1x1024xf32> to vector<1x256xf32>
    %522 = arith.negf %521 : vector<1x256xf32>
    %523 = math.exp %522 : vector<1x256xf32>
    %cst_217 = arith.constant 1.000000e+00 : f32
    %524 = vector.broadcast %cst_217 : f32 to vector<1x256xf32>
    %525 = arith.addf %524, %523 : vector<1x256xf32>
    %526 = arith.divf %524, %525 : vector<1x256xf32>
    %527 = arith.mulf %518, %497 : vector<1x256xf32>
    %528 = arith.mulf %512, %520 : vector<1x256xf32>
    %529 = arith.addf %527, %528 : vector<1x256xf32>
    %530 = math.tanh %529 : vector<1x256xf32>
    %531 = arith.mulf %526, %530 : vector<1x256xf32>
    %532 = vector.extract_strided_slice %531 {offsets = [0, 0], sizes = [1, 128], strides = [1, 1]} : vector<1x256xf32> to vector<1x128xf32>
    %c6_218 = arith.constant 6 : index
    %c0_219 = arith.constant 0 : index
    %533 = vector.load %arg12[%c6_218, %c0_219] : memref<8x256xf32, #tpu.memory_space<vmem>>, vector<1x128xf32>
    tpu.vector_store %arg12[%c6_218, %c0_219], %532 {strides = array<i32>} : memref<8x256xf32, #tpu.memory_space<vmem>>, vector<1x128xf32>,
    %534 = vector.extract_strided_slice %531 {offsets = [0, 128], sizes = [1, 128], strides = [1, 1]} : vector<1x256xf32> to vector<1x128xf32>
    %c1_220 = arith.constant 1 : index
    %c128_221 = arith.constant 128 : index
    %535 = vector.load %arg12[%c1_220, %c128_221] : memref<8x256xf32, #tpu.memory_space<vmem>>, vector<1x128xf32>
    tpu.vector_store %arg12[%c1_220, %c128_221], %534 {strides = array<i32>} : memref<8x256xf32, #tpu.memory_space<vmem>>, vector<1x128xf32>,
    %c7_222 = arith.constant 7 : index
    %c0_223 = arith.constant 0 : index
    %536 = vector.load %arg16[%c7_222, %c0_223] : memref<8x1024xf32, #tpu.memory_space<vmem>>, vector<1x1024xf32>
    %cst_224 = arith.constant dense<0.000000e+00> : vector<1x1024xf32>
    %537 = tpu.matmul %531, %285, %cst_224 {dimension_numbers = #tpu.dot_dimension_numbers<[1], [0], [0], [1], [0, 0, 1, 1], [], []>} : vector<1x256xf32>, vector<256x1024xf32>, vector<1x1024xf32> -> vector<1x1024xf32>
    %538 = arith.addf %536, %537 : vector<1x1024xf32>
    %539 = vector.extract_strided_slice %538 {offsets = [0, 0], sizes = [1, 256], strides = [1, 1]} : vector<1x1024xf32> to vector<1x256xf32>
    %540 = arith.negf %539 : vector<1x256xf32>
    %541 = math.exp %540 : vector<1x256xf32>
    %cst_225 = arith.constant 1.000000e+00 : f32
    %542 = vector.broadcast %cst_225 : f32 to vector<1x256xf32>
    %543 = arith.addf %542, %541 : vector<1x256xf32>
    %544 = arith.divf %542, %543 : vector<1x256xf32>
    %545 = vector.extract_strided_slice %538 {offsets = [0, 256], sizes = [1, 256], strides = [1, 1]} : vector<1x1024xf32> to vector<1x256xf32>
    %546 = arith.negf %545 : vector<1x256xf32>
    %547 = math.exp %546 : vector<1x256xf32>
    %cst_226 = arith.constant 1.000000e+00 : f32
    %548 = vector.broadcast %cst_226 : f32 to vector<1x256xf32>
    %549 = arith.addf %548, %547 : vector<1x256xf32>
    %550 = arith.divf %548, %549 : vector<1x256xf32>
    %551 = vector.extract_strided_slice %538 {offsets = [0, 512], sizes = [1, 256], strides = [1, 1]} : vector<1x1024xf32> to vector<1x256xf32>
    %552 = math.tanh %551 : vector<1x256xf32>
    %553 = vector.extract_strided_slice %538 {offsets = [0, 768], sizes = [1, 256], strides = [1, 1]} : vector<1x1024xf32> to vector<1x256xf32>
    %554 = arith.negf %553 : vector<1x256xf32>
    %555 = math.exp %554 : vector<1x256xf32>
    %cst_227 = arith.constant 1.000000e+00 : f32
    %556 = vector.broadcast %cst_227 : f32 to vector<1x256xf32>
    %557 = arith.addf %556, %555 : vector<1x256xf32>
    %558 = arith.divf %556, %557 : vector<1x256xf32>
    %559 = arith.mulf %550, %529 : vector<1x256xf32>
    %560 = arith.mulf %544, %552 : vector<1x256xf32>
    %561 = arith.addf %559, %560 : vector<1x256xf32>
    %562 = math.tanh %561 : vector<1x256xf32>
    %563 = arith.mulf %558, %562 : vector<1x256xf32>
    %564 = vector.extract_strided_slice %563 {offsets = [0, 0], sizes = [1, 128], strides = [1, 1]} : vector<1x256xf32> to vector<1x128xf32>
    %c7_228 = arith.constant 7 : index
    %c0_229 = arith.constant 0 : index
    %565 = vector.load %arg12[%c7_228, %c0_229] : memref<8x256xf32, #tpu.memory_space<vmem>>, vector<1x128xf32>
    tpu.vector_store %arg12[%c7_228, %c0_229], %564 {strides = array<i32>} : memref<8x256xf32, #tpu.memory_space<vmem>>, vector<1x128xf32>,
    %566 = vector.extract_strided_slice %563 {offsets = [0, 128], sizes = [1, 128], strides = [1, 1]} : vector<1x256xf32> to vector<1x128xf32>
    %c0_230 = arith.constant 0 : index
    %c128_231 = arith.constant 128 : index
    %567 = vector.load %arg12[%c0_230, %c128_231] : memref<8x256xf32, #tpu.memory_space<vmem>>, vector<1x128xf32>
    tpu.vector_store %arg12[%c0_230, %c128_231], %566 {strides = array<i32>} : memref<8x256xf32, #tpu.memory_space<vmem>>, vector<1x128xf32>,
    %c1_232 = arith.constant 1 : index
    %c0_233 = arith.constant 0 : index
    %568 = vector.load %arg13[%c1_232, %c0_233] : memref<2x256xf32, #tpu.memory_space<vmem>>, vector<1x256xf32>
    tpu.vector_store %arg13[%c1_232, %c0_233], %563 {strides = array<i32>} : memref<2x256xf32, #tpu.memory_space<vmem>>, vector<1x256xf32>,
    %c1_234 = arith.constant 1 : index
    %c0_235 = arith.constant 0 : index
    %569 = vector.load %arg14[%c1_234, %c0_235] : memref<2x256xf32, #tpu.memory_space<vmem>>, vector<1x256xf32>
    tpu.vector_store %arg14[%c1_234, %c0_235], %561 {strides = array<i32>} : memref<2x256xf32, #tpu.memory_space<vmem>>, vector<1x256xf32>,
    return
  }
  func.func @transform_0(%arg0: i32) -> (i32, i32) {
    %c0_i32 = arith.constant 0 : i32
    %c0_i32_0 = arith.constant 0 : i32
    %c0_i32_1 = arith.constant 0 : i32
    return %c0_i32, %c0_i32_0 : i32, i32
  }
  func.func @transform_1(%arg0: i32) -> (i32, i32) {
    %c0_i32 = arith.constant 0 : i32
    %c0_i32_0 = arith.constant 0 : i32
    %c0_i32_1 = arith.constant 0 : i32
    return %c0_i32, %c0_i32_0 : i32, i32
  }
  func.func @transform_2(%arg0: i32) -> (i32, i32) {
    %c0_i32 = arith.constant 0 : i32
    %c0_i32_0 = arith.constant 0 : i32
    %c0_i32_1 = arith.constant 0 : i32
    return %c0_i32, %c0_i32_0 : i32, i32
  }
  func.func @transform_3(%arg0: i32) -> (i32, i32) {
    %c0_i32 = arith.constant 0 : i32
    %c0_i32_0 = arith.constant 0 : i32
    %c0_i32_1 = arith.constant 0 : i32
    return %c0_i32, %c0_i32_0 : i32, i32
  }
  func.func @transform_4(%arg0: i32) -> (i32, i32) {
    %c0_i32 = arith.constant 0 : i32
    %c0_i32_0 = arith.constant 0 : i32
    %c0_i32_1 = arith.constant 0 : i32
    return %c0_i32, %c0_i32_0 : i32, i32
  }
  func.func @transform_5(%arg0: i32) -> (i32, i32) {
    %c0_i32 = arith.constant 0 : i32
    %c0_i32_0 = arith.constant 0 : i32
    %c0_i32_1 = arith.constant 0 : i32
    return %c0_i32, %c0_i32_0 : i32, i32
  }
  func.func @transform_6(%arg0: i32) -> (i32, i32) {
    %c0_i32 = arith.constant 0 : i32
    %c0_i32_0 = arith.constant 0 : i32
    %c0_i32_1 = arith.constant 0 : i32
    return %c0_i32, %c0_i32_0 : i32, i32
  }
  func.func @transform_7(%arg0: i32) -> (i32, i32) {
    %c0_i32 = arith.constant 0 : i32
    %c0_i32_0 = arith.constant 0 : i32
    %c0_i32_1 = arith.constant 0 : i32
    return %c0_i32, %c0_i32_0 : i32, i32
  }
  func.func @transform_8(%arg0: i32) -> (i32, i32) {
    %c0_i32 = arith.constant 0 : i32
    %c0_i32_0 = arith.constant 0 : i32
    %c0_i32_1 = arith.constant 0 : i32
    return %c0_i32, %c0_i32_0 : i32, i32
  }
  func.func @transform_9(%arg0: i32) -> (i32, i32) {
    %c0_i32 = arith.constant 0 : i32
    %c0_i32_0 = arith.constant 0 : i32
    %c0_i32_1 = arith.constant 0 : i32
    return %c0_i32, %c0_i32_0 : i32, i32
  }
  func.func @transform_10(%arg0: i32) -> (i32, i32) {
    %c0_i32 = arith.constant 0 : i32
    %c0_i32_0 = arith.constant 0 : i32
    %c0_i32_1 = arith.constant 0 : i32
    return %c0_i32, %c0_i32_0 : i32, i32
  }
  func.func @transform_11(%arg0: i32) -> (i32, i32) {
    %c0_i32 = arith.constant 0 : i32
    %c0_i32_0 = arith.constant 0 : i32
    %c0_i32_1 = arith.constant 0 : i32
    return %c0_i32, %c0_i32_0 : i32, i32
  }
  func.func @transform_12(%arg0: i32) -> (i32, i32) {
    %c0_i32 = arith.constant 0 : i32
    %c0_i32_0 = arith.constant 0 : i32
    %c0_i32_1 = arith.constant 0 : i32
    return %c0_i32, %c0_i32_0 : i32, i32
  }
  func.func @transform_13(%arg0: i32) -> (i32, i32) {
    %c0_i32 = arith.constant 0 : i32
    %c0_i32_0 = arith.constant 0 : i32
    %c0_i32_1 = arith.constant 0 : i32
    return %c0_i32, %c0_i32_0 : i32, i32
  }
}

</mosaic_0001>

<llo_original>
// kernel: tpu_custom_call.1
$region0: #{tpu_custom_call.1}
  #allocation0 [shape = 'u32[]', space=smem, size = 0x4, offset = 0x4, fixed_abs, tag = 'smem constant byte address 0x4 - core index']
  #allocation1 [shape = 'u32[144,128]{1,0:T(1,128)}', space=vmem, size = 0x12000, scoped, tag = 'internal scratch']
  #allocation2 [shape = 'f32[8,32]{1,0:T(8,128)}', space=vmem, size = 0x1000, scoped, tag = 'scratch operand']
  #allocation3 [shape = 'f32[8,1024]{1,0:T(8,128)}', space=vmem, size = 0x8000, scoped, tag = 'scratch operand']
  #allocation4 [shape = 'f32[8,256]{1,0:T(8,128)}', space=vmem, size = 0x2000, scoped, tag = 'scratch operand']
  %s0 = inlined_call_operand.hbm [shape: f32[8,32], index: 0, kind: input, shape index: {}]
  %s1 = inlined_call_operand.hbm [shape: f32[32,512], index: 1, kind: input, shape index: {}]
  %s2 = inlined_call_operand.hbm [shape: f32[32,512], index: 2, kind: input, shape index: {}]
  %s3 = inlined_call_operand.vmem [shape: f32[1,512], index: 3, kind: input, shape index: {}]
  %s4 = inlined_call_operand.hbm [shape: f32[1,512], index: 4, kind: input, shape index: {}]
  %s5 = inlined_call_operand.hbm [shape: f32[256,1024], index: 5, kind: input, shape index: {}]
  %s6 = inlined_call_operand.hbm [shape: f32[128,512], index: 6, kind: input, shape index: {}]
  %s7 = inlined_call_operand.hbm [shape: f32[128,512], index: 7, kind: input, shape index: {}]
  %s8 = inlined_call_operand.vmem [shape: f32[1,512], index: 8, kind: input, shape index: {}]
  %s9 = inlined_call_operand.vmem [shape: f32[1,512], index: 9, kind: input, shape index: {}]
  %s10 = inlined_call_operand.hbm [shape: f32[256,1024], index: 10, kind: input, shape index: {}]
  %s11 = inlined_call_operand.hbm [shape: f32[8,256], index: 11, kind: output, shape index: {0}]
  %s12 = inlined_call_operand.hbm [shape: f32[2,256], index: 12, kind: output, shape index: {1}]
  %s13 = inlined_call_operand.hbm [shape: f32[2,256], index: 13, kind: output, shape index: {2}]
  %14 = xla_tuple %s11, %s12, %s13
  %s15 = sld [smem:[#allocation0]]
  $region102: #{tpu_custom_call.1} parent=0
    _
  %s17 = ssub.s32 1, %s15
  %s18 = scalar_select 0, %s17, %s15
  $region1: #{tpu_custom_call.1} parent=0
    #allocation5 [shape = 'u8[4096]{0}', space=vmem, size = 0x1000, scoped, tag = 'input window, operand 0, single buffered']
    #allocation6 [shape = 's32[1]{0}', space=sflag, size = 0x4, scoped, tag = 'scoped memory for tpu_custom_call.1']
    #allocation7 [shape = 's32[1]{0}', space=sflag, size = 0x4, scoped, tag = 'scoped memory for tpu_custom_call.1']
    #allocation8 [shape = 'u8[65536]{0}', space=vmem, size = 0x10000, scoped, tag = 'input window, operand 1, single buffered']
    #allocation9 [shape = 's32[1]{0}', space=sflag, size = 0x4, scoped, tag = 'scoped memory for tpu_custom_call.1']
    #allocation10 [shape = 'u8[65536]{0}', space=vmem, size = 0x10000, scoped, tag = 'input window, operand 2, single buffered']
    #allocation11 [shape = 'u8[2048]{0}', space=vmem, size = 0x800, scoped, tag = 'input window, operand 4, single buffered']
    #allocation12 [shape = 's32[1]{0}', space=sflag, size = 0x4, scoped, tag = 'scoped memory for tpu_custom_call.1']
    #allocation13 [shape = 'u8[1048576]{0}', space=vmem, size = 0x100000, scoped, tag = 'input window, operand 5, single buffered']
    #allocation14 [shape = 'u8[262144]{0}', space=vmem, size = 0x40000, scoped, tag = 'input window, operand 6, single buffered']
    #allocation15 [shape = 's32[1]{0}', space=sflag, size = 0x4, scoped, tag = 'scoped memory for tpu_custom_call.1']
    #allocation16 [shape = 'u8[262144]{0}', space=vmem, size = 0x40000, scoped, tag = 'input window, operand 7, single buffered']
    #allocation17 [shape = 'u8[1048576]{0}', space=vmem, size = 0x100000, scoped, tag = 'input window, operand 10, single buffered']
    #allocation18 [shape = 's32[1]{0}', space=sflag, size = 0x4, scoped, tag = 'scoped memory for tpu_custom_call.1']
    #allocation19 [shape = 'u8[8192]{0}', space=vmem, size = 0x2000, scoped, tag = 'output window, operand 0, single buffered']
    #allocation20 [shape = 'u8[2048]{0}', space=vmem, size = 0x800, scoped, tag = 'output window, operand 1, single buffered']
    #allocation21 [shape = 's32[1]{0}', space=sflag, size = 0x4, scoped, tag = 'scoped memory for tpu_custom_call.1']
    #allocation22 [shape = 'u8[2048]{0}', space=vmem, size = 0x800, scoped, tag = 'output window, operand 2, single buffered']
    %19 = vsyncpa [#allocation6], 0
    %20 = vsyncpa [#allocation9], 0
    %21 = vsyncpa [#allocation12], 0
    %22 = vsyncpa [#allocation15], 0
    %23 = vsyncpa [#allocation18], 0
    %24 = vsyncpa [#allocation7], 0
    %25 = vsyncpa [#allocation21], 0
    // Predicated region
    $region2: #{tpu_custom_call.1} parent=1 // pred_check
      _
    $region3: #{tpu_custom_call.1} parent=1 // pred_check_branch
      %27 = sbr.rel (0) target = $region5
    $region4: #{tpu_custom_call.1} parent=1 // pred_region
      %s29 = ssub.s32 128, 128
      %30 = vsyncadd [#allocation6], %s29
      %s32 = sshll.u32 [#allocation5], 4
      %s33 = int_to_ptr.vmem [resolvable:$true] %s32
      %35 = dma.hbm_to_vmem [thread:$0]  %s0, 128, %s33, [#allocation6]
    $region5: #{tpu_custom_call.1} parent=1 // pred_fallthru
      _
    // Predicated region
    $region6: #{tpu_custom_call.1} parent=1 // pred_check
      _
    $region7: #{tpu_custom_call.1} parent=1 // pred_check_branch
      %37 = sbr.rel (0) target = $region9
    $region8: #{tpu_custom_call.1} parent=1 // pred_region
      %s39 = ssub.s32 2048, 2048
      %40 = vsyncadd [#allocation9], %s39
      %s41 = sshll.u32 [#allocation8], 4
      %s42 = int_to_ptr.vmem [resolvable:$true] %s41
      %47 = dma.hbm_to_vmem [thread:$0]  %s1, 2048, %s42, [#allocation9], 512, 512, 32
    $region9: #{tpu_custom_call.1} parent=1 // pred_fallthru
      _
    // Predicated region
    $region10: #{tpu_custom_call.1} parent=1 // pred_check
      _
    $region11: #{tpu_custom_call.1} parent=1 // pred_check_branch
      %49 = sbr.rel (0) target = $region13
    $region12: #{tpu_custom_call.1} parent=1 // pred_region
      %s51 = ssub.s32 2048, 2048
      %52 = vsyncadd [#allocation9], %s51
      %s53 = sshll.u32 [#allocation10], 4
      %s54 = int_to_ptr.vmem [resolvable:$true] %s53
      %59 = dma.hbm_to_vmem [thread:$0]  %s2, 2048, %s54, [#allocation9], 512, 512, 32
    $region13: #{tpu_custom_call.1} parent=1 // pred_fallthru
      _
    // Predicated region
    $region14: #{tpu_custom_call.1} parent=1 // pred_check
      _
    $region15: #{tpu_custom_call.1} parent=1 // pred_check_branch
      %61 = sbr.rel (0) target = $region17
    $region16: #{tpu_custom_call.1} parent=1 // pred_region
      _
    $region17: #{tpu_custom_call.1} parent=1 // pred_fallthru
      _
    // Predicated region
    $region18: #{tpu_custom_call.1} parent=1 // pred_check
      _
    $region19: #{tpu_custom_call.1} parent=1 // pred_check_branch
      %63 = sbr.rel (0) target = $region21
    $region20: #{tpu_custom_call.1} parent=1 // pred_region
      %s65 = ssub.s32 64, 64
      %66 = vsyncadd [#allocation12], %s65
      %s68 = sshll.u32 [#allocation11], 4
      %s69 = int_to_ptr.vmem [resolvable:$true] %s68
      %71 = dma.hbm_to_vmem [thread:$0]  %s4, 64, %s69, [#allocation12]
    $region21: #{tpu_custom_call.1} parent=1 // pred_fallthru
      _
    // Predicated region
    $region22: #{tpu_custom_call.1} parent=1 // pred_check
      _
    $region23: #{tpu_custom_call.1} parent=1 // pred_check_branch
      %73 = sbr.rel (0) target = $region25
    $region24: #{tpu_custom_call.1} parent=1 // pred_region
      %s75 = ssub.s32 32768, 32768
      %76 = vsyncadd [#allocation12], %s75
      %s77 = sshll.u32 [#allocation13], 4
      %s78 = int_to_ptr.vmem [resolvable:$true] %s77
      %83 = dma.hbm_to_vmem [thread:$0]  %s5, 32768, %s78, [#allocation12], 1024, 1024, 64
    $region25: #{tpu_custom_call.1} parent=1 // pred_fallthru
      _
    // Predicated region
    $region26: #{tpu_custom_call.1} parent=1 // pred_check
      _
    $region27: #{tpu_custom_call.1} parent=1 // pred_check_branch
      %85 = sbr.rel (0) target = $region29
    $region28: #{tpu_custom_call.1} parent=1 // pred_region
      %s87 = ssub.s32 8192, 8192
      %88 = vsyncadd [#allocation15], %s87
      %s89 = sshll.u32 [#allocation14], 4
      %s90 = int_to_ptr.vmem [resolvable:$true] %s89
      %95 = dma.hbm_to_vmem [thread:$0]  %s6, 8192, %s90, [#allocation15], 512, 512, 32
    $region29: #{tpu_custom_call.1} parent=1 // pred_fallthru
      _
    // Predicated region
    $region30: #{tpu_custom_call.1} parent=1 // pred_check
      _
    $region31: #{tpu_custom_call.1} parent=1 // pred_check_branch
      %97 = sbr.rel (0) target = $region33
    $region32: #{tpu_custom_call.1} parent=1 // pred_region
      %s99 = ssub.s32 8192, 8192
      %100 = vsyncadd [#allocation15], %s99
      %s101 = sshll.u32 [#allocation16], 4
      %s102 = int_to_ptr.vmem [resolvable:$true] %s101
      %107 = dma.hbm_to_vmem [thread:$0]  %s7, 8192, %s102, [#allocation15], 512, 512, 32
    $region33: #{tpu_custom_call.1} parent=1 // pred_fallthru
      _
    // Predicated region
    $region34: #{tpu_custom_call.1} parent=1 // pred_check
      _
    $region35: #{tpu_custom_call.1} parent=1 // pred_check_branch
      %109 = sbr.rel (0) target = $region37
    $region36: #{tpu_custom_call.1} parent=1 // pred_region
      _
    $region37: #{tpu_custom_call.1} parent=1 // pred_fallthru
      _
    // Predicated region
    $region38: #{tpu_custom_call.1} parent=1 // pred_check
      _
    $region39: #{tpu_custom_call.1} parent=1 // pred_check_branch
      %111 = sbr.rel (0) target = $region41
    $region40: #{tpu_custom_call.1} parent=1 // pred_region
      _
    $region41: #{tpu_custom_call.1} parent=1 // pred_fallthru
      _
    // Predicated region
    $region42: #{tpu_custom_call.1} parent=1 // pred_check
      _
    $region43: #{tpu_custom_call.1} parent=1 // pred_check_branch
      %113 = sbr.rel (0) target = $region45
    $region44: #{tpu_custom_call.1} parent=1 // pred_region
      %s115 = ssub.s32 32768, 32768
      %116 = vsyncadd [#allocation18], %s115
      %s117 = sshll.u32 [#allocation17], 4
      %s118 = int_to_ptr.vmem [resolvable:$true] %s117
      %123 = dma.hbm_to_vmem [thread:$0]  %s10, 32768, %s118, [#allocation18], 1024, 1024, 64
    $region45: #{tpu_custom_call.1} parent=1 // pred_fallthru
      _
    // Predicated region
    $region46: #{tpu_custom_call.1} parent=1 // pred_check
      _
    $region47: #{tpu_custom_call.1} parent=1 // pred_check_branch
      %125 = sbr.rel (0) target = $region49
    $region48: #{tpu_custom_call.1} parent=1 // pred_region
      %126 = dma.done [#allocation6], 128
    $region49: #{tpu_custom_call.1} parent=1 // pred_fallthru
      _
    // Predicated region
    $region50: #{tpu_custom_call.1} parent=1 // pred_check
      _
    $region51: #{tpu_custom_call.1} parent=1 // pred_check_branch
      %128 = sbr.rel (0) target = $region53
    $region52: #{tpu_custom_call.1} parent=1 // pred_region
      %129 = dma.done [#allocation9], 2048
    $region53: #{tpu_custom_call.1} parent=1 // pred_fallthru
      _
    // Predicated region
    $region54: #{tpu_custom_call.1} parent=1 // pred_check
      _
    $region55: #{tpu_custom_call.1} parent=1 // pred_check_branch
      %131 = sbr.rel (0) target = $region57
    $region56: #{tpu_custom_call.1} parent=1 // pred_region
      %132 = dma.done [#allocation9], 2048
    $region57: #{tpu_custom_call.1} parent=1 // pred_fallthru
      _
    // Predicated region
    $region58: #{tpu_custom_call.1} parent=1 // pred_check
      _
    $region59: #{tpu_custom_call.1} parent=1 // pred_check_branch
      %134 = sbr.rel (0) target = $region61
    $region60: #{tpu_custom_call.1} parent=1 // pred_region
      %135 = dma.done [#allocation12], 64
    $region61: #{tpu_custom_call.1} parent=1 // pred_fallthru
      _
    // Predicated region
    $region62: #{tpu_custom_call.1} parent=1 // pred_check
      _
    $region63: #{tpu_custom_call.1} parent=1 // pred_check_branch
      %137 = sbr.rel (0) target = $region65
    $region64: #{tpu_custom_call.1} parent=1 // pred_region
      %138 = dma.done [#allocation12], 32768
    $region65: #{tpu_custom_call.1} parent=1 // pred_fallthru
      _
    // Predicated region
    $region66: #{tpu_custom_call.1} parent=1 // pred_check
      _
    $region67: #{tpu_custom_call.1} parent=1 // pred_check_branch
      %140 = sbr.rel (0) target = $region69
    $region68: #{tpu_custom_call.1} parent=1 // pred_region
      %141 = dma.done [#allocation15], 8192
    $region69: #{tpu_custom_call.1} parent=1 // pred_fallthru
      _
    // Predicated region
    $region70: #{tpu_custom_call.1} parent=1 // pred_check
      _
    $region71: #{tpu_custom_call.1} parent=1 // pred_check_branch
      %143 = sbr.rel (0) target = $region73
    $region72: #{tpu_custom_call.1} parent=1 // pred_region
      %144 = dma.done [#allocation15], 8192
    $region73: #{tpu_custom_call.1} parent=1 // pred_fallthru
      _
    // Predicated region
    $region74: #{tpu_custom_call.1} parent=1 // pred_check
      _
    $region75: #{tpu_custom_call.1} parent=1 // pred_check_branch
      %146 = sbr.rel (0) target = $region77
    $region76: #{tpu_custom_call.1} parent=1 // pred_region
      %147 = dma.done [#allocation18], 32768
    $region77: #{tpu_custom_call.1} parent=1 // pred_fallthru
      _
    %v148 = vld [vmem:[#allocation5 + $0x7] sm:$0x1]
    %vm149 = vcmask 253952
    %150 = vst.msk [vmem:[#allocation2] sm:$0x1] %vm149, %v148
    %v151 = vld [vmem:[#allocation5 + $0x6] sm:$0x1]
    %152 = vst.msk [vmem:[#allocation2 + $0x1] sm:$0x1] %vm149, %v151
    %v153 = vld [vmem:[#allocation5 + $0x5] sm:$0x1]
    %154 = vst.msk [vmem:[#allocation2 + $0x2] sm:$0x1] %vm149, %v153
    %v155 = vld [vmem:[#allocation5 + $0x4] sm:$0x1]
    %156 = vst.msk [vmem:[#allocation2 + $0x3] sm:$0x1] %vm149, %v155
    %v157 = vld [vmem:[#allocation5 + $0x3] sm:$0x1]
    %158 = vst.msk [vmem:[#allocation2 + $0x4] sm:$0x1] %vm149, %v157
    %v159 = vld [vmem:[#allocation5 + $0x2] sm:$0x1]
    %160 = vst.msk [vmem:[#allocation2 + $0x5] sm:$0x1] %vm149, %v159
    %v161 = vld [vmem:[#allocation5 + $0x1] sm:$0x1]
    %162 = vst.msk [vmem:[#allocation2 + $0x6] sm:$0x1] %vm149, %v161
    %v163 = vld [vmem:[#allocation5] sm:$0x1]
    %164 = vst.msk [vmem:[#allocation2 + $0x7] sm:$0x1] %vm149, %v163
    %v165 = vld [vmem:[#allocation8] sm:$0xff]
    %v166 = vld [vmem:[#allocation8 + $0x8] sm:$0xff]
    %v167 = vld [vmem:[#allocation8 + $0x10] sm:$0xff]
    %v168 = vld [vmem:[#allocation8 + $0x18] sm:$0xff]
    %v169 = vld [vmem:[#allocation8 + $0x20] sm:$0xff]
    %v170 = vld [vmem:[#allocation8 + $0x28] sm:$0xff]
    %v171 = vld [vmem:[#allocation8 + $0x30] sm:$0xff]
    %v172 = vld [vmem:[#allocation8 + $0x38] sm:$0xff]
    %v173 = vld [vmem:[#allocation8 + $0x40] sm:$0xff]
    %v174 = vld [vmem:[#allocation8 + $0x48] sm:$0xff]
    %v175 = vld [vmem:[#allocation8 + $0x50] sm:$0xff]
    %v176 = vld [vmem:[#allocation8 + $0x58] sm:$0xff]
    %v177 = vld [vmem:[#allocation8 + $0x60] sm:$0xff]
    %v178 = vld [vmem:[#allocation8 + $0x68] sm:$0xff]
    %v179 = vld [vmem:[#allocation8 + $0x70] sm:$0xff]
    %v180 = vld [vmem:[#allocation8 + $0x78] sm:$0xff]
    %v181 = vld [vmem:[#allocation10] sm:$0xff]
    %v182 = vld [vmem:[#allocation10 + $0x8] sm:$0xff]
    %v183 = vld [vmem:[#allocation10 + $0x10] sm:$0xff]
    %v184 = vld [vmem:[#allocation10 + $0x18] sm:$0xff]
    %v185 = vld [vmem:[#allocation10 + $0x20] sm:$0xff]
    %v186 = vld [vmem:[#allocation10 + $0x28] sm:$0xff]
    %v187 = vld [vmem:[#allocation10 + $0x30] sm:$0xff]
    %v188 = vld [vmem:[#allocation10 + $0x38] sm:$0xff]
    %v189 = vld [vmem:[#allocation10 + $0x40] sm:$0xff]
    %v190 = vld [vmem:[#allocation10 + $0x48] sm:$0xff]
    %v191 = vld [vmem:[#allocation10 + $0x50] sm:$0xff]
    %v192 = vld [vmem:[#allocation10 + $0x58] sm:$0xff]
    %v193 = vld [vmem:[#allocation10 + $0x60] sm:$0xff]
    %v194 = vld [vmem:[#allocation10 + $0x68] sm:$0xff]
    %v195 = vld [vmem:[#allocation10 + $0x70] sm:$0xff]
    %v196 = vld [vmem:[#allocation10 + $0x78] sm:$0xff]
    %v197 = vld [vmem:[%s3] sm:$0xf]
    %v198 = vld [vmem:[#allocation11] sm:$0xf]
    %v199 = vld [vmem:[#allocation13] sm:$0xff]
    %v200 = vld [vmem:[#allocation13 + $0x8] sm:$0xff]
    %v201 = vld [vmem:[#allocation13 + $0x10] sm:$0xff]
    %v202 = vld [vmem:[#allocation13 + $0x18] sm:$0xff]
    %v203 = vld [vmem:[#allocation13 + $0x20] sm:$0xff]
    %v204 = vld [vmem:[#allocation13 + $0x28] sm:$0xff]
    %v205 = vld [vmem:[#allocation13 + $0x30] sm:$0xff]
    %v206 = vld [vmem:[#allocation13 + $0x38] sm:$0xff]
    %v207 = vld [vmem:[#allocation13 + $0x40] sm:$0xff]
    %v208 = vld [vmem:[#allocation13 + $0x48] sm:$0xff]
    %v209 = vld [vmem:[#allocation13 + $0x50] sm:$0xff]
    %v210 = vld [vmem:[#allocation13 + $0x58] sm:$0xff]
    %v211 = vld [vmem:[#allocation13 + $0x60] sm:$0xff]
    %v212 = vld [vmem:[#allocation13 + $0x68] sm:$0xff]
    %v213 = vld [vmem:[#allocation13 + $0x70] sm:$0xff]
    %v214 = vld [vmem:[#allocation13 + $0x78] sm:$0xff]
    %v215 = vld [vmem:[#allocation13 + $0x80] sm:$0xff]
    %v216 = vld [vmem:[#allocation13 + $0x88] sm:$0xff]
    %v217 = vld [vmem:[#allocation13 + $0x90] sm:$0xff]
    %v218 = vld [vmem:[#allocation13 + $0x98] sm:$0xff]
    %v219 = vld [vmem:[#allocation13 + $0xa0] sm:$0xff]
    %v220 = vld [vmem:[#allocation13 + $0xa8] sm:$0xff]
    %v221 = vld [vmem:[#allocation13 + $0xb0] sm:$0xff]
    %v222 = vld [vmem:[#allocation13 + $0xb8] sm:$0xff]
    %v223 = vld [vmem:[#allocation13 + $0xc0] sm:$0xff]
    %v224 = vld [vmem:[#allocation13 + $0xc8] sm:$0xff]
    %v225 = vld [vmem:[#allocation13 + $0xd0] sm:$0xff]
    %v226 = vld [vmem:[#allocation13 + $0xd8] sm:$0xff]
    %v227 = vld [vmem:[#allocation13 + $0xe0] sm:$0xff]
    %v228 = vld [vmem:[#allocation13 + $0xe8] sm:$0xff]
    %v229 = vld [vmem:[#allocation13 + $0xf0] sm:$0xff]
    %v230 = vld [vmem:[#allocation13 + $0xf8] sm:$0xff]
    %v231 = vld [vmem:[#allocation13 + $0x100] sm:$0xff]
    %v232 = vld [vmem:[#allocation13 + $0x108] sm:$0xff]
    %v233 = vld [vmem:[#allocation13 + $0x110] sm:$0xff]
    %v234 = vld [vmem:[#allocation13 + $0x118] sm:$0xff]
    %v235 = vld [vmem:[#allocation13 + $0x120] sm:$0xff]
    %v236 = vld [vmem:[#allocation13 + $0x128] sm:$0xff]
    %v237 = vld [vmem:[#allocation13 + $0x130] sm:$0xff]
    %v238 = vld [vmem:[#allocation13 + $0x138] sm:$0xff]
    %v239 = vld [vmem:[#allocation13 + $0x140] sm:$0xff]
    %v240 = vld [vmem:[#allocation13 + $0x148] sm:$0xff]
    %v241 = vld [vmem:[#allocation13 + $0x150] sm:$0xff]
    %v242 = vld [vmem:[#allocation13 + $0x158] sm:$0xff]
    %v243 = vld [vmem:[#allocation13 + $0x160] sm:$0xff]
    %v244 = vld [vmem:[#allocation13 + $0x168] sm:$0xff]
    %v245 = vld [vmem:[#allocation13 + $0x170] sm:$0xff]
    %v246 = vld [vmem:[#allocation13 + $0x178] sm:$0xff]
    %v247 = vld [vmem:[#allocation13 + $0x180] sm:$0xff]
    %v248 = vld [vmem:[#allocation13 + $0x188] sm:$0xff]
    %v249 = vld [vmem:[#allocation13 + $0x190] sm:$0xff]
    %v250 = vld [vmem:[#allocation13 + $0x198] sm:$0xff]
    %v251 = vld [vmem:[#allocation13 + $0x1a0] sm:$0xff]
    %v252 = vld [vmem:[#allocation13 + $0x1a8] sm:$0xff]
    %v253 = vld [vmem:[#allocation13 + $0x1b0] sm:$0xff]
    %v254 = vld [vmem:[#allocation13 + $0x1b8] sm:$0xff]
    %v255 = vld [vmem:[#allocation13 + $0x1c0] sm:$0xff]
    %v256 = vld [vmem:[#allocation13 + $0x1c8] sm:$0xff]
    %v257 = vld [vmem:[#allocation13 + $0x1d0] sm:$0xff]
    %v258 = vld [vmem:[#allocation13 + $0x1d8] sm:$0xff]
    %v259 = vld [vmem:[#allocation13 + $0x1e0] sm:$0xff]
    %v260 = vld [vmem:[#allocation13 + $0x1e8] sm:$0xff]
    %v261 = vld [vmem:[#allocation13 + $0x1f0] sm:$0xff]
    %v262 = vld [vmem:[#allocation13 + $0x1f8] sm:$0xff]
    %v263 = vld [vmem:[#allocation13 + $0x200] sm:$0xff]
    %v264 = vld [vmem:[#allocation13 + $0x208] sm:$0xff]
    %v265 = vld [vmem:[#allocation13 + $0x210] sm:$0xff]
    %v266 = vld [vmem:[#allocation13 + $0x218] sm:$0xff]
    %v267 = vld [vmem:[#allocation13 + $0x220] sm:$0xff]
    %v268 = vld [vmem:[#allocation13 + $0x228] sm:$0xff]
    %v269 = vld [vmem:[#allocation13 + $0x230] sm:$0xff]
    %v270 = vld [vmem:[#allocation13 + $0x238] sm:$0xff]
    %v271 = vld [vmem:[#allocation13 + $0x240] sm:$0xff]
    %v272 = vld [vmem:[#allocation13 + $0x248] sm:$0xff]
    %v273 = vld [vmem:[#allocation13 + $0x250] sm:$0xff]
    %v274 = vld [vmem:[#allocation13 + $0x258] sm:$0xff]
    %v275 = vld [vmem:[#allocation13 + $0x260] sm:$0xff]
    %v276 = vld [vmem:[#allocation13 + $0x268] sm:$0xff]
    %v277 = vld [vmem:[#allocation13 + $0x270] sm:$0xff]
    %v278 = vld [vmem:[#allocation13 + $0x278] sm:$0xff]
    %v279 = vld [vmem:[#allocation13 + $0x280] sm:$0xff]
    %v280 = vld [vmem:[#allocation13 + $0x288] sm:$0xff]
    %v281 = vld [vmem:[#allocation13 + $0x290] sm:$0xff]
    %v282 = vld [vmem:[#allocation13 + $0x298] sm:$0xff]
    %v283 = vld [vmem:[#allocation13 + $0x2a0] sm:$0xff]
    %v284 = vld [vmem:[#allocation13 + $0x2a8] sm:$0xff]
    %v285 = vld [vmem:[#allocation13 + $0x2b0] sm:$0xff]
    %v286 = vld [vmem:[#allocation13 + $0x2b8] sm:$0xff]
    %v287 = vld [vmem:[#allocation13 + $0x2c0] sm:$0xff]
    %v288 = vld [vmem:[#allocation13 + $0x2c8] sm:$0xff]
    %v289 = vld [vmem:[#allocation13 + $0x2d0] sm:$0xff]
    %v290 = vld [vmem:[#allocation13 + $0x2d8] sm:$0xff]
    %v291 = vld [vmem:[#allocation13 + $0x2e0] sm:$0xff]
    %v292 = vld [vmem:[#allocation13 + $0x2e8] sm:$0xff]
    %v293 = vld [vmem:[#allocation13 + $0x2f0] sm:$0xff]
    %v294 = vld [vmem:[#allocation13 + $0x2f8] sm:$0xff]
    %v295 = vld [vmem:[#allocation13 + $0x300] sm:$0xff]
    %v296 = vld [vmem:[#allocation13 + $0x308] sm:$0xff]
    %v297 = vld [vmem:[#allocation13 + $0x310] sm:$0xff]
    %v298 = vld [vmem:[#allocation13 + $0x318] sm:$0xff]
    %v299 = vld [vmem:[#allocation13 + $0x320] sm:$0xff]
    %v300 = vld [vmem:[#allocation13 + $0x328] sm:$0xff]
    %v301 = vld [vmem:[#allocation13 + $0x330] sm:$0xff]
    %v302 = vld [vmem:[#allocation13 + $0x338] sm:$0xff]
    %v303 = vld [vmem:[#allocation13 + $0x340] sm:$0xff]
    %v304 = vld [vmem:[#allocation13 + $0x348] sm:$0xff]
    %v305 = vld [vmem:[#allocation13 + $0x350] sm:$0xff]
    %v306 = vld [vmem:[#allocation13 + $0x358] sm:$0xff]
    %v307 = vld [vmem:[#allocation13 + $0x360] sm:$0xff]
    %v308 = vld [vmem:[#allocation13 + $0x368] sm:$0xff]
    %v309 = vld [vmem:[#allocation13 + $0x370] sm:$0xff]
    %v310 = vld [vmem:[#allocation13 + $0x378] sm:$0xff]
    %v311 = vld [vmem:[#allocation13 + $0x380] sm:$0xff]
    %v312 = vld [vmem:[#allocation13 + $0x388] sm:$0xff]
    %v313 = vld [vmem:[#allocation13 + $0x390] sm:$0xff]
    %v314 = vld [vmem:[#allocation13 + $0x398] sm:$0xff]
    %v315 = vld [vmem:[#allocation13 + $0x3a0] sm:$0xff]
    %v316 = vld [vmem:[#allocation13 + $0x3a8] sm:$0xff]
    %v317 = vld [vmem:[#allocation13 + $0x3b0] sm:$0xff]
    %v318 = vld [vmem:[#allocation13 + $0x3b8] sm:$0xff]
    %v319 = vld [vmem:[#allocation13 + $0x3c0] sm:$0xff]
    %v320 = vld [vmem:[#allocation13 + $0x3c8] sm:$0xff]
    %v321 = vld [vmem:[#allocation13 + $0x3d0] sm:$0xff]
    %v322 = vld [vmem:[#allocation13 + $0x3d8] sm:$0xff]
    %v323 = vld [vmem:[#allocation13 + $0x3e0] sm:$0xff]
    %v324 = vld [vmem:[#allocation13 + $0x3e8] sm:$0xff]
    %v325 = vld [vmem:[#allocation13 + $0x3f0] sm:$0xff]
    %v326 = vld [vmem:[#allocation13 + $0x3f8] sm:$0xff]
    %v327 = vld [vmem:[#allocation13 + $0x400] sm:$0xff]
    %v328 = vld [vmem:[#allocation13 + $0x408] sm:$0xff]
    %v329 = vld [vmem:[#allocation13 + $0x410] sm:$0xff]
    %v330 = vld [vmem:[#allocation13 + $0x418] sm:$0xff]
    %v331 = vld [vmem:[#allocation13 + $0x420] sm:$0xff]
    %v332 = vld [vmem:[#allocation13 + $0x428] sm:$0xff]
    %v333 = vld [vmem:[#allocation13 + $0x430] sm:$0xff]
    %v334 = vld [vmem:[#allocation13 + $0x438] sm:$0xff]
    %v335 = vld [vmem:[#allocation13 + $0x440] sm:$0xff]
    %v336 = vld [vmem:[#allocation13 + $0x448] sm:$0xff]
    %v337 = vld [vmem:[#allocation13 + $0x450] sm:$0xff]
    %v338 = vld [vmem:[#allocation13 + $0x458] sm:$0xff]
    %v339 = vld [vmem:[#allocation13 + $0x460] sm:$0xff]
    %v340 = vld [vmem:[#allocation13 + $0x468] sm:$0xff]
    %v341 = vld [vmem:[#allocation13 + $0x470] sm:$0xff]
    %v342 = vld [vmem:[#allocation13 + $0x478] sm:$0xff]
    %v343 = vld [vmem:[#allocation13 + $0x480] sm:$0xff]
    %v344 = vld [vmem:[#allocation13 + $0x488] sm:$0xff]
    %v345 = vld [vmem:[#allocation13 + $0x490] sm:$0xff]
    %v346 = vld [vmem:[#allocation13 + $0x498] sm:$0xff]
    %v347 = vld [vmem:[#allocation13 + $0x4a0] sm:$0xff]
    %v348 = vld [vmem:[#allocation13 + $0x4a8] sm:$0xff]
    %v349 = vld [vmem:[#allocation13 + $0x4b0] sm:$0xff]
    %v350 = vld [vmem:[#allocation13 + $0x4b8] sm:$0xff]
    %v351 = vld [vmem:[#allocation13 + $0x4c0] sm:$0xff]
    %v352 = vld [vmem:[#allocation13 + $0x4c8] sm:$0xff]
    %v353 = vld [vmem:[#allocation13 + $0x4d0] sm:$0xff]
    %v354 = vld [vmem:[#allocation13 + $0x4d8] sm:$0xff]
    %v355 = vld [vmem:[#allocation13 + $0x4e0] sm:$0xff]
    %v356 = vld [vmem:[#allocation13 + $0x4e8] sm:$0xff]
    %v357 = vld [vmem:[#allocation13 + $0x4f0] sm:$0xff]
    %v358 = vld [vmem:[#allocation13 + $0x4f8] sm:$0xff]
    %v359 = vld [vmem:[#allocation13 + $0x500] sm:$0xff]
    %v360 = vld [vmem:[#allocation13 + $0x508] sm:$0xff]
    %v361 = vld [vmem:[#allocation13 + $0x510] sm:$0xff]
    %v362 = vld [vmem:[#allocation13 + $0x518] sm:$0xff]
    %v363 = vld [vmem:[#allocation13 + $0x520] sm:$0xff]
    %v364 = vld [vmem:[#allocation13 + $0x528] sm:$0xff]
    %v365 = vld [vmem:[#allocation13 + $0x530] sm:$0xff]
    %v366 = vld [vmem:[#allocation13 + $0x538] sm:$0xff]
    %v367 = vld [vmem:[#allocation13 + $0x540] sm:$0xff]
    %v368 = vld [vmem:[#allocation13 + $0x548] sm:$0xff]
    %v369 = vld [vmem:[#allocation13 + $0x550] sm:$0xff]
    %v370 = vld [vmem:[#allocation13 + $0x558] sm:$0xff]
    %v371 = vld [vmem:[#allocation13 + $0x560] sm:$0xff]
    %v372 = vld [vmem:[#allocation13 + $0x568] sm:$0xff]
    %v373 = vld [vmem:[#allocation13 + $0x570] sm:$0xff]
    %v374 = vld [vmem:[#allocation13 + $0x578] sm:$0xff]
    %v375 = vld [vmem:[#allocation13 + $0x580] sm:$0xff]
    %v376 = vld [vmem:[#allocation13 + $0x588] sm:$0xff]
    %v377 = vld [vmem:[#allocation13 + $0x590] sm:$0xff]
    %v378 = vld [vmem:[#allocation13 + $0x598] sm:$0xff]
    %v379 = vld [vmem:[#allocation13 + $0x5a0] sm:$0xff]
    %v380 = vld [vmem:[#allocation13 + $0x5a8] sm:$0xff]
    %v381 = vld [vmem:[#allocation13 + $0x5b0] sm:$0xff]
    %v382 = vld [vmem:[#allocation13 + $0x5b8] sm:$0xff]
    %v383 = vld [vmem:[#allocation13 + $0x5c0] sm:$0xff]
    %v384 = vld [vmem:[#allocation13 + $0x5c8] sm:$0xff]
    %v385 = vld [vmem:[#allocation13 + $0x5d0] sm:$0xff]
    %v386 = vld [vmem:[#allocation13 + $0x5d8] sm:$0xff]
    %v387 = vld [vmem:[#allocation13 + $0x5e0] sm:$0xff]
    %v388 = vld [vmem:[#allocation13 + $0x5e8] sm:$0xff]
    %v389 = vld [vmem:[#allocation13 + $0x5f0] sm:$0xff]
    %v390 = vld [vmem:[#allocation13 + $0x5f8] sm:$0xff]
    %v391 = vld [vmem:[#allocation13 + $0x600] sm:$0xff]
    %v392 = vld [vmem:[#allocation13 + $0x608] sm:$0xff]
    %v393 = vld [vmem:[#allocation13 + $0x610] sm:$0xff]
    %v394 = vld [vmem:[#allocation13 + $0x618] sm:$0xff]
    %v395 = vld [vmem:[#allocation13 + $0x620] sm:$0xff]
    %v396 = vld [vmem:[#allocation13 + $0x628] sm:$0xff]
    %v397 = vld [vmem:[#allocation13 + $0x630] sm:$0xff]
    %v398 = vld [vmem:[#allocation13 + $0x638] sm:$0xff]
    %v399 = vld [vmem:[#allocation13 + $0x640] sm:$0xff]
    %v400 = vld [vmem:[#allocation13 + $0x648] sm:$0xff]
    %v401 = vld [vmem:[#allocation13 + $0x650] sm:$0xff]
    %v402 = vld [vmem:[#allocation13 + $0x658] sm:$0xff]
    %v403 = vld [vmem:[#allocation13 + $0x660] sm:$0xff]
    %v404 = vld [vmem:[#allocation13 + $0x668] sm:$0xff]
    %v405 = vld [vmem:[#allocation13 + $0x670] sm:$0xff]
    %v406 = vld [vmem:[#allocation13 + $0x678] sm:$0xff]
    %v407 = vld [vmem:[#allocation13 + $0x680] sm:$0xff]
    %v408 = vld [vmem:[#allocation13 + $0x688] sm:$0xff]
    %v409 = vld [vmem:[#allocation13 + $0x690] sm:$0xff]
    %v410 = vld [vmem:[#allocation13 + $0x698] sm:$0xff]
    %v411 = vld [vmem:[#allocation13 + $0x6a0] sm:$0xff]
    %v412 = vld [vmem:[#allocation13 + $0x6a8] sm:$0xff]
    %v413 = vld [vmem:[#allocation13 + $0x6b0] sm:$0xff]
    %v414 = vld [vmem:[#allocation13 + $0x6b8] sm:$0xff]
    %v415 = vld [vmem:[#allocation13 + $0x6c0] sm:$0xff]
    %v416 = vld [vmem:[#allocation13 + $0x6c8] sm:$0xff]
    %v417 = vld [vmem:[#allocation13 + $0x6d0] sm:$0xff]
    %v418 = vld [vmem:[#allocation13 + $0x6d8] sm:$0xff]
    %v419 = vld [vmem:[#allocation13 + $0x6e0] sm:$0xff]
    %v420 = vld [vmem:[#allocation13 + $0x6e8] sm:$0xff]
    %v421 = vld [vmem:[#allocation13 + $0x6f0] sm:$0xff]
    %v422 = vld [vmem:[#allocation13 + $0x6f8] sm:$0xff]
    %v423 = vld [vmem:[#allocation13 + $0x700] sm:$0xff]
    %v424 = vld [vmem:[#allocation13 + $0x708] sm:$0xff]
    %v425 = vld [vmem:[#allocation13 + $0x710] sm:$0xff]
    %v426 = vld [vmem:[#allocation13 + $0x718] sm:$0xff]
    %v427 = vld [vmem:[#allocation13 + $0x720] sm:$0xff]
    %v428 = vld [vmem:[#allocation13 + $0x728] sm:$0xff]
    %v429 = vld [vmem:[#allocation13 + $0x730] sm:$0xff]
    %v430 = vld [vmem:[#allocation13 + $0x738] sm:$0xff]
    %v431 = vld [vmem:[#allocation13 + $0x740] sm:$0xff]
    %v432 = vld [vmem:[#allocation13 + $0x748] sm:$0xff]
    %v433 = vld [vmem:[#allocation13 + $0x750] sm:$0xff]
    %v434 = vld [vmem:[#allocation13 + $0x758] sm:$0xff]
    %v435 = vld [vmem:[#allocation13 + $0x760] sm:$0xff]
    %v436 = vld [vmem:[#allocation13 + $0x768] sm:$0xff]
    %v437 = vld [vmem:[#allocation13 + $0x770] sm:$0xff]
    %v438 = vld [vmem:[#allocation13 + $0x778] sm:$0xff]
    %v439 = vld [vmem:[#allocation13 + $0x780] sm:$0xff]
    %v440 = vld [vmem:[#allocation13 + $0x788] sm:$0xff]
    %v441 = vld [vmem:[#allocation13 + $0x790] sm:$0xff]
    %v442 = vld [vmem:[#allocation13 + $0x798] sm:$0xff]
    %v443 = vld [vmem:[#allocation13 + $0x7a0] sm:$0xff]
    %v444 = vld [vmem:[#allocation13 + $0x7a8] sm:$0xff]
    %v445 = vld [vmem:[#allocation13 + $0x7b0] sm:$0xff]
    %v446 = vld [vmem:[#allocation13 + $0x7b8] sm:$0xff]
    %v447 = vld [vmem:[#allocation13 + $0x7c0] sm:$0xff]
    %v448 = vld [vmem:[#allocation13 + $0x7c8] sm:$0xff]
    %v449 = vld [vmem:[#allocation13 + $0x7d0] sm:$0xff]
    %v450 = vld [vmem:[#allocation13 + $0x7d8] sm:$0xff]
    %v451 = vld [vmem:[#allocation13 + $0x7e0] sm:$0xff]
    %v452 = vld [vmem:[#allocation13 + $0x7e8] sm:$0xff]
    %v453 = vld [vmem:[#allocation13 + $0x7f0] sm:$0xff]
    %v454 = vld [vmem:[#allocation13 + $0x7f8] sm:$0xff]
    %v455 = vld [vmem:[#allocation5] sm:$0xff]
    %v456 = vld [vmem:[#allocation2] sm:$0xff]
    %v458 = vlaneseq
    %v459 = vshrl.u32 %v458, 7
    %v460 = vsub.s32 0, %v459
    %v461 = vrot.slane %v197, %v460
    %v462 = vlaneseq
    %v463 = vshrl.u32 %v462, 7
    %v464 = vsub.s32 1, %v463
    %v465 = vrot.slane %v197, %v464
    %v466 = vlaneseq
    %v467 = vshrl.u32 %v466, 7
    %v468 = vsub.s32 2, %v467
    %v469 = vrot.slane %v197, %v468
    %v470 = vlaneseq
    %v471 = vshrl.u32 %v470, 7
    %v472 = vsub.s32 3, %v471
    %v473 = vrot.slane %v197, %v472
    %vm478 = vcmask 261120
    %v480 = vsel %vm478, %v455, 0
    %482 = vmatprep.subr.mxu0 0.0
    %483 = vmatpush1.msra.mxu0 0.0
    %484 = vmatprep.subr.mxu0 0.0
    %485 = vmatpush1.msra.mxu0 0.0
    %486 = vmatprep.subr.mxu0 0.0
    %487 = vmatpush1.msra.mxu0 0.0
    %488 = vmatprep.subr.mxu0 0.0
    %489 = vmatpush1.msra.mxu0 0.0
    %490 = vmatprep.subr.mxu0 0.0
    %491 = vmatpush1.msra.mxu0 0.0
    %492 = vmatprep.subr.mxu0 0.0
    %493 = vmatpush1.msra.mxu0 0.0
    %494 = vmatprep.subr.mxu0 0.0
    %495 = vmatpush1.msra.mxu0 0.0
    %496 = vmatprep.subr.mxu0 0.0
    %497 = vmatpush1.msra.mxu0 0.0
    %498 = vmatprep.subr.mxu0 0.0
    %499 = vmatpush1.msra.mxu0 0.0
    %500 = vmatprep.subr.mxu0 0.0
    %501 = vmatpush1.msra.mxu0 0.0
    %502 = vmatprep.subr.mxu0 0.0
    %503 = vmatpush1.msra.mxu0 0.0
    %504 = vmatprep.subr.mxu0 0.0
    %505 = vmatpush1.msra.mxu0 0.0
    %506 = vmatprep.subr.mxu0 %v178
    %507 = vmatpush1.msra.mxu0 %v177
    %508 = vmatprep.subr.mxu0 %v174
    %509 = vmatpush1.msra.mxu0 %v173
    %510 = vmatprep.subr.mxu0 %v170
    %511 = vmatpush1.msra.mxu0 %v169
    %512 = vmatprep.subr.mxu0 %v166
    %513 = vmatpush1.msra.mxu0 %v165
    %514 = vmatprep.subr.mxu0 0.0
    %515 = vmatpush2.msra.mxu0 0.0
    %516 = vmatprep.subr.mxu0 0.0
    %517 = vmatpush2.msra.mxu0 0.0
    %518 = vmatprep.subr.mxu0 0.0
    %519 = vmatpush2.msra.mxu0 0.0
    %520 = vmatprep.subr.mxu0 0.0
    %521 = vmatpush2.msra.mxu0 0.0
    %522 = vmatprep.subr.mxu0 0.0
    %523 = vmatpush2.msra.mxu0 0.0
    %524 = vmatprep.subr.mxu0 0.0
    %525 = vmatpush2.msra.mxu0 0.0
    %526 = vmatprep.subr.mxu0 0.0
    %527 = vmatpush2.msra.mxu0 0.0
    %528 = vmatprep.subr.mxu0 0.0
    %529 = vmatpush2.msra.mxu0 0.0
    %530 = vmatprep.subr.mxu0 0.0
    %531 = vmatpush2.msra.mxu0 0.0
    %532 = vmatprep.subr.mxu0 0.0
    %533 = vmatpush2.msra.mxu0 0.0
    %534 = vmatprep.subr.mxu0 0.0
    %535 = vmatpush2.msra.mxu0 0.0
    %536 = vmatprep.subr.mxu0 0.0
    %537 = vmatpush2.msra.mxu0 0.0
    %538 = vmatprep.subr.mxu0 0.0
    %539 = vmatpush2.msra.mxu0 0.0
    %540 = vmatprep.subr.mxu0 0.0
    %541 = vmatpush2.msra.mxu0 0.0
    %542 = vmatprep.subr.mxu0 0.0
    %543 = vmatpush2.msra.mxu0 0.0
    %544 = vmatprep.subr.mxu0 0.0
    %545 = vmatpush2.msra.mxu0 0.0
    %546 = vmatprep.mubr.f32.mxu0 0.0
    %547 = vmatmul.mubr.f32.gmra.mxu0 %v480
    %v548 = vpop.f32.mrf.mxu0
    %v549 = vadd.f32 %v461, %v548
    %v550 = vpop.f32.mrf.mxu0
    %v551 = vadd.f32 %v465, %v550
    %552 = vdwg.mxu0
    %553 = vmatprep.subr.mxu0 0.0
    %554 = vmatpush1.msra.mxu0 0.0
    %555 = vmatprep.subr.mxu0 0.0
    %556 = vmatpush1.msra.mxu0 0.0
    %557 = vmatprep.subr.mxu0 0.0
    %558 = vmatpush1.msra.mxu0 0.0
    %559 = vmatprep.subr.mxu0 0.0
    %560 = vmatpush1.msra.mxu0 0.0
    %561 = vmatprep.subr.mxu0 0.0
    %562 = vmatpush1.msra.mxu0 0.0
    %563 = vmatprep.subr.mxu0 0.0
    %564 = vmatpush1.msra.mxu0 0.0
    %565 = vmatprep.subr.mxu0 0.0
    %566 = vmatpush1.msra.mxu0 0.0
    %567 = vmatprep.subr.mxu0 0.0
    %568 = vmatpush1.msra.mxu0 0.0
    %569 = vmatprep.subr.mxu0 0.0
    %570 = vmatpush1.msra.mxu0 0.0
    %571 = vmatprep.subr.mxu0 0.0
    %572 = vmatpush1.msra.mxu0 0.0
    %573 = vmatprep.subr.mxu0 0.0
    %574 = vmatpush1.msra.mxu0 0.0
    %575 = vmatprep.subr.mxu0 0.0
    %576 = vmatpush1.msra.mxu0 0.0
    %577 = vmatprep.subr.mxu0 %v180
    %578 = vmatpush1.msra.mxu0 %v179
    %579 = vmatprep.subr.mxu0 %v176
    %580 = vmatpush1.msra.mxu0 %v175
    %581 = vmatprep.subr.mxu0 %v172
    %582 = vmatpush1.msra.mxu0 %v171
    %583 = vmatprep.subr.mxu0 %v168
    %584 = vmatpush1.msra.mxu0 %v167
    %585 = vmatprep.subr.mxu0 0.0
    %586 = vmatpush2.msra.mxu0 0.0
    %587 = vmatprep.subr.mxu0 0.0
    %588 = vmatpush2.msra.mxu0 0.0
    %589 = vmatprep.subr.mxu0 0.0
    %590 = vmatpush2.msra.mxu0 0.0
    %591 = vmatprep.subr.mxu0 0.0
    %592 = vmatpush2.msra.mxu0 0.0
    %593 = vmatprep.subr.mxu0 0.0
    %594 = vmatpush2.msra.mxu0 0.0
    %595 = vmatprep.subr.mxu0 0.0
    %596 = vmatpush2.msra.mxu0 0.0
    %597 = vmatprep.subr.mxu0 0.0
    %598 = vmatpush2.msra.mxu0 0.0
    %599 = vmatprep.subr.mxu0 0.0
    %600 = vmatpush2.msra.mxu0 0.0
    %601 = vmatprep.subr.mxu0 0.0
    %602 = vmatpush2.msra.mxu0 0.0
    %603 = vmatprep.subr.mxu0 0.0
    %604 = vmatpush2.msra.mxu0 0.0
    %605 = vmatprep.subr.mxu0 0.0
    %606 = vmatpush2.msra.mxu0 0.0
    %607 = vmatprep.subr.mxu0 0.0
    %608 = vmatpush2.msra.mxu0 0.0
    %609 = vmatprep.subr.mxu0 0.0
    %610 = vmatpush2.msra.mxu0 0.0
    %611 = vmatprep.subr.mxu0 0.0
    %612 = vmatpush2.msra.mxu0 0.0
    %613 = vmatprep.subr.mxu0 0.0
    %614 = vmatpush2.msra.mxu0 0.0
    %615 = vmatprep.subr.mxu0 0.0
    %616 = vmatpush2.msra.mxu0 0.0
    %617 = vmatprep.mubr.f32.mxu0 0.0
    %618 = vmatmul.mubr.f32.gmra.mxu0 %v480
    %v619 = vpop.f32.mrf.mxu0
    %v620 = vadd.f32 %v469, %v619
    %v621 = vpop.f32.mrf.mxu0
    %v622 = vadd.f32 %v473, %v621
    %623 = vdwg.mxu0
    %v625 = vlaneseq
    %v626 = vshrl.u32 %v625, 7
    %v627 = vsub.s32 0, %v626
    %v628 = vrot.slane %v198, %v627
    %v629 = vlaneseq
    %v630 = vshrl.u32 %v629, 7
    %v631 = vsub.s32 1, %v630
    %v632 = vrot.slane %v198, %v631
    %v633 = vlaneseq
    %v634 = vshrl.u32 %v633, 7
    %v635 = vsub.s32 2, %v634
    %v636 = vrot.slane %v198, %v635
    %v637 = vlaneseq
    %v638 = vshrl.u32 %v637, 7
    %v639 = vsub.s32 3, %v638
    %v640 = vrot.slane %v198, %v639
    %v646 = vsel %vm478, %v456, 0
    %648 = vmatprep.subr.mxu0 0.0
    %649 = vmatpush1.msra.mxu0 0.0
    %650 = vmatprep.subr.mxu0 0.0
    %651 = vmatpush1.msra.mxu0 0.0
    %652 = vmatprep.subr.mxu0 0.0
    %653 = vmatpush1.msra.mxu0 0.0
    %654 = vmatprep.subr.mxu0 0.0
    %655 = vmatpush1.msra.mxu0 0.0
    %656 = vmatprep.subr.mxu0 0.0
    %657 = vmatpush1.msra.mxu0 0.0
    %658 = vmatprep.subr.mxu0 0.0
    %659 = vmatpush1.msra.mxu0 0.0
    %660 = vmatprep.subr.mxu0 0.0
    %661 = vmatpush1.msra.mxu0 0.0
    %662 = vmatprep.subr.mxu0 0.0
    %663 = vmatpush1.msra.mxu0 0.0
    %664 = vmatprep.subr.mxu0 0.0
    %665 = vmatpush1.msra.mxu0 0.0
    %666 = vmatprep.subr.mxu0 0.0
    %667 = vmatpush1.msra.mxu0 0.0
    %668 = vmatprep.subr.mxu0 0.0
    %669 = vmatpush1.msra.mxu0 0.0
    %670 = vmatprep.subr.mxu0 0.0
    %671 = vmatpush1.msra.mxu0 0.0
    %672 = vmatprep.subr.mxu0 %v194
    %673 = vmatpush1.msra.mxu0 %v193
    %674 = vmatprep.subr.mxu0 %v190
    %675 = vmatpush1.msra.mxu0 %v189
    %676 = vmatprep.subr.mxu0 %v186
    %677 = vmatpush1.msra.mxu0 %v185
    %678 = vmatprep.subr.mxu0 %v182
    %679 = vmatpush1.msra.mxu0 %v181
    %680 = vmatprep.subr.mxu0 0.0
    %681 = vmatpush2.msra.mxu0 0.0
    %682 = vmatprep.subr.mxu0 0.0
    %683 = vmatpush2.msra.mxu0 0.0
    %684 = vmatprep.subr.mxu0 0.0
    %685 = vmatpush2.msra.mxu0 0.0
    %686 = vmatprep.subr.mxu0 0.0
    %687 = vmatpush2.msra.mxu0 0.0
    %688 = vmatprep.subr.mxu0 0.0
    %689 = vmatpush2.msra.mxu0 0.0
    %690 = vmatprep.subr.mxu0 0.0
    %691 = vmatpush2.msra.mxu0 0.0
    %692 = vmatprep.subr.mxu0 0.0
    %693 = vmatpush2.msra.mxu0 0.0
    %694 = vmatprep.subr.mxu0 0.0
    %695 = vmatpush2.msra.mxu0 0.0
    %696 = vmatprep.subr.mxu0 0.0
    %697 = vmatpush2.msra.mxu0 0.0
    %698 = vmatprep.subr.mxu0 0.0
    %699 = vmatpush2.msra.mxu0 0.0
    %700 = vmatprep.subr.mxu0 0.0
    %701 = vmatpush2.msra.mxu0 0.0
    %702 = vmatprep.subr.mxu0 0.0
    %703 = vmatpush2.msra.mxu0 0.0
    %704 = vmatprep.subr.mxu0 0.0
    %705 = vmatpush2.msra.mxu0 0.0
    %706 = vmatprep.subr.mxu0 0.0
    %707 = vmatpush2.msra.mxu0 0.0
    %708 = vmatprep.subr.mxu0 0.0
    %709 = vmatpush2.msra.mxu0 0.0
    %710 = vmatprep.subr.mxu0 0.0
    %711 = vmatpush2.msra.mxu0 0.0
    %712 = vmatprep.mubr.f32.mxu0 0.0
    %713 = vmatmul.mubr.f32.gmra.mxu0 %v646
    %v714 = vpop.f32.mrf.mxu0
    %v715 = vadd.f32 %v628, %v714
    %v716 = vpop.f32.mrf.mxu0
    %v717 = vadd.f32 %v632, %v716
    %718 = vdwg.mxu0
    %719 = vmatprep.subr.mxu0 0.0
    %720 = vmatpush1.msra.mxu0 0.0
    %721 = vmatprep.subr.mxu0 0.0
    %722 = vmatpush1.msra.mxu0 0.0
    %723 = vmatprep.subr.mxu0 0.0
    %724 = vmatpush1.msra.mxu0 0.0
    %725 = vmatprep.subr.mxu0 0.0
    %726 = vmatpush1.msra.mxu0 0.0
    %727 = vmatprep.subr.mxu0 0.0
    %728 = vmatpush1.msra.mxu0 0.0
    %729 = vmatprep.subr.mxu0 0.0
    %730 = vmatpush1.msra.mxu0 0.0
    %731 = vmatprep.subr.mxu0 0.0
    %732 = vmatpush1.msra.mxu0 0.0
    %733 = vmatprep.subr.mxu0 0.0
    %734 = vmatpush1.msra.mxu0 0.0
    %735 = vmatprep.subr.mxu0 0.0
    %736 = vmatpush1.msra.mxu0 0.0
    %737 = vmatprep.subr.mxu0 0.0
    %738 = vmatpush1.msra.mxu0 0.0
    %739 = vmatprep.subr.mxu0 0.0
    %740 = vmatpush1.msra.mxu0 0.0
    %741 = vmatprep.subr.mxu0 0.0
    %742 = vmatpush1.msra.mxu0 0.0
    %743 = vmatprep.subr.mxu0 %v196
    %744 = vmatpush1.msra.mxu0 %v195
    %745 = vmatprep.subr.mxu0 %v192
    %746 = vmatpush1.msra.mxu0 %v191
    %747 = vmatprep.subr.mxu0 %v188
    %748 = vmatpush1.msra.mxu0 %v187
    %749 = vmatprep.subr.mxu0 %v184
    %750 = vmatpush1.msra.mxu0 %v183
    %751 = vmatprep.subr.mxu0 0.0
    %752 = vmatpush2.msra.mxu0 0.0
    %753 = vmatprep.subr.mxu0 0.0
    %754 = vmatpush2.msra.mxu0 0.0
    %755 = vmatprep.subr.mxu0 0.0
    %756 = vmatpush2.msra.mxu0 0.0
    %757 = vmatprep.subr.mxu0 0.0
    %758 = vmatpush2.msra.mxu0 0.0
    %759 = vmatprep.subr.mxu0 0.0
    %760 = vmatpush2.msra.mxu0 0.0
    %761 = vmatprep.subr.mxu0 0.0
    %762 = vmatpush2.msra.mxu0 0.0
    %763 = vmatprep.subr.mxu0 0.0
    %764 = vmatpush2.msra.mxu0 0.0
    %765 = vmatprep.subr.mxu0 0.0
    %766 = vmatpush2.msra.mxu0 0.0
    %767 = vmatprep.subr.mxu0 0.0
    %768 = vmatpush2.msra.mxu0 0.0
    %769 = vmatprep.subr.mxu0 0.0
    %770 = vmatpush2.msra.mxu0 0.0
    %771 = vmatprep.subr.mxu0 0.0
    %772 = vmatpush2.msra.mxu0 0.0
    %773 = vmatprep.subr.mxu0 0.0
    %774 = vmatpush2.msra.mxu0 0.0
    %775 = vmatprep.subr.mxu0 0.0
    %776 = vmatpush2.msra.mxu0 0.0
    %777 = vmatprep.subr.mxu0 0.0
    %778 = vmatpush2.msra.mxu0 0.0
    %779 = vmatprep.subr.mxu0 0.0
    %780 = vmatpush2.msra.mxu0 0.0
    %781 = vmatprep.subr.mxu0 0.0
    %782 = vmatpush2.msra.mxu0 0.0
    %783 = vmatprep.mubr.f32.mxu0 0.0
    %784 = vmatmul.mubr.f32.gmra.mxu0 %v646
    %v785 = vpop.f32.mrf.mxu0
    %v786 = vadd.f32 %v636, %v785
    %v787 = vpop.f32.mrf.mxu0
    %v788 = vadd.f32 %v640, %v787
    %789 = vdwg.mxu0
    %790 = vst [vmem:[#allocation3] sm:$0xff] %v549
    %791 = vst [vmem:[#allocation3 + $0x8] sm:$0xff] %v715
    %792 = vst [vmem:[#allocation3 + $0x10] sm:$0xff] %v551
    %793 = vst [vmem:[#allocation3 + $0x18] sm:$0xff] %v717
    %794 = vst [vmem:[#allocation3 + $0x20] sm:$0xff] %v620
    %795 = vst [vmem:[#allocation3 + $0x28] sm:$0xff] %v786
    %796 = vst [vmem:[#allocation3 + $0x30] sm:$0xff] %v622
    %797 = vst [vmem:[#allocation3 + $0x38] sm:$0xff] %v788
    %v798 = vld [vmem:[#allocation3] ss:$8 sm:$0xf]
    %v799 = vld [vmem:[#allocation3] ss:$8 sm:$0xf0]
    %v800 = vor.u32 %v798, %v799
    %801 = vmatprep.subr.mxu0 %v320
    %802 = vmatpush1.msra.mxu0 %v319
    %803 = vmatprep.subr.mxu0 %v312
    %804 = vmatpush1.msra.mxu0 %v311
    %805 = vmatprep.subr.mxu0 %v304
    %806 = vmatpush1.msra.mxu0 %v303
    %807 = vmatprep.subr.mxu0 %v296
    %808 = vmatpush1.msra.mxu0 %v295
    %809 = vmatprep.subr.mxu0 %v288
    %810 = vmatpush1.msra.mxu0 %v287
    %811 = vmatprep.subr.mxu0 %v280
    %812 = vmatpush1.msra.mxu0 %v279
    %813 = vmatprep.subr.mxu0 %v272
    %814 = vmatpush1.msra.mxu0 %v271
    %815 = vmatprep.subr.mxu0 %v264
    %816 = vmatpush1.msra.mxu0 %v263
    %817 = vmatprep.subr.mxu0 %v256
    %818 = vmatpush1.msra.mxu0 %v255
    %819 = vmatprep.subr.mxu0 %v248
    %820 = vmatpush1.msra.mxu0 %v247
    %821 = vmatprep.subr.mxu0 %v240
    %822 = vmatpush1.msra.mxu0 %v239
    %823 = vmatprep.subr.mxu0 %v232
    %824 = vmatpush1.msra.mxu0 %v231
    %825 = vmatprep.subr.mxu0 %v224
    %826 = vmatpush1.msra.mxu0 %v223
    %827 = vmatprep.subr.mxu0 %v216
    %828 = vmatpush1.msra.mxu0 %v215
    %829 = vmatprep.subr.mxu0 %v208
    %830 = vmatpush1.msra.mxu0 %v207
    %831 = vmatprep.subr.mxu0 %v200
    %832 = vmatpush1.msra.mxu0 %v199
    %833 = vmatprep.subr.mxu0 %v448
    %834 = vmatpush2.msra.mxu0 %v447
    %835 = vmatprep.subr.mxu0 %v440
    %836 = vmatpush2.msra.mxu0 %v439
    %837 = vmatprep.subr.mxu0 %v432
    %838 = vmatpush2.msra.mxu0 %v431
    %839 = vmatprep.subr.mxu0 %v424
    %840 = vmatpush2.msra.mxu0 %v423
    %841 = vmatprep.subr.mxu0 %v416
    %842 = vmatpush2.msra.mxu0 %v415
    %843 = vmatprep.subr.mxu0 %v408
    %844 = vmatpush2.msra.mxu0 %v407
    %845 = vmatprep.subr.mxu0 %v400
    %846 = vmatpush2.msra.mxu0 %v399
    %847 = vmatprep.subr.mxu0 %v392
    %848 = vmatpush2.msra.mxu0 %v391
    %849 = vmatprep.subr.mxu0 %v384
    %850 = vmatpush2.msra.mxu0 %v383
    %851 = vmatprep.subr.mxu0 %v376
    %852 = vmatpush2.msra.mxu0 %v375
    %853 = vmatprep.subr.mxu0 %v368
    %854 = vmatpush2.msra.mxu0 %v367
    %855 = vmatprep.subr.mxu0 %v360
    %856 = vmatpush2.msra.mxu0 %v359
    %857 = vmatprep.subr.mxu0 %v352
    %858 = vmatpush2.msra.mxu0 %v351
    %859 = vmatprep.subr.mxu0 %v344
    %860 = vmatpush2.msra.mxu0 %v343
    %861 = vmatprep.subr.mxu0 %v336
    %862 = vmatpush2.msra.mxu0 %v335
    %863 = vmatprep.subr.mxu0 %v328
    %864 = vmatpush2.msra.mxu0 %v327
    %865 = vmatprep.mubr.f32.mxu0 0.0
    %866 = vmatmul.mubr.f32.gmra.mxu0 0.0
    %v867 = vpop.f32.mrf.mxu0
    %v868 = vadd.f32 0.0, %v867
    %v869 = vpop.f32.mrf.mxu0
    %v870 = vadd.f32 0.0, %v869
    %871 = vdwg.mxu0
    %872 = vmatprep.subr.mxu0 %v322
    %873 = vmatpush1.msra.mxu0 %v321
    %874 = vmatprep.subr.mxu0 %v314
    %875 = vmatpush1.msra.mxu0 %v313
    %876 = vmatprep.subr.mxu0 %v306
    %877 = vmatpush1.msra.mxu0 %v305
    %878 = vmatprep.subr.mxu0 %v298
    %879 = vmatpush1.msra.mxu0 %v297
    %880 = vmatprep.subr.mxu0 %v290
    %881 = vmatpush1.msra.mxu0 %v289
    %882 = vmatprep.subr.mxu0 %v282
    %883 = vmatpush1.msra.mxu0 %v281
    %884 = vmatprep.subr.mxu0 %v274
    %885 = vmatpush1.msra.mxu0 %v273
    %886 = vmatprep.subr.mxu0 %v266
    %887 = vmatpush1.msra.mxu0 %v265
    %888 = vmatprep.subr.mxu0 %v258
    %889 = vmatpush1.msra.mxu0 %v257
    %890 = vmatprep.subr.mxu0 %v250
    %891 = vmatpush1.msra.mxu0 %v249
    %892 = vmatprep.subr.mxu0 %v242
    %893 = vmatpush1.msra.mxu0 %v241
    %894 = vmatprep.subr.mxu0 %v234
    %895 = vmatpush1.msra.mxu0 %v233
    %896 = vmatprep.subr.mxu0 %v226
    %897 = vmatpush1.msra.mxu0 %v225
    %898 = vmatprep.subr.mxu0 %v218
    %899 = vmatpush1.msra.mxu0 %v217
    %900 = vmatprep.subr.mxu0 %v210
    %901 = vmatpush1.msra.mxu0 %v209
    %902 = vmatprep.subr.mxu0 %v202
    %903 = vmatpush1.msra.mxu0 %v201
    %904 = vmatprep.subr.mxu0 %v450
    %905 = vmatpush2.msra.mxu0 %v449
    %906 = vmatprep.subr.mxu0 %v442
    %907 = vmatpush2.msra.mxu0 %v441
    %908 = vmatprep.subr.mxu0 %v434
    %909 = vmatpush2.msra.mxu0 %v433
    %910 = vmatprep.subr.mxu0 %v426
    %911 = vmatpush2.msra.mxu0 %v425
    %912 = vmatprep.subr.mxu0 %v418
    %913 = vmatpush2.msra.mxu0 %v417
    %914 = vmatprep.subr.mxu0 %v410
    %915 = vmatpush2.msra.mxu0 %v409
    %916 = vmatprep.subr.mxu0 %v402
    %917 = vmatpush2.msra.mxu0 %v401
    %918 = vmatprep.subr.mxu0 %v394
    %919 = vmatpush2.msra.mxu0 %v393
    %920 = vmatprep.subr.mxu0 %v386
    %921 = vmatpush2.msra.mxu0 %v385
    %922 = vmatprep.subr.mxu0 %v378
    %923 = vmatpush2.msra.mxu0 %v377
    %924 = vmatprep.subr.mxu0 %v370
    %925 = vmatpush2.msra.mxu0 %v369
    %926 = vmatprep.subr.mxu0 %v362
    %927 = vmatpush2.msra.mxu0 %v361
    %928 = vmatprep.subr.mxu0 %v354
    %929 = vmatpush2.msra.mxu0 %v353
    %930 = vmatprep.subr.mxu0 %v346
    %931 = vmatpush2.msra.mxu0 %v345
    %932 = vmatprep.subr.mxu0 %v338
    %933 = vmatpush2.msra.mxu0 %v337
    %934 = vmatprep.subr.mxu0 %v330
    %935 = vmatpush2.msra.mxu0 %v329
    %936 = vmatprep.mubr.f32.mxu0 0.0
    %937 = vmatmul.mubr.f32.gmra.mxu0 0.0
    %v938 = vpop.f32.mrf.mxu0
    %v939 = vadd.f32 0.0, %v938
    %v940 = vpop.f32.mrf.mxu0
    %v941 = vadd.f32 0.0, %v940
    %942 = vdwg.mxu0
    %943 = vmatprep.subr.mxu0 %v324
    %944 = vmatpush1.msra.mxu0 %v323
    %945 = vmatprep.subr.mxu0 %v316
    %946 = vmatpush1.msra.mxu0 %v315
    %947 = vmatprep.subr.mxu0 %v308
    %948 = vmatpush1.msra.mxu0 %v307
    %949 = vmatprep.subr.mxu0 %v300
    %950 = vmatpush1.msra.mxu0 %v299
    %951 = vmatprep.subr.mxu0 %v292
    %952 = vmatpush1.msra.mxu0 %v291
    %953 = vmatprep.subr.mxu0 %v284
    %954 = vmatpush1.msra.mxu0 %v283
    %955 = vmatprep.subr.mxu0 %v276
    %956 = vmatpush1.msra.mxu0 %v275
    %957 = vmatprep.subr.mxu0 %v268
    %958 = vmatpush1.msra.mxu0 %v267
    %959 = vmatprep.subr.mxu0 %v260
    %960 = vmatpush1.msra.mxu0 %v259
    %961 = vmatprep.subr.mxu0 %v252
    %962 = vmatpush1.msra.mxu0 %v251
    %963 = vmatprep.subr.mxu0 %v244
    %964 = vmatpush1.msra.mxu0 %v243
    %965 = vmatprep.subr.mxu0 %v236
    %966 = vmatpush1.msra.mxu0 %v235
    %967 = vmatprep.subr.mxu0 %v228
    %968 = vmatpush1.msra.mxu0 %v227
    %969 = vmatprep.subr.mxu0 %v220
    %970 = vmatpush1.msra.mxu0 %v219
    %971 = vmatprep.subr.mxu0 %v212
    %972 = vmatpush1.msra.mxu0 %v211
    %973 = vmatprep.subr.mxu0 %v204
    %974 = vmatpush1.msra.mxu0 %v203
    %975 = vmatprep.subr.mxu0 %v452
    %976 = vmatpush2.msra.mxu0 %v451
    %977 = vmatprep.subr.mxu0 %v444
    %978 = vmatpush2.msra.mxu0 %v443
    %979 = vmatprep.subr.mxu0 %v436
    %980 = vmatpush2.msra.mxu0 %v435
    %981 = vmatprep.subr.mxu0 %v428
    %982 = vmatpush2.msra.mxu0 %v427
    %983 = vmatprep.subr.mxu0 %v420
    %984 = vmatpush2.msra.mxu0 %v419
    %985 = vmatprep.subr.mxu0 %v412
    %986 = vmatpush2.msra.mxu0 %v411
    %987 = vmatprep.subr.mxu0 %v404
    %988 = vmatpush2.msra.mxu0 %v403
    %989 = vmatprep.subr.mxu0 %v396
    %990 = vmatpush2.msra.mxu0 %v395
    %991 = vmatprep.subr.mxu0 %v388
    %992 = vmatpush2.msra.mxu0 %v387
    %993 = vmatprep.subr.mxu0 %v380
    %994 = vmatpush2.msra.mxu0 %v379
    %995 = vmatprep.subr.mxu0 %v372
    %996 = vmatpush2.msra.mxu0 %v371
    %997 = vmatprep.subr.mxu0 %v364
    %998 = vmatpush2.msra.mxu0 %v363
    %999 = vmatprep.subr.mxu0 %v356
    %1000 = vmatpush2.msra.mxu0 %v355
    %1001 = vmatprep.subr.mxu0 %v348
    %1002 = vmatpush2.msra.mxu0 %v347
    %1003 = vmatprep.subr.mxu0 %v340
    %1004 = vmatpush2.msra.mxu0 %v339
    %1005 = vmatprep.subr.mxu0 %v332
    %1006 = vmatpush2.msra.mxu0 %v331
    %1007 = vmatprep.mubr.f32.mxu0 0.0
    %1008 = vmatmul.mubr.f32.gmra.mxu0 0.0
    %v1009 = vpop.f32.mrf.mxu0
    %v1010 = vadd.f32 0.0, %v1009
    %v1011 = vpop.f32.mrf.mxu0
    %v1012 = vadd.f32 0.0, %v1011
    %1013 = vdwg.mxu0
    %1014 = vmatprep.subr.mxu0 %v326
    %1015 = vmatpush1.msra.mxu0 %v325
    %1016 = vmatprep.subr.mxu0 %v318
    %1017 = vmatpush1.msra.mxu0 %v317
    %1018 = vmatprep.subr.mxu0 %v310
    %1019 = vmatpush1.msra.mxu0 %v309
    %1020 = vmatprep.subr.mxu0 %v302
    %1021 = vmatpush1.msra.mxu0 %v301
    %1022 = vmatprep.subr.mxu0 %v294
    %1023 = vmatpush1.msra.mxu0 %v293
    %1024 = vmatprep.subr.mxu0 %v286
    %1025 = vmatpush1.msra.mxu0 %v285
    %1026 = vmatprep.subr.mxu0 %v278
    %1027 = vmatpush1.msra.mxu0 %v277
    %1028 = vmatprep.subr.mxu0 %v270
    %1029 = vmatpush1.msra.mxu0 %v269
    %1030 = vmatprep.subr.mxu0 %v262
    %1031 = vmatpush1.msra.mxu0 %v261
    %1032 = vmatprep.subr.mxu0 %v254
    %1033 = vmatpush1.msra.mxu0 %v253
    %1034 = vmatprep.subr.mxu0 %v246
    %1035 = vmatpush1.msra.mxu0 %v245
    %1036 = vmatprep.subr.mxu0 %v238
    %1037 = vmatpush1.msra.mxu0 %v237
    %1038 = vmatprep.subr.mxu0 %v230
    %1039 = vmatpush1.msra.mxu0 %v229
    %1040 = vmatprep.subr.mxu0 %v222
    %1041 = vmatpush1.msra.mxu0 %v221
    %1042 = vmatprep.subr.mxu0 %v214
    %1043 = vmatpush1.msra.mxu0 %v213
    %1044 = vmatprep.subr.mxu0 %v206
    %1045 = vmatpush1.msra.mxu0 %v205
    %1046 = vmatprep.subr.mxu0 %v454
    %1047 = vmatpush2.msra.mxu0 %v453
    %1048 = vmatprep.subr.mxu0 %v446
    %1049 = vmatpush2.msra.mxu0 %v445
    %1050 = vmatprep.subr.mxu0 %v438
    %1051 = vmatpush2.msra.mxu0 %v437
    %1052 = vmatprep.subr.mxu0 %v430
    %1053 = vmatpush2.msra.mxu0 %v429
    %1054 = vmatprep.subr.mxu0 %v422
    %1055 = vmatpush2.msra.mxu0 %v421
    %1056 = vmatprep.subr.mxu0 %v414
    %1057 = vmatpush2.msra.mxu0 %v413
    %1058 = vmatprep.subr.mxu0 %v406
    %1059 = vmatpush2.msra.mxu0 %v405
    %1060 = vmatprep.subr.mxu0 %v398
    %1061 = vmatpush2.msra.mxu0 %v397
    %1062 = vmatprep.subr.mxu0 %v390
    %1063 = vmatpush2.msra.mxu0 %v389
    %1064 = vmatprep.subr.mxu0 %v382
    %1065 = vmatpush2.msra.mxu0 %v381
    %1066 = vmatprep.subr.mxu0 %v374
    %1067 = vmatpush2.msra.mxu0 %v373
    %1068 = vmatprep.subr.mxu0 %v366
    %1069 = vmatpush2.msra.mxu0 %v365
    %1070 = vmatprep.subr.mxu0 %v358
    %1071 = vmatpush2.msra.mxu0 %v357
    %1072 = vmatprep.subr.mxu0 %v350
    %1073 = vmatpush2.msra.mxu0 %v349
    %1074 = vmatprep.subr.mxu0 %v342
    %1075 = vmatpush2.msra.mxu0 %v341
    %1076 = vmatprep.subr.mxu0 %v334
    %1077 = vmatpush2.msra.mxu0 %v333
    %1078 = vmatprep.mubr.f32.mxu0 0.0
    %1079 = vmatmul.mubr.f32.gmra.mxu0 0.0
    %v1080 = vpop.f32.mrf.mxu0
    %v1081 = vadd.f32 0.0, %v1080
    %v1082 = vpop.f32.mrf.mxu0
    %v1083 = vadd.f32 0.0, %v1082
    %1084 = vdwg.mxu0
    %v1093 = vcombine.low %v868, %v870
    %v1094 = vcombine.low %v939, %v941
    %v1095 = vcombine.low %v1010, %v1012
    %v1096 = vcombine.low %v1081, %v1083
    %v1098 = vunpack.c.l.s4 1966171168
    %v1099 = vunpack.c.0.s8 %v1098
    %v1100 = vlaneseq
    %v1101 = vshrl.u32 %v1100, 7
    %v1102 = vsub.s32 %v1099, %v1101
    %v1103 = vrot.slane %v1093, %v1102
    %v1105 = vunpack.c.l.s4 1966171168
    %v1106 = vunpack.c.0.s8 %v1105
    %v1107 = vlaneseq
    %v1108 = vshrl.u32 %v1107, 7
    %v1109 = vsub.s32 %v1106, %v1108
    %v1110 = vrot.slane %v1094, %v1109
    %v1112 = vunpack.c.l.s4 1966171168
    %v1113 = vunpack.c.0.s8 %v1112
    %v1114 = vlaneseq
    %v1115 = vshrl.u32 %v1114, 7
    %v1116 = vsub.s32 %v1113, %v1115
    %v1117 = vrot.slane %v1095, %v1116
    %v1119 = vunpack.c.l.s4 1966171168
    %v1120 = vunpack.c.0.s8 %v1119
    %v1121 = vlaneseq
    %v1122 = vshrl.u32 %v1121, 7
    %v1123 = vsub.s32 %v1120, %v1122
    %v1124 = vrot.slane %v1096, %v1123
    %v1125 = vcombine.low %v1103, %v1110
    %v1126 = vcombine.low %v1117, %v1124
    %v1128 = vunpack.c.l.s4 1966171168
    %v1129 = vunpack.c.0.s8 %v1128
    %v1130 = vlaneseq
    %v1131 = vshrl.u32 %v1130, 7
    %v1132 = vsub.s32 %v1129, %v1131
    %v1133 = vrot.slane %v1125, %v1132
    %v1135 = vunpack.c.l.s4 1966171168
    %v1136 = vunpack.c.0.s8 %v1135
    %v1137 = vlaneseq
    %v1138 = vshrl.u32 %v1137, 7
    %v1139 = vsub.s32 %v1136, %v1138
    %v1140 = vrot.slane %v1126, %v1139
    %v1141 = vcombine.low %v1133, %v1140
    %v1143 = vadd.f32 %v800, %v1141
    %v1144 = vxor.u32 %v1143, 2147483648
    %v1145 = vmul.f32 %v1144, 1.442695
    %v1146 = vpow.pop %v1145
    %v1147 = vadd.f32 %v1146, 1.0
    %v1148 = vrcp.pop %v1147
    %v1149 = vmul.f32 1.0, %v1148
    %v1151 = vrot.slane %v1143, 2
    %v1153 = vxor.u32 %v1151, 2147483648
    %v1154 = vmul.f32 %v1153, 1.442695
    %v1155 = vpow.pop %v1154
    %v1156 = vadd.f32 %v1155, 1.0
    %v1157 = vrcp.pop %v1156
    %v1158 = vmul.f32 1.0, %v1157
    %v1159 = vrot.slane %v1143, 4
    %v1161 = vtanh.pop %v1159
    %v1162 = vrot.slane %v1143, 6
    %v1164 = vxor.u32 %v1162, 2147483648
    %v1165 = vmul.f32 %v1164, 1.442695
    %v1166 = vpow.pop %v1165
    %v1167 = vadd.f32 %v1166, 1.0
    %v1168 = vrcp.pop %v1167
    %v1169 = vmul.f32 1.0, %v1168
    %v1170 = vmul.f32 %v1158, 0.0
    %v1171 = vmul.f32 %v1149, %v1161
    %v1172 = vadd.f32 %v1170, %v1171
    %v1173 = vtanh.pop %v1172
    %v1174 = vmul.f32 %v1169, %v1173
    %v1175 = vlaneseq
    %vm1176 = vcmp.ge.s32.totalorder %v1175, 0
    %vm1177 = vcmp.lt.s32.totalorder %v1175, 256
    %vm1178 = vmand %vm1176, %vm1177
    %1179 = vst.msk [vmem:[#allocation4] ss:$8 sm:$0x3] %vm1178, %v1174
    %1180 = vst.msk [vmem:[#allocation4] ss:$8 sm:$0x0] %vm1178, %v1174
    %s1181 = scalar_lea.vmem [#allocation3], 1
    %v1182 = vld [vmem:[%s1181] ss:$8 sm:$0xf]
    %v1183 = vld [vmem:[%s1181] ss:$8 sm:$0xf0]
    %v1184 = vor.u32 %v1182, %v1183
    %v1186 = vlaneseq
    %v1187 = vshrl.u32 %v1186, 7
    %v1188 = vsub.s32 0, %v1187
    %v1189 = vrot.slane %v1174, %v1188
    %v1190 = vlaneseq
    %v1191 = vshrl.u32 %v1190, 7
    %v1192 = vsub.s32 1, %v1191
    %v1193 = vrot.slane %v1174, %v1192
    %1196 = vmatprep.subr.mxu0 %v320
    %1197 = vmatpush1.msra.mxu0 %v319
    %1198 = vmatprep.subr.mxu0 %v312
    %1199 = vmatpush1.msra.mxu0 %v311
    %1200 = vmatprep.subr.mxu0 %v304
    %1201 = vmatpush1.msra.mxu0 %v303
    %1202 = vmatprep.subr.mxu0 %v296
    %1203 = vmatpush1.msra.mxu0 %v295
    %1204 = vmatprep.subr.mxu0 %v288
    %1205 = vmatpush1.msra.mxu0 %v287
    %1206 = vmatprep.subr.mxu0 %v280
    %1207 = vmatpush1.msra.mxu0 %v279
    %1208 = vmatprep.subr.mxu0 %v272
    %1209 = vmatpush1.msra.mxu0 %v271
    %1210 = vmatprep.subr.mxu0 %v264
    %1211 = vmatpush1.msra.mxu0 %v263
    %1212 = vmatprep.subr.mxu0 %v256
    %1213 = vmatpush1.msra.mxu0 %v255
    %1214 = vmatprep.subr.mxu0 %v248
    %1215 = vmatpush1.msra.mxu0 %v247
    %1216 = vmatprep.subr.mxu0 %v240
    %1217 = vmatpush1.msra.mxu0 %v239
    %1218 = vmatprep.subr.mxu0 %v232
    %1219 = vmatpush1.msra.mxu0 %v231
    %1220 = vmatprep.subr.mxu0 %v224
    %1221 = vmatpush1.msra.mxu0 %v223
    %1222 = vmatprep.subr.mxu0 %v216
    %1223 = vmatpush1.msra.mxu0 %v215
    %1224 = vmatprep.subr.mxu0 %v208
    %1225 = vmatpush1.msra.mxu0 %v207
    %1226 = vmatprep.subr.mxu0 %v200
    %1227 = vmatpush1.msra.mxu0 %v199
    %1228 = vmatprep.subr.mxu0 %v448
    %1229 = vmatpush2.msra.mxu0 %v447
    %1230 = vmatprep.subr.mxu0 %v440
    %1231 = vmatpush2.msra.mxu0 %v439
    %1232 = vmatprep.subr.mxu0 %v432
    %1233 = vmatpush2.msra.mxu0 %v431
    %1234 = vmatprep.subr.mxu0 %v424
    %1235 = vmatpush2.msra.mxu0 %v423
    %1236 = vmatprep.subr.mxu0 %v416
    %1237 = vmatpush2.msra.mxu0 %v415
    %1238 = vmatprep.subr.mxu0 %v408
    %1239 = vmatpush2.msra.mxu0 %v407
    %1240 = vmatprep.subr.mxu0 %v400
    %1241 = vmatpush2.msra.mxu0 %v399
    %1242 = vmatprep.subr.mxu0 %v392
    %1243 = vmatpush2.msra.mxu0 %v391
    %1244 = vmatprep.subr.mxu0 %v384
    %1245 = vmatpush2.msra.mxu0 %v383
    %1246 = vmatprep.subr.mxu0 %v376
    %1247 = vmatpush2.msra.mxu0 %v375
    %1248 = vmatprep.subr.mxu0 %v368
    %1249 = vmatpush2.msra.mxu0 %v367
    %1250 = vmatprep.subr.mxu0 %v360
    %1251 = vmatpush2.msra.mxu0 %v359
    %1252 = vmatprep.subr.mxu0 %v352
    %1253 = vmatpush2.msra.mxu0 %v351
    %1254 = vmatprep.subr.mxu0 %v344
    %1255 = vmatpush2.msra.mxu0 %v343
    %1256 = vmatprep.subr.mxu0 %v336
    %1257 = vmatpush2.msra.mxu0 %v335
    %1258 = vmatprep.subr.mxu0 %v328
    %1259 = vmatpush2.msra.mxu0 %v327
    %1260 = vmatprep.mubr.f32.mxu0 %v1193
    %1261 = vmatmul.mubr.f32.gmra.mxu0 %v1189
    %v1262 = vpop.f32.mrf.mxu0
    %v1263 = vadd.f32 0.0, %v1262
    %v1264 = vpop.f32.mrf.mxu0
    %v1265 = vadd.f32 0.0, %v1264
    %1266 = vdwg.mxu0
    %1267 = vmatprep.subr.mxu0 %v322
    %1268 = vmatpush1.msra.mxu0 %v321
    %1269 = vmatprep.subr.mxu0 %v314
    %1270 = vmatpush1.msra.mxu0 %v313
    %1271 = vmatprep.subr.mxu0 %v306
    %1272 = vmatpush1.msra.mxu0 %v305
    %1273 = vmatprep.subr.mxu0 %v298
    %1274 = vmatpush1.msra.mxu0 %v297
    %1275 = vmatprep.subr.mxu0 %v290
    %1276 = vmatpush1.msra.mxu0 %v289
    %1277 = vmatprep.subr.mxu0 %v282
    %1278 = vmatpush1.msra.mxu0 %v281
    %1279 = vmatprep.subr.mxu0 %v274
    %1280 = vmatpush1.msra.mxu0 %v273
    %1281 = vmatprep.subr.mxu0 %v266
    %1282 = vmatpush1.msra.mxu0 %v265
    %1283 = vmatprep.subr.mxu0 %v258
    %1284 = vmatpush1.msra.mxu0 %v257
    %1285 = vmatprep.subr.mxu0 %v250
    %1286 = vmatpush1.msra.mxu0 %v249
    %1287 = vmatprep.subr.mxu0 %v242
    %1288 = vmatpush1.msra.mxu0 %v241
    %1289 = vmatprep.subr.mxu0 %v234
    %1290 = vmatpush1.msra.mxu0 %v233
    %1291 = vmatprep.subr.mxu0 %v226
    %1292 = vmatpush1.msra.mxu0 %v225
    %1293 = vmatprep.subr.mxu0 %v218
    %1294 = vmatpush1.msra.mxu0 %v217
    %1295 = vmatprep.subr.mxu0 %v210
    %1296 = vmatpush1.msra.mxu0 %v209
    %1297 = vmatprep.subr.mxu0 %v202
    %1298 = vmatpush1.msra.mxu0 %v201
    %1299 = vmatprep.subr.mxu0 %v450
    %1300 = vmatpush2.msra.mxu0 %v449
    %1301 = vmatprep.subr.mxu0 %v442
    %1302 = vmatpush2.msra.mxu0 %v441
    %1303 = vmatprep.subr.mxu0 %v434
    %1304 = vmatpush2.msra.mxu0 %v433
    %1305 = vmatprep.subr.mxu0 %v426
    %1306 = vmatpush2.msra.mxu0 %v425
    %1307 = vmatprep.subr.mxu0 %v418
    %1308 = vmatpush2.msra.mxu0 %v417
    %1309 = vmatprep.subr.mxu0 %v410
    %1310 = vmatpush2.msra.mxu0 %v409
    %1311 = vmatprep.subr.mxu0 %v402
    %1312 = vmatpush2.msra.mxu0 %v401
    %1313 = vmatprep.subr.mxu0 %v394
    %1314 = vmatpush2.msra.mxu0 %v393
    %1315 = vmatprep.subr.mxu0 %v386
    %1316 = vmatpush2.msra.mxu0 %v385
    %1317 = vmatprep.subr.mxu0 %v378
    %1318 = vmatpush2.msra.mxu0 %v377
    %1319 = vmatprep.subr.mxu0 %v370
    %1320 = vmatpush2.msra.mxu0 %v369
    %1321 = vmatprep.subr.mxu0 %v362
    %1322 = vmatpush2.msra.mxu0 %v361
    %1323 = vmatprep.subr.mxu0 %v354
    %1324 = vmatpush2.msra.mxu0 %v353
    %1325 = vmatprep.subr.mxu0 %v346
    %1326 = vmatpush2.msra.mxu0 %v345
    %1327 = vmatprep.subr.mxu0 %v338
    %1328 = vmatpush2.msra.mxu0 %v337
    %1329 = vmatprep.subr.mxu0 %v330
    %1330 = vmatpush2.msra.mxu0 %v329
    %1331 = vmatprep.mubr.f32.mxu0 %v1193
    %1332 = vmatmul.mubr.f32.gmra.mxu0 %v1189
    %v1333 = vpop.f32.mrf.mxu0
    %v1334 = vadd.f32 0.0, %v1333
    %v1335 = vpop.f32.mrf.mxu0
    %v1336 = vadd.f32 0.0, %v1335
    %1337 = vdwg.mxu0
    %1338 = vmatprep.subr.mxu0 %v324
    %1339 = vmatpush1.msra.mxu0 %v323
    %1340 = vmatprep.subr.mxu0 %v316
    %1341 = vmatpush1.msra.mxu0 %v315
    %1342 = vmatprep.subr.mxu0 %v308
    %1343 = vmatpush1.msra.mxu0 %v307
    %1344 = vmatprep.subr.mxu0 %v300
    %1345 = vmatpush1.msra.mxu0 %v299
    %1346 = vmatprep.subr.mxu0 %v292
    %1347 = vmatpush1.msra.mxu0 %v291
    %1348 = vmatprep.subr.mxu0 %v284
    %1349 = vmatpush1.msra.mxu0 %v283
    %1350 = vmatprep.subr.mxu0 %v276
    %1351 = vmatpush1.msra.mxu0 %v275
    %1352 = vmatprep.subr.mxu0 %v268
    %1353 = vmatpush1.msra.mxu0 %v267
    %1354 = vmatprep.subr.mxu0 %v260
    %1355 = vmatpush1.msra.mxu0 %v259
    %1356 = vmatprep.subr.mxu0 %v252
    %1357 = vmatpush1.msra.mxu0 %v251
    %1358 = vmatprep.subr.mxu0 %v244
    %1359 = vmatpush1.msra.mxu0 %v243
    %1360 = vmatprep.subr.mxu0 %v236
    %1361 = vmatpush1.msra.mxu0 %v235
    %1362 = vmatprep.subr.mxu0 %v228
    %1363 = vmatpush1.msra.mxu0 %v227
    %1364 = vmatprep.subr.mxu0 %v220
    %1365 = vmatpush1.msra.mxu0 %v219
    %1366 = vmatprep.subr.mxu0 %v212
    %1367 = vmatpush1.msra.mxu0 %v211
    %1368 = vmatprep.subr.mxu0 %v204
    %1369 = vmatpush1.msra.mxu0 %v203
    %1370 = vmatprep.subr.mxu0 %v452
    %1371 = vmatpush2.msra.mxu0 %v451
    %1372 = vmatprep.subr.mxu0 %v444
    %1373 = vmatpush2.msra.mxu0 %v443
    %1374 = vmatprep.subr.mxu0 %v436
    %1375 = vmatpush2.msra.mxu0 %v435
    %1376 = vmatprep.subr.mxu0 %v428
    %1377 = vmatpush2.msra.mxu0 %v427
    %1378 = vmatprep.subr.mxu0 %v420
    %1379 = vmatpush2.msra.mxu0 %v419
    %1380 = vmatprep.subr.mxu0 %v412
    %1381 = vmatpush2.msra.mxu0 %v411
    %1382 = vmatprep.subr.mxu0 %v404
    %1383 = vmatpush2.msra.mxu0 %v403
    %1384 = vmatprep.subr.mxu0 %v396
    %1385 = vmatpush2.msra.mxu0 %v395
    %1386 = vmatprep.subr.mxu0 %v388
    %1387 = vmatpush2.msra.mxu0 %v387
    %1388 = vmatprep.subr.mxu0 %v380
    %1389 = vmatpush2.msra.mxu0 %v379
    %1390 = vmatprep.subr.mxu0 %v372
    %1391 = vmatpush2.msra.mxu0 %v371
    %1392 = vmatprep.subr.mxu0 %v364
    %1393 = vmatpush2.msra.mxu0 %v363
    %1394 = vmatprep.subr.mxu0 %v356
    %1395 = vmatpush2.msra.mxu0 %v355
    %1396 = vmatprep.subr.mxu0 %v348
    %1397 = vmatpush2.msra.mxu0 %v347
    %1398 = vmatprep.subr.mxu0 %v340
    %1399 = vmatpush2.msra.mxu0 %v339
    %1400 = vmatprep.subr.mxu0 %v332
    %1401 = vmatpush2.msra.mxu0 %v331
    %1402 = vmatprep.mubr.f32.mxu0 %v1193
    %1403 = vmatmul.mubr.f32.gmra.mxu0 %v1189
    %v1404 = vpop.f32.mrf.mxu0
    %v1405 = vadd.f32 0.0, %v1404
    %v1406 = vpop.f32.mrf.mxu0
    %v1407 = vadd.f32 0.0, %v1406
    %1408 = vdwg.mxu0
    %1409 = vmatprep.subr.mxu0 %v326
    %1410 = vmatpush1.msra.mxu0 %v325
    %1411 = vmatprep.subr.mxu0 %v318
    %1412 = vmatpush1.msra.mxu0 %v317
    %1413 = vmatprep.subr.mxu0 %v310
    %1414 = vmatpush1.msra.mxu0 %v309
    %1415 = vmatprep.subr.mxu0 %v302
    %1416 = vmatpush1.msra.mxu0 %v301
    %1417 = vmatprep.subr.mxu0 %v294
    %1418 = vmatpush1.msra.mxu0 %v293
    %1419 = vmatprep.subr.mxu0 %v286
    %1420 = vmatpush1.msra.mxu0 %v285
    %1421 = vmatprep.subr.mxu0 %v278
    %1422 = vmatpush1.msra.mxu0 %v277
    %1423 = vmatprep.subr.mxu0 %v270
    %1424 = vmatpush1.msra.mxu0 %v269
    %1425 = vmatprep.subr.mxu0 %v262
    %1426 = vmatpush1.msra.mxu0 %v261
    %1427 = vmatprep.subr.mxu0 %v254
    %1428 = vmatpush1.msra.mxu0 %v253
    %1429 = vmatprep.subr.mxu0 %v246
    %1430 = vmatpush1.msra.mxu0 %v245
    %1431 = vmatprep.subr.mxu0 %v238
    %1432 = vmatpush1.msra.mxu0 %v237
    %1433 = vmatprep.subr.mxu0 %v230
    %1434 = vmatpush1.msra.mxu0 %v229
    %1435 = vmatprep.subr.mxu0 %v222
    %1436 = vmatpush1.msra.mxu0 %v221
    %1437 = vmatprep.subr.mxu0 %v214
    %1438 = vmatpush1.msra.mxu0 %v213
    %1439 = vmatprep.subr.mxu0 %v206
    %1440 = vmatpush1.msra.mxu0 %v205
    %1441 = vmatprep.subr.mxu0 %v454
    %1442 = vmatpush2.msra.mxu0 %v453
    %1443 = vmatprep.subr.mxu0 %v446
    %1444 = vmatpush2.msra.mxu0 %v445
    %1445 = vmatprep.subr.mxu0 %v438
    %1446 = vmatpush2.msra.mxu0 %v437
    %1447 = vmatprep.subr.mxu0 %v430
    %1448 = vmatpush2.msra.mxu0 %v429
    %1449 = vmatprep.subr.mxu0 %v422
    %1450 = vmatpush2.msra.mxu0 %v421
    %1451 = vmatprep.subr.mxu0 %v414
    %1452 = vmatpush2.msra.mxu0 %v413
    %1453 = vmatprep.subr.mxu0 %v406
    %1454 = vmatpush2.msra.mxu0 %v405
    %1455 = vmatprep.subr.mxu0 %v398
    %1456 = vmatpush2.msra.mxu0 %v397
    %1457 = vmatprep.subr.mxu0 %v390
    %1458 = vmatpush2.msra.mxu0 %v389
    %1459 = vmatprep.subr.mxu0 %v382
    %1460 = vmatpush2.msra.mxu0 %v381
    %1461 = vmatprep.subr.mxu0 %v374
    %1462 = vmatpush2.msra.mxu0 %v373
    %1463 = vmatprep.subr.mxu0 %v366
    %1464 = vmatpush2.msra.mxu0 %v365
    %1465 = vmatprep.subr.mxu0 %v358
    %1466 = vmatpush2.msra.mxu0 %v357
    %1467 = vmatprep.subr.mxu0 %v350
    %1468 = vmatpush2.msra.mxu0 %v349
    %1469 = vmatprep.subr.mxu0 %v342
    %1470 = vmatpush2.msra.mxu0 %v341
    %1471 = vmatprep.subr.mxu0 %v334
    %1472 = vmatpush2.msra.mxu0 %v333
    %1473 = vmatprep.mubr.f32.mxu0 %v1193
    %1474 = vmatmul.mubr.f32.gmra.mxu0 %v1189
    %v1475 = vpop.f32.mrf.mxu0
    %v1476 = vadd.f32 0.0, %v1475
    %v1477 = vpop.f32.mrf.mxu0
    %v1478 = vadd.f32 0.0, %v1477
    %1479 = vdwg.mxu0
    %v1488 = vcombine.low %v1263, %v1265
    %v1489 = vcombine.low %v1334, %v1336
    %v1490 = vcombine.low %v1405, %v1407
    %v1491 = vcombine.low %v1476, %v1478
    %v1493 = vunpack.c.l.s4 1966171168
    %v1494 = vunpack.c.0.s8 %v1493
    %v1495 = vlaneseq
    %v1496 = vshrl.u32 %v1495, 7
    %v1497 = vsub.s32 %v1494, %v1496
    %v1498 = vrot.slane %v1488, %v1497
    %v1500 = vunpack.c.l.s4 1966171168
    %v1501 = vunpack.c.0.s8 %v1500
    %v1502 = vlaneseq
    %v1503 = vshrl.u32 %v1502, 7
    %v1504 = vsub.s32 %v1501, %v1503
    %v1505 = vrot.slane %v1489, %v1504
    %v1507 = vunpack.c.l.s4 1966171168
    %v1508 = vunpack.c.0.s8 %v1507
    %v1509 = vlaneseq
    %v1510 = vshrl.u32 %v1509, 7
    %v1511 = vsub.s32 %v1508, %v1510
    %v1512 = vrot.slane %v1490, %v1511
    %v1514 = vunpack.c.l.s4 1966171168
    %v1515 = vunpack.c.0.s8 %v1514
    %v1516 = vlaneseq
    %v1517 = vshrl.u32 %v1516, 7
    %v1518 = vsub.s32 %v1515, %v1517
    %v1519 = vrot.slane %v1491, %v1518
    %v1520 = vcombine.low %v1498, %v1505
    %v1521 = vcombine.low %v1512, %v1519
    %v1523 = vunpack.c.l.s4 1966171168
    %v1524 = vunpack.c.0.s8 %v1523
    %v1525 = vlaneseq
    %v1526 = vshrl.u32 %v1525, 7
    %v1527 = vsub.s32 %v1524, %v1526
    %v1528 = vrot.slane %v1520, %v1527
    %v1530 = vunpack.c.l.s4 1966171168
    %v1531 = vunpack.c.0.s8 %v1530
    %v1532 = vlaneseq
    %v1533 = vshrl.u32 %v1532, 7
    %v1534 = vsub.s32 %v1531, %v1533
    %v1535 = vrot.slane %v1521, %v1534
    %v1536 = vcombine.low %v1528, %v1535
    %v1538 = vadd.f32 %v1184, %v1536
    %v1539 = vxor.u32 %v1538, 2147483648
    %v1540 = vmul.f32 %v1539, 1.442695
    %v1541 = vpow.pop %v1540
    %v1542 = vadd.f32 %v1541, 1.0
    %v1543 = vrcp.pop %v1542
    %v1544 = vmul.f32 1.0, %v1543
    %v1546 = vrot.slane %v1538, 2
    %v1548 = vxor.u32 %v1546, 2147483648
    %v1549 = vmul.f32 %v1548, 1.442695
    %v1550 = vpow.pop %v1549
    %v1551 = vadd.f32 %v1550, 1.0
    %v1552 = vrcp.pop %v1551
    %v1553 = vmul.f32 1.0, %v1552
    %v1554 = vrot.slane %v1538, 4
    %v1556 = vtanh.pop %v1554
    %v1557 = vrot.slane %v1538, 6
    %v1559 = vxor.u32 %v1557, 2147483648
    %v1560 = vmul.f32 %v1559, 1.442695
    %v1561 = vpow.pop %v1560
    %v1562 = vadd.f32 %v1561, 1.0
    %v1563 = vrcp.pop %v1562
    %v1564 = vmul.f32 1.0, %v1563
    %v1565 = vmul.f32 %v1553, %v1172
    %v1566 = vmul.f32 %v1544, %v1556
    %v1567 = vadd.f32 %v1565, %v1566
    %v1568 = vtanh.pop %v1567
    %v1569 = vmul.f32 %v1564, %v1568
    %s1570 = scalar_lea.vmem [#allocation4], 1
    %1571 = vst.msk [vmem:[%s1570] ss:$8 sm:$0x3] %vm1178, %v1569
    %1572 = vst.msk [vmem:[%s1570] ss:$8 sm:$0x0] %vm1178, %v1569
    %s1573 = scalar_lea.vmem [#allocation3], 2
    %v1574 = vld [vmem:[%s1573] ss:$8 sm:$0xf]
    %v1575 = vld [vmem:[%s1573] ss:$8 sm:$0xf0]
    %v1576 = vor.u32 %v1574, %v1575
    %v1578 = vlaneseq
    %v1579 = vshrl.u32 %v1578, 7
    %v1580 = vsub.s32 0, %v1579
    %v1581 = vrot.slane %v1569, %v1580
    %v1582 = vlaneseq
    %v1583 = vshrl.u32 %v1582, 7
    %v1584 = vsub.s32 1, %v1583
    %v1585 = vrot.slane %v1569, %v1584
    %1588 = vmatprep.subr.mxu0 %v320
    %1589 = vmatpush1.msra.mxu0 %v319
    %1590 = vmatprep.subr.mxu0 %v312
    %1591 = vmatpush1.msra.mxu0 %v311
    %1592 = vmatprep.subr.mxu0 %v304
    %1593 = vmatpush1.msra.mxu0 %v303
    %1594 = vmatprep.subr.mxu0 %v296
    %1595 = vmatpush1.msra.mxu0 %v295
    %1596 = vmatprep.subr.mxu0 %v288
    %1597 = vmatpush1.msra.mxu0 %v287
    %1598 = vmatprep.subr.mxu0 %v280
    %1599 = vmatpush1.msra.mxu0 %v279
    %1600 = vmatprep.subr.mxu0 %v272
    %1601 = vmatpush1.msra.mxu0 %v271
    %1602 = vmatprep.subr.mxu0 %v264
    %1603 = vmatpush1.msra.mxu0 %v263
    %1604 = vmatprep.subr.mxu0 %v256
    %1605 = vmatpush1.msra.mxu0 %v255
    %1606 = vmatprep.subr.mxu0 %v248
    %1607 = vmatpush1.msra.mxu0 %v247
    %1608 = vmatprep.subr.mxu0 %v240
    %1609 = vmatpush1.msra.mxu0 %v239
    %1610 = vmatprep.subr.mxu0 %v232
    %1611 = vmatpush1.msra.mxu0 %v231
    %1612 = vmatprep.subr.mxu0 %v224
    %1613 = vmatpush1.msra.mxu0 %v223
    %1614 = vmatprep.subr.mxu0 %v216
    %1615 = vmatpush1.msra.mxu0 %v215
    %1616 = vmatprep.subr.mxu0 %v208
    %1617 = vmatpush1.msra.mxu0 %v207
    %1618 = vmatprep.subr.mxu0 %v200
    %1619 = vmatpush1.msra.mxu0 %v199
    %1620 = vmatprep.subr.mxu0 %v448
    %1621 = vmatpush2.msra.mxu0 %v447
    %1622 = vmatprep.subr.mxu0 %v440
    %1623 = vmatpush2.msra.mxu0 %v439
    %1624 = vmatprep.subr.mxu0 %v432
    %1625 = vmatpush2.msra.mxu0 %v431
    %1626 = vmatprep.subr.mxu0 %v424
    %1627 = vmatpush2.msra.mxu0 %v423
    %1628 = vmatprep.subr.mxu0 %v416
    %1629 = vmatpush2.msra.mxu0 %v415
    %1630 = vmatprep.subr.mxu0 %v408
    %1631 = vmatpush2.msra.mxu0 %v407
    %1632 = vmatprep.subr.mxu0 %v400
    %1633 = vmatpush2.msra.mxu0 %v399
    %1634 = vmatprep.subr.mxu0 %v392
    %1635 = vmatpush2.msra.mxu0 %v391
    %1636 = vmatprep.subr.mxu0 %v384
    %1637 = vmatpush2.msra.mxu0 %v383
    %1638 = vmatprep.subr.mxu0 %v376
    %1639 = vmatpush2.msra.mxu0 %v375
    %1640 = vmatprep.subr.mxu0 %v368
    %1641 = vmatpush2.msra.mxu0 %v367
    %1642 = vmatprep.subr.mxu0 %v360
    %1643 = vmatpush2.msra.mxu0 %v359
    %1644 = vmatprep.subr.mxu0 %v352
    %1645 = vmatpush2.msra.mxu0 %v351
    %1646 = vmatprep.subr.mxu0 %v344
    %1647 = vmatpush2.msra.mxu0 %v343
    %1648 = vmatprep.subr.mxu0 %v336
    %1649 = vmatpush2.msra.mxu0 %v335
    %1650 = vmatprep.subr.mxu0 %v328
    %1651 = vmatpush2.msra.mxu0 %v327
    %1652 = vmatprep.mubr.f32.mxu0 %v1585
    %1653 = vmatmul.mubr.f32.gmra.mxu0 %v1581
    %v1654 = vpop.f32.mrf.mxu0
    %v1655 = vadd.f32 0.0, %v1654
    %v1656 = vpop.f32.mrf.mxu0
    %v1657 = vadd.f32 0.0, %v1656
    %1658 = vdwg.mxu0
    %1659 = vmatprep.subr.mxu0 %v322
    %1660 = vmatpush1.msra.mxu0 %v321
    %1661 = vmatprep.subr.mxu0 %v314
    %1662 = vmatpush1.msra.mxu0 %v313
    %1663 = vmatprep.subr.mxu0 %v306
    %1664 = vmatpush1.msra.mxu0 %v305
    %1665 = vmatprep.subr.mxu0 %v298
    %1666 = vmatpush1.msra.mxu0 %v297
    %1667 = vmatprep.subr.mxu0 %v290
    %1668 = vmatpush1.msra.mxu0 %v289
    %1669 = vmatprep.subr.mxu0 %v282
    %1670 = vmatpush1.msra.mxu0 %v281
    %1671 = vmatprep.subr.mxu0 %v274
    %1672 = vmatpush1.msra.mxu0 %v273
    %1673 = vmatprep.subr.mxu0 %v266
    %1674 = vmatpush1.msra.mxu0 %v265
    %1675 = vmatprep.subr.mxu0 %v258
    %1676 = vmatpush1.msra.mxu0 %v257
    %1677 = vmatprep.subr.mxu0 %v250
    %1678 = vmatpush1.msra.mxu0 %v249
    %1679 = vmatprep.subr.mxu0 %v242
    %1680 = vmatpush1.msra.mxu0 %v241
    %1681 = vmatprep.subr.mxu0 %v234
    %1682 = vmatpush1.msra.mxu0 %v233
    %1683 = vmatprep.subr.mxu0 %v226
    %1684 = vmatpush1.msra.mxu0 %v225
    %1685 = vmatprep.subr.mxu0 %v218
    %1686 = vmatpush1.msra.mxu0 %v217
    %1687 = vmatprep.subr.mxu0 %v210
    %1688 = vmatpush1.msra.mxu0 %v209
    %1689 = vmatprep.subr.mxu0 %v202
    %1690 = vmatpush1.msra.mxu0 %v201
    %1691 = vmatprep.subr.mxu0 %v450
    %1692 = vmatpush2.msra.mxu0 %v449
    %1693 = vmatprep.subr.mxu0 %v442
    %1694 = vmatpush2.msra.mxu0 %v441
    %1695 = vmatprep.subr.mxu0 %v434
    %1696 = vmatpush2.msra.mxu0 %v433
    %1697 = vmatprep.subr.mxu0 %v426
    %1698 = vmatpush2.msra.mxu0 %v425
    %1699 = vmatprep.subr.mxu0 %v418
    %1700 = vmatpush2.msra.mxu0 %v417
    %1701 = vmatprep.subr.mxu0 %v410
    %1702 = vmatpush2.msra.mxu0 %v409
    %1703 = vmatprep.subr.mxu0 %v402
    %1704 = vmatpush2.msra.mxu0 %v401
    %1705 = vmatprep.subr.mxu0 %v394
    %1706 = vmatpush2.msra.mxu0 %v393
    %1707 = vmatprep.subr.mxu0 %v386
    %1708 = vmatpush2.msra.mxu0 %v385
    %1709 = vmatprep.subr.mxu0 %v378
    %1710 = vmatpush2.msra.mxu0 %v377
    %1711 = vmatprep.subr.mxu0 %v370
    %1712 = vmatpush2.msra.mxu0 %v369
    %1713 = vmatprep.subr.mxu0 %v362
    %1714 = vmatpush2.msra.mxu0 %v361
    %1715 = vmatprep.subr.mxu0 %v354
    %1716 = vmatpush2.msra.mxu0 %v353
    %1717 = vmatprep.subr.mxu0 %v346
    %1718 = vmatpush2.msra.mxu0 %v345
    %1719 = vmatprep.subr.mxu0 %v338
    %1720 = vmatpush2.msra.mxu0 %v337
    %1721 = vmatprep.subr.mxu0 %v330
    %1722 = vmatpush2.msra.mxu0 %v329
    %1723 = vmatprep.mubr.f32.mxu0 %v1585
    %1724 = vmatmul.mubr.f32.gmra.mxu0 %v1581
    %v1725 = vpop.f32.mrf.mxu0
    %v1726 = vadd.f32 0.0, %v1725
    %v1727 = vpop.f32.mrf.mxu0
    %v1728 = vadd.f32 0.0, %v1727
    %1729 = vdwg.mxu0
    %1730 = vmatprep.subr.mxu0 %v324
    %1731 = vmatpush1.msra.mxu0 %v323
    %1732 = vmatprep.subr.mxu0 %v316
    %1733 = vmatpush1.msra.mxu0 %v315
    %1734 = vmatprep.subr.mxu0 %v308
    %1735 = vmatpush1.msra.mxu0 %v307
    %1736 = vmatprep.subr.mxu0 %v300
    %1737 = vmatpush1.msra.mxu0 %v299
    %1738 = vmatprep.subr.mxu0 %v292
    %1739 = vmatpush1.msra.mxu0 %v291
    %1740 = vmatprep.subr.mxu0 %v284
    %1741 = vmatpush1.msra.mxu0 %v283
    %1742 = vmatprep.subr.mxu0 %v276
    %1743 = vmatpush1.msra.mxu0 %v275
    %1744 = vmatprep.subr.mxu0 %v268
    %1745 = vmatpush1.msra.mxu0 %v267
    %1746 = vmatprep.subr.mxu0 %v260
    %1747 = vmatpush1.msra.mxu0 %v259
    %1748 = vmatprep.subr.mxu0 %v252
    %1749 = vmatpush1.msra.mxu0 %v251
    %1750 = vmatprep.subr.mxu0 %v244
    %1751 = vmatpush1.msra.mxu0 %v243
    %1752 = vmatprep.subr.mxu0 %v236
    %1753 = vmatpush1.msra.mxu0 %v235
    %1754 = vmatprep.subr.mxu0 %v228
    %1755 = vmatpush1.msra.mxu0 %v227
    %1756 = vmatprep.subr.mxu0 %v220
    %1757 = vmatpush1.msra.mxu0 %v219
    %1758 = vmatprep.subr.mxu0 %v212
    %1759 = vmatpush1.msra.mxu0 %v211
    %1760 = vmatprep.subr.mxu0 %v204
    %1761 = vmatpush1.msra.mxu0 %v203
    %1762 = vmatprep.subr.mxu0 %v452
    %1763 = vmatpush2.msra.mxu0 %v451
    %1764 = vmatprep.subr.mxu0 %v444
    %1765 = vmatpush2.msra.mxu0 %v443
    %1766 = vmatprep.subr.mxu0 %v436
    %1767 = vmatpush2.msra.mxu0 %v435
    %1768 = vmatprep.subr.mxu0 %v428
    %1769 = vmatpush2.msra.mxu0 %v427
    %1770 = vmatprep.subr.mxu0 %v420
    %1771 = vmatpush2.msra.mxu0 %v419
    %1772 = vmatprep.subr.mxu0 %v412
    %1773 = vmatpush2.msra.mxu0 %v411
    %1774 = vmatprep.subr.mxu0 %v404
    %1775 = vmatpush2.msra.mxu0 %v403
    %1776 = vmatprep.subr.mxu0 %v396
    %1777 = vmatpush2.msra.mxu0 %v395
    %1778 = vmatprep.subr.mxu0 %v388
    %1779 = vmatpush2.msra.mxu0 %v387
    %1780 = vmatprep.subr.mxu0 %v380
    %1781 = vmatpush2.msra.mxu0 %v379
    %1782 = vmatprep.subr.mxu0 %v372
    %1783 = vmatpush2.msra.mxu0 %v371
    %1784 = vmatprep.subr.mxu0 %v364
    %1785 = vmatpush2.msra.mxu0 %v363
    %1786 = vmatprep.subr.mxu0 %v356
    %1787 = vmatpush2.msra.mxu0 %v355
    %1788 = vmatprep.subr.mxu0 %v348
    %1789 = vmatpush2.msra.mxu0 %v347
    %1790 = vmatprep.subr.mxu0 %v340
    %1791 = vmatpush2.msra.mxu0 %v339
    %1792 = vmatprep.subr.mxu0 %v332
    %1793 = vmatpush2.msra.mxu0 %v331
    %1794 = vmatprep.mubr.f32.mxu0 %v1585
    %1795 = vmatmul.mubr.f32.gmra.mxu0 %v1581
    %v1796 = vpop.f32.mrf.mxu0
    %v1797 = vadd.f32 0.0, %v1796
    %v1798 = vpop.f32.mrf.mxu0
    %v1799 = vadd.f32 0.0, %v1798
    %1800 = vdwg.mxu0
    %1801 = vmatprep.subr.mxu0 %v326
    %1802 = vmatpush1.msra.mxu0 %v325
    %1803 = vmatprep.subr.mxu0 %v318
    %1804 = vmatpush1.msra.mxu0 %v317
    %1805 = vmatprep.subr.mxu0 %v310
    %1806 = vmatpush1.msra.mxu0 %v309
    %1807 = vmatprep.subr.mxu0 %v302
    %1808 = vmatpush1.msra.mxu0 %v301
    %1809 = vmatprep.subr.mxu0 %v294
    %1810 = vmatpush1.msra.mxu0 %v293
    %1811 = vmatprep.subr.mxu0 %v286
    %1812 = vmatpush1.msra.mxu0 %v285
    %1813 = vmatprep.subr.mxu0 %v278
    %1814 = vmatpush1.msra.mxu0 %v277
    %1815 = vmatprep.subr.mxu0 %v270
    %1816 = vmatpush1.msra.mxu0 %v269
    %1817 = vmatprep.subr.mxu0 %v262
    %1818 = vmatpush1.msra.mxu0 %v261
    %1819 = vmatprep.subr.mxu0 %v254
    %1820 = vmatpush1.msra.mxu0 %v253
    %1821 = vmatprep.subr.mxu0 %v246
    %1822 = vmatpush1.msra.mxu0 %v245
    %1823 = vmatprep.subr.mxu0 %v238
    %1824 = vmatpush1.msra.mxu0 %v237
    %1825 = vmatprep.subr.mxu0 %v230
    %1826 = vmatpush1.msra.mxu0 %v229
    %1827 = vmatprep.subr.mxu0 %v222
    %1828 = vmatpush1.msra.mxu0 %v221
    %1829 = vmatprep.subr.mxu0 %v214
    %1830 = vmatpush1.msra.mxu0 %v213
    %1831 = vmatprep.subr.mxu0 %v206
    %1832 = vmatpush1.msra.mxu0 %v205
    %1833 = vmatprep.subr.mxu0 %v454
    %1834 = vmatpush2.msra.mxu0 %v453
    %1835 = vmatprep.subr.mxu0 %v446
    %1836 = vmatpush2.msra.mxu0 %v445
    %1837 = vmatprep.subr.mxu0 %v438
    %1838 = vmatpush2.msra.mxu0 %v437
    %1839 = vmatprep.subr.mxu0 %v430
    %1840 = vmatpush2.msra.mxu0 %v429
    %1841 = vmatprep.subr.mxu0 %v422
    %1842 = vmatpush2.msra.mxu0 %v421
    %1843 = vmatprep.subr.mxu0 %v414
    %1844 = vmatpush2.msra.mxu0 %v413
    %1845 = vmatprep.subr.mxu0 %v406
    %1846 = vmatpush2.msra.mxu0 %v405
    %1847 = vmatprep.subr.mxu0 %v398
    %1848 = vmatpush2.msra.mxu0 %v397
    %1849 = vmatprep.subr.mxu0 %v390
    %1850 = vmatpush2.msra.mxu0 %v389
    %1851 = vmatprep.subr.mxu0 %v382
    %1852 = vmatpush2.msra.mxu0 %v381
    %1853 = vmatprep.subr.mxu0 %v374
    %1854 = vmatpush2.msra.mxu0 %v373
    %1855 = vmatprep.subr.mxu0 %v366
    %1856 = vmatpush2.msra.mxu0 %v365
    %1857 = vmatprep.subr.mxu0 %v358
    %1858 = vmatpush2.msra.mxu0 %v357
    %1859 = vmatprep.subr.mxu0 %v350
    %1860 = vmatpush2.msra.mxu0 %v349
    %1861 = vmatprep.subr.mxu0 %v342
    %1862 = vmatpush2.msra.mxu0 %v341
    %1863 = vmatprep.subr.mxu0 %v334
    %1864 = vmatpush2.msra.mxu0 %v333
    %1865 = vmatprep.mubr.f32.mxu0 %v1585
    %1866 = vmatmul.mubr.f32.gmra.mxu0 %v1581
    %v1867 = vpop.f32.mrf.mxu0
    %v1868 = vadd.f32 0.0, %v1867
    %v1869 = vpop.f32.mrf.mxu0
    %v1870 = vadd.f32 0.0, %v1869
    %1871 = vdwg.mxu0
    %v1880 = vcombine.low %v1655, %v1657
    %v1881 = vcombine.low %v1726, %v1728
    %v1882 = vcombine.low %v1797, %v1799
    %v1883 = vcombine.low %v1868, %v1870
    %v1885 = vunpack.c.l.s4 1966171168
    %v1886 = vunpack.c.0.s8 %v1885
    %v1887 = vlaneseq
    %v1888 = vshrl.u32 %v1887, 7
    %v1889 = vsub.s32 %v1886, %v1888
    %v1890 = vrot.slane %v1880, %v1889
    %v1892 = vunpack.c.l.s4 1966171168
    %v1893 = vunpack.c.0.s8 %v1892
    %v1894 = vlaneseq
    %v1895 = vshrl.u32 %v1894, 7
    %v1896 = vsub.s32 %v1893, %v1895
    %v1897 = vrot.slane %v1881, %v1896
    %v1899 = vunpack.c.l.s4 1966171168
    %v1900 = vunpack.c.0.s8 %v1899
    %v1901 = vlaneseq
    %v1902 = vshrl.u32 %v1901, 7
    %v1903 = vsub.s32 %v1900, %v1902
    %v1904 = vrot.slane %v1882, %v1903
    %v1906 = vunpack.c.l.s4 1966171168
    %v1907 = vunpack.c.0.s8 %v1906
    %v1908 = vlaneseq
    %v1909 = vshrl.u32 %v1908, 7
    %v1910 = vsub.s32 %v1907, %v1909
    %v1911 = vrot.slane %v1883, %v1910
    %v1912 = vcombine.low %v1890, %v1897
    %v1913 = vcombine.low %v1904, %v1911
    %v1915 = vunpack.c.l.s4 1966171168
    %v1916 = vunpack.c.0.s8 %v1915
    %v1917 = vlaneseq
    %v1918 = vshrl.u32 %v1917, 7
    %v1919 = vsub.s32 %v1916, %v1918
    %v1920 = vrot.slane %v1912, %v1919
    %v1922 = vunpack.c.l.s4 1966171168
    %v1923 = vunpack.c.0.s8 %v1922
    %v1924 = vlaneseq
    %v1925 = vshrl.u32 %v1924, 7
    %v1926 = vsub.s32 %v1923, %v1925
    %v1927 = vrot.slane %v1913, %v1926
    %v1928 = vcombine.low %v1920, %v1927
    %v1930 = vadd.f32 %v1576, %v1928
    %v1931 = vxor.u32 %v1930, 2147483648
    %v1932 = vmul.f32 %v1931, 1.442695
    %v1933 = vpow.pop %v1932
    %v1934 = vadd.f32 %v1933, 1.0
    %v1935 = vrcp.pop %v1934
    %v1936 = vmul.f32 1.0, %v1935
    %v1938 = vrot.slane %v1930, 2
    %v1940 = vxor.u32 %v1938, 2147483648
    %v1941 = vmul.f32 %v1940, 1.442695
    %v1942 = vpow.pop %v1941
    %v1943 = vadd.f32 %v1942, 1.0
    %v1944 = vrcp.pop %v1943
    %v1945 = vmul.f32 1.0, %v1944
    %v1946 = vrot.slane %v1930, 4
    %v1948 = vtanh.pop %v1946
    %v1949 = vrot.slane %v1930, 6
    %v1951 = vxor.u32 %v1949, 2147483648
    %v1952 = vmul.f32 %v1951, 1.442695
    %v1953 = vpow.pop %v1952
    %v1954 = vadd.f32 %v1953, 1.0
    %v1955 = vrcp.pop %v1954
    %v1956 = vmul.f32 1.0, %v1955
    %v1957 = vmul.f32 %v1945, %v1567
    %v1958 = vmul.f32 %v1936, %v1948
    %v1959 = vadd.f32 %v1957, %v1958
    %v1960 = vtanh.pop %v1959
    %v1961 = vmul.f32 %v1956, %v1960
    %s1962 = scalar_lea.vmem [#allocation4], 2
    %1963 = vst.msk [vmem:[%s1962] ss:$8 sm:$0x3] %vm1178, %v1961
    %1964 = vst.msk [vmem:[%s1962] ss:$8 sm:$0x0] %vm1178, %v1961
    %s1965 = scalar_lea.vmem [#allocation3], 3
    %v1966 = vld [vmem:[%s1965] ss:$8 sm:$0xf]
    %v1967 = vld [vmem:[%s1965] ss:$8 sm:$0xf0]
    %v1968 = vor.u32 %v1966, %v1967
    %v1970 = vlaneseq
    %v1971 = vshrl.u32 %v1970, 7
    %v1972 = vsub.s32 0, %v1971
    %v1973 = vrot.slane %v1961, %v1972
    %v1974 = vlaneseq
    %v1975 = vshrl.u32 %v1974, 7
    %v1976 = vsub.s32 1, %v1975
    %v1977 = vrot.slane %v1961, %v1976
    %1980 = vmatprep.subr.mxu0 %v320
    %1981 = vmatpush1.msra.mxu0 %v319
    %1982 = vmatprep.subr.mxu0 %v312
    %1983 = vmatpush1.msra.mxu0 %v311
    %1984 = vmatprep.subr.mxu0 %v304
    %1985 = vmatpush1.msra.mxu0 %v303
    %1986 = vmatprep.subr.mxu0 %v296
    %1987 = vmatpush1.msra.mxu0 %v295
    %1988 = vmatprep.subr.mxu0 %v288
    %1989 = vmatpush1.msra.mxu0 %v287
    %1990 = vmatprep.subr.mxu0 %v280
    %1991 = vmatpush1.msra.mxu0 %v279
    %1992 = vmatprep.subr.mxu0 %v272
    %1993 = vmatpush1.msra.mxu0 %v271
    %1994 = vmatprep.subr.mxu0 %v264
    %1995 = vmatpush1.msra.mxu0 %v263
    %1996 = vmatprep.subr.mxu0 %v256
    %1997 = vmatpush1.msra.mxu0 %v255
    %1998 = vmatprep.subr.mxu0 %v248
    %1999 = vmatpush1.msra.mxu0 %v247
    %2000 = vmatprep.subr.mxu0 %v240
    %2001 = vmatpush1.msra.mxu0 %v239
    %2002 = vmatprep.subr.mxu0 %v232
    %2003 = vmatpush1.msra.mxu0 %v231
    %2004 = vmatprep.subr.mxu0 %v224
    %2005 = vmatpush1.msra.mxu0 %v223
    %2006 = vmatprep.subr.mxu0 %v216
    %2007 = vmatpush1.msra.mxu0 %v215
    %2008 = vmatprep.subr.mxu0 %v208
    %2009 = vmatpush1.msra.mxu0 %v207
    %2010 = vmatprep.subr.mxu0 %v200
    %2011 = vmatpush1.msra.mxu0 %v199
    %2012 = vmatprep.subr.mxu0 %v448
    %2013 = vmatpush2.msra.mxu0 %v447
    %2014 = vmatprep.subr.mxu0 %v440
    %2015 = vmatpush2.msra.mxu0 %v439
    %2016 = vmatprep.subr.mxu0 %v432
    %2017 = vmatpush2.msra.mxu0 %v431
    %2018 = vmatprep.subr.mxu0 %v424
    %2019 = vmatpush2.msra.mxu0 %v423
    %2020 = vmatprep.subr.mxu0 %v416
    %2021 = vmatpush2.msra.mxu0 %v415
    %2022 = vmatprep.subr.mxu0 %v408
    %2023 = vmatpush2.msra.mxu0 %v407
    %2024 = vmatprep.subr.mxu0 %v400
    %2025 = vmatpush2.msra.mxu0 %v399
    %2026 = vmatprep.subr.mxu0 %v392
    %2027 = vmatpush2.msra.mxu0 %v391
    %2028 = vmatprep.subr.mxu0 %v384
    %2029 = vmatpush2.msra.mxu0 %v383
    %2030 = vmatprep.subr.mxu0 %v376
    %2031 = vmatpush2.msra.mxu0 %v375
    %2032 = vmatprep.subr.mxu0 %v368
    %2033 = vmatpush2.msra.mxu0 %v367
    %2034 = vmatprep.subr.mxu0 %v360
    %2035 = vmatpush2.msra.mxu0 %v359
    %2036 = vmatprep.subr.mxu0 %v352
    %2037 = vmatpush2.msra.mxu0 %v351
    %2038 = vmatprep.subr.mxu0 %v344
    %2039 = vmatpush2.msra.mxu0 %v343
    %2040 = vmatprep.subr.mxu0 %v336
    %2041 = vmatpush2.msra.mxu0 %v335
    %2042 = vmatprep.subr.mxu0 %v328
    %2043 = vmatpush2.msra.mxu0 %v327
    %2044 = vmatprep.mubr.f32.mxu0 %v1977
    %2045 = vmatmul.mubr.f32.gmra.mxu0 %v1973
    %v2046 = vpop.f32.mrf.mxu0
    %v2047 = vadd.f32 0.0, %v2046
    %v2048 = vpop.f32.mrf.mxu0
    %v2049 = vadd.f32 0.0, %v2048
    %2050 = vdwg.mxu0
    %2051 = vmatprep.subr.mxu0 %v322
    %2052 = vmatpush1.msra.mxu0 %v321
    %2053 = vmatprep.subr.mxu0 %v314
    %2054 = vmatpush1.msra.mxu0 %v313
    %2055 = vmatprep.subr.mxu0 %v306
    %2056 = vmatpush1.msra.mxu0 %v305
    %2057 = vmatprep.subr.mxu0 %v298
    %2058 = vmatpush1.msra.mxu0 %v297
    %2059 = vmatprep.subr.mxu0 %v290
    %2060 = vmatpush1.msra.mxu0 %v289
    %2061 = vmatprep.subr.mxu0 %v282
    %2062 = vmatpush1.msra.mxu0 %v281
    %2063 = vmatprep.subr.mxu0 %v274
    %2064 = vmatpush1.msra.mxu0 %v273
    %2065 = vmatprep.subr.mxu0 %v266
    %2066 = vmatpush1.msra.mxu0 %v265
    %2067 = vmatprep.subr.mxu0 %v258
    %2068 = vmatpush1.msra.mxu0 %v257
    %2069 = vmatprep.subr.mxu0 %v250
    %2070 = vmatpush1.msra.mxu0 %v249
    %2071 = vmatprep.subr.mxu0 %v242
    %2072 = vmatpush1.msra.mxu0 %v241
    %2073 = vmatprep.subr.mxu0 %v234
    %2074 = vmatpush1.msra.mxu0 %v233
    %2075 = vmatprep.subr.mxu0 %v226
    %2076 = vmatpush1.msra.mxu0 %v225
    %2077 = vmatprep.subr.mxu0 %v218
    %2078 = vmatpush1.msra.mxu0 %v217
    %2079 = vmatprep.subr.mxu0 %v210
    %2080 = vmatpush1.msra.mxu0 %v209
    %2081 = vmatprep.subr.mxu0 %v202
    %2082 = vmatpush1.msra.mxu0 %v201
    %2083 = vmatprep.subr.mxu0 %v450
    %2084 = vmatpush2.msra.mxu0 %v449
    %2085 = vmatprep.subr.mxu0 %v442
    %2086 = vmatpush2.msra.mxu0 %v441
    %2087 = vmatprep.subr.mxu0 %v434
    %2088 = vmatpush2.msra.mxu0 %v433
    %2089 = vmatprep.subr.mxu0 %v426
    %2090 = vmatpush2.msra.mxu0 %v425
    %2091 = vmatprep.subr.mxu0 %v418
    %2092 = vmatpush2.msra.mxu0 %v417
    %2093 = vmatprep.subr.mxu0 %v410
    %2094 = vmatpush2.msra.mxu0 %v409
    %2095 = vmatprep.subr.mxu0 %v402
    %2096 = vmatpush2.msra.mxu0 %v401
    %2097 = vmatprep.subr.mxu0 %v394
    %2098 = vmatpush2.msra.mxu0 %v393
    %2099 = vmatprep.subr.mxu0 %v386
    %2100 = vmatpush2.msra.mxu0 %v385
    %2101 = vmatprep.subr.mxu0 %v378
    %2102 = vmatpush2.msra.mxu0 %v377
    %2103 = vmatprep.subr.mxu0 %v370
    %2104 = vmatpush2.msra.mxu0 %v369
    %2105 = vmatprep.subr.mxu0 %v362
    %2106 = vmatpush2.msra.mxu0 %v361
    %2107 = vmatprep.subr.mxu0 %v354
    %2108 = vmatpush2.msra.mxu0 %v353
    %2109 = vmatprep.subr.mxu0 %v346
    %2110 = vmatpush2.msra.mxu0 %v345
    %2111 = vmatprep.subr.mxu0 %v338
    %2112 = vmatpush2.msra.mxu0 %v337
    %2113 = vmatprep.subr.mxu0 %v330
    %2114 = vmatpush2.msra.mxu0 %v329
    %2115 = vmatprep.mubr.f32.mxu0 %v1977
    %2116 = vmatmul.mubr.f32.gmra.mxu0 %v1973
    %v2117 = vpop.f32.mrf.mxu0
    %v2118 = vadd.f32 0.0, %v2117
    %v2119 = vpop.f32.mrf.mxu0
    %v2120 = vadd.f32 0.0, %v2119
    %2121 = vdwg.mxu0
    %2122 = vmatprep.subr.mxu0 %v324
    %2123 = vmatpush1.msra.mxu0 %v323
    %2124 = vmatprep.subr.mxu0 %v316
    %2125 = vmatpush1.msra.mxu0 %v315
    %2126 = vmatprep.subr.mxu0 %v308
    %2127 = vmatpush1.msra.mxu0 %v307
    %2128 = vmatprep.subr.mxu0 %v300
    %2129 = vmatpush1.msra.mxu0 %v299
    %2130 = vmatprep.subr.mxu0 %v292
    %2131 = vmatpush1.msra.mxu0 %v291
    %2132 = vmatprep.subr.mxu0 %v284
    %2133 = vmatpush1.msra.mxu0 %v283
    %2134 = vmatprep.subr.mxu0 %v276
    %2135 = vmatpush1.msra.mxu0 %v275
    %2136 = vmatprep.subr.mxu0 %v268
    %2137 = vmatpush1.msra.mxu0 %v267
    %2138 = vmatprep.subr.mxu0 %v260
    %2139 = vmatpush1.msra.mxu0 %v259
    %2140 = vmatprep.subr.mxu0 %v252
    %2141 = vmatpush1.msra.mxu0 %v251
    %2142 = vmatprep.subr.mxu0 %v244
    %2143 = vmatpush1.msra.mxu0 %v243
    %2144 = vmatprep.subr.mxu0 %v236
    %2145 = vmatpush1.msra.mxu0 %v235
    %2146 = vmatprep.subr.mxu0 %v228
    %2147 = vmatpush1.msra.mxu0 %v227
    %2148 = vmatprep.subr.mxu0 %v220
    %2149 = vmatpush1.msra.mxu0 %v219
    %2150 = vmatprep.subr.mxu0 %v212
    %2151 = vmatpush1.msra.mxu0 %v211
    %2152 = vmatprep.subr.mxu0 %v204
    %2153 = vmatpush1.msra.mxu0 %v203
    %2154 = vmatprep.subr.mxu0 %v452
    %2155 = vmatpush2.msra.mxu0 %v451
    %2156 = vmatprep.subr.mxu0 %v444
    %2157 = vmatpush2.msra.mxu0 %v443
    %2158 = vmatprep.subr.mxu0 %v436
    %2159 = vmatpush2.msra.mxu0 %v435
    %2160 = vmatprep.subr.mxu0 %v428
    %2161 = vmatpush2.msra.mxu0 %v427
    %2162 = vmatprep.subr.mxu0 %v420
    %2163 = vmatpush2.msra.mxu0 %v419
    %2164 = vmatprep.subr.mxu0 %v412
    %2165 = vmatpush2.msra.mxu0 %v411
    %2166 = vmatprep.subr.mxu0 %v404
    %2167 = vmatpush2.msra.mxu0 %v403
    %2168 = vmatprep.subr.mxu0 %v396
    %2169 = vmatpush2.msra.mxu0 %v395
    %2170 = vmatprep.subr.mxu0 %v388
    %2171 = vmatpush2.msra.mxu0 %v387
    %2172 = vmatprep.subr.mxu0 %v380
    %2173 = vmatpush2.msra.mxu0 %v379
    %2174 = vmatprep.subr.mxu0 %v372
    %2175 = vmatpush2.msra.mxu0 %v371
    %2176 = vmatprep.subr.mxu0 %v364
    %2177 = vmatpush2.msra.mxu0 %v363
    %2178 = vmatprep.subr.mxu0 %v356
    %2179 = vmatpush2.msra.mxu0 %v355
    %2180 = vmatprep.subr.mxu0 %v348
    %2181 = vmatpush2.msra.mxu0 %v347
    %2182 = vmatprep.subr.mxu0 %v340
    %2183 = vmatpush2.msra.mxu0 %v339
    %2184 = vmatprep.subr.mxu0 %v332
    %2185 = vmatpush2.msra.mxu0 %v331
    %2186 = vmatprep.mubr.f32.mxu0 %v1977
    %2187 = vmatmul.mubr.f32.gmra.mxu0 %v1973
    %v2188 = vpop.f32.mrf.mxu0
    %v2189 = vadd.f32 0.0, %v2188
    %v2190 = vpop.f32.mrf.mxu0
    %v2191 = vadd.f32 0.0, %v2190
    %2192 = vdwg.mxu0
    %2193 = vmatprep.subr.mxu0 %v326
    %2194 = vmatpush1.msra.mxu0 %v325
    %2195 = vmatprep.subr.mxu0 %v318
    %2196 = vmatpush1.msra.mxu0 %v317
    %2197 = vmatprep.subr.mxu0 %v310
    %2198 = vmatpush1.msra.mxu0 %v309
    %2199 = vmatprep.subr.mxu0 %v302
    %2200 = vmatpush1.msra.mxu0 %v301
    %2201 = vmatprep.subr.mxu0 %v294
    %2202 = vmatpush1.msra.mxu0 %v293
    %2203 = vmatprep.subr.mxu0 %v286
    %2204 = vmatpush1.msra.mxu0 %v285
    %2205 = vmatprep.subr.mxu0 %v278
    %2206 = vmatpush1.msra.mxu0 %v277
    %2207 = vmatprep.subr.mxu0 %v270
    %2208 = vmatpush1.msra.mxu0 %v269
    %2209 = vmatprep.subr.mxu0 %v262
    %2210 = vmatpush1.msra.mxu0 %v261
    %2211 = vmatprep.subr.mxu0 %v254
    %2212 = vmatpush1.msra.mxu0 %v253
    %2213 = vmatprep.subr.mxu0 %v246
    %2214 = vmatpush1.msra.mxu0 %v245
    %2215 = vmatprep.subr.mxu0 %v238
    %2216 = vmatpush1.msra.mxu0 %v237
    %2217 = vmatprep.subr.mxu0 %v230
    %2218 = vmatpush1.msra.mxu0 %v229
    %2219 = vmatprep.subr.mxu0 %v222
    %2220 = vmatpush1.msra.mxu0 %v221
    %2221 = vmatprep.subr.mxu0 %v214
    %2222 = vmatpush1.msra.mxu0 %v213
    %2223 = vmatprep.subr.mxu0 %v206
    %2224 = vmatpush1.msra.mxu0 %v205
    %2225 = vmatprep.subr.mxu0 %v454
    %2226 = vmatpush2.msra.mxu0 %v453
    %2227 = vmatprep.subr.mxu0 %v446
    %2228 = vmatpush2.msra.mxu0 %v445
    %2229 = vmatprep.subr.mxu0 %v438
    %2230 = vmatpush2.msra.mxu0 %v437
    %2231 = vmatprep.subr.mxu0 %v430
    %2232 = vmatpush2.msra.mxu0 %v429
    %2233 = vmatprep.subr.mxu0 %v422
    %2234 = vmatpush2.msra.mxu0 %v421
    %2235 = vmatprep.subr.mxu0 %v414
    %2236 = vmatpush2.msra.mxu0 %v413
    %2237 = vmatprep.subr.mxu0 %v406
    %2238 = vmatpush2.msra.mxu0 %v405
    %2239 = vmatprep.subr.mxu0 %v398
    %2240 = vmatpush2.msra.mxu0 %v397
    %2241 = vmatprep.subr.mxu0 %v390
    %2242 = vmatpush2.msra.mxu0 %v389
    %2243 = vmatprep.subr.mxu0 %v382
    %2244 = vmatpush2.msra.mxu0 %v381
    %2245 = vmatprep.subr.mxu0 %v374
    %2246 = vmatpush2.msra.mxu0 %v373
    %2247 = vmatprep.subr.mxu0 %v366
    %2248 = vmatpush2.msra.mxu0 %v365
    %2249 = vmatprep.subr.mxu0 %v358
    %2250 = vmatpush2.msra.mxu0 %v357
    %2251 = vmatprep.subr.mxu0 %v350
    %2252 = vmatpush2.msra.mxu0 %v349
    %2253 = vmatprep.subr.mxu0 %v342
    %2254 = vmatpush2.msra.mxu0 %v341
    %2255 = vmatprep.subr.mxu0 %v334
    %2256 = vmatpush2.msra.mxu0 %v333
    %2257 = vmatprep.mubr.f32.mxu0 %v1977
    %2258 = vmatmul.mubr.f32.gmra.mxu0 %v1973
    %v2259 = vpop.f32.mrf.mxu0
    %v2260 = vadd.f32 0.0, %v2259
    %v2261 = vpop.f32.mrf.mxu0
    %v2262 = vadd.f32 0.0, %v2261
    %2263 = vdwg.mxu0
    %v2272 = vcombine.low %v2047, %v2049
    %v2273 = vcombine.low %v2118, %v2120
    %v2274 = vcombine.low %v2189, %v2191
    %v2275 = vcombine.low %v2260, %v2262
    %v2277 = vunpack.c.l.s4 1966171168
    %v2278 = vunpack.c.0.s8 %v2277
    %v2279 = vlaneseq
    %v2280 = vshrl.u32 %v2279, 7
    %v2281 = vsub.s32 %v2278, %v2280
    %v2282 = vrot.slane %v2272, %v2281
    %v2284 = vunpack.c.l.s4 1966171168
    %v2285 = vunpack.c.0.s8 %v2284
    %v2286 = vlaneseq
    %v2287 = vshrl.u32 %v2286, 7
    %v2288 = vsub.s32 %v2285, %v2287
    %v2289 = vrot.slane %v2273, %v2288
    %v2291 = vunpack.c.l.s4 1966171168
    %v2292 = vunpack.c.0.s8 %v2291
    %v2293 = vlaneseq
    %v2294 = vshrl.u32 %v2293, 7
    %v2295 = vsub.s32 %v2292, %v2294
    %v2296 = vrot.slane %v2274, %v2295
    %v2298 = vunpack.c.l.s4 1966171168
    %v2299 = vunpack.c.0.s8 %v2298
    %v2300 = vlaneseq
    %v2301 = vshrl.u32 %v2300, 7
    %v2302 = vsub.s32 %v2299, %v2301
    %v2303 = vrot.slane %v2275, %v2302
    %v2304 = vcombine.low %v2282, %v2289
    %v2305 = vcombine.low %v2296, %v2303
    %v2307 = vunpack.c.l.s4 1966171168
    %v2308 = vunpack.c.0.s8 %v2307
    %v2309 = vlaneseq
    %v2310 = vshrl.u32 %v2309, 7
    %v2311 = vsub.s32 %v2308, %v2310
    %v2312 = vrot.slane %v2304, %v2311
    %v2314 = vunpack.c.l.s4 1966171168
    %v2315 = vunpack.c.0.s8 %v2314
    %v2316 = vlaneseq
    %v2317 = vshrl.u32 %v2316, 7
    %v2318 = vsub.s32 %v2315, %v2317
    %v2319 = vrot.slane %v2305, %v2318
    %v2320 = vcombine.low %v2312, %v2319
    %v2322 = vadd.f32 %v1968, %v2320
    %v2323 = vxor.u32 %v2322, 2147483648
    %v2324 = vmul.f32 %v2323, 1.442695
    %v2325 = vpow.pop %v2324
    %v2326 = vadd.f32 %v2325, 1.0
    %v2327 = vrcp.pop %v2326
    %v2328 = vmul.f32 1.0, %v2327
    %v2330 = vrot.slane %v2322, 2
    %v2332 = vxor.u32 %v2330, 2147483648
    %v2333 = vmul.f32 %v2332, 1.442695
    %v2334 = vpow.pop %v2333
    %v2335 = vadd.f32 %v2334, 1.0
    %v2336 = vrcp.pop %v2335
    %v2337 = vmul.f32 1.0, %v2336
    %v2338 = vrot.slane %v2322, 4
    %v2340 = vtanh.pop %v2338
    %v2341 = vrot.slane %v2322, 6
    %v2343 = vxor.u32 %v2341, 2147483648
    %v2344 = vmul.f32 %v2343, 1.442695
    %v2345 = vpow.pop %v2344
    %v2346 = vadd.f32 %v2345, 1.0
    %v2347 = vrcp.pop %v2346
    %v2348 = vmul.f32 1.0, %v2347
    %v2349 = vmul.f32 %v2337, %v1959
    %v2350 = vmul.f32 %v2328, %v2340
    %v2351 = vadd.f32 %v2349, %v2350
    %v2352 = vtanh.pop %v2351
    %v2353 = vmul.f32 %v2348, %v2352
    %s2354 = scalar_lea.vmem [#allocation4], 3
    %2355 = vst.msk [vmem:[%s2354] ss:$8 sm:$0x3] %vm1178, %v2353
    %2356 = vst.msk [vmem:[%s2354] ss:$8 sm:$0x0] %vm1178, %v2353
    %s2357 = scalar_lea.vmem [#allocation3], 4
    %v2358 = vld [vmem:[%s2357] ss:$8 sm:$0xf]
    %v2359 = vld [vmem:[%s2357] ss:$8 sm:$0xf0]
    %v2360 = vor.u32 %v2358, %v2359
    %v2362 = vlaneseq
    %v2363 = vshrl.u32 %v2362, 7
    %v2364 = vsub.s32 0, %v2363
    %v2365 = vrot.slane %v2353, %v2364
    %v2366 = vlaneseq
    %v2367 = vshrl.u32 %v2366, 7
    %v2368 = vsub.s32 1, %v2367
    %v2369 = vrot.slane %v2353, %v2368
    %2372 = vmatprep.subr.mxu0 %v320
    %2373 = vmatpush1.msra.mxu0 %v319
    %2374 = vmatprep.subr.mxu0 %v312
    %2375 = vmatpush1.msra.mxu0 %v311
    %2376 = vmatprep.subr.mxu0 %v304
    %2377 = vmatpush1.msra.mxu0 %v303
    %2378 = vmatprep.subr.mxu0 %v296
    %2379 = vmatpush1.msra.mxu0 %v295
    %2380 = vmatprep.subr.mxu0 %v288
    %2381 = vmatpush1.msra.mxu0 %v287
    %2382 = vmatprep.subr.mxu0 %v280
    %2383 = vmatpush1.msra.mxu0 %v279
    %2384 = vmatprep.subr.mxu0 %v272
    %2385 = vmatpush1.msra.mxu0 %v271
    %2386 = vmatprep.subr.mxu0 %v264
    %2387 = vmatpush1.msra.mxu0 %v263
    %2388 = vmatprep.subr.mxu0 %v256
    %2389 = vmatpush1.msra.mxu0 %v255
    %2390 = vmatprep.subr.mxu0 %v248
    %2391 = vmatpush1.msra.mxu0 %v247
    %2392 = vmatprep.subr.mxu0 %v240
    %2393 = vmatpush1.msra.mxu0 %v239
    %2394 = vmatprep.subr.mxu0 %v232
    %2395 = vmatpush1.msra.mxu0 %v231
    %2396 = vmatprep.subr.mxu0 %v224
    %2397 = vmatpush1.msra.mxu0 %v223
    %2398 = vmatprep.subr.mxu0 %v216
    %2399 = vmatpush1.msra.mxu0 %v215
    %2400 = vmatprep.subr.mxu0 %v208
    %2401 = vmatpush1.msra.mxu0 %v207
    %2402 = vmatprep.subr.mxu0 %v200
    %2403 = vmatpush1.msra.mxu0 %v199
    %2404 = vmatprep.subr.mxu0 %v448
    %2405 = vmatpush2.msra.mxu0 %v447
    %2406 = vmatprep.subr.mxu0 %v440
    %2407 = vmatpush2.msra.mxu0 %v439
    %2408 = vmatprep.subr.mxu0 %v432
    %2409 = vmatpush2.msra.mxu0 %v431
    %2410 = vmatprep.subr.mxu0 %v424
    %2411 = vmatpush2.msra.mxu0 %v423
    %2412 = vmatprep.subr.mxu0 %v416
    %2413 = vmatpush2.msra.mxu0 %v415
    %2414 = vmatprep.subr.mxu0 %v408
    %2415 = vmatpush2.msra.mxu0 %v407
    %2416 = vmatprep.subr.mxu0 %v400
    %2417 = vmatpush2.msra.mxu0 %v399
    %2418 = vmatprep.subr.mxu0 %v392
    %2419 = vmatpush2.msra.mxu0 %v391
    %2420 = vmatprep.subr.mxu0 %v384
    %2421 = vmatpush2.msra.mxu0 %v383
    %2422 = vmatprep.subr.mxu0 %v376
    %2423 = vmatpush2.msra.mxu0 %v375
    %2424 = vmatprep.subr.mxu0 %v368
    %2425 = vmatpush2.msra.mxu0 %v367
    %2426 = vmatprep.subr.mxu0 %v360
    %2427 = vmatpush2.msra.mxu0 %v359
    %2428 = vmatprep.subr.mxu0 %v352
    %2429 = vmatpush2.msra.mxu0 %v351
    %2430 = vmatprep.subr.mxu0 %v344
    %2431 = vmatpush2.msra.mxu0 %v343
    %2432 = vmatprep.subr.mxu0 %v336
    %2433 = vmatpush2.msra.mxu0 %v335
    %2434 = vmatprep.subr.mxu0 %v328
    %2435 = vmatpush2.msra.mxu0 %v327
    %2436 = vmatprep.mubr.f32.mxu0 %v2369
    %2437 = vmatmul.mubr.f32.gmra.mxu0 %v2365
    %v2438 = vpop.f32.mrf.mxu0
    %v2439 = vadd.f32 0.0, %v2438
    %v2440 = vpop.f32.mrf.mxu0
    %v2441 = vadd.f32 0.0, %v2440
    %2442 = vdwg.mxu0
    %2443 = vmatprep.subr.mxu0 %v322
    %2444 = vmatpush1.msra.mxu0 %v321
    %2445 = vmatprep.subr.mxu0 %v314
    %2446 = vmatpush1.msra.mxu0 %v313
    %2447 = vmatprep.subr.mxu0 %v306
    %2448 = vmatpush1.msra.mxu0 %v305
    %2449 = vmatprep.subr.mxu0 %v298
    %2450 = vmatpush1.msra.mxu0 %v297
    %2451 = vmatprep.subr.mxu0 %v290
    %2452 = vmatpush1.msra.mxu0 %v289
    %2453 = vmatprep.subr.mxu0 %v282
    %2454 = vmatpush1.msra.mxu0 %v281
    %2455 = vmatprep.subr.mxu0 %v274
    %2456 = vmatpush1.msra.mxu0 %v273
    %2457 = vmatprep.subr.mxu0 %v266
    %2458 = vmatpush1.msra.mxu0 %v265
    %2459 = vmatprep.subr.mxu0 %v258
    %2460 = vmatpush1.msra.mxu0 %v257
    %2461 = vmatprep.subr.mxu0 %v250
    %2462 = vmatpush1.msra.mxu0 %v249
    %2463 = vmatprep.subr.mxu0 %v242
    %2464 = vmatpush1.msra.mxu0 %v241
    %2465 = vmatprep.subr.mxu0 %v234
    %2466 = vmatpush1.msra.mxu0 %v233
    %2467 = vmatprep.subr.mxu0 %v226
    %2468 = vmatpush1.msra.mxu0 %v225
    %2469 = vmatprep.subr.mxu0 %v218
    %2470 = vmatpush1.msra.mxu0 %v217
    %2471 = vmatprep.subr.mxu0 %v210
    %2472 = vmatpush1.msra.mxu0 %v209
    %2473 = vmatprep.subr.mxu0 %v202
    %2474 = vmatpush1.msra.mxu0 %v201
    %2475 = vmatprep.subr.mxu0 %v450
    %2476 = vmatpush2.msra.mxu0 %v449
    %2477 = vmatprep.subr.mxu0 %v442
    %2478 = vmatpush2.msra.mxu0 %v441
    %2479 = vmatprep.subr.mxu0 %v434
    %2480 = vmatpush2.msra.mxu0 %v433
    %2481 = vmatprep.subr.mxu0 %v426
    %2482 = vmatpush2.msra.mxu0 %v425
    %2483 = vmatprep.subr.mxu0 %v418
    %2484 = vmatpush2.msra.mxu0 %v417
    %2485 = vmatprep.subr.mxu0 %v410
    %2486 = vmatpush2.msra.mxu0 %v409
    %2487 = vmatprep.subr.mxu0 %v402
    %2488 = vmatpush2.msra.mxu0 %v401
    %2489 = vmatprep.subr.mxu0 %v394
    %2490 = vmatpush2.msra.mxu0 %v393
    %2491 = vmatprep.subr.mxu0 %v386
    %2492 = vmatpush2.msra.mxu0 %v385
    %2493 = vmatprep.subr.mxu0 %v378
    %2494 = vmatpush2.msra.mxu0 %v377
    %2495 = vmatprep.subr.mxu0 %v370
    %2496 = vmatpush2.msra.mxu0 %v369
    %2497 = vmatprep.subr.mxu0 %v362
    %2498 = vmatpush2.msra.mxu0 %v361
    %2499 = vmatprep.subr.mxu0 %v354
    %2500 = vmatpush2.msra.mxu0 %v353
    %2501 = vmatprep.subr.mxu0 %v346
    %2502 = vmatpush2.msra.mxu0 %v345
    %2503 = vmatprep.subr.mxu0 %v338
    %2504 = vmatpush2.msra.mxu0 %v337
    %2505 = vmatprep.subr.mxu0 %v330
    %2506 = vmatpush2.msra.mxu0 %v329
    %2507 = vmatprep.mubr.f32.mxu0 %v2369
    %2508 = vmatmul.mubr.f32.gmra.mxu0 %v2365
    %v2509 = vpop.f32.mrf.mxu0
    %v2510 = vadd.f32 0.0, %v2509
    %v2511 = vpop.f32.mrf.mxu0
    %v2512 = vadd.f32 0.0, %v2511
    %2513 = vdwg.mxu0
    %2514 = vmatprep.subr.mxu0 %v324
    %2515 = vmatpush1.msra.mxu0 %v323
    %2516 = vmatprep.subr.mxu0 %v316
    %2517 = vmatpush1.msra.mxu0 %v315
    %2518 = vmatprep.subr.mxu0 %v308
    %2519 = vmatpush1.msra.mxu0 %v307
    %2520 = vmatprep.subr.mxu0 %v300
    %2521 = vmatpush1.msra.mxu0 %v299
    %2522 = vmatprep.subr.mxu0 %v292
    %2523 = vmatpush1.msra.mxu0 %v291
    %2524 = vmatprep.subr.mxu0 %v284
    %2525 = vmatpush1.msra.mxu0 %v283
    %2526 = vmatprep.subr.mxu0 %v276
    %2527 = vmatpush1.msra.mxu0 %v275
    %2528 = vmatprep.subr.mxu0 %v268
    %2529 = vmatpush1.msra.mxu0 %v267
    %2530 = vmatprep.subr.mxu0 %v260
    %2531 = vmatpush1.msra.mxu0 %v259
    %2532 = vmatprep.subr.mxu0 %v252
    %2533 = vmatpush1.msra.mxu0 %v251
    %2534 = vmatprep.subr.mxu0 %v244
    %2535 = vmatpush1.msra.mxu0 %v243
    %2536 = vmatprep.subr.mxu0 %v236
    %2537 = vmatpush1.msra.mxu0 %v235
    %2538 = vmatprep.subr.mxu0 %v228
    %2539 = vmatpush1.msra.mxu0 %v227
    %2540 = vmatprep.subr.mxu0 %v220
    %2541 = vmatpush1.msra.mxu0 %v219
    %2542 = vmatprep.subr.mxu0 %v212
    %2543 = vmatpush1.msra.mxu0 %v211
    %2544 = vmatprep.subr.mxu0 %v204
    %2545 = vmatpush1.msra.mxu0 %v203
    %2546 = vmatprep.subr.mxu0 %v452
    %2547 = vmatpush2.msra.mxu0 %v451
    %2548 = vmatprep.subr.mxu0 %v444
    %2549 = vmatpush2.msra.mxu0 %v443
    %2550 = vmatprep.subr.mxu0 %v436
    %2551 = vmatpush2.msra.mxu0 %v435
    %2552 = vmatprep.subr.mxu0 %v428
    %2553 = vmatpush2.msra.mxu0 %v427
    %2554 = vmatprep.subr.mxu0 %v420
    %2555 = vmatpush2.msra.mxu0 %v419
    %2556 = vmatprep.subr.mxu0 %v412
    %2557 = vmatpush2.msra.mxu0 %v411
    %2558 = vmatprep.subr.mxu0 %v404
    %2559 = vmatpush2.msra.mxu0 %v403
    %2560 = vmatprep.subr.mxu0 %v396
    %2561 = vmatpush2.msra.mxu0 %v395
    %2562 = vmatprep.subr.mxu0 %v388
    %2563 = vmatpush2.msra.mxu0 %v387
    %2564 = vmatprep.subr.mxu0 %v380
    %2565 = vmatpush2.msra.mxu0 %v379
    %2566 = vmatprep.subr.mxu0 %v372
    %2567 = vmatpush2.msra.mxu0 %v371
    %2568 = vmatprep.subr.mxu0 %v364
    %2569 = vmatpush2.msra.mxu0 %v363
    %2570 = vmatprep.subr.mxu0 %v356
    %2571 = vmatpush2.msra.mxu0 %v355
    %2572 = vmatprep.subr.mxu0 %v348
    %2573 = vmatpush2.msra.mxu0 %v347
    %2574 = vmatprep.subr.mxu0 %v340
    %2575 = vmatpush2.msra.mxu0 %v339
    %2576 = vmatprep.subr.mxu0 %v332
    %2577 = vmatpush2.msra.mxu0 %v331
    %2578 = vmatprep.mubr.f32.mxu0 %v2369
    %2579 = vmatmul.mubr.f32.gmra.mxu0 %v2365
    %v2580 = vpop.f32.mrf.mxu0
    %v2581 = vadd.f32 0.0, %v2580
    %v2582 = vpop.f32.mrf.mxu0
    %v2583 = vadd.f32 0.0, %v2582
    %2584 = vdwg.mxu0
    %2585 = vmatprep.subr.mxu0 %v326
    %2586 = vmatpush1.msra.mxu0 %v325
    %2587 = vmatprep.subr.mxu0 %v318
    %2588 = vmatpush1.msra.mxu0 %v317
    %2589 = vmatprep.subr.mxu0 %v310
    %2590 = vmatpush1.msra.mxu0 %v309
    %2591 = vmatprep.subr.mxu0 %v302
    %2592 = vmatpush1.msra.mxu0 %v301
    %2593 = vmatprep.subr.mxu0 %v294
    %2594 = vmatpush1.msra.mxu0 %v293
    %2595 = vmatprep.subr.mxu0 %v286
    %2596 = vmatpush1.msra.mxu0 %v285
    %2597 = vmatprep.subr.mxu0 %v278
    %2598 = vmatpush1.msra.mxu0 %v277
    %2599 = vmatprep.subr.mxu0 %v270
    %2600 = vmatpush1.msra.mxu0 %v269
    %2601 = vmatprep.subr.mxu0 %v262
    %2602 = vmatpush1.msra.mxu0 %v261
    %2603 = vmatprep.subr.mxu0 %v254
    %2604 = vmatpush1.msra.mxu0 %v253
    %2605 = vmatprep.subr.mxu0 %v246
    %2606 = vmatpush1.msra.mxu0 %v245
    %2607 = vmatprep.subr.mxu0 %v238
    %2608 = vmatpush1.msra.mxu0 %v237
    %2609 = vmatprep.subr.mxu0 %v230
    %2610 = vmatpush1.msra.mxu0 %v229
    %2611 = vmatprep.subr.mxu0 %v222
    %2612 = vmatpush1.msra.mxu0 %v221
    %2613 = vmatprep.subr.mxu0 %v214
    %2614 = vmatpush1.msra.mxu0 %v213
    %2615 = vmatprep.subr.mxu0 %v206
    %2616 = vmatpush1.msra.mxu0 %v205
    %2617 = vmatprep.subr.mxu0 %v454
    %2618 = vmatpush2.msra.mxu0 %v453
    %2619 = vmatprep.subr.mxu0 %v446
    %2620 = vmatpush2.msra.mxu0 %v445
    %2621 = vmatprep.subr.mxu0 %v438
    %2622 = vmatpush2.msra.mxu0 %v437
    %2623 = vmatprep.subr.mxu0 %v430
    %2624 = vmatpush2.msra.mxu0 %v429
    %2625 = vmatprep.subr.mxu0 %v422
    %2626 = vmatpush2.msra.mxu0 %v421
    %2627 = vmatprep.subr.mxu0 %v414
    %2628 = vmatpush2.msra.mxu0 %v413
    %2629 = vmatprep.subr.mxu0 %v406
    %2630 = vmatpush2.msra.mxu0 %v405
    %2631 = vmatprep.subr.mxu0 %v398
    %2632 = vmatpush2.msra.mxu0 %v397
    %2633 = vmatprep.subr.mxu0 %v390
    %2634 = vmatpush2.msra.mxu0 %v389
    %2635 = vmatprep.subr.mxu0 %v382
    %2636 = vmatpush2.msra.mxu0 %v381
    %2637 = vmatprep.subr.mxu0 %v374
    %2638 = vmatpush2.msra.mxu0 %v373
    %2639 = vmatprep.subr.mxu0 %v366
    %2640 = vmatpush2.msra.mxu0 %v365
    %2641 = vmatprep.subr.mxu0 %v358
    %2642 = vmatpush2.msra.mxu0 %v357
    %2643 = vmatprep.subr.mxu0 %v350
    %2644 = vmatpush2.msra.mxu0 %v349
    %2645 = vmatprep.subr.mxu0 %v342
    %2646 = vmatpush2.msra.mxu0 %v341
    %2647 = vmatprep.subr.mxu0 %v334
    %2648 = vmatpush2.msra.mxu0 %v333
    %2649 = vmatprep.mubr.f32.mxu0 %v2369
    %2650 = vmatmul.mubr.f32.gmra.mxu0 %v2365
    %v2651 = vpop.f32.mrf.mxu0
    %v2652 = vadd.f32 0.0, %v2651
    %v2653 = vpop.f32.mrf.mxu0
    %v2654 = vadd.f32 0.0, %v2653
    %2655 = vdwg.mxu0
    %v2664 = vcombine.low %v2439, %v2441
    %v2665 = vcombine.low %v2510, %v2512
    %v2666 = vcombine.low %v2581, %v2583
    %v2667 = vcombine.low %v2652, %v2654
    %v2669 = vunpack.c.l.s4 1966171168
    %v2670 = vunpack.c.0.s8 %v2669
    %v2671 = vlaneseq
    %v2672 = vshrl.u32 %v2671, 7
    %v2673 = vsub.s32 %v2670, %v2672
    %v2674 = vrot.slane %v2664, %v2673
    %v2676 = vunpack.c.l.s4 1966171168
    %v2677 = vunpack.c.0.s8 %v2676
    %v2678 = vlaneseq
    %v2679 = vshrl.u32 %v2678, 7
    %v2680 = vsub.s32 %v2677, %v2679
    %v2681 = vrot.slane %v2665, %v2680
    %v2683 = vunpack.c.l.s4 1966171168
    %v2684 = vunpack.c.0.s8 %v2683
    %v2685 = vlaneseq
    %v2686 = vshrl.u32 %v2685, 7
    %v2687 = vsub.s32 %v2684, %v2686
    %v2688 = vrot.slane %v2666, %v2687
    %v2690 = vunpack.c.l.s4 1966171168
    %v2691 = vunpack.c.0.s8 %v2690
    %v2692 = vlaneseq
    %v2693 = vshrl.u32 %v2692, 7
    %v2694 = vsub.s32 %v2691, %v2693
    %v2695 = vrot.slane %v2667, %v2694
    %v2696 = vcombine.low %v2674, %v2681
    %v2697 = vcombine.low %v2688, %v2695
    %v2699 = vunpack.c.l.s4 1966171168
    %v2700 = vunpack.c.0.s8 %v2699
    %v2701 = vlaneseq
    %v2702 = vshrl.u32 %v2701, 7
    %v2703 = vsub.s32 %v2700, %v2702
    %v2704 = vrot.slane %v2696, %v2703
    %v2706 = vunpack.c.l.s4 1966171168
    %v2707 = vunpack.c.0.s8 %v2706
    %v2708 = vlaneseq
    %v2709 = vshrl.u32 %v2708, 7
    %v2710 = vsub.s32 %v2707, %v2709
    %v2711 = vrot.slane %v2697, %v2710
    %v2712 = vcombine.low %v2704, %v2711
    %v2714 = vadd.f32 %v2360, %v2712
    %v2715 = vxor.u32 %v2714, 2147483648
    %v2716 = vmul.f32 %v2715, 1.442695
    %v2717 = vpow.pop %v2716
    %v2718 = vadd.f32 %v2717, 1.0
    %v2719 = vrcp.pop %v2718
    %v2720 = vmul.f32 1.0, %v2719
    %v2722 = vrot.slane %v2714, 2
    %v2724 = vxor.u32 %v2722, 2147483648
    %v2725 = vmul.f32 %v2724, 1.442695
    %v2726 = vpow.pop %v2725
    %v2727 = vadd.f32 %v2726, 1.0
    %v2728 = vrcp.pop %v2727
    %v2729 = vmul.f32 1.0, %v2728
    %v2730 = vrot.slane %v2714, 4
    %v2732 = vtanh.pop %v2730
    %v2733 = vrot.slane %v2714, 6
    %v2735 = vxor.u32 %v2733, 2147483648
    %v2736 = vmul.f32 %v2735, 1.442695
    %v2737 = vpow.pop %v2736
    %v2738 = vadd.f32 %v2737, 1.0
    %v2739 = vrcp.pop %v2738
    %v2740 = vmul.f32 1.0, %v2739
    %v2741 = vmul.f32 %v2729, %v2351
    %v2742 = vmul.f32 %v2720, %v2732
    %v2743 = vadd.f32 %v2741, %v2742
    %v2744 = vtanh.pop %v2743
    %v2745 = vmul.f32 %v2740, %v2744
    %s2746 = scalar_lea.vmem [#allocation4], 4
    %2747 = vst.msk [vmem:[%s2746] ss:$8 sm:$0x3] %vm1178, %v2745
    %2748 = vst.msk [vmem:[%s2746] ss:$8 sm:$0x0] %vm1178, %v2745
    %s2749 = scalar_lea.vmem [#allocation3], 5
    %v2750 = vld [vmem:[%s2749] ss:$8 sm:$0xf]
    %v2751 = vld [vmem:[%s2749] ss:$8 sm:$0xf0]
    %v2752 = vor.u32 %v2750, %v2751
    %v2754 = vlaneseq
    %v2755 = vshrl.u32 %v2754, 7
    %v2756 = vsub.s32 0, %v2755
    %v2757 = vrot.slane %v2745, %v2756
    %v2758 = vlaneseq
    %v2759 = vshrl.u32 %v2758, 7
    %v2760 = vsub.s32 1, %v2759
    %v2761 = vrot.slane %v2745, %v2760
    %2764 = vmatprep.subr.mxu0 %v320
    %2765 = vmatpush1.msra.mxu0 %v319
    %2766 = vmatprep.subr.mxu0 %v312
    %2767 = vmatpush1.msra.mxu0 %v311
    %2768 = vmatprep.subr.mxu0 %v304
    %2769 = vmatpush1.msra.mxu0 %v303
    %2770 = vmatprep.subr.mxu0 %v296
    %2771 = vmatpush1.msra.mxu0 %v295
    %2772 = vmatprep.subr.mxu0 %v288
    %2773 = vmatpush1.msra.mxu0 %v287
    %2774 = vmatprep.subr.mxu0 %v280
    %2775 = vmatpush1.msra.mxu0 %v279
    %2776 = vmatprep.subr.mxu0 %v272
    %2777 = vmatpush1.msra.mxu0 %v271
    %2778 = vmatprep.subr.mxu0 %v264
    %2779 = vmatpush1.msra.mxu0 %v263
    %2780 = vmatprep.subr.mxu0 %v256
    %2781 = vmatpush1.msra.mxu0 %v255
    %2782 = vmatprep.subr.mxu0 %v248
    %2783 = vmatpush1.msra.mxu0 %v247
    %2784 = vmatprep.subr.mxu0 %v240
    %2785 = vmatpush1.msra.mxu0 %v239
    %2786 = vmatprep.subr.mxu0 %v232
    %2787 = vmatpush1.msra.mxu0 %v231
    %2788 = vmatprep.subr.mxu0 %v224
    %2789 = vmatpush1.msra.mxu0 %v223
    %2790 = vmatprep.subr.mxu0 %v216
    %2791 = vmatpush1.msra.mxu0 %v215
    %2792 = vmatprep.subr.mxu0 %v208
    %2793 = vmatpush1.msra.mxu0 %v207
    %2794 = vmatprep.subr.mxu0 %v200
    %2795 = vmatpush1.msra.mxu0 %v199
    %2796 = vmatprep.subr.mxu0 %v448
    %2797 = vmatpush2.msra.mxu0 %v447
    %2798 = vmatprep.subr.mxu0 %v440
    %2799 = vmatpush2.msra.mxu0 %v439
    %2800 = vmatprep.subr.mxu0 %v432
    %2801 = vmatpush2.msra.mxu0 %v431
    %2802 = vmatprep.subr.mxu0 %v424
    %2803 = vmatpush2.msra.mxu0 %v423
    %2804 = vmatprep.subr.mxu0 %v416
    %2805 = vmatpush2.msra.mxu0 %v415
    %2806 = vmatprep.subr.mxu0 %v408
    %2807 = vmatpush2.msra.mxu0 %v407
    %2808 = vmatprep.subr.mxu0 %v400
    %2809 = vmatpush2.msra.mxu0 %v399
    %2810 = vmatprep.subr.mxu0 %v392
    %2811 = vmatpush2.msra.mxu0 %v391
    %2812 = vmatprep.subr.mxu0 %v384
    %2813 = vmatpush2.msra.mxu0 %v383
    %2814 = vmatprep.subr.mxu0 %v376
    %2815 = vmatpush2.msra.mxu0 %v375
    %2816 = vmatprep.subr.mxu0 %v368
    %2817 = vmatpush2.msra.mxu0 %v367
    %2818 = vmatprep.subr.mxu0 %v360
    %2819 = vmatpush2.msra.mxu0 %v359
    %2820 = vmatprep.subr.mxu0 %v352
    %2821 = vmatpush2.msra.mxu0 %v351
    %2822 = vmatprep.subr.mxu0 %v344
    %2823 = vmatpush2.msra.mxu0 %v343
    %2824 = vmatprep.subr.mxu0 %v336
    %2825 = vmatpush2.msra.mxu0 %v335
    %2826 = vmatprep.subr.mxu0 %v328
    %2827 = vmatpush2.msra.mxu0 %v327
    %2828 = vmatprep.mubr.f32.mxu0 %v2761
    %2829 = vmatmul.mubr.f32.gmra.mxu0 %v2757
    %v2830 = vpop.f32.mrf.mxu0
    %v2831 = vadd.f32 0.0, %v2830
    %v2832 = vpop.f32.mrf.mxu0
    %v2833 = vadd.f32 0.0, %v2832
    %2834 = vdwg.mxu0
    %2835 = vmatprep.subr.mxu0 %v322
    %2836 = vmatpush1.msra.mxu0 %v321
    %2837 = vmatprep.subr.mxu0 %v314
    %2838 = vmatpush1.msra.mxu0 %v313
    %2839 = vmatprep.subr.mxu0 %v306
    %2840 = vmatpush1.msra.mxu0 %v305
    %2841 = vmatprep.subr.mxu0 %v298
    %2842 = vmatpush1.msra.mxu0 %v297
    %2843 = vmatprep.subr.mxu0 %v290
    %2844 = vmatpush1.msra.mxu0 %v289
    %2845 = vmatprep.subr.mxu0 %v282
    %2846 = vmatpush1.msra.mxu0 %v281
    %2847 = vmatprep.subr.mxu0 %v274
    %2848 = vmatpush1.msra.mxu0 %v273
    %2849 = vmatprep.subr.mxu0 %v266
    %2850 = vmatpush1.msra.mxu0 %v265
    %2851 = vmatprep.subr.mxu0 %v258
    %2852 = vmatpush1.msra.mxu0 %v257
    %2853 = vmatprep.subr.mxu0 %v250
    %2854 = vmatpush1.msra.mxu0 %v249
    %2855 = vmatprep.subr.mxu0 %v242
    %2856 = vmatpush1.msra.mxu0 %v241
    %2857 = vmatprep.subr.mxu0 %v234
    %2858 = vmatpush1.msra.mxu0 %v233
    %2859 = vmatprep.subr.mxu0 %v226
    %2860 = vmatpush1.msra.mxu0 %v225
    %2861 = vmatprep.subr.mxu0 %v218
    %2862 = vmatpush1.msra.mxu0 %v217
    %2863 = vmatprep.subr.mxu0 %v210
    %2864 = vmatpush1.msra.mxu0 %v209
    %2865 = vmatprep.subr.mxu0 %v202
    %2866 = vmatpush1.msra.mxu0 %v201
    %2867 = vmatprep.subr.mxu0 %v450
    %2868 = vmatpush2.msra.mxu0 %v449
    %2869 = vmatprep.subr.mxu0 %v442
    %2870 = vmatpush2.msra.mxu0 %v441
    %2871 = vmatprep.subr.mxu0 %v434
    %2872 = vmatpush2.msra.mxu0 %v433
    %2873 = vmatprep.subr.mxu0 %v426
    %2874 = vmatpush2.msra.mxu0 %v425
    %2875 = vmatprep.subr.mxu0 %v418
    %2876 = vmatpush2.msra.mxu0 %v417
    %2877 = vmatprep.subr.mxu0 %v410
    %2878 = vmatpush2.msra.mxu0 %v409
    %2879 = vmatprep.subr.mxu0 %v402
    %2880 = vmatpush2.msra.mxu0 %v401
    %2881 = vmatprep.subr.mxu0 %v394
    %2882 = vmatpush2.msra.mxu0 %v393
    %2883 = vmatprep.subr.mxu0 %v386
    %2884 = vmatpush2.msra.mxu0 %v385
    %2885 = vmatprep.subr.mxu0 %v378
    %2886 = vmatpush2.msra.mxu0 %v377
    %2887 = vmatprep.subr.mxu0 %v370
    %2888 = vmatpush2.msra.mxu0 %v369
    %2889 = vmatprep.subr.mxu0 %v362
    %2890 = vmatpush2.msra.mxu0 %v361
    %2891 = vmatprep.subr.mxu0 %v354
    %2892 = vmatpush2.msra.mxu0 %v353
    %2893 = vmatprep.subr.mxu0 %v346
    %2894 = vmatpush2.msra.mxu0 %v345
    %2895 = vmatprep.subr.mxu0 %v338
    %2896 = vmatpush2.msra.mxu0 %v337
    %2897 = vmatprep.subr.mxu0 %v330
    %2898 = vmatpush2.msra.mxu0 %v329
    %2899 = vmatprep.mubr.f32.mxu0 %v2761
    %2900 = vmatmul.mubr.f32.gmra.mxu0 %v2757
    %v2901 = vpop.f32.mrf.mxu0
    %v2902 = vadd.f32 0.0, %v2901
    %v2903 = vpop.f32.mrf.mxu0
    %v2904 = vadd.f32 0.0, %v2903
    %2905 = vdwg.mxu0
    %2906 = vmatprep.subr.mxu0 %v324
    %2907 = vmatpush1.msra.mxu0 %v323
    %2908 = vmatprep.subr.mxu0 %v316
    %2909 = vmatpush1.msra.mxu0 %v315
    %2910 = vmatprep.subr.mxu0 %v308
    %2911 = vmatpush1.msra.mxu0 %v307
    %2912 = vmatprep.subr.mxu0 %v300
    %2913 = vmatpush1.msra.mxu0 %v299
    %2914 = vmatprep.subr.mxu0 %v292
    %2915 = vmatpush1.msra.mxu0 %v291
    %2916 = vmatprep.subr.mxu0 %v284
    %2917 = vmatpush1.msra.mxu0 %v283
    %2918 = vmatprep.subr.mxu0 %v276
    %2919 = vmatpush1.msra.mxu0 %v275
    %2920 = vmatprep.subr.mxu0 %v268
    %2921 = vmatpush1.msra.mxu0 %v267
    %2922 = vmatprep.subr.mxu0 %v260
    %2923 = vmatpush1.msra.mxu0 %v259
    %2924 = vmatprep.subr.mxu0 %v252
    %2925 = vmatpush1.msra.mxu0 %v251
    %2926 = vmatprep.subr.mxu0 %v244
    %2927 = vmatpush1.msra.mxu0 %v243
    %2928 = vmatprep.subr.mxu0 %v236
    %2929 = vmatpush1.msra.mxu0 %v235
    %2930 = vmatprep.subr.mxu0 %v228
    %2931 = vmatpush1.msra.mxu0 %v227
    %2932 = vmatprep.subr.mxu0 %v220
    %2933 = vmatpush1.msra.mxu0 %v219
    %2934 = vmatprep.subr.mxu0 %v212
    %2935 = vmatpush1.msra.mxu0 %v211
    %2936 = vmatprep.subr.mxu0 %v204
    %2937 = vmatpush1.msra.mxu0 %v203
    %2938 = vmatprep.subr.mxu0 %v452
    %2939 = vmatpush2.msra.mxu0 %v451
    %2940 = vmatprep.subr.mxu0 %v444
    %2941 = vmatpush2.msra.mxu0 %v443
    %2942 = vmatprep.subr.mxu0 %v436
    %2943 = vmatpush2.msra.mxu0 %v435
    %2944 = vmatprep.subr.mxu0 %v428
    %2945 = vmatpush2.msra.mxu0 %v427
    %2946 = vmatprep.subr.mxu0 %v420
    %2947 = vmatpush2.msra.mxu0 %v419
    %2948 = vmatprep.subr.mxu0 %v412
    %2949 = vmatpush2.msra.mxu0 %v411
    %2950 = vmatprep.subr.mxu0 %v404
    %2951 = vmatpush2.msra.mxu0 %v403
    %2952 = vmatprep.subr.mxu0 %v396
    %2953 = vmatpush2.msra.mxu0 %v395
    %2954 = vmatprep.subr.mxu0 %v388
    %2955 = vmatpush2.msra.mxu0 %v387
    %2956 = vmatprep.subr.mxu0 %v380
    %2957 = vmatpush2.msra.mxu0 %v379
    %2958 = vmatprep.subr.mxu0 %v372
    %2959 = vmatpush2.msra.mxu0 %v371
    %2960 = vmatprep.subr.mxu0 %v364
    %2961 = vmatpush2.msra.mxu0 %v363
    %2962 = vmatprep.subr.mxu0 %v356
    %2963 = vmatpush2.msra.mxu0 %v355
    %2964 = vmatprep.subr.mxu0 %v348
    %2965 = vmatpush2.msra.mxu0 %v347
    %2966 = vmatprep.subr.mxu0 %v340
    %2967 = vmatpush2.msra.mxu0 %v339
    %2968 = vmatprep.subr.mxu0 %v332
    %2969 = vmatpush2.msra.mxu0 %v331
    %2970 = vmatprep.mubr.f32.mxu0 %v2761
    %2971 = vmatmul.mubr.f32.gmra.mxu0 %v2757
    %v2972 = vpop.f32.mrf.mxu0
    %v2973 = vadd.f32 0.0, %v2972
    %v2974 = vpop.f32.mrf.mxu0
    %v2975 = vadd.f32 0.0, %v2974
    %2976 = vdwg.mxu0
    %2977 = vmatprep.subr.mxu0 %v326
    %2978 = vmatpush1.msra.mxu0 %v325
    %2979 = vmatprep.subr.mxu0 %v318
    %2980 = vmatpush1.msra.mxu0 %v317
    %2981 = vmatprep.subr.mxu0 %v310
    %2982 = vmatpush1.msra.mxu0 %v309
    %2983 = vmatprep.subr.mxu0 %v302
    %2984 = vmatpush1.msra.mxu0 %v301
    %2985 = vmatprep.subr.mxu0 %v294
    %2986 = vmatpush1.msra.mxu0 %v293
    %2987 = vmatprep.subr.mxu0 %v286
    %2988 = vmatpush1.msra.mxu0 %v285
    %2989 = vmatprep.subr.mxu0 %v278
    %2990 = vmatpush1.msra.mxu0 %v277
    %2991 = vmatprep.subr.mxu0 %v270
    %2992 = vmatpush1.msra.mxu0 %v269
    %2993 = vmatprep.subr.mxu0 %v262
    %2994 = vmatpush1.msra.mxu0 %v261
    %2995 = vmatprep.subr.mxu0 %v254
    %2996 = vmatpush1.msra.mxu0 %v253
    %2997 = vmatprep.subr.mxu0 %v246
    %2998 = vmatpush1.msra.mxu0 %v245
    %2999 = vmatprep.subr.mxu0 %v238
    %3000 = vmatpush1.msra.mxu0 %v237
    %3001 = vmatprep.subr.mxu0 %v230
    %3002 = vmatpush1.msra.mxu0 %v229
    %3003 = vmatprep.subr.mxu0 %v222
    %3004 = vmatpush1.msra.mxu0 %v221
    %3005 = vmatprep.subr.mxu0 %v214
    %3006 = vmatpush1.msra.mxu0 %v213
    %3007 = vmatprep.subr.mxu0 %v206
    %3008 = vmatpush1.msra.mxu0 %v205
    %3009 = vmatprep.subr.mxu0 %v454
    %3010 = vmatpush2.msra.mxu0 %v453
    %3011 = vmatprep.subr.mxu0 %v446
    %3012 = vmatpush2.msra.mxu0 %v445
    %3013 = vmatprep.subr.mxu0 %v438
    %3014 = vmatpush2.msra.mxu0 %v437
    %3015 = vmatprep.subr.mxu0 %v430
    %3016 = vmatpush2.msra.mxu0 %v429
    %3017 = vmatprep.subr.mxu0 %v422
    %3018 = vmatpush2.msra.mxu0 %v421
    %3019 = vmatprep.subr.mxu0 %v414
    %3020 = vmatpush2.msra.mxu0 %v413
    %3021 = vmatprep.subr.mxu0 %v406
    %3022 = vmatpush2.msra.mxu0 %v405
    %3023 = vmatprep.subr.mxu0 %v398
    %3024 = vmatpush2.msra.mxu0 %v397
    %3025 = vmatprep.subr.mxu0 %v390
    %3026 = vmatpush2.msra.mxu0 %v389
    %3027 = vmatprep.subr.mxu0 %v382
    %3028 = vmatpush2.msra.mxu0 %v381
    %3029 = vmatprep.subr.mxu0 %v374
    %3030 = vmatpush2.msra.mxu0 %v373
    %3031 = vmatprep.subr.mxu0 %v366
    %3032 = vmatpush2.msra.mxu0 %v365
    %3033 = vmatprep.subr.mxu0 %v358
    %3034 = vmatpush2.msra.mxu0 %v357
    %3035 = vmatprep.subr.mxu0 %v350
    %3036 = vmatpush2.msra.mxu0 %v349
    %3037 = vmatprep.subr.mxu0 %v342
    %3038 = vmatpush2.msra.mxu0 %v341
    %3039 = vmatprep.subr.mxu0 %v334
    %3040 = vmatpush2.msra.mxu0 %v333
    %3041 = vmatprep.mubr.f32.mxu0 %v2761
    %3042 = vmatmul.mubr.f32.gmra.mxu0 %v2757
    %v3043 = vpop.f32.mrf.mxu0
    %v3044 = vadd.f32 0.0, %v3043
    %v3045 = vpop.f32.mrf.mxu0
    %v3046 = vadd.f32 0.0, %v3045
    %3047 = vdwg.mxu0
    %v3056 = vcombine.low %v2831, %v2833
    %v3057 = vcombine.low %v2902, %v2904
    %v3058 = vcombine.low %v2973, %v2975
    %v3059 = vcombine.low %v3044, %v3046
    %v3061 = vunpack.c.l.s4 1966171168
    %v3062 = vunpack.c.0.s8 %v3061
    %v3063 = vlaneseq
    %v3064 = vshrl.u32 %v3063, 7
    %v3065 = vsub.s32 %v3062, %v3064
    %v3066 = vrot.slane %v3056, %v3065
    %v3068 = vunpack.c.l.s4 1966171168
    %v3069 = vunpack.c.0.s8 %v3068
    %v3070 = vlaneseq
    %v3071 = vshrl.u32 %v3070, 7
    %v3072 = vsub.s32 %v3069, %v3071
    %v3073 = vrot.slane %v3057, %v3072
    %v3075 = vunpack.c.l.s4 1966171168
    %v3076 = vunpack.c.0.s8 %v3075
    %v3077 = vlaneseq
    %v3078 = vshrl.u32 %v3077, 7
    %v3079 = vsub.s32 %v3076, %v3078
    %v3080 = vrot.slane %v3058, %v3079
    %v3082 = vunpack.c.l.s4 1966171168
    %v3083 = vunpack.c.0.s8 %v3082
    %v3084 = vlaneseq
    %v3085 = vshrl.u32 %v3084, 7
    %v3086 = vsub.s32 %v3083, %v3085
    %v3087 = vrot.slane %v3059, %v3086
    %v3088 = vcombine.low %v3066, %v3073
    %v3089 = vcombine.low %v3080, %v3087
    %v3091 = vunpack.c.l.s4 1966171168
    %v3092 = vunpack.c.0.s8 %v3091
    %v3093 = vlaneseq
    %v3094 = vshrl.u32 %v3093, 7
    %v3095 = vsub.s32 %v3092, %v3094
    %v3096 = vrot.slane %v3088, %v3095
    %v3098 = vunpack.c.l.s4 1966171168
    %v3099 = vunpack.c.0.s8 %v3098
    %v3100 = vlaneseq
    %v3101 = vshrl.u32 %v3100, 7
    %v3102 = vsub.s32 %v3099, %v3101
    %v3103 = vrot.slane %v3089, %v3102
    %v3104 = vcombine.low %v3096, %v3103
    %v3106 = vadd.f32 %v2752, %v3104
    %v3107 = vxor.u32 %v3106, 2147483648
    %v3108 = vmul.f32 %v3107, 1.442695
    %v3109 = vpow.pop %v3108
    %v3110 = vadd.f32 %v3109, 1.0
    %v3111 = vrcp.pop %v3110
    %v3112 = vmul.f32 1.0, %v3111
    %v3114 = vrot.slane %v3106, 2
    %v3116 = vxor.u32 %v3114, 2147483648
    %v3117 = vmul.f32 %v3116, 1.442695
    %v3118 = vpow.pop %v3117
    %v3119 = vadd.f32 %v3118, 1.0
    %v3120 = vrcp.pop %v3119
    %v3121 = vmul.f32 1.0, %v3120
    %v3122 = vrot.slane %v3106, 4
    %v3124 = vtanh.pop %v3122
    %v3125 = vrot.slane %v3106, 6
    %v3127 = vxor.u32 %v3125, 2147483648
    %v3128 = vmul.f32 %v3127, 1.442695
    %v3129 = vpow.pop %v3128
    %v3130 = vadd.f32 %v3129, 1.0
    %v3131 = vrcp.pop %v3130
    %v3132 = vmul.f32 1.0, %v3131
    %v3133 = vmul.f32 %v3121, %v2743
    %v3134 = vmul.f32 %v3112, %v3124
    %v3135 = vadd.f32 %v3133, %v3134
    %v3136 = vtanh.pop %v3135
    %v3137 = vmul.f32 %v3132, %v3136
    %s3138 = scalar_lea.vmem [#allocation4], 5
    %3139 = vst.msk [vmem:[%s3138] ss:$8 sm:$0x3] %vm1178, %v3137
    %3140 = vst.msk [vmem:[%s3138] ss:$8 sm:$0x0] %vm1178, %v3137
    %s3141 = scalar_lea.vmem [#allocation3], 6
    %v3142 = vld [vmem:[%s3141] ss:$8 sm:$0xf]
    %v3143 = vld [vmem:[%s3141] ss:$8 sm:$0xf0]
    %v3144 = vor.u32 %v3142, %v3143
    %v3146 = vlaneseq
    %v3147 = vshrl.u32 %v3146, 7
    %v3148 = vsub.s32 0, %v3147
    %v3149 = vrot.slane %v3137, %v3148
    %v3150 = vlaneseq
    %v3151 = vshrl.u32 %v3150, 7
    %v3152 = vsub.s32 1, %v3151
    %v3153 = vrot.slane %v3137, %v3152
    %3156 = vmatprep.subr.mxu0 %v320
    %3157 = vmatpush1.msra.mxu0 %v319
    %3158 = vmatprep.subr.mxu0 %v312
    %3159 = vmatpush1.msra.mxu0 %v311
    %3160 = vmatprep.subr.mxu0 %v304
    %3161 = vmatpush1.msra.mxu0 %v303
    %3162 = vmatprep.subr.mxu0 %v296
    %3163 = vmatpush1.msra.mxu0 %v295
    %3164 = vmatprep.subr.mxu0 %v288
    %3165 = vmatpush1.msra.mxu0 %v287
    %3166 = vmatprep.subr.mxu0 %v280
    %3167 = vmatpush1.msra.mxu0 %v279
    %3168 = vmatprep.subr.mxu0 %v272
    %3169 = vmatpush1.msra.mxu0 %v271
    %3170 = vmatprep.subr.mxu0 %v264
    %3171 = vmatpush1.msra.mxu0 %v263
    %3172 = vmatprep.subr.mxu0 %v256
    %3173 = vmatpush1.msra.mxu0 %v255
    %3174 = vmatprep.subr.mxu0 %v248
    %3175 = vmatpush1.msra.mxu0 %v247
    %3176 = vmatprep.subr.mxu0 %v240
    %3177 = vmatpush1.msra.mxu0 %v239
    %3178 = vmatprep.subr.mxu0 %v232
    %3179 = vmatpush1.msra.mxu0 %v231
    %3180 = vmatprep.subr.mxu0 %v224
    %3181 = vmatpush1.msra.mxu0 %v223
    %3182 = vmatprep.subr.mxu0 %v216
    %3183 = vmatpush1.msra.mxu0 %v215
    %3184 = vmatprep.subr.mxu0 %v208
    %3185 = vmatpush1.msra.mxu0 %v207
    %3186 = vmatprep.subr.mxu0 %v200
    %3187 = vmatpush1.msra.mxu0 %v199
    %3188 = vmatprep.subr.mxu0 %v448
    %3189 = vmatpush2.msra.mxu0 %v447
    %3190 = vmatprep.subr.mxu0 %v440
    %3191 = vmatpush2.msra.mxu0 %v439
    %3192 = vmatprep.subr.mxu0 %v432
    %3193 = vmatpush2.msra.mxu0 %v431
    %3194 = vmatprep.subr.mxu0 %v424
    %3195 = vmatpush2.msra.mxu0 %v423
    %3196 = vmatprep.subr.mxu0 %v416
    %3197 = vmatpush2.msra.mxu0 %v415
    %3198 = vmatprep.subr.mxu0 %v408
    %3199 = vmatpush2.msra.mxu0 %v407
    %3200 = vmatprep.subr.mxu0 %v400
    %3201 = vmatpush2.msra.mxu0 %v399
    %3202 = vmatprep.subr.mxu0 %v392
    %3203 = vmatpush2.msra.mxu0 %v391
    %3204 = vmatprep.subr.mxu0 %v384
    %3205 = vmatpush2.msra.mxu0 %v383
    %3206 = vmatprep.subr.mxu0 %v376
    %3207 = vmatpush2.msra.mxu0 %v375
    %3208 = vmatprep.subr.mxu0 %v368
    %3209 = vmatpush2.msra.mxu0 %v367
    %3210 = vmatprep.subr.mxu0 %v360
    %3211 = vmatpush2.msra.mxu0 %v359
    %3212 = vmatprep.subr.mxu0 %v352
    %3213 = vmatpush2.msra.mxu0 %v351
    %3214 = vmatprep.subr.mxu0 %v344
    %3215 = vmatpush2.msra.mxu0 %v343
    %3216 = vmatprep.subr.mxu0 %v336
    %3217 = vmatpush2.msra.mxu0 %v335
    %3218 = vmatprep.subr.mxu0 %v328
    %3219 = vmatpush2.msra.mxu0 %v327
    %3220 = vmatprep.mubr.f32.mxu0 %v3153
    %3221 = vmatmul.mubr.f32.gmra.mxu0 %v3149
    %v3222 = vpop.f32.mrf.mxu0
    %v3223 = vadd.f32 0.0, %v3222
    %v3224 = vpop.f32.mrf.mxu0
    %v3225 = vadd.f32 0.0, %v3224
    %3226 = vdwg.mxu0
    %3227 = vmatprep.subr.mxu0 %v322
    %3228 = vmatpush1.msra.mxu0 %v321
    %3229 = vmatprep.subr.mxu0 %v314
    %3230 = vmatpush1.msra.mxu0 %v313
    %3231 = vmatprep.subr.mxu0 %v306
    %3232 = vmatpush1.msra.mxu0 %v305
    %3233 = vmatprep.subr.mxu0 %v298
    %3234 = vmatpush1.msra.mxu0 %v297
    %3235 = vmatprep.subr.mxu0 %v290
    %3236 = vmatpush1.msra.mxu0 %v289
    %3237 = vmatprep.subr.mxu0 %v282
    %3238 = vmatpush1.msra.mxu0 %v281
    %3239 = vmatprep.subr.mxu0 %v274
    %3240 = vmatpush1.msra.mxu0 %v273
    %3241 = vmatprep.subr.mxu0 %v266
    %3242 = vmatpush1.msra.mxu0 %v265
    %3243 = vmatprep.subr.mxu0 %v258
    %3244 = vmatpush1.msra.mxu0 %v257
    %3245 = vmatprep.subr.mxu0 %v250
    %3246 = vmatpush1.msra.mxu0 %v249
    %3247 = vmatprep.subr.mxu0 %v242
    %3248 = vmatpush1.msra.mxu0 %v241
    %3249 = vmatprep.subr.mxu0 %v234
    %3250 = vmatpush1.msra.mxu0 %v233
    %3251 = vmatprep.subr.mxu0 %v226
    %3252 = vmatpush1.msra.mxu0 %v225
    %3253 = vmatprep.subr.mxu0 %v218
    %3254 = vmatpush1.msra.mxu0 %v217
    %3255 = vmatprep.subr.mxu0 %v210
    %3256 = vmatpush1.msra.mxu0 %v209
    %3257 = vmatprep.subr.mxu0 %v202
    %3258 = vmatpush1.msra.mxu0 %v201
    %3259 = vmatprep.subr.mxu0 %v450
    %3260 = vmatpush2.msra.mxu0 %v449
    %3261 = vmatprep.subr.mxu0 %v442
    %3262 = vmatpush2.msra.mxu0 %v441
    %3263 = vmatprep.subr.mxu0 %v434
    %3264 = vmatpush2.msra.mxu0 %v433
    %3265 = vmatprep.subr.mxu0 %v426
    %3266 = vmatpush2.msra.mxu0 %v425
    %3267 = vmatprep.subr.mxu0 %v418
    %3268 = vmatpush2.msra.mxu0 %v417
    %3269 = vmatprep.subr.mxu0 %v410
    %3270 = vmatpush2.msra.mxu0 %v409
    %3271 = vmatprep.subr.mxu0 %v402
    %3272 = vmatpush2.msra.mxu0 %v401
    %3273 = vmatprep.subr.mxu0 %v394
    %3274 = vmatpush2.msra.mxu0 %v393
    %3275 = vmatprep.subr.mxu0 %v386
    %3276 = vmatpush2.msra.mxu0 %v385
    %3277 = vmatprep.subr.mxu0 %v378
    %3278 = vmatpush2.msra.mxu0 %v377
    %3279 = vmatprep.subr.mxu0 %v370
    %3280 = vmatpush2.msra.mxu0 %v369
    %3281 = vmatprep.subr.mxu0 %v362
    %3282 = vmatpush2.msra.mxu0 %v361
    %3283 = vmatprep.subr.mxu0 %v354
    %3284 = vmatpush2.msra.mxu0 %v353
    %3285 = vmatprep.subr.mxu0 %v346
    %3286 = vmatpush2.msra.mxu0 %v345
    %3287 = vmatprep.subr.mxu0 %v338
    %3288 = vmatpush2.msra.mxu0 %v337
    %3289 = vmatprep.subr.mxu0 %v330
    %3290 = vmatpush2.msra.mxu0 %v329
    %3291 = vmatprep.mubr.f32.mxu0 %v3153
    %3292 = vmatmul.mubr.f32.gmra.mxu0 %v3149
    %v3293 = vpop.f32.mrf.mxu0
    %v3294 = vadd.f32 0.0, %v3293
    %v3295 = vpop.f32.mrf.mxu0
    %v3296 = vadd.f32 0.0, %v3295
    %3297 = vdwg.mxu0
    %3298 = vmatprep.subr.mxu0 %v324
    %3299 = vmatpush1.msra.mxu0 %v323
    %3300 = vmatprep.subr.mxu0 %v316
    %3301 = vmatpush1.msra.mxu0 %v315
    %3302 = vmatprep.subr.mxu0 %v308
    %3303 = vmatpush1.msra.mxu0 %v307
    %3304 = vmatprep.subr.mxu0 %v300
    %3305 = vmatpush1.msra.mxu0 %v299
    %3306 = vmatprep.subr.mxu0 %v292
    %3307 = vmatpush1.msra.mxu0 %v291
    %3308 = vmatprep.subr.mxu0 %v284
    %3309 = vmatpush1.msra.mxu0 %v283
    %3310 = vmatprep.subr.mxu0 %v276
    %3311 = vmatpush1.msra.mxu0 %v275
    %3312 = vmatprep.subr.mxu0 %v268
    %3313 = vmatpush1.msra.mxu0 %v267
    %3314 = vmatprep.subr.mxu0 %v260
    %3315 = vmatpush1.msra.mxu0 %v259
    %3316 = vmatprep.subr.mxu0 %v252
    %3317 = vmatpush1.msra.mxu0 %v251
    %3318 = vmatprep.subr.mxu0 %v244
    %3319 = vmatpush1.msra.mxu0 %v243
    %3320 = vmatprep.subr.mxu0 %v236
    %3321 = vmatpush1.msra.mxu0 %v235
    %3322 = vmatprep.subr.mxu0 %v228
    %3323 = vmatpush1.msra.mxu0 %v227
    %3324 = vmatprep.subr.mxu0 %v220
    %3325 = vmatpush1.msra.mxu0 %v219
    %3326 = vmatprep.subr.mxu0 %v212
    %3327 = vmatpush1.msra.mxu0 %v211
    %3328 = vmatprep.subr.mxu0 %v204
    %3329 = vmatpush1.msra.mxu0 %v203
    %3330 = vmatprep.subr.mxu0 %v452
    %3331 = vmatpush2.msra.mxu0 %v451
    %3332 = vmatprep.subr.mxu0 %v444
    %3333 = vmatpush2.msra.mxu0 %v443
    %3334 = vmatprep.subr.mxu0 %v436
    %3335 = vmatpush2.msra.mxu0 %v435
    %3336 = vmatprep.subr.mxu0 %v428
    %3337 = vmatpush2.msra.mxu0 %v427
    %3338 = vmatprep.subr.mxu0 %v420
    %3339 = vmatpush2.msra.mxu0 %v419
    %3340 = vmatprep.subr.mxu0 %v412
    %3341 = vmatpush2.msra.mxu0 %v411
    %3342 = vmatprep.subr.mxu0 %v404
    %3343 = vmatpush2.msra.mxu0 %v403
    %3344 = vmatprep.subr.mxu0 %v396
    %3345 = vmatpush2.msra.mxu0 %v395
    %3346 = vmatprep.subr.mxu0 %v388
    %3347 = vmatpush2.msra.mxu0 %v387
    %3348 = vmatprep.subr.mxu0 %v380
    %3349 = vmatpush2.msra.mxu0 %v379
    %3350 = vmatprep.subr.mxu0 %v372
    %3351 = vmatpush2.msra.mxu0 %v371
    %3352 = vmatprep.subr.mxu0 %v364
    %3353 = vmatpush2.msra.mxu0 %v363
    %3354 = vmatprep.subr.mxu0 %v356
    %3355 = vmatpush2.msra.mxu0 %v355
    %3356 = vmatprep.subr.mxu0 %v348
    %3357 = vmatpush2.msra.mxu0 %v347
    %3358 = vmatprep.subr.mxu0 %v340
    %3359 = vmatpush2.msra.mxu0 %v339
    %3360 = vmatprep.subr.mxu0 %v332
    %3361 = vmatpush2.msra.mxu0 %v331
    %3362 = vmatprep.mubr.f32.mxu0 %v3153
    %3363 = vmatmul.mubr.f32.gmra.mxu0 %v3149
    %v3364 = vpop.f32.mrf.mxu0
    %v3365 = vadd.f32 0.0, %v3364
    %v3366 = vpop.f32.mrf.mxu0
    %v3367 = vadd.f32 0.0, %v3366
    %3368 = vdwg.mxu0
    %3369 = vmatprep.subr.mxu0 %v326
    %3370 = vmatpush1.msra.mxu0 %v325
    %3371 = vmatprep.subr.mxu0 %v318
    %3372 = vmatpush1.msra.mxu0 %v317
    %3373 = vmatprep.subr.mxu0 %v310
    %3374 = vmatpush1.msra.mxu0 %v309
    %3375 = vmatprep.subr.mxu0 %v302
    %3376 = vmatpush1.msra.mxu0 %v301
    %3377 = vmatprep.subr.mxu0 %v294
    %3378 = vmatpush1.msra.mxu0 %v293
    %3379 = vmatprep.subr.mxu0 %v286
    %3380 = vmatpush1.msra.mxu0 %v285
    %3381 = vmatprep.subr.mxu0 %v278
    %3382 = vmatpush1.msra.mxu0 %v277
    %3383 = vmatprep.subr.mxu0 %v270
    %3384 = vmatpush1.msra.mxu0 %v269
    %3385 = vmatprep.subr.mxu0 %v262
    %3386 = vmatpush1.msra.mxu0 %v261
    %3387 = vmatprep.subr.mxu0 %v254
    %3388 = vmatpush1.msra.mxu0 %v253
    %3389 = vmatprep.subr.mxu0 %v246
    %3390 = vmatpush1.msra.mxu0 %v245
    %3391 = vmatprep.subr.mxu0 %v238
    %3392 = vmatpush1.msra.mxu0 %v237
    %3393 = vmatprep.subr.mxu0 %v230
    %3394 = vmatpush1.msra.mxu0 %v229
    %3395 = vmatprep.subr.mxu0 %v222
    %3396 = vmatpush1.msra.mxu0 %v221
    %3397 = vmatprep.subr.mxu0 %v214
    %3398 = vmatpush1.msra.mxu0 %v213
    %3399 = vmatprep.subr.mxu0 %v206
    %3400 = vmatpush1.msra.mxu0 %v205
    %3401 = vmatprep.subr.mxu0 %v454
    %3402 = vmatpush2.msra.mxu0 %v453
    %3403 = vmatprep.subr.mxu0 %v446
    %3404 = vmatpush2.msra.mxu0 %v445
    %3405 = vmatprep.subr.mxu0 %v438
    %3406 = vmatpush2.msra.mxu0 %v437
    %3407 = vmatprep.subr.mxu0 %v430
    %3408 = vmatpush2.msra.mxu0 %v429
    %3409 = vmatprep.subr.mxu0 %v422
    %3410 = vmatpush2.msra.mxu0 %v421
    %3411 = vmatprep.subr.mxu0 %v414
    %3412 = vmatpush2.msra.mxu0 %v413
    %3413 = vmatprep.subr.mxu0 %v406
    %3414 = vmatpush2.msra.mxu0 %v405
    %3415 = vmatprep.subr.mxu0 %v398
    %3416 = vmatpush2.msra.mxu0 %v397
    %3417 = vmatprep.subr.mxu0 %v390
    %3418 = vmatpush2.msra.mxu0 %v389
    %3419 = vmatprep.subr.mxu0 %v382
    %3420 = vmatpush2.msra.mxu0 %v381
    %3421 = vmatprep.subr.mxu0 %v374
    %3422 = vmatpush2.msra.mxu0 %v373
    %3423 = vmatprep.subr.mxu0 %v366
    %3424 = vmatpush2.msra.mxu0 %v365
    %3425 = vmatprep.subr.mxu0 %v358
    %3426 = vmatpush2.msra.mxu0 %v357
    %3427 = vmatprep.subr.mxu0 %v350
    %3428 = vmatpush2.msra.mxu0 %v349
    %3429 = vmatprep.subr.mxu0 %v342
    %3430 = vmatpush2.msra.mxu0 %v341
    %3431 = vmatprep.subr.mxu0 %v334
    %3432 = vmatpush2.msra.mxu0 %v333
    %3433 = vmatprep.mubr.f32.mxu0 %v3153
    %3434 = vmatmul.mubr.f32.gmra.mxu0 %v3149
    %v3435 = vpop.f32.mrf.mxu0
    %v3436 = vadd.f32 0.0, %v3435
    %v3437 = vpop.f32.mrf.mxu0
    %v3438 = vadd.f32 0.0, %v3437
    %3439 = vdwg.mxu0
    %v3448 = vcombine.low %v3223, %v3225
    %v3449 = vcombine.low %v3294, %v3296
    %v3450 = vcombine.low %v3365, %v3367
    %v3451 = vcombine.low %v3436, %v3438
    %v3453 = vunpack.c.l.s4 1966171168
    %v3454 = vunpack.c.0.s8 %v3453
    %v3455 = vlaneseq
    %v3456 = vshrl.u32 %v3455, 7
    %v3457 = vsub.s32 %v3454, %v3456
    %v3458 = vrot.slane %v3448, %v3457
    %v3460 = vunpack.c.l.s4 1966171168
    %v3461 = vunpack.c.0.s8 %v3460
    %v3462 = vlaneseq
    %v3463 = vshrl.u32 %v3462, 7
    %v3464 = vsub.s32 %v3461, %v3463
    %v3465 = vrot.slane %v3449, %v3464
    %v3467 = vunpack.c.l.s4 1966171168
    %v3468 = vunpack.c.0.s8 %v3467
    %v3469 = vlaneseq
    %v3470 = vshrl.u32 %v3469, 7
    %v3471 = vsub.s32 %v3468, %v3470
    %v3472 = vrot.slane %v3450, %v3471
    %v3474 = vunpack.c.l.s4 1966171168
    %v3475 = vunpack.c.0.s8 %v3474
    %v3476 = vlaneseq
    %v3477 = vshrl.u32 %v3476, 7
    %v3478 = vsub.s32 %v3475, %v3477
    %v3479 = vrot.slane %v3451, %v3478
    %v3480 = vcombine.low %v3458, %v3465
    %v3481 = vcombine.low %v3472, %v3479
    %v3483 = vunpack.c.l.s4 1966171168
    %v3484 = vunpack.c.0.s8 %v3483
    %v3485 = vlaneseq
    %v3486 = vshrl.u32 %v3485, 7
    %v3487 = vsub.s32 %v3484, %v3486
    %v3488 = vrot.slane %v3480, %v3487
    %v3490 = vunpack.c.l.s4 1966171168
    %v3491 = vunpack.c.0.s8 %v3490
    %v3492 = vlaneseq
    %v3493 = vshrl.u32 %v3492, 7
    %v3494 = vsub.s32 %v3491, %v3493
    %v3495 = vrot.slane %v3481, %v3494
    %v3496 = vcombine.low %v3488, %v3495
    %v3498 = vadd.f32 %v3144, %v3496
    %v3499 = vxor.u32 %v3498, 2147483648
    %v3500 = vmul.f32 %v3499, 1.442695
    %v3501 = vpow.pop %v3500
    %v3502 = vadd.f32 %v3501, 1.0
    %v3503 = vrcp.pop %v3502
    %v3504 = vmul.f32 1.0, %v3503
    %v3506 = vrot.slane %v3498, 2
    %v3508 = vxor.u32 %v3506, 2147483648
    %v3509 = vmul.f32 %v3508, 1.442695
    %v3510 = vpow.pop %v3509
    %v3511 = vadd.f32 %v3510, 1.0
    %v3512 = vrcp.pop %v3511
    %v3513 = vmul.f32 1.0, %v3512
    %v3514 = vrot.slane %v3498, 4
    %v3516 = vtanh.pop %v3514
    %v3517 = vrot.slane %v3498, 6
    %v3519 = vxor.u32 %v3517, 2147483648
    %v3520 = vmul.f32 %v3519, 1.442695
    %v3521 = vpow.pop %v3520
    %v3522 = vadd.f32 %v3521, 1.0
    %v3523 = vrcp.pop %v3522
    %v3524 = vmul.f32 1.0, %v3523
    %v3525 = vmul.f32 %v3513, %v3135
    %v3526 = vmul.f32 %v3504, %v3516
    %v3527 = vadd.f32 %v3525, %v3526
    %v3528 = vtanh.pop %v3527
    %v3529 = vmul.f32 %v3524, %v3528
    %s3530 = scalar_lea.vmem [#allocation4], 6
    %3531 = vst.msk [vmem:[%s3530] ss:$8 sm:$0x3] %vm1178, %v3529
    %3532 = vst.msk [vmem:[%s3530] ss:$8 sm:$0x0] %vm1178, %v3529
    %s3533 = scalar_lea.vmem [#allocation3], 7
    %v3534 = vld [vmem:[%s3533] ss:$8 sm:$0xf]
    %v3535 = vld [vmem:[%s3533] ss:$8 sm:$0xf0]
    %v3536 = vor.u32 %v3534, %v3535
    %v3538 = vlaneseq
    %v3539 = vshrl.u32 %v3538, 7
    %v3540 = vsub.s32 0, %v3539
    %v3541 = vrot.slane %v3529, %v3540
    %v3542 = vlaneseq
    %v3543 = vshrl.u32 %v3542, 7
    %v3544 = vsub.s32 1, %v3543
    %v3545 = vrot.slane %v3529, %v3544
    %3548 = vmatprep.subr.mxu0 %v320
    %3549 = vmatpush1.msra.mxu0 %v319
    %3550 = vmatprep.subr.mxu0 %v312
    %3551 = vmatpush1.msra.mxu0 %v311
    %3552 = vmatprep.subr.mxu0 %v304
    %3553 = vmatpush1.msra.mxu0 %v303
    %3554 = vmatprep.subr.mxu0 %v296
    %3555 = vmatpush1.msra.mxu0 %v295
    %3556 = vmatprep.subr.mxu0 %v288
    %3557 = vmatpush1.msra.mxu0 %v287
    %3558 = vmatprep.subr.mxu0 %v280
    %3559 = vmatpush1.msra.mxu0 %v279
    %3560 = vmatprep.subr.mxu0 %v272
    %3561 = vmatpush1.msra.mxu0 %v271
    %3562 = vmatprep.subr.mxu0 %v264
    %3563 = vmatpush1.msra.mxu0 %v263
    %3564 = vmatprep.subr.mxu0 %v256
    %3565 = vmatpush1.msra.mxu0 %v255
    %3566 = vmatprep.subr.mxu0 %v248
    %3567 = vmatpush1.msra.mxu0 %v247
    %3568 = vmatprep.subr.mxu0 %v240
    %3569 = vmatpush1.msra.mxu0 %v239
    %3570 = vmatprep.subr.mxu0 %v232
    %3571 = vmatpush1.msra.mxu0 %v231
    %3572 = vmatprep.subr.mxu0 %v224
    %3573 = vmatpush1.msra.mxu0 %v223
    %3574 = vmatprep.subr.mxu0 %v216
    %3575 = vmatpush1.msra.mxu0 %v215
    %3576 = vmatprep.subr.mxu0 %v208
    %3577 = vmatpush1.msra.mxu0 %v207
    %3578 = vmatprep.subr.mxu0 %v200
    %3579 = vmatpush1.msra.mxu0 %v199
    %3580 = vmatprep.subr.mxu0 %v448
    %3581 = vmatpush2.msra.mxu0 %v447
    %3582 = vmatprep.subr.mxu0 %v440
    %3583 = vmatpush2.msra.mxu0 %v439
    %3584 = vmatprep.subr.mxu0 %v432
    %3585 = vmatpush2.msra.mxu0 %v431
    %3586 = vmatprep.subr.mxu0 %v424
    %3587 = vmatpush2.msra.mxu0 %v423
    %3588 = vmatprep.subr.mxu0 %v416
    %3589 = vmatpush2.msra.mxu0 %v415
    %3590 = vmatprep.subr.mxu0 %v408
    %3591 = vmatpush2.msra.mxu0 %v407
    %3592 = vmatprep.subr.mxu0 %v400
    %3593 = vmatpush2.msra.mxu0 %v399
    %3594 = vmatprep.subr.mxu0 %v392
    %3595 = vmatpush2.msra.mxu0 %v391
    %3596 = vmatprep.subr.mxu0 %v384
    %3597 = vmatpush2.msra.mxu0 %v383
    %3598 = vmatprep.subr.mxu0 %v376
    %3599 = vmatpush2.msra.mxu0 %v375
    %3600 = vmatprep.subr.mxu0 %v368
    %3601 = vmatpush2.msra.mxu0 %v367
    %3602 = vmatprep.subr.mxu0 %v360
    %3603 = vmatpush2.msra.mxu0 %v359
    %3604 = vmatprep.subr.mxu0 %v352
    %3605 = vmatpush2.msra.mxu0 %v351
    %3606 = vmatprep.subr.mxu0 %v344
    %3607 = vmatpush2.msra.mxu0 %v343
    %3608 = vmatprep.subr.mxu0 %v336
    %3609 = vmatpush2.msra.mxu0 %v335
    %3610 = vmatprep.subr.mxu0 %v328
    %3611 = vmatpush2.msra.mxu0 %v327
    %3612 = vmatprep.mubr.f32.mxu0 %v3545
    %3613 = vmatmul.mubr.f32.gmra.mxu0 %v3541
    %v3614 = vpop.f32.mrf.mxu0
    %v3615 = vadd.f32 0.0, %v3614
    %v3616 = vpop.f32.mrf.mxu0
    %v3617 = vadd.f32 0.0, %v3616
    %3618 = vdwg.mxu0
    %3619 = vmatprep.subr.mxu0 %v322
    %3620 = vmatpush1.msra.mxu0 %v321
    %3621 = vmatprep.subr.mxu0 %v314
    %3622 = vmatpush1.msra.mxu0 %v313
    %3623 = vmatprep.subr.mxu0 %v306
    %3624 = vmatpush1.msra.mxu0 %v305
    %3625 = vmatprep.subr.mxu0 %v298
    %3626 = vmatpush1.msra.mxu0 %v297
    %3627 = vmatprep.subr.mxu0 %v290
    %3628 = vmatpush1.msra.mxu0 %v289
    %3629 = vmatprep.subr.mxu0 %v282
    %3630 = vmatpush1.msra.mxu0 %v281
    %3631 = vmatprep.subr.mxu0 %v274
    %3632 = vmatpush1.msra.mxu0 %v273
    %3633 = vmatprep.subr.mxu0 %v266
    %3634 = vmatpush1.msra.mxu0 %v265
    %3635 = vmatprep.subr.mxu0 %v258
    %3636 = vmatpush1.msra.mxu0 %v257
    %3637 = vmatprep.subr.mxu0 %v250
    %3638 = vmatpush1.msra.mxu0 %v249
    %3639 = vmatprep.subr.mxu0 %v242
    %3640 = vmatpush1.msra.mxu0 %v241
    %3641 = vmatprep.subr.mxu0 %v234
    %3642 = vmatpush1.msra.mxu0 %v233
    %3643 = vmatprep.subr.mxu0 %v226
    %3644 = vmatpush1.msra.mxu0 %v225
    %3645 = vmatprep.subr.mxu0 %v218
    %3646 = vmatpush1.msra.mxu0 %v217
    %3647 = vmatprep.subr.mxu0 %v210
    %3648 = vmatpush1.msra.mxu0 %v209
    %3649 = vmatprep.subr.mxu0 %v202
    %3650 = vmatpush1.msra.mxu0 %v201
    %3651 = vmatprep.subr.mxu0 %v450
    %3652 = vmatpush2.msra.mxu0 %v449
    %3653 = vmatprep.subr.mxu0 %v442
    %3654 = vmatpush2.msra.mxu0 %v441
    %3655 = vmatprep.subr.mxu0 %v434
    %3656 = vmatpush2.msra.mxu0 %v433
    %3657 = vmatprep.subr.mxu0 %v426
    %3658 = vmatpush2.msra.mxu0 %v425
    %3659 = vmatprep.subr.mxu0 %v418
    %3660 = vmatpush2.msra.mxu0 %v417
    %3661 = vmatprep.subr.mxu0 %v410
    %3662 = vmatpush2.msra.mxu0 %v409
    %3663 = vmatprep.subr.mxu0 %v402
    %3664 = vmatpush2.msra.mxu0 %v401
    %3665 = vmatprep.subr.mxu0 %v394
    %3666 = vmatpush2.msra.mxu0 %v393
    %3667 = vmatprep.subr.mxu0 %v386
    %3668 = vmatpush2.msra.mxu0 %v385
    %3669 = vmatprep.subr.mxu0 %v378
    %3670 = vmatpush2.msra.mxu0 %v377
    %3671 = vmatprep.subr.mxu0 %v370
    %3672 = vmatpush2.msra.mxu0 %v369
    %3673 = vmatprep.subr.mxu0 %v362
    %3674 = vmatpush2.msra.mxu0 %v361
    %3675 = vmatprep.subr.mxu0 %v354
    %3676 = vmatpush2.msra.mxu0 %v353
    %3677 = vmatprep.subr.mxu0 %v346
    %3678 = vmatpush2.msra.mxu0 %v345
    %3679 = vmatprep.subr.mxu0 %v338
    %3680 = vmatpush2.msra.mxu0 %v337
    %3681 = vmatprep.subr.mxu0 %v330
    %3682 = vmatpush2.msra.mxu0 %v329
    %3683 = vmatprep.mubr.f32.mxu0 %v3545
    %3684 = vmatmul.mubr.f32.gmra.mxu0 %v3541
    %v3685 = vpop.f32.mrf.mxu0
    %v3686 = vadd.f32 0.0, %v3685
    %v3687 = vpop.f32.mrf.mxu0
    %v3688 = vadd.f32 0.0, %v3687
    %3689 = vdwg.mxu0
    %3690 = vmatprep.subr.mxu0 %v324
    %3691 = vmatpush1.msra.mxu0 %v323
    %3692 = vmatprep.subr.mxu0 %v316
    %3693 = vmatpush1.msra.mxu0 %v315
    %3694 = vmatprep.subr.mxu0 %v308
    %3695 = vmatpush1.msra.mxu0 %v307
    %3696 = vmatprep.subr.mxu0 %v300
    %3697 = vmatpush1.msra.mxu0 %v299
    %3698 = vmatprep.subr.mxu0 %v292
    %3699 = vmatpush1.msra.mxu0 %v291
    %3700 = vmatprep.subr.mxu0 %v284
    %3701 = vmatpush1.msra.mxu0 %v283
    %3702 = vmatprep.subr.mxu0 %v276
    %3703 = vmatpush1.msra.mxu0 %v275
    %3704 = vmatprep.subr.mxu0 %v268
    %3705 = vmatpush1.msra.mxu0 %v267
    %3706 = vmatprep.subr.mxu0 %v260
    %3707 = vmatpush1.msra.mxu0 %v259
    %3708 = vmatprep.subr.mxu0 %v252
    %3709 = vmatpush1.msra.mxu0 %v251
    %3710 = vmatprep.subr.mxu0 %v244
    %3711 = vmatpush1.msra.mxu0 %v243
    %3712 = vmatprep.subr.mxu0 %v236
    %3713 = vmatpush1.msra.mxu0 %v235
    %3714 = vmatprep.subr.mxu0 %v228
    %3715 = vmatpush1.msra.mxu0 %v227
    %3716 = vmatprep.subr.mxu0 %v220
    %3717 = vmatpush1.msra.mxu0 %v219
    %3718 = vmatprep.subr.mxu0 %v212
    %3719 = vmatpush1.msra.mxu0 %v211
    %3720 = vmatprep.subr.mxu0 %v204
    %3721 = vmatpush1.msra.mxu0 %v203
    %3722 = vmatprep.subr.mxu0 %v452
    %3723 = vmatpush2.msra.mxu0 %v451
    %3724 = vmatprep.subr.mxu0 %v444
    %3725 = vmatpush2.msra.mxu0 %v443
    %3726 = vmatprep.subr.mxu0 %v436
    %3727 = vmatpush2.msra.mxu0 %v435
    %3728 = vmatprep.subr.mxu0 %v428
    %3729 = vmatpush2.msra.mxu0 %v427
    %3730 = vmatprep.subr.mxu0 %v420
    %3731 = vmatpush2.msra.mxu0 %v419
    %3732 = vmatprep.subr.mxu0 %v412
    %3733 = vmatpush2.msra.mxu0 %v411
    %3734 = vmatprep.subr.mxu0 %v404
    %3735 = vmatpush2.msra.mxu0 %v403
    %3736 = vmatprep.subr.mxu0 %v396
    %3737 = vmatpush2.msra.mxu0 %v395
    %3738 = vmatprep.subr.mxu0 %v388
    %3739 = vmatpush2.msra.mxu0 %v387
    %3740 = vmatprep.subr.mxu0 %v380
    %3741 = vmatpush2.msra.mxu0 %v379
    %3742 = vmatprep.subr.mxu0 %v372
    %3743 = vmatpush2.msra.mxu0 %v371
    %3744 = vmatprep.subr.mxu0 %v364
    %3745 = vmatpush2.msra.mxu0 %v363
    %3746 = vmatprep.subr.mxu0 %v356
    %3747 = vmatpush2.msra.mxu0 %v355
    %3748 = vmatprep.subr.mxu0 %v348
    %3749 = vmatpush2.msra.mxu0 %v347
    %3750 = vmatprep.subr.mxu0 %v340
    %3751 = vmatpush2.msra.mxu0 %v339
    %3752 = vmatprep.subr.mxu0 %v332
    %3753 = vmatpush2.msra.mxu0 %v331
    %3754 = vmatprep.mubr.f32.mxu0 %v3545
    %3755 = vmatmul.mubr.f32.gmra.mxu0 %v3541
    %v3756 = vpop.f32.mrf.mxu0
    %v3757 = vadd.f32 0.0, %v3756
    %v3758 = vpop.f32.mrf.mxu0
    %v3759 = vadd.f32 0.0, %v3758
    %3760 = vdwg.mxu0
    %3761 = vmatprep.subr.mxu0 %v326
    %3762 = vmatpush1.msra.mxu0 %v325
    %3763 = vmatprep.subr.mxu0 %v318
    %3764 = vmatpush1.msra.mxu0 %v317
    %3765 = vmatprep.subr.mxu0 %v310
    %3766 = vmatpush1.msra.mxu0 %v309
    %3767 = vmatprep.subr.mxu0 %v302
    %3768 = vmatpush1.msra.mxu0 %v301
    %3769 = vmatprep.subr.mxu0 %v294
    %3770 = vmatpush1.msra.mxu0 %v293
    %3771 = vmatprep.subr.mxu0 %v286
    %3772 = vmatpush1.msra.mxu0 %v285
    %3773 = vmatprep.subr.mxu0 %v278
    %3774 = vmatpush1.msra.mxu0 %v277
    %3775 = vmatprep.subr.mxu0 %v270
    %3776 = vmatpush1.msra.mxu0 %v269
    %3777 = vmatprep.subr.mxu0 %v262
    %3778 = vmatpush1.msra.mxu0 %v261
    %3779 = vmatprep.subr.mxu0 %v254
    %3780 = vmatpush1.msra.mxu0 %v253
    %3781 = vmatprep.subr.mxu0 %v246
    %3782 = vmatpush1.msra.mxu0 %v245
    %3783 = vmatprep.subr.mxu0 %v238
    %3784 = vmatpush1.msra.mxu0 %v237
    %3785 = vmatprep.subr.mxu0 %v230
    %3786 = vmatpush1.msra.mxu0 %v229
    %3787 = vmatprep.subr.mxu0 %v222
    %3788 = vmatpush1.msra.mxu0 %v221
    %3789 = vmatprep.subr.mxu0 %v214
    %3790 = vmatpush1.msra.mxu0 %v213
    %3791 = vmatprep.subr.mxu0 %v206
    %3792 = vmatpush1.msra.mxu0 %v205
    %3793 = vmatprep.subr.mxu0 %v454
    %3794 = vmatpush2.msra.mxu0 %v453
    %3795 = vmatprep.subr.mxu0 %v446
    %3796 = vmatpush2.msra.mxu0 %v445
    %3797 = vmatprep.subr.mxu0 %v438
    %3798 = vmatpush2.msra.mxu0 %v437
    %3799 = vmatprep.subr.mxu0 %v430
    %3800 = vmatpush2.msra.mxu0 %v429
    %3801 = vmatprep.subr.mxu0 %v422
    %3802 = vmatpush2.msra.mxu0 %v421
    %3803 = vmatprep.subr.mxu0 %v414
    %3804 = vmatpush2.msra.mxu0 %v413
    %3805 = vmatprep.subr.mxu0 %v406
    %3806 = vmatpush2.msra.mxu0 %v405
    %3807 = vmatprep.subr.mxu0 %v398
    %3808 = vmatpush2.msra.mxu0 %v397
    %3809 = vmatprep.subr.mxu0 %v390
    %3810 = vmatpush2.msra.mxu0 %v389
    %3811 = vmatprep.subr.mxu0 %v382
    %3812 = vmatpush2.msra.mxu0 %v381
    %3813 = vmatprep.subr.mxu0 %v374
    %3814 = vmatpush2.msra.mxu0 %v373
    %3815 = vmatprep.subr.mxu0 %v366
    %3816 = vmatpush2.msra.mxu0 %v365
    %3817 = vmatprep.subr.mxu0 %v358
    %3818 = vmatpush2.msra.mxu0 %v357
    %3819 = vmatprep.subr.mxu0 %v350
    %3820 = vmatpush2.msra.mxu0 %v349
    %3821 = vmatprep.subr.mxu0 %v342
    %3822 = vmatpush2.msra.mxu0 %v341
    %3823 = vmatprep.subr.mxu0 %v334
    %3824 = vmatpush2.msra.mxu0 %v333
    %3825 = vmatprep.mubr.f32.mxu0 %v3545
    %3826 = vmatmul.mubr.f32.gmra.mxu0 %v3541
    %v3827 = vpop.f32.mrf.mxu0
    %v3828 = vadd.f32 0.0, %v3827
    %v3829 = vpop.f32.mrf.mxu0
    %v3830 = vadd.f32 0.0, %v3829
    %3831 = vdwg.mxu0
    %v3840 = vcombine.low %v3615, %v3617
    %v3841 = vcombine.low %v3686, %v3688
    %v3842 = vcombine.low %v3757, %v3759
    %v3843 = vcombine.low %v3828, %v3830
    %v3845 = vunpack.c.l.s4 1966171168
    %v3846 = vunpack.c.0.s8 %v3845
    %v3847 = vlaneseq
    %v3848 = vshrl.u32 %v3847, 7
    %v3849 = vsub.s32 %v3846, %v3848
    %v3850 = vrot.slane %v3840, %v3849
    %v3852 = vunpack.c.l.s4 1966171168
    %v3853 = vunpack.c.0.s8 %v3852
    %v3854 = vlaneseq
    %v3855 = vshrl.u32 %v3854, 7
    %v3856 = vsub.s32 %v3853, %v3855
    %v3857 = vrot.slane %v3841, %v3856
    %v3859 = vunpack.c.l.s4 1966171168
    %v3860 = vunpack.c.0.s8 %v3859
    %v3861 = vlaneseq
    %v3862 = vshrl.u32 %v3861, 7
    %v3863 = vsub.s32 %v3860, %v3862
    %v3864 = vrot.slane %v3842, %v3863
    %v3866 = vunpack.c.l.s4 1966171168
    %v3867 = vunpack.c.0.s8 %v3866
    %v3868 = vlaneseq
    %v3869 = vshrl.u32 %v3868, 7
    %v3870 = vsub.s32 %v3867, %v3869
    %v3871 = vrot.slane %v3843, %v3870
    %v3872 = vcombine.low %v3850, %v3857
    %v3873 = vcombine.low %v3864, %v3871
    %v3875 = vunpack.c.l.s4 1966171168
    %v3876 = vunpack.c.0.s8 %v3875
    %v3877 = vlaneseq
    %v3878 = vshrl.u32 %v3877, 7
    %v3879 = vsub.s32 %v3876, %v3878
    %v3880 = vrot.slane %v3872, %v3879
    %v3882 = vunpack.c.l.s4 1966171168
    %v3883 = vunpack.c.0.s8 %v3882
    %v3884 = vlaneseq
    %v3885 = vshrl.u32 %v3884, 7
    %v3886 = vsub.s32 %v3883, %v3885
    %v3887 = vrot.slane %v3873, %v3886
    %v3888 = vcombine.low %v3880, %v3887
    %v3890 = vadd.f32 %v3536, %v3888
    %v3891 = vxor.u32 %v3890, 2147483648
    %v3892 = vmul.f32 %v3891, 1.442695
    %v3893 = vpow.pop %v3892
    %v3894 = vadd.f32 %v3893, 1.0
    %v3895 = vrcp.pop %v3894
    %v3896 = vmul.f32 1.0, %v3895
    %v3898 = vrot.slane %v3890, 2
    %v3900 = vxor.u32 %v3898, 2147483648
    %v3901 = vmul.f32 %v3900, 1.442695
    %v3902 = vpow.pop %v3901
    %v3903 = vadd.f32 %v3902, 1.0
    %v3904 = vrcp.pop %v3903
    %v3905 = vmul.f32 1.0, %v3904
    %v3906 = vrot.slane %v3890, 4
    %v3908 = vtanh.pop %v3906
    %v3909 = vrot.slane %v3890, 6
    %v3911 = vxor.u32 %v3909, 2147483648
    %v3912 = vmul.f32 %v3911, 1.442695
    %v3913 = vpow.pop %v3912
    %v3914 = vadd.f32 %v3913, 1.0
    %v3915 = vrcp.pop %v3914
    %v3916 = vmul.f32 1.0, %v3915
    %v3917 = vmul.f32 %v3905, %v3527
    %v3918 = vmul.f32 %v3896, %v3908
    %v3919 = vadd.f32 %v3917, %v3918
    %v3920 = vtanh.pop %v3919
    %v3921 = vmul.f32 %v3916, %v3920
    %s3922 = scalar_lea.vmem [#allocation4], 7
    %3923 = vst.msk [vmem:[%s3922] ss:$8 sm:$0x3] %vm1178, %v3921
    %3924 = vst.msk [vmem:[%s3922] ss:$8 sm:$0x0] %vm1178, %v3921
    %3925 = vst.msk [vmem:[#allocation20] ss:$2 sm:$0x3] %vm1178, %v3921
    %3926 = vst.msk [vmem:[#allocation22] ss:$2 sm:$0x3] %vm1178, %v3919
    %v3927 = vld [vmem:[#allocation14] sm:$0xff]
    %v3928 = vld [vmem:[#allocation14 + $0x8] sm:$0xff]
    %v3929 = vld [vmem:[#allocation14 + $0x10] sm:$0xff]
    %v3930 = vld [vmem:[#allocation14 + $0x18] sm:$0xff]
    %v3931 = vld [vmem:[#allocation14 + $0x20] sm:$0xff]
    %v3932 = vld [vmem:[#allocation14 + $0x28] sm:$0xff]
    %v3933 = vld [vmem:[#allocation14 + $0x30] sm:$0xff]
    %v3934 = vld [vmem:[#allocation14 + $0x38] sm:$0xff]
    %v3935 = vld [vmem:[#allocation14 + $0x40] sm:$0xff]
    %v3936 = vld [vmem:[#allocation14 + $0x48] sm:$0xff]
    %v3937 = vld [vmem:[#allocation14 + $0x50] sm:$0xff]
    %v3938 = vld [vmem:[#allocation14 + $0x58] sm:$0xff]
    %v3939 = vld [vmem:[#allocation14 + $0x60] sm:$0xff]
    %v3940 = vld [vmem:[#allocation14 + $0x68] sm:$0xff]
    %v3941 = vld [vmem:[#allocation14 + $0x70] sm:$0xff]
    %v3942 = vld [vmem:[#allocation14 + $0x78] sm:$0xff]
    %v3943 = vld [vmem:[#allocation14 + $0x80] sm:$0xff]
    %v3944 = vld [vmem:[#allocation14 + $0x88] sm:$0xff]
    %v3945 = vld [vmem:[#allocation14 + $0x90] sm:$0xff]
    %v3946 = vld [vmem:[#allocation14 + $0x98] sm:$0xff]
    %v3947 = vld [vmem:[#allocation14 + $0xa0] sm:$0xff]
    %v3948 = vld [vmem:[#allocation14 + $0xa8] sm:$0xff]
    %v3949 = vld [vmem:[#allocation14 + $0xb0] sm:$0xff]
    %v3950 = vld [vmem:[#allocation14 + $0xb8] sm:$0xff]
    %v3951 = vld [vmem:[#allocation14 + $0xc0] sm:$0xff]
    %v3952 = vld [vmem:[#allocation14 + $0xc8] sm:$0xff]
    %v3953 = vld [vmem:[#allocation14 + $0xd0] sm:$0xff]
    %v3954 = vld [vmem:[#allocation14 + $0xd8] sm:$0xff]
    %v3955 = vld [vmem:[#allocation14 + $0xe0] sm:$0xff]
    %v3956 = vld [vmem:[#allocation14 + $0xe8] sm:$0xff]
    %v3957 = vld [vmem:[#allocation14 + $0xf0] sm:$0xff]
    %v3958 = vld [vmem:[#allocation14 + $0xf8] sm:$0xff]
    %v3959 = vld [vmem:[#allocation14 + $0x100] sm:$0xff]
    %v3960 = vld [vmem:[#allocation14 + $0x108] sm:$0xff]
    %v3961 = vld [vmem:[#allocation14 + $0x110] sm:$0xff]
    %v3962 = vld [vmem:[#allocation14 + $0x118] sm:$0xff]
    %v3963 = vld [vmem:[#allocation14 + $0x120] sm:$0xff]
    %v3964 = vld [vmem:[#allocation14 + $0x128] sm:$0xff]
    %v3965 = vld [vmem:[#allocation14 + $0x130] sm:$0xff]
    %v3966 = vld [vmem:[#allocation14 + $0x138] sm:$0xff]
    %v3967 = vld [vmem:[#allocation14 + $0x140] sm:$0xff]
    %v3968 = vld [vmem:[#allocation14 + $0x148] sm:$0xff]
    %v3969 = vld [vmem:[#allocation14 + $0x150] sm:$0xff]
    %v3970 = vld [vmem:[#allocation14 + $0x158] sm:$0xff]
    %v3971 = vld [vmem:[#allocation14 + $0x160] sm:$0xff]
    %v3972 = vld [vmem:[#allocation14 + $0x168] sm:$0xff]
    %v3973 = vld [vmem:[#allocation14 + $0x170] sm:$0xff]
    %v3974 = vld [vmem:[#allocation14 + $0x178] sm:$0xff]
    %v3975 = vld [vmem:[#allocation14 + $0x180] sm:$0xff]
    %v3976 = vld [vmem:[#allocation14 + $0x188] sm:$0xff]
    %v3977 = vld [vmem:[#allocation14 + $0x190] sm:$0xff]
    %v3978 = vld [vmem:[#allocation14 + $0x198] sm:$0xff]
    %v3979 = vld [vmem:[#allocation14 + $0x1a0] sm:$0xff]
    %v3980 = vld [vmem:[#allocation14 + $0x1a8] sm:$0xff]
    %v3981 = vld [vmem:[#allocation14 + $0x1b0] sm:$0xff]
    %v3982 = vld [vmem:[#allocation14 + $0x1b8] sm:$0xff]
    %v3983 = vld [vmem:[#allocation14 + $0x1c0] sm:$0xff]
    %v3984 = vld [vmem:[#allocation14 + $0x1c8] sm:$0xff]
    %v3985 = vld [vmem:[#allocation14 + $0x1d0] sm:$0xff]
    %v3986 = vld [vmem:[#allocation14 + $0x1d8] sm:$0xff]
    %v3987 = vld [vmem:[#allocation14 + $0x1e0] sm:$0xff]
    %v3988 = vld [vmem:[#allocation14 + $0x1e8] sm:$0xff]
    %v3989 = vld [vmem:[#allocation14 + $0x1f0] sm:$0xff]
    %v3990 = vld [vmem:[#allocation14 + $0x1f8] sm:$0xff]
    %v3991 = vld [vmem:[#allocation16] sm:$0xff]
    %v3992 = vld [vmem:[#allocation16 + $0x8] sm:$0xff]
    %v3993 = vld [vmem:[#allocation16 + $0x10] sm:$0xff]
    %v3994 = vld [vmem:[#allocation16 + $0x18] sm:$0xff]
    %v3995 = vld [vmem:[#allocation16 + $0x20] sm:$0xff]
    %v3996 = vld [vmem:[#allocation16 + $0x28] sm:$0xff]
    %v3997 = vld [vmem:[#allocation16 + $0x30] sm:$0xff]
    %v3998 = vld [vmem:[#allocation16 + $0x38] sm:$0xff]
    %v3999 = vld [vmem:[#allocation16 + $0x40] sm:$0xff]
    %v4000 = vld [vmem:[#allocation16 + $0x48] sm:$0xff]
    %v4001 = vld [vmem:[#allocation16 + $0x50] sm:$0xff]
    %v4002 = vld [vmem:[#allocation16 + $0x58] sm:$0xff]
    %v4003 = vld [vmem:[#allocation16 + $0x60] sm:$0xff]
    %v4004 = vld [vmem:[#allocation16 + $0x68] sm:$0xff]
    %v4005 = vld [vmem:[#allocation16 + $0x70] sm:$0xff]
    %v4006 = vld [vmem:[#allocation16 + $0x78] sm:$0xff]
    %v4007 = vld [vmem:[#allocation16 + $0x80] sm:$0xff]
    %v4008 = vld [vmem:[#allocation16 + $0x88] sm:$0xff]
    %v4009 = vld [vmem:[#allocation16 + $0x90] sm:$0xff]
    %v4010 = vld [vmem:[#allocation16 + $0x98] sm:$0xff]
    %v4011 = vld [vmem:[#allocation16 + $0xa0] sm:$0xff]
    %v4012 = vld [vmem:[#allocation16 + $0xa8] sm:$0xff]
    %v4013 = vld [vmem:[#allocation16 + $0xb0] sm:$0xff]
    %v4014 = vld [vmem:[#allocation16 + $0xb8] sm:$0xff]
    %v4015 = vld [vmem:[#allocation16 + $0xc0] sm:$0xff]
    %v4016 = vld [vmem:[#allocation16 + $0xc8] sm:$0xff]
    %v4017 = vld [vmem:[#allocation16 + $0xd0] sm:$0xff]
    %v4018 = vld [vmem:[#allocation16 + $0xd8] sm:$0xff]
    %v4019 = vld [vmem:[#allocation16 + $0xe0] sm:$0xff]
    %v4020 = vld [vmem:[#allocation16 + $0xe8] sm:$0xff]
    %v4021 = vld [vmem:[#allocation16 + $0xf0] sm:$0xff]
    %v4022 = vld [vmem:[#allocation16 + $0xf8] sm:$0xff]
    %v4023 = vld [vmem:[#allocation16 + $0x100] sm:$0xff]
    %v4024 = vld [vmem:[#allocation16 + $0x108] sm:$0xff]
    %v4025 = vld [vmem:[#allocation16 + $0x110] sm:$0xff]
    %v4026 = vld [vmem:[#allocation16 + $0x118] sm:$0xff]
    %v4027 = vld [vmem:[#allocation16 + $0x120] sm:$0xff]
    %v4028 = vld [vmem:[#allocation16 + $0x128] sm:$0xff]
    %v4029 = vld [vmem:[#allocation16 + $0x130] sm:$0xff]
    %v4030 = vld [vmem:[#allocation16 + $0x138] sm:$0xff]
    %v4031 = vld [vmem:[#allocation16 + $0x140] sm:$0xff]
    %v4032 = vld [vmem:[#allocation16 + $0x148] sm:$0xff]
    %v4033 = vld [vmem:[#allocation16 + $0x150] sm:$0xff]
    %v4034 = vld [vmem:[#allocation16 + $0x158] sm:$0xff]
    %v4035 = vld [vmem:[#allocation16 + $0x160] sm:$0xff]
    %v4036 = vld [vmem:[#allocation16 + $0x168] sm:$0xff]
    %v4037 = vld [vmem:[#allocation16 + $0x170] sm:$0xff]
    %v4038 = vld [vmem:[#allocation16 + $0x178] sm:$0xff]
    %v4039 = vld [vmem:[#allocation16 + $0x180] sm:$0xff]
    %v4040 = vld [vmem:[#allocation16 + $0x188] sm:$0xff]
    %v4041 = vld [vmem:[#allocation16 + $0x190] sm:$0xff]
    %v4042 = vld [vmem:[#allocation16 + $0x198] sm:$0xff]
    %v4043 = vld [vmem:[#allocation16 + $0x1a0] sm:$0xff]
    %v4044 = vld [vmem:[#allocation16 + $0x1a8] sm:$0xff]
    %v4045 = vld [vmem:[#allocation16 + $0x1b0] sm:$0xff]
    %v4046 = vld [vmem:[#allocation16 + $0x1b8] sm:$0xff]
    %v4047 = vld [vmem:[#allocation16 + $0x1c0] sm:$0xff]
    %v4048 = vld [vmem:[#allocation16 + $0x1c8] sm:$0xff]
    %v4049 = vld [vmem:[#allocation16 + $0x1d0] sm:$0xff]
    %v4050 = vld [vmem:[#allocation16 + $0x1d8] sm:$0xff]
    %v4051 = vld [vmem:[#allocation16 + $0x1e0] sm:$0xff]
    %v4052 = vld [vmem:[#allocation16 + $0x1e8] sm:$0xff]
    %v4053 = vld [vmem:[#allocation16 + $0x1f0] sm:$0xff]
    %v4054 = vld [vmem:[#allocation16 + $0x1f8] sm:$0xff]
    %v4055 = vld [vmem:[%s8] sm:$0xf]
    %v4056 = vld [vmem:[%s9] sm:$0xf]
    %v4057 = vld [vmem:[#allocation17] sm:$0xff]
    %v4058 = vld [vmem:[#allocation17 + $0x8] sm:$0xff]
    %v4059 = vld [vmem:[#allocation17 + $0x10] sm:$0xff]
    %v4060 = vld [vmem:[#allocation17 + $0x18] sm:$0xff]
    %v4061 = vld [vmem:[#allocation17 + $0x20] sm:$0xff]
    %v4062 = vld [vmem:[#allocation17 + $0x28] sm:$0xff]
    %v4063 = vld [vmem:[#allocation17 + $0x30] sm:$0xff]
    %v4064 = vld [vmem:[#allocation17 + $0x38] sm:$0xff]
    %v4065 = vld [vmem:[#allocation17 + $0x40] sm:$0xff]
    %v4066 = vld [vmem:[#allocation17 + $0x48] sm:$0xff]
    %v4067 = vld [vmem:[#allocation17 + $0x50] sm:$0xff]
    %v4068 = vld [vmem:[#allocation17 + $0x58] sm:$0xff]
    %v4069 = vld [vmem:[#allocation17 + $0x60] sm:$0xff]
    %v4070 = vld [vmem:[#allocation17 + $0x68] sm:$0xff]
    %v4071 = vld [vmem:[#allocation17 + $0x70] sm:$0xff]
    %v4072 = vld [vmem:[#allocation17 + $0x78] sm:$0xff]
    %v4073 = vld [vmem:[#allocation17 + $0x80] sm:$0xff]
    %v4074 = vld [vmem:[#allocation17 + $0x88] sm:$0xff]
    %v4075 = vld [vmem:[#allocation17 + $0x90] sm:$0xff]
    %v4076 = vld [vmem:[#allocation17 + $0x98] sm:$0xff]
    %v4077 = vld [vmem:[#allocation17 + $0xa0] sm:$0xff]
    %v4078 = vld [vmem:[#allocation17 + $0xa8] sm:$0xff]
    %v4079 = vld [vmem:[#allocation17 + $0xb0] sm:$0xff]
    %v4080 = vld [vmem:[#allocation17 + $0xb8] sm:$0xff]
    %v4081 = vld [vmem:[#allocation17 + $0xc0] sm:$0xff]
    %v4082 = vld [vmem:[#allocation17 + $0xc8] sm:$0xff]
    %v4083 = vld [vmem:[#allocation17 + $0xd0] sm:$0xff]
    %v4084 = vld [vmem:[#allocation17 + $0xd8] sm:$0xff]
    %v4085 = vld [vmem:[#allocation17 + $0xe0] sm:$0xff]
    %v4086 = vld [vmem:[#allocation17 + $0xe8] sm:$0xff]
    %v4087 = vld [vmem:[#allocation17 + $0xf0] sm:$0xff]
    %v4088 = vld [vmem:[#allocation17 + $0xf8] sm:$0xff]
    %v4089 = vld [vmem:[#allocation17 + $0x100] sm:$0xff]
    %v4090 = vld [vmem:[#allocation17 + $0x108] sm:$0xff]
    %v4091 = vld [vmem:[#allocation17 + $0x110] sm:$0xff]
    %v4092 = vld [vmem:[#allocation17 + $0x118] sm:$0xff]
    %v4093 = vld [vmem:[#allocation17 + $0x120] sm:$0xff]
    %v4094 = vld [vmem:[#allocation17 + $0x128] sm:$0xff]
    %v4095 = vld [vmem:[#allocation17 + $0x130] sm:$0xff]
    %v4096 = vld [vmem:[#allocation17 + $0x138] sm:$0xff]
    %v4097 = vld [vmem:[#allocation17 + $0x140] sm:$0xff]
    %v4098 = vld [vmem:[#allocation17 + $0x148] sm:$0xff]
    %v4099 = vld [vmem:[#allocation17 + $0x150] sm:$0xff]
    %v4100 = vld [vmem:[#allocation17 + $0x158] sm:$0xff]
    %v4101 = vld [vmem:[#allocation17 + $0x160] sm:$0xff]
    %v4102 = vld [vmem:[#allocation17 + $0x168] sm:$0xff]
    %v4103 = vld [vmem:[#allocation17 + $0x170] sm:$0xff]
    %v4104 = vld [vmem:[#allocation17 + $0x178] sm:$0xff]
    %v4105 = vld [vmem:[#allocation17 + $0x180] sm:$0xff]
    %v4106 = vld [vmem:[#allocation17 + $0x188] sm:$0xff]
    %v4107 = vld [vmem:[#allocation17 + $0x190] sm:$0xff]
    %v4108 = vld [vmem:[#allocation17 + $0x198] sm:$0xff]
    %v4109 = vld [vmem:[#allocation17 + $0x1a0] sm:$0xff]
    %v4110 = vld [vmem:[#allocation17 + $0x1a8] sm:$0xff]
    %v4111 = vld [vmem:[#allocation17 + $0x1b0] sm:$0xff]
    %v4112 = vld [vmem:[#allocation17 + $0x1b8] sm:$0xff]
    %v4113 = vld [vmem:[#allocation17 + $0x1c0] sm:$0xff]
    %v4114 = vld [vmem:[#allocation17 + $0x1c8] sm:$0xff]
    %v4115 = vld [vmem:[#allocation17 + $0x1d0] sm:$0xff]
    %v4116 = vld [vmem:[#allocation17 + $0x1d8] sm:$0xff]
    %v4117 = vld [vmem:[#allocation17 + $0x1e0] sm:$0xff]
    %v4118 = vld [vmem:[#allocation17 + $0x1e8] sm:$0xff]
    %v4119 = vld [vmem:[#allocation17 + $0x1f0] sm:$0xff]
    %v4120 = vld [vmem:[#allocation17 + $0x1f8] sm:$0xff]
    %v4121 = vld [vmem:[#allocation17 + $0x200] sm:$0xff]
    %v4122 = vld [vmem:[#allocation17 + $0x208] sm:$0xff]
    %v4123 = vld [vmem:[#allocation17 + $0x210] sm:$0xff]
    %v4124 = vld [vmem:[#allocation17 + $0x218] sm:$0xff]
    %v4125 = vld [vmem:[#allocation17 + $0x220] sm:$0xff]
    %v4126 = vld [vmem:[#allocation17 + $0x228] sm:$0xff]
    %v4127 = vld [vmem:[#allocation17 + $0x230] sm:$0xff]
    %v4128 = vld [vmem:[#allocation17 + $0x238] sm:$0xff]
    %v4129 = vld [vmem:[#allocation17 + $0x240] sm:$0xff]
    %v4130 = vld [vmem:[#allocation17 + $0x248] sm:$0xff]
    %v4131 = vld [vmem:[#allocation17 + $0x250] sm:$0xff]
    %v4132 = vld [vmem:[#allocation17 + $0x258] sm:$0xff]
    %v4133 = vld [vmem:[#allocation17 + $0x260] sm:$0xff]
    %v4134 = vld [vmem:[#allocation17 + $0x268] sm:$0xff]
    %v4135 = vld [vmem:[#allocation17 + $0x270] sm:$0xff]
    %v4136 = vld [vmem:[#allocation17 + $0x278] sm:$0xff]
    %v4137 = vld [vmem:[#allocation17 + $0x280] sm:$0xff]
    %v4138 = vld [vmem:[#allocation17 + $0x288] sm:$0xff]
    %v4139 = vld [vmem:[#allocation17 + $0x290] sm:$0xff]
    %v4140 = vld [vmem:[#allocation17 + $0x298] sm:$0xff]
    %v4141 = vld [vmem:[#allocation17 + $0x2a0] sm:$0xff]
    %v4142 = vld [vmem:[#allocation17 + $0x2a8] sm:$0xff]
    %v4143 = vld [vmem:[#allocation17 + $0x2b0] sm:$0xff]
    %v4144 = vld [vmem:[#allocation17 + $0x2b8] sm:$0xff]
    %v4145 = vld [vmem:[#allocation17 + $0x2c0] sm:$0xff]
    %v4146 = vld [vmem:[#allocation17 + $0x2c8] sm:$0xff]
    %v4147 = vld [vmem:[#allocation17 + $0x2d0] sm:$0xff]
    %v4148 = vld [vmem:[#allocation17 + $0x2d8] sm:$0xff]
    %v4149 = vld [vmem:[#allocation17 + $0x2e0] sm:$0xff]
    %v4150 = vld [vmem:[#allocation17 + $0x2e8] sm:$0xff]
    %v4151 = vld [vmem:[#allocation17 + $0x2f0] sm:$0xff]
    %v4152 = vld [vmem:[#allocation17 + $0x2f8] sm:$0xff]
    %v4153 = vld [vmem:[#allocation17 + $0x300] sm:$0xff]
    %v4154 = vld [vmem:[#allocation17 + $0x308] sm:$0xff]
    %v4155 = vld [vmem:[#allocation17 + $0x310] sm:$0xff]
    %v4156 = vld [vmem:[#allocation17 + $0x318] sm:$0xff]
    %v4157 = vld [vmem:[#allocation17 + $0x320] sm:$0xff]
    %v4158 = vld [vmem:[#allocation17 + $0x328] sm:$0xff]
    %v4159 = vld [vmem:[#allocation17 + $0x330] sm:$0xff]
    %v4160 = vld [vmem:[#allocation17 + $0x338] sm:$0xff]
    %v4161 = vld [vmem:[#allocation17 + $0x340] sm:$0xff]
    %v4162 = vld [vmem:[#allocation17 + $0x348] sm:$0xff]
    %v4163 = vld [vmem:[#allocation17 + $0x350] sm:$0xff]
    %v4164 = vld [vmem:[#allocation17 + $0x358] sm:$0xff]
    %v4165 = vld [vmem:[#allocation17 + $0x360] sm:$0xff]
    %v4166 = vld [vmem:[#allocation17 + $0x368] sm:$0xff]
    %v4167 = vld [vmem:[#allocation17 + $0x370] sm:$0xff]
    %v4168 = vld [vmem:[#allocation17 + $0x378] sm:$0xff]
    %v4169 = vld [vmem:[#allocation17 + $0x380] sm:$0xff]
    %v4170 = vld [vmem:[#allocation17 + $0x388] sm:$0xff]
    %v4171 = vld [vmem:[#allocation17 + $0x390] sm:$0xff]
    %v4172 = vld [vmem:[#allocation17 + $0x398] sm:$0xff]
    %v4173 = vld [vmem:[#allocation17 + $0x3a0] sm:$0xff]
    %v4174 = vld [vmem:[#allocation17 + $0x3a8] sm:$0xff]
    %v4175 = vld [vmem:[#allocation17 + $0x3b0] sm:$0xff]
    %v4176 = vld [vmem:[#allocation17 + $0x3b8] sm:$0xff]
    %v4177 = vld [vmem:[#allocation17 + $0x3c0] sm:$0xff]
    %v4178 = vld [vmem:[#allocation17 + $0x3c8] sm:$0xff]
    %v4179 = vld [vmem:[#allocation17 + $0x3d0] sm:$0xff]
    %v4180 = vld [vmem:[#allocation17 + $0x3d8] sm:$0xff]
    %v4181 = vld [vmem:[#allocation17 + $0x3e0] sm:$0xff]
    %v4182 = vld [vmem:[#allocation17 + $0x3e8] sm:$0xff]
    %v4183 = vld [vmem:[#allocation17 + $0x3f0] sm:$0xff]
    %v4184 = vld [vmem:[#allocation17 + $0x3f8] sm:$0xff]
    %v4185 = vld [vmem:[#allocation17 + $0x400] sm:$0xff]
    %v4186 = vld [vmem:[#allocation17 + $0x408] sm:$0xff]
    %v4187 = vld [vmem:[#allocation17 + $0x410] sm:$0xff]
    %v4188 = vld [vmem:[#allocation17 + $0x418] sm:$0xff]
    %v4189 = vld [vmem:[#allocation17 + $0x420] sm:$0xff]
    %v4190 = vld [vmem:[#allocation17 + $0x428] sm:$0xff]
    %v4191 = vld [vmem:[#allocation17 + $0x430] sm:$0xff]
    %v4192 = vld [vmem:[#allocation17 + $0x438] sm:$0xff]
    %v4193 = vld [vmem:[#allocation17 + $0x440] sm:$0xff]
    %v4194 = vld [vmem:[#allocation17 + $0x448] sm:$0xff]
    %v4195 = vld [vmem:[#allocation17 + $0x450] sm:$0xff]
    %v4196 = vld [vmem:[#allocation17 + $0x458] sm:$0xff]
    %v4197 = vld [vmem:[#allocation17 + $0x460] sm:$0xff]
    %v4198 = vld [vmem:[#allocation17 + $0x468] sm:$0xff]
    %v4199 = vld [vmem:[#allocation17 + $0x470] sm:$0xff]
    %v4200 = vld [vmem:[#allocation17 + $0x478] sm:$0xff]
    %v4201 = vld [vmem:[#allocation17 + $0x480] sm:$0xff]
    %v4202 = vld [vmem:[#allocation17 + $0x488] sm:$0xff]
    %v4203 = vld [vmem:[#allocation17 + $0x490] sm:$0xff]
    %v4204 = vld [vmem:[#allocation17 + $0x498] sm:$0xff]
    %v4205 = vld [vmem:[#allocation17 + $0x4a0] sm:$0xff]
    %v4206 = vld [vmem:[#allocation17 + $0x4a8] sm:$0xff]
    %v4207 = vld [vmem:[#allocation17 + $0x4b0] sm:$0xff]
    %v4208 = vld [vmem:[#allocation17 + $0x4b8] sm:$0xff]
    %v4209 = vld [vmem:[#allocation17 + $0x4c0] sm:$0xff]
    %v4210 = vld [vmem:[#allocation17 + $0x4c8] sm:$0xff]
    %v4211 = vld [vmem:[#allocation17 + $0x4d0] sm:$0xff]
    %v4212 = vld [vmem:[#allocation17 + $0x4d8] sm:$0xff]
    %v4213 = vld [vmem:[#allocation17 + $0x4e0] sm:$0xff]
    %v4214 = vld [vmem:[#allocation17 + $0x4e8] sm:$0xff]
    %v4215 = vld [vmem:[#allocation17 + $0x4f0] sm:$0xff]
    %v4216 = vld [vmem:[#allocation17 + $0x4f8] sm:$0xff]
    %v4217 = vld [vmem:[#allocation17 + $0x500] sm:$0xff]
    %v4218 = vld [vmem:[#allocation17 + $0x508] sm:$0xff]
    %v4219 = vld [vmem:[#allocation17 + $0x510] sm:$0xff]
    %v4220 = vld [vmem:[#allocation17 + $0x518] sm:$0xff]
    %v4221 = vld [vmem:[#allocation17 + $0x520] sm:$0xff]
    %v4222 = vld [vmem:[#allocation17 + $0x528] sm:$0xff]
    %v4223 = vld [vmem:[#allocation17 + $0x530] sm:$0xff]
    %v4224 = vld [vmem:[#allocation17 + $0x538] sm:$0xff]
    %v4225 = vld [vmem:[#allocation17 + $0x540] sm:$0xff]
    %v4226 = vld [vmem:[#allocation17 + $0x548] sm:$0xff]
    %v4227 = vld [vmem:[#allocation17 + $0x550] sm:$0xff]
    %v4228 = vld [vmem:[#allocation17 + $0x558] sm:$0xff]
    %v4229 = vld [vmem:[#allocation17 + $0x560] sm:$0xff]
    %v4230 = vld [vmem:[#allocation17 + $0x568] sm:$0xff]
    %v4231 = vld [vmem:[#allocation17 + $0x570] sm:$0xff]
    %v4232 = vld [vmem:[#allocation17 + $0x578] sm:$0xff]
    %v4233 = vld [vmem:[#allocation17 + $0x580] sm:$0xff]
    %v4234 = vld [vmem:[#allocation17 + $0x588] sm:$0xff]
    %v4235 = vld [vmem:[#allocation17 + $0x590] sm:$0xff]
    %v4236 = vld [vmem:[#allocation17 + $0x598] sm:$0xff]
    %v4237 = vld [vmem:[#allocation17 + $0x5a0] sm:$0xff]
    %v4238 = vld [vmem:[#allocation17 + $0x5a8] sm:$0xff]
    %v4239 = vld [vmem:[#allocation17 + $0x5b0] sm:$0xff]
    %v4240 = vld [vmem:[#allocation17 + $0x5b8] sm:$0xff]
    %v4241 = vld [vmem:[#allocation17 + $0x5c0] sm:$0xff]
    %v4242 = vld [vmem:[#allocation17 + $0x5c8] sm:$0xff]
    %v4243 = vld [vmem:[#allocation17 + $0x5d0] sm:$0xff]
    %v4244 = vld [vmem:[#allocation17 + $0x5d8] sm:$0xff]
    %v4245 = vld [vmem:[#allocation17 + $0x5e0] sm:$0xff]
    %v4246 = vld [vmem:[#allocation17 + $0x5e8] sm:$0xff]
    %v4247 = vld [vmem:[#allocation17 + $0x5f0] sm:$0xff]
    %v4248 = vld [vmem:[#allocation17 + $0x5f8] sm:$0xff]
    %v4249 = vld [vmem:[#allocation17 + $0x600] sm:$0xff]
    %v4250 = vld [vmem:[#allocation17 + $0x608] sm:$0xff]
    %v4251 = vld [vmem:[#allocation17 + $0x610] sm:$0xff]
    %v4252 = vld [vmem:[#allocation17 + $0x618] sm:$0xff]
    %v4253 = vld [vmem:[#allocation17 + $0x620] sm:$0xff]
    %v4254 = vld [vmem:[#allocation17 + $0x628] sm:$0xff]
    %v4255 = vld [vmem:[#allocation17 + $0x630] sm:$0xff]
    %v4256 = vld [vmem:[#allocation17 + $0x638] sm:$0xff]
    %v4257 = vld [vmem:[#allocation17 + $0x640] sm:$0xff]
    %v4258 = vld [vmem:[#allocation17 + $0x648] sm:$0xff]
    %v4259 = vld [vmem:[#allocation17 + $0x650] sm:$0xff]
    %v4260 = vld [vmem:[#allocation17 + $0x658] sm:$0xff]
    %v4261 = vld [vmem:[#allocation17 + $0x660] sm:$0xff]
    %v4262 = vld [vmem:[#allocation17 + $0x668] sm:$0xff]
    %v4263 = vld [vmem:[#allocation17 + $0x670] sm:$0xff]
    %v4264 = vld [vmem:[#allocation17 + $0x678] sm:$0xff]
    %v4265 = vld [vmem:[#allocation17 + $0x680] sm:$0xff]
    %v4266 = vld [vmem:[#allocation17 + $0x688] sm:$0xff]
    %v4267 = vld [vmem:[#allocation17 + $0x690] sm:$0xff]
    %v4268 = vld [vmem:[#allocation17 + $0x698] sm:$0xff]
    %v4269 = vld [vmem:[#allocation17 + $0x6a0] sm:$0xff]
    %v4270 = vld [vmem:[#allocation17 + $0x6a8] sm:$0xff]
    %v4271 = vld [vmem:[#allocation17 + $0x6b0] sm:$0xff]
    %v4272 = vld [vmem:[#allocation17 + $0x6b8] sm:$0xff]
    %v4273 = vld [vmem:[#allocation17 + $0x6c0] sm:$0xff]
    %v4274 = vld [vmem:[#allocation17 + $0x6c8] sm:$0xff]
    %v4275 = vld [vmem:[#allocation17 + $0x6d0] sm:$0xff]
    %v4276 = vld [vmem:[#allocation17 + $0x6d8] sm:$0xff]
    %v4277 = vld [vmem:[#allocation17 + $0x6e0] sm:$0xff]
    %v4278 = vld [vmem:[#allocation17 + $0x6e8] sm:$0xff]
    %v4279 = vld [vmem:[#allocation17 + $0x6f0] sm:$0xff]
    %v4280 = vld [vmem:[#allocation17 + $0x6f8] sm:$0xff]
    %v4281 = vld [vmem:[#allocation17 + $0x700] sm:$0xff]
    %v4282 = vld [vmem:[#allocation17 + $0x708] sm:$0xff]
    %v4283 = vld [vmem:[#allocation17 + $0x710] sm:$0xff]
    %v4284 = vld [vmem:[#allocation17 + $0x718] sm:$0xff]
    %v4285 = vld [vmem:[#allocation17 + $0x720] sm:$0xff]
    %v4286 = vld [vmem:[#allocation17 + $0x728] sm:$0xff]
    %v4287 = vld [vmem:[#allocation17 + $0x730] sm:$0xff]
    %v4288 = vld [vmem:[#allocation17 + $0x738] sm:$0xff]
    %v4289 = vld [vmem:[#allocation17 + $0x740] sm:$0xff]
    %v4290 = vld [vmem:[#allocation17 + $0x748] sm:$0xff]
    %v4291 = vld [vmem:[#allocation17 + $0x750] sm:$0xff]
    %v4292 = vld [vmem:[#allocation17 + $0x758] sm:$0xff]
    %v4293 = vld [vmem:[#allocation17 + $0x760] sm:$0xff]
    %v4294 = vld [vmem:[#allocation17 + $0x768] sm:$0xff]
    %v4295 = vld [vmem:[#allocation17 + $0x770] sm:$0xff]
    %v4296 = vld [vmem:[#allocation17 + $0x778] sm:$0xff]
    %v4297 = vld [vmem:[#allocation17 + $0x780] sm:$0xff]
    %v4298 = vld [vmem:[#allocation17 + $0x788] sm:$0xff]
    %v4299 = vld [vmem:[#allocation17 + $0x790] sm:$0xff]
    %v4300 = vld [vmem:[#allocation17 + $0x798] sm:$0xff]
    %v4301 = vld [vmem:[#allocation17 + $0x7a0] sm:$0xff]
    %v4302 = vld [vmem:[#allocation17 + $0x7a8] sm:$0xff]
    %v4303 = vld [vmem:[#allocation17 + $0x7b0] sm:$0xff]
    %v4304 = vld [vmem:[#allocation17 + $0x7b8] sm:$0xff]
    %v4305 = vld [vmem:[#allocation17 + $0x7c0] sm:$0xff]
    %v4306 = vld [vmem:[#allocation17 + $0x7c8] sm:$0xff]
    %v4307 = vld [vmem:[#allocation17 + $0x7d0] sm:$0xff]
    %v4308 = vld [vmem:[#allocation17 + $0x7d8] sm:$0xff]
    %v4309 = vld [vmem:[#allocation17 + $0x7e0] sm:$0xff]
    %v4310 = vld [vmem:[#allocation17 + $0x7e8] sm:$0xff]
    %v4311 = vld [vmem:[#allocation17 + $0x7f0] sm:$0xff]
    %v4312 = vld [vmem:[#allocation17 + $0x7f8] sm:$0xff]
    %v4313 = vld [vmem:[#allocation4] sm:$0xff]
    %v4314 = vld [vmem:[#allocation4 + $0x8] sm:$0xff]
    %v4316 = vlaneseq
    %v4317 = vshrl.u32 %v4316, 7
    %v4318 = vsub.s32 0, %v4317
    %v4319 = vrot.slane %v4055, %v4318
    %v4320 = vlaneseq
    %v4321 = vshrl.u32 %v4320, 7
    %v4322 = vsub.s32 1, %v4321
    %v4323 = vrot.slane %v4055, %v4322
    %v4324 = vlaneseq
    %v4325 = vshrl.u32 %v4324, 7
    %v4326 = vsub.s32 2, %v4325
    %v4327 = vrot.slane %v4055, %v4326
    %v4328 = vlaneseq
    %v4329 = vshrl.u32 %v4328, 7
    %v4330 = vsub.s32 3, %v4329
    %v4331 = vrot.slane %v4055, %v4330
    %4336 = vmatprep.subr.mxu0 %v3988
    %4337 = vmatpush1.msra.mxu0 %v3987
    %4338 = vmatprep.subr.mxu0 %v3984
    %4339 = vmatpush1.msra.mxu0 %v3983
    %4340 = vmatprep.subr.mxu0 %v3980
    %4341 = vmatpush1.msra.mxu0 %v3979
    %4342 = vmatprep.subr.mxu0 %v3976
    %4343 = vmatpush1.msra.mxu0 %v3975
    %4344 = vmatprep.subr.mxu0 %v3972
    %4345 = vmatpush1.msra.mxu0 %v3971
    %4346 = vmatprep.subr.mxu0 %v3968
    %4347 = vmatpush1.msra.mxu0 %v3967
    %4348 = vmatprep.subr.mxu0 %v3964
    %4349 = vmatpush1.msra.mxu0 %v3963
    %4350 = vmatprep.subr.mxu0 %v3960
    %4351 = vmatpush1.msra.mxu0 %v3959
    %4352 = vmatprep.subr.mxu0 %v3956
    %4353 = vmatpush1.msra.mxu0 %v3955
    %4354 = vmatprep.subr.mxu0 %v3952
    %4355 = vmatpush1.msra.mxu0 %v3951
    %4356 = vmatprep.subr.mxu0 %v3948
    %4357 = vmatpush1.msra.mxu0 %v3947
    %4358 = vmatprep.subr.mxu0 %v3944
    %4359 = vmatpush1.msra.mxu0 %v3943
    %4360 = vmatprep.subr.mxu0 %v3940
    %4361 = vmatpush1.msra.mxu0 %v3939
    %4362 = vmatprep.subr.mxu0 %v3936
    %4363 = vmatpush1.msra.mxu0 %v3935
    %4364 = vmatprep.subr.mxu0 %v3932
    %4365 = vmatpush1.msra.mxu0 %v3931
    %4366 = vmatprep.subr.mxu0 %v3928
    %4367 = vmatpush1.msra.mxu0 %v3927
    %4368 = vmatprep.subr.mxu0 0.0
    %4369 = vmatpush2.msra.mxu0 0.0
    %4370 = vmatprep.subr.mxu0 0.0
    %4371 = vmatpush2.msra.mxu0 0.0
    %4372 = vmatprep.subr.mxu0 0.0
    %4373 = vmatpush2.msra.mxu0 0.0
    %4374 = vmatprep.subr.mxu0 0.0
    %4375 = vmatpush2.msra.mxu0 0.0
    %4376 = vmatprep.subr.mxu0 0.0
    %4377 = vmatpush2.msra.mxu0 0.0
    %4378 = vmatprep.subr.mxu0 0.0
    %4379 = vmatpush2.msra.mxu0 0.0
    %4380 = vmatprep.subr.mxu0 0.0
    %4381 = vmatpush2.msra.mxu0 0.0
    %4382 = vmatprep.subr.mxu0 0.0
    %4383 = vmatpush2.msra.mxu0 0.0
    %4384 = vmatprep.subr.mxu0 0.0
    %4385 = vmatpush2.msra.mxu0 0.0
    %4386 = vmatprep.subr.mxu0 0.0
    %4387 = vmatpush2.msra.mxu0 0.0
    %4388 = vmatprep.subr.mxu0 0.0
    %4389 = vmatpush2.msra.mxu0 0.0
    %4390 = vmatprep.subr.mxu0 0.0
    %4391 = vmatpush2.msra.mxu0 0.0
    %4392 = vmatprep.subr.mxu0 0.0
    %4393 = vmatpush2.msra.mxu0 0.0
    %4394 = vmatprep.subr.mxu0 0.0
    %4395 = vmatpush2.msra.mxu0 0.0
    %4396 = vmatprep.subr.mxu0 0.0
    %4397 = vmatpush2.msra.mxu0 0.0
    %4398 = vmatprep.subr.mxu0 0.0
    %4399 = vmatpush2.msra.mxu0 0.0
    %4400 = vmatprep.mubr.f32.mxu0 0.0
    %4401 = vmatmul.mubr.f32.gmra.mxu0 %v4313
    %v4402 = vpop.f32.mrf.mxu0
    %v4403 = vadd.f32 %v4319, %v4402
    %v4404 = vpop.f32.mrf.mxu0
    %v4405 = vadd.f32 %v4323, %v4404
    %4406 = vdwg.mxu0
    %4407 = vmatprep.subr.mxu0 %v3990
    %4408 = vmatpush1.msra.mxu0 %v3989
    %4409 = vmatprep.subr.mxu0 %v3986
    %4410 = vmatpush1.msra.mxu0 %v3985
    %4411 = vmatprep.subr.mxu0 %v3982
    %4412 = vmatpush1.msra.mxu0 %v3981
    %4413 = vmatprep.subr.mxu0 %v3978
    %4414 = vmatpush1.msra.mxu0 %v3977
    %4415 = vmatprep.subr.mxu0 %v3974
    %4416 = vmatpush1.msra.mxu0 %v3973
    %4417 = vmatprep.subr.mxu0 %v3970
    %4418 = vmatpush1.msra.mxu0 %v3969
    %4419 = vmatprep.subr.mxu0 %v3966
    %4420 = vmatpush1.msra.mxu0 %v3965
    %4421 = vmatprep.subr.mxu0 %v3962
    %4422 = vmatpush1.msra.mxu0 %v3961
    %4423 = vmatprep.subr.mxu0 %v3958
    %4424 = vmatpush1.msra.mxu0 %v3957
    %4425 = vmatprep.subr.mxu0 %v3954
    %4426 = vmatpush1.msra.mxu0 %v3953
    %4427 = vmatprep.subr.mxu0 %v3950
    %4428 = vmatpush1.msra.mxu0 %v3949
    %4429 = vmatprep.subr.mxu0 %v3946
    %4430 = vmatpush1.msra.mxu0 %v3945
    %4431 = vmatprep.subr.mxu0 %v3942
    %4432 = vmatpush1.msra.mxu0 %v3941
    %4433 = vmatprep.subr.mxu0 %v3938
    %4434 = vmatpush1.msra.mxu0 %v3937
    %4435 = vmatprep.subr.mxu0 %v3934
    %4436 = vmatpush1.msra.mxu0 %v3933
    %4437 = vmatprep.subr.mxu0 %v3930
    %4438 = vmatpush1.msra.mxu0 %v3929
    %4439 = vmatprep.subr.mxu0 0.0
    %4440 = vmatpush2.msra.mxu0 0.0
    %4441 = vmatprep.subr.mxu0 0.0
    %4442 = vmatpush2.msra.mxu0 0.0
    %4443 = vmatprep.subr.mxu0 0.0
    %4444 = vmatpush2.msra.mxu0 0.0
    %4445 = vmatprep.subr.mxu0 0.0
    %4446 = vmatpush2.msra.mxu0 0.0
    %4447 = vmatprep.subr.mxu0 0.0
    %4448 = vmatpush2.msra.mxu0 0.0
    %4449 = vmatprep.subr.mxu0 0.0
    %4450 = vmatpush2.msra.mxu0 0.0
    %4451 = vmatprep.subr.mxu0 0.0
    %4452 = vmatpush2.msra.mxu0 0.0
    %4453 = vmatprep.subr.mxu0 0.0
    %4454 = vmatpush2.msra.mxu0 0.0
    %4455 = vmatprep.subr.mxu0 0.0
    %4456 = vmatpush2.msra.mxu0 0.0
    %4457 = vmatprep.subr.mxu0 0.0
    %4458 = vmatpush2.msra.mxu0 0.0
    %4459 = vmatprep.subr.mxu0 0.0
    %4460 = vmatpush2.msra.mxu0 0.0
    %4461 = vmatprep.subr.mxu0 0.0
    %4462 = vmatpush2.msra.mxu0 0.0
    %4463 = vmatprep.subr.mxu0 0.0
    %4464 = vmatpush2.msra.mxu0 0.0
    %4465 = vmatprep.subr.mxu0 0.0
    %4466 = vmatpush2.msra.mxu0 0.0
    %4467 = vmatprep.subr.mxu0 0.0
    %4468 = vmatpush2.msra.mxu0 0.0
    %4469 = vmatprep.subr.mxu0 0.0
    %4470 = vmatpush2.msra.mxu0 0.0
    %4471 = vmatprep.mubr.f32.mxu0 0.0
    %4472 = vmatmul.mubr.f32.gmra.mxu0 %v4313
    %v4473 = vpop.f32.mrf.mxu0
    %v4474 = vadd.f32 %v4327, %v4473
    %v4475 = vpop.f32.mrf.mxu0
    %v4476 = vadd.f32 %v4331, %v4475
    %4477 = vdwg.mxu0
    %v4479 = vlaneseq
    %v4480 = vshrl.u32 %v4479, 7
    %v4481 = vsub.s32 0, %v4480
    %v4482 = vrot.slane %v4056, %v4481
    %v4483 = vlaneseq
    %v4484 = vshrl.u32 %v4483, 7
    %v4485 = vsub.s32 1, %v4484
    %v4486 = vrot.slane %v4056, %v4485
    %v4487 = vlaneseq
    %v4488 = vshrl.u32 %v4487, 7
    %v4489 = vsub.s32 2, %v4488
    %v4490 = vrot.slane %v4056, %v4489
    %v4491 = vlaneseq
    %v4492 = vshrl.u32 %v4491, 7
    %v4493 = vsub.s32 3, %v4492
    %v4494 = vrot.slane %v4056, %v4493
    %4499 = vmatprep.subr.mxu0 %v4052
    %4500 = vmatpush1.msra.mxu0 %v4051
    %4501 = vmatprep.subr.mxu0 %v4048
    %4502 = vmatpush1.msra.mxu0 %v4047
    %4503 = vmatprep.subr.mxu0 %v4044
    %4504 = vmatpush1.msra.mxu0 %v4043
    %4505 = vmatprep.subr.mxu0 %v4040
    %4506 = vmatpush1.msra.mxu0 %v4039
    %4507 = vmatprep.subr.mxu0 %v4036
    %4508 = vmatpush1.msra.mxu0 %v4035
    %4509 = vmatprep.subr.mxu0 %v4032
    %4510 = vmatpush1.msra.mxu0 %v4031
    %4511 = vmatprep.subr.mxu0 %v4028
    %4512 = vmatpush1.msra.mxu0 %v4027
    %4513 = vmatprep.subr.mxu0 %v4024
    %4514 = vmatpush1.msra.mxu0 %v4023
    %4515 = vmatprep.subr.mxu0 %v4020
    %4516 = vmatpush1.msra.mxu0 %v4019
    %4517 = vmatprep.subr.mxu0 %v4016
    %4518 = vmatpush1.msra.mxu0 %v4015
    %4519 = vmatprep.subr.mxu0 %v4012
    %4520 = vmatpush1.msra.mxu0 %v4011
    %4521 = vmatprep.subr.mxu0 %v4008
    %4522 = vmatpush1.msra.mxu0 %v4007
    %4523 = vmatprep.subr.mxu0 %v4004
    %4524 = vmatpush1.msra.mxu0 %v4003
    %4525 = vmatprep.subr.mxu0 %v4000
    %4526 = vmatpush1.msra.mxu0 %v3999
    %4527 = vmatprep.subr.mxu0 %v3996
    %4528 = vmatpush1.msra.mxu0 %v3995
    %4529 = vmatprep.subr.mxu0 %v3992
    %4530 = vmatpush1.msra.mxu0 %v3991
    %4531 = vmatprep.subr.mxu0 0.0
    %4532 = vmatpush2.msra.mxu0 0.0
    %4533 = vmatprep.subr.mxu0 0.0
    %4534 = vmatpush2.msra.mxu0 0.0
    %4535 = vmatprep.subr.mxu0 0.0
    %4536 = vmatpush2.msra.mxu0 0.0
    %4537 = vmatprep.subr.mxu0 0.0
    %4538 = vmatpush2.msra.mxu0 0.0
    %4539 = vmatprep.subr.mxu0 0.0
    %4540 = vmatpush2.msra.mxu0 0.0
    %4541 = vmatprep.subr.mxu0 0.0
    %4542 = vmatpush2.msra.mxu0 0.0
    %4543 = vmatprep.subr.mxu0 0.0
    %4544 = vmatpush2.msra.mxu0 0.0
    %4545 = vmatprep.subr.mxu0 0.0
    %4546 = vmatpush2.msra.mxu0 0.0
    %4547 = vmatprep.subr.mxu0 0.0
    %4548 = vmatpush2.msra.mxu0 0.0
    %4549 = vmatprep.subr.mxu0 0.0
    %4550 = vmatpush2.msra.mxu0 0.0
    %4551 = vmatprep.subr.mxu0 0.0
    %4552 = vmatpush2.msra.mxu0 0.0
    %4553 = vmatprep.subr.mxu0 0.0
    %4554 = vmatpush2.msra.mxu0 0.0
    %4555 = vmatprep.subr.mxu0 0.0
    %4556 = vmatpush2.msra.mxu0 0.0
    %4557 = vmatprep.subr.mxu0 0.0
    %4558 = vmatpush2.msra.mxu0 0.0
    %4559 = vmatprep.subr.mxu0 0.0
    %4560 = vmatpush2.msra.mxu0 0.0
    %4561 = vmatprep.subr.mxu0 0.0
    %4562 = vmatpush2.msra.mxu0 0.0
    %4563 = vmatprep.mubr.f32.mxu0 0.0
    %4564 = vmatmul.mubr.f32.gmra.mxu0 %v4314
    %v4565 = vpop.f32.mrf.mxu0
    %v4566 = vadd.f32 %v4482, %v4565
    %v4567 = vpop.f32.mrf.mxu0
    %v4568 = vadd.f32 %v4486, %v4567
    %4569 = vdwg.mxu0
    %4570 = vmatprep.subr.mxu0 %v4054
    %4571 = vmatpush1.msra.mxu0 %v4053
    %4572 = vmatprep.subr.mxu0 %v4050
    %4573 = vmatpush1.msra.mxu0 %v4049
    %4574 = vmatprep.subr.mxu0 %v4046
    %4575 = vmatpush1.msra.mxu0 %v4045
    %4576 = vmatprep.subr.mxu0 %v4042
    %4577 = vmatpush1.msra.mxu0 %v4041
    %4578 = vmatprep.subr.mxu0 %v4038
    %4579 = vmatpush1.msra.mxu0 %v4037
    %4580 = vmatprep.subr.mxu0 %v4034
    %4581 = vmatpush1.msra.mxu0 %v4033
    %4582 = vmatprep.subr.mxu0 %v4030
    %4583 = vmatpush1.msra.mxu0 %v4029
    %4584 = vmatprep.subr.mxu0 %v4026
    %4585 = vmatpush1.msra.mxu0 %v4025
    %4586 = vmatprep.subr.mxu0 %v4022
    %4587 = vmatpush1.msra.mxu0 %v4021
    %4588 = vmatprep.subr.mxu0 %v4018
    %4589 = vmatpush1.msra.mxu0 %v4017
    %4590 = vmatprep.subr.mxu0 %v4014
    %4591 = vmatpush1.msra.mxu0 %v4013
    %4592 = vmatprep.subr.mxu0 %v4010
    %4593 = vmatpush1.msra.mxu0 %v4009
    %4594 = vmatprep.subr.mxu0 %v4006
    %4595 = vmatpush1.msra.mxu0 %v4005
    %4596 = vmatprep.subr.mxu0 %v4002
    %4597 = vmatpush1.msra.mxu0 %v4001
    %4598 = vmatprep.subr.mxu0 %v3998
    %4599 = vmatpush1.msra.mxu0 %v3997
    %4600 = vmatprep.subr.mxu0 %v3994
    %4601 = vmatpush1.msra.mxu0 %v3993
    %4602 = vmatprep.subr.mxu0 0.0
    %4603 = vmatpush2.msra.mxu0 0.0
    %4604 = vmatprep.subr.mxu0 0.0
    %4605 = vmatpush2.msra.mxu0 0.0
    %4606 = vmatprep.subr.mxu0 0.0
    %4607 = vmatpush2.msra.mxu0 0.0
    %4608 = vmatprep.subr.mxu0 0.0
    %4609 = vmatpush2.msra.mxu0 0.0
    %4610 = vmatprep.subr.mxu0 0.0
    %4611 = vmatpush2.msra.mxu0 0.0
    %4612 = vmatprep.subr.mxu0 0.0
    %4613 = vmatpush2.msra.mxu0 0.0
    %4614 = vmatprep.subr.mxu0 0.0
    %4615 = vmatpush2.msra.mxu0 0.0
    %4616 = vmatprep.subr.mxu0 0.0
    %4617 = vmatpush2.msra.mxu0 0.0
    %4618 = vmatprep.subr.mxu0 0.0
    %4619 = vmatpush2.msra.mxu0 0.0
    %4620 = vmatprep.subr.mxu0 0.0
    %4621 = vmatpush2.msra.mxu0 0.0
    %4622 = vmatprep.subr.mxu0 0.0
    %4623 = vmatpush2.msra.mxu0 0.0
    %4624 = vmatprep.subr.mxu0 0.0
    %4625 = vmatpush2.msra.mxu0 0.0
    %4626 = vmatprep.subr.mxu0 0.0
    %4627 = vmatpush2.msra.mxu0 0.0
    %4628 = vmatprep.subr.mxu0 0.0
    %4629 = vmatpush2.msra.mxu0 0.0
    %4630 = vmatprep.subr.mxu0 0.0
    %4631 = vmatpush2.msra.mxu0 0.0
    %4632 = vmatprep.subr.mxu0 0.0
    %4633 = vmatpush2.msra.mxu0 0.0
    %4634 = vmatprep.mubr.f32.mxu0 0.0
    %4635 = vmatmul.mubr.f32.gmra.mxu0 %v4314
    %v4636 = vpop.f32.mrf.mxu0
    %v4637 = vadd.f32 %v4490, %v4636
    %v4638 = vpop.f32.mrf.mxu0
    %v4639 = vadd.f32 %v4494, %v4638
    %4640 = vdwg.mxu0
    %4641 = vst [vmem:[#allocation3] sm:$0xff] %v4403
    %4642 = vst [vmem:[#allocation3 + $0x8] sm:$0xff] %v4566
    %4643 = vst [vmem:[#allocation3 + $0x10] sm:$0xff] %v4405
    %4644 = vst [vmem:[#allocation3 + $0x18] sm:$0xff] %v4568
    %4645 = vst [vmem:[#allocation3 + $0x20] sm:$0xff] %v4474
    %4646 = vst [vmem:[#allocation3 + $0x28] sm:$0xff] %v4637
    %4647 = vst [vmem:[#allocation3 + $0x30] sm:$0xff] %v4476
    %4648 = vst [vmem:[#allocation3 + $0x38] sm:$0xff] %v4639
    %v4649 = vld [vmem:[#allocation3] ss:$8 sm:$0xf]
    %v4650 = vld [vmem:[#allocation3] ss:$8 sm:$0xf0]
    %v4651 = vor.u32 %v4649, %v4650
    %4652 = vmatprep.subr.mxu0 %v4178
    %4653 = vmatpush1.msra.mxu0 %v4177
    %4654 = vmatprep.subr.mxu0 %v4170
    %4655 = vmatpush1.msra.mxu0 %v4169
    %4656 = vmatprep.subr.mxu0 %v4162
    %4657 = vmatpush1.msra.mxu0 %v4161
    %4658 = vmatprep.subr.mxu0 %v4154
    %4659 = vmatpush1.msra.mxu0 %v4153
    %4660 = vmatprep.subr.mxu0 %v4146
    %4661 = vmatpush1.msra.mxu0 %v4145
    %4662 = vmatprep.subr.mxu0 %v4138
    %4663 = vmatpush1.msra.mxu0 %v4137
    %4664 = vmatprep.subr.mxu0 %v4130
    %4665 = vmatpush1.msra.mxu0 %v4129
    %4666 = vmatprep.subr.mxu0 %v4122
    %4667 = vmatpush1.msra.mxu0 %v4121
    %4668 = vmatprep.subr.mxu0 %v4114
    %4669 = vmatpush1.msra.mxu0 %v4113
    %4670 = vmatprep.subr.mxu0 %v4106
    %4671 = vmatpush1.msra.mxu0 %v4105
    %4672 = vmatprep.subr.mxu0 %v4098
    %4673 = vmatpush1.msra.mxu0 %v4097
    %4674 = vmatprep.subr.mxu0 %v4090
    %4675 = vmatpush1.msra.mxu0 %v4089
    %4676 = vmatprep.subr.mxu0 %v4082
    %4677 = vmatpush1.msra.mxu0 %v4081
    %4678 = vmatprep.subr.mxu0 %v4074
    %4679 = vmatpush1.msra.mxu0 %v4073
    %4680 = vmatprep.subr.mxu0 %v4066
    %4681 = vmatpush1.msra.mxu0 %v4065
    %4682 = vmatprep.subr.mxu0 %v4058
    %4683 = vmatpush1.msra.mxu0 %v4057
    %4684 = vmatprep.subr.mxu0 %v4306
    %4685 = vmatpush2.msra.mxu0 %v4305
    %4686 = vmatprep.subr.mxu0 %v4298
    %4687 = vmatpush2.msra.mxu0 %v4297
    %4688 = vmatprep.subr.mxu0 %v4290
    %4689 = vmatpush2.msra.mxu0 %v4289
    %4690 = vmatprep.subr.mxu0 %v4282
    %4691 = vmatpush2.msra.mxu0 %v4281
    %4692 = vmatprep.subr.mxu0 %v4274
    %4693 = vmatpush2.msra.mxu0 %v4273
    %4694 = vmatprep.subr.mxu0 %v4266
    %4695 = vmatpush2.msra.mxu0 %v4265
    %4696 = vmatprep.subr.mxu0 %v4258
    %4697 = vmatpush2.msra.mxu0 %v4257
    %4698 = vmatprep.subr.mxu0 %v4250
    %4699 = vmatpush2.msra.mxu0 %v4249
    %4700 = vmatprep.subr.mxu0 %v4242
    %4701 = vmatpush2.msra.mxu0 %v4241
    %4702 = vmatprep.subr.mxu0 %v4234
    %4703 = vmatpush2.msra.mxu0 %v4233
    %4704 = vmatprep.subr.mxu0 %v4226
    %4705 = vmatpush2.msra.mxu0 %v4225
    %4706 = vmatprep.subr.mxu0 %v4218
    %4707 = vmatpush2.msra.mxu0 %v4217
    %4708 = vmatprep.subr.mxu0 %v4210
    %4709 = vmatpush2.msra.mxu0 %v4209
    %4710 = vmatprep.subr.mxu0 %v4202
    %4711 = vmatpush2.msra.mxu0 %v4201
    %4712 = vmatprep.subr.mxu0 %v4194
    %4713 = vmatpush2.msra.mxu0 %v4193
    %4714 = vmatprep.subr.mxu0 %v4186
    %4715 = vmatpush2.msra.mxu0 %v4185
    %4716 = vmatprep.mubr.f32.mxu0 0.0
    %4717 = vmatmul.mubr.f32.gmra.mxu0 0.0
    %v4718 = vpop.f32.mrf.mxu0
    %v4719 = vadd.f32 0.0, %v4718
    %v4720 = vpop.f32.mrf.mxu0
    %v4721 = vadd.f32 0.0, %v4720
    %4722 = vdwg.mxu0
    %4723 = vmatprep.subr.mxu0 %v4180
    %4724 = vmatpush1.msra.mxu0 %v4179
    %4725 = vmatprep.subr.mxu0 %v4172
    %4726 = vmatpush1.msra.mxu0 %v4171
    %4727 = vmatprep.subr.mxu0 %v4164
    %4728 = vmatpush1.msra.mxu0 %v4163
    %4729 = vmatprep.subr.mxu0 %v4156
    %4730 = vmatpush1.msra.mxu0 %v4155
    %4731 = vmatprep.subr.mxu0 %v4148
    %4732 = vmatpush1.msra.mxu0 %v4147
    %4733 = vmatprep.subr.mxu0 %v4140
    %4734 = vmatpush1.msra.mxu0 %v4139
    %4735 = vmatprep.subr.mxu0 %v4132
    %4736 = vmatpush1.msra.mxu0 %v4131
    %4737 = vmatprep.subr.mxu0 %v4124
    %4738 = vmatpush1.msra.mxu0 %v4123
    %4739 = vmatprep.subr.mxu0 %v4116
    %4740 = vmatpush1.msra.mxu0 %v4115
    %4741 = vmatprep.subr.mxu0 %v4108
    %4742 = vmatpush1.msra.mxu0 %v4107
    %4743 = vmatprep.subr.mxu0 %v4100
    %4744 = vmatpush1.msra.mxu0 %v4099
    %4745 = vmatprep.subr.mxu0 %v4092
    %4746 = vmatpush1.msra.mxu0 %v4091
    %4747 = vmatprep.subr.mxu0 %v4084
    %4748 = vmatpush1.msra.mxu0 %v4083
    %4749 = vmatprep.subr.mxu0 %v4076
    %4750 = vmatpush1.msra.mxu0 %v4075
    %4751 = vmatprep.subr.mxu0 %v4068
    %4752 = vmatpush1.msra.mxu0 %v4067
    %4753 = vmatprep.subr.mxu0 %v4060
    %4754 = vmatpush1.msra.mxu0 %v4059
    %4755 = vmatprep.subr.mxu0 %v4308
    %4756 = vmatpush2.msra.mxu0 %v4307
    %4757 = vmatprep.subr.mxu0 %v4300
    %4758 = vmatpush2.msra.mxu0 %v4299
    %4759 = vmatprep.subr.mxu0 %v4292
    %4760 = vmatpush2.msra.mxu0 %v4291
    %4761 = vmatprep.subr.mxu0 %v4284
    %4762 = vmatpush2.msra.mxu0 %v4283
    %4763 = vmatprep.subr.mxu0 %v4276
    %4764 = vmatpush2.msra.mxu0 %v4275
    %4765 = vmatprep.subr.mxu0 %v4268
    %4766 = vmatpush2.msra.mxu0 %v4267
    %4767 = vmatprep.subr.mxu0 %v4260
    %4768 = vmatpush2.msra.mxu0 %v4259
    %4769 = vmatprep.subr.mxu0 %v4252
    %4770 = vmatpush2.msra.mxu0 %v4251
    %4771 = vmatprep.subr.mxu0 %v4244
    %4772 = vmatpush2.msra.mxu0 %v4243
    %4773 = vmatprep.subr.mxu0 %v4236
    %4774 = vmatpush2.msra.mxu0 %v4235
    %4775 = vmatprep.subr.mxu0 %v4228
    %4776 = vmatpush2.msra.mxu0 %v4227
    %4777 = vmatprep.subr.mxu0 %v4220
    %4778 = vmatpush2.msra.mxu0 %v4219
    %4779 = vmatprep.subr.mxu0 %v4212
    %4780 = vmatpush2.msra.mxu0 %v4211
    %4781 = vmatprep.subr.mxu0 %v4204
    %4782 = vmatpush2.msra.mxu0 %v4203
    %4783 = vmatprep.subr.mxu0 %v4196
    %4784 = vmatpush2.msra.mxu0 %v4195
    %4785 = vmatprep.subr.mxu0 %v4188
    %4786 = vmatpush2.msra.mxu0 %v4187
    %4787 = vmatprep.mubr.f32.mxu0 0.0
    %4788 = vmatmul.mubr.f32.gmra.mxu0 0.0
    %v4789 = vpop.f32.mrf.mxu0
    %v4790 = vadd.f32 0.0, %v4789
    %v4791 = vpop.f32.mrf.mxu0
    %v4792 = vadd.f32 0.0, %v4791
    %4793 = vdwg.mxu0
    %4794 = vmatprep.subr.mxu0 %v4182
    %4795 = vmatpush1.msra.mxu0 %v4181
    %4796 = vmatprep.subr.mxu0 %v4174
    %4797 = vmatpush1.msra.mxu0 %v4173
    %4798 = vmatprep.subr.mxu0 %v4166
    %4799 = vmatpush1.msra.mxu0 %v4165
    %4800 = vmatprep.subr.mxu0 %v4158
    %4801 = vmatpush1.msra.mxu0 %v4157
    %4802 = vmatprep.subr.mxu0 %v4150
    %4803 = vmatpush1.msra.mxu0 %v4149
    %4804 = vmatprep.subr.mxu0 %v4142
    %4805 = vmatpush1.msra.mxu0 %v4141
    %4806 = vmatprep.subr.mxu0 %v4134
    %4807 = vmatpush1.msra.mxu0 %v4133
    %4808 = vmatprep.subr.mxu0 %v4126
    %4809 = vmatpush1.msra.mxu0 %v4125
    %4810 = vmatprep.subr.mxu0 %v4118
    %4811 = vmatpush1.msra.mxu0 %v4117
    %4812 = vmatprep.subr.mxu0 %v4110
    %4813 = vmatpush1.msra.mxu0 %v4109
    %4814 = vmatprep.subr.mxu0 %v4102
    %4815 = vmatpush1.msra.mxu0 %v4101
    %4816 = vmatprep.subr.mxu0 %v4094
    %4817 = vmatpush1.msra.mxu0 %v4093
    %4818 = vmatprep.subr.mxu0 %v4086
    %4819 = vmatpush1.msra.mxu0 %v4085
    %4820 = vmatprep.subr.mxu0 %v4078
    %4821 = vmatpush1.msra.mxu0 %v4077
    %4822 = vmatprep.subr.mxu0 %v4070
    %4823 = vmatpush1.msra.mxu0 %v4069
    %4824 = vmatprep.subr.mxu0 %v4062
    %4825 = vmatpush1.msra.mxu0 %v4061
    %4826 = vmatprep.subr.mxu0 %v4310
    %4827 = vmatpush2.msra.mxu0 %v4309
    %4828 = vmatprep.subr.mxu0 %v4302
    %4829 = vmatpush2.msra.mxu0 %v4301
    %4830 = vmatprep.subr.mxu0 %v4294
    %4831 = vmatpush2.msra.mxu0 %v4293
    %4832 = vmatprep.subr.mxu0 %v4286
    %4833 = vmatpush2.msra.mxu0 %v4285
    %4834 = vmatprep.subr.mxu0 %v4278
    %4835 = vmatpush2.msra.mxu0 %v4277
    %4836 = vmatprep.subr.mxu0 %v4270
    %4837 = vmatpush2.msra.mxu0 %v4269
    %4838 = vmatprep.subr.mxu0 %v4262
    %4839 = vmatpush2.msra.mxu0 %v4261
    %4840 = vmatprep.subr.mxu0 %v4254
    %4841 = vmatpush2.msra.mxu0 %v4253
    %4842 = vmatprep.subr.mxu0 %v4246
    %4843 = vmatpush2.msra.mxu0 %v4245
    %4844 = vmatprep.subr.mxu0 %v4238
    %4845 = vmatpush2.msra.mxu0 %v4237
    %4846 = vmatprep.subr.mxu0 %v4230
    %4847 = vmatpush2.msra.mxu0 %v4229
    %4848 = vmatprep.subr.mxu0 %v4222
    %4849 = vmatpush2.msra.mxu0 %v4221
    %4850 = vmatprep.subr.mxu0 %v4214
    %4851 = vmatpush2.msra.mxu0 %v4213
    %4852 = vmatprep.subr.mxu0 %v4206
    %4853 = vmatpush2.msra.mxu0 %v4205
    %4854 = vmatprep.subr.mxu0 %v4198
    %4855 = vmatpush2.msra.mxu0 %v4197
    %4856 = vmatprep.subr.mxu0 %v4190
    %4857 = vmatpush2.msra.mxu0 %v4189
    %4858 = vmatprep.mubr.f32.mxu0 0.0
    %4859 = vmatmul.mubr.f32.gmra.mxu0 0.0
    %v4860 = vpop.f32.mrf.mxu0
    %v4861 = vadd.f32 0.0, %v4860
    %v4862 = vpop.f32.mrf.mxu0
    %v4863 = vadd.f32 0.0, %v4862
    %4864 = vdwg.mxu0
    %4865 = vmatprep.subr.mxu0 %v4184
    %4866 = vmatpush1.msra.mxu0 %v4183
    %4867 = vmatprep.subr.mxu0 %v4176
    %4868 = vmatpush1.msra.mxu0 %v4175
    %4869 = vmatprep.subr.mxu0 %v4168
    %4870 = vmatpush1.msra.mxu0 %v4167
    %4871 = vmatprep.subr.mxu0 %v4160
    %4872 = vmatpush1.msra.mxu0 %v4159
    %4873 = vmatprep.subr.mxu0 %v4152
    %4874 = vmatpush1.msra.mxu0 %v4151
    %4875 = vmatprep.subr.mxu0 %v4144
    %4876 = vmatpush1.msra.mxu0 %v4143
    %4877 = vmatprep.subr.mxu0 %v4136
    %4878 = vmatpush1.msra.mxu0 %v4135
    %4879 = vmatprep.subr.mxu0 %v4128
    %4880 = vmatpush1.msra.mxu0 %v4127
    %4881 = vmatprep.subr.mxu0 %v4120
    %4882 = vmatpush1.msra.mxu0 %v4119
    %4883 = vmatprep.subr.mxu0 %v4112
    %4884 = vmatpush1.msra.mxu0 %v4111
    %4885 = vmatprep.subr.mxu0 %v4104
    %4886 = vmatpush1.msra.mxu0 %v4103
    %4887 = vmatprep.subr.mxu0 %v4096
    %4888 = vmatpush1.msra.mxu0 %v4095
    %4889 = vmatprep.subr.mxu0 %v4088
    %4890 = vmatpush1.msra.mxu0 %v4087
    %4891 = vmatprep.subr.mxu0 %v4080
    %4892 = vmatpush1.msra.mxu0 %v4079
    %4893 = vmatprep.subr.mxu0 %v4072
    %4894 = vmatpush1.msra.mxu0 %v4071
    %4895 = vmatprep.subr.mxu0 %v4064
    %4896 = vmatpush1.msra.mxu0 %v4063
    %4897 = vmatprep.subr.mxu0 %v4312
    %4898 = vmatpush2.msra.mxu0 %v4311
    %4899 = vmatprep.subr.mxu0 %v4304
    %4900 = vmatpush2.msra.mxu0 %v4303
    %4901 = vmatprep.subr.mxu0 %v4296
    %4902 = vmatpush2.msra.mxu0 %v4295
    %4903 = vmatprep.subr.mxu0 %v4288
    %4904 = vmatpush2.msra.mxu0 %v4287
    %4905 = vmatprep.subr.mxu0 %v4280
    %4906 = vmatpush2.msra.mxu0 %v4279
    %4907 = vmatprep.subr.mxu0 %v4272
    %4908 = vmatpush2.msra.mxu0 %v4271
    %4909 = vmatprep.subr.mxu0 %v4264
    %4910 = vmatpush2.msra.mxu0 %v4263
    %4911 = vmatprep.subr.mxu0 %v4256
    %4912 = vmatpush2.msra.mxu0 %v4255
    %4913 = vmatprep.subr.mxu0 %v4248
    %4914 = vmatpush2.msra.mxu0 %v4247
    %4915 = vmatprep.subr.mxu0 %v4240
    %4916 = vmatpush2.msra.mxu0 %v4239
    %4917 = vmatprep.subr.mxu0 %v4232
    %4918 = vmatpush2.msra.mxu0 %v4231
    %4919 = vmatprep.subr.mxu0 %v4224
    %4920 = vmatpush2.msra.mxu0 %v4223
    %4921 = vmatprep.subr.mxu0 %v4216
    %4922 = vmatpush2.msra.mxu0 %v4215
    %4923 = vmatprep.subr.mxu0 %v4208
    %4924 = vmatpush2.msra.mxu0 %v4207
    %4925 = vmatprep.subr.mxu0 %v4200
    %4926 = vmatpush2.msra.mxu0 %v4199
    %4927 = vmatprep.subr.mxu0 %v4192
    %4928 = vmatpush2.msra.mxu0 %v4191
    %4929 = vmatprep.mubr.f32.mxu0 0.0
    %4930 = vmatmul.mubr.f32.gmra.mxu0 0.0
    %v4931 = vpop.f32.mrf.mxu0
    %v4932 = vadd.f32 0.0, %v4931
    %v4933 = vpop.f32.mrf.mxu0
    %v4934 = vadd.f32 0.0, %v4933
    %4935 = vdwg.mxu0
    %v4944 = vcombine.low %v4719, %v4721
    %v4945 = vcombine.low %v4790, %v4792
    %v4946 = vcombine.low %v4861, %v4863
    %v4947 = vcombine.low %v4932, %v4934
    %v4949 = vunpack.c.l.s4 1966171168
    %v4950 = vunpack.c.0.s8 %v4949
    %v4951 = vlaneseq
    %v4952 = vshrl.u32 %v4951, 7
    %v4953 = vsub.s32 %v4950, %v4952
    %v4954 = vrot.slane %v4944, %v4953
    %v4956 = vunpack.c.l.s4 1966171168
    %v4957 = vunpack.c.0.s8 %v4956
    %v4958 = vlaneseq
    %v4959 = vshrl.u32 %v4958, 7
    %v4960 = vsub.s32 %v4957, %v4959
    %v4961 = vrot.slane %v4945, %v4960
    %v4963 = vunpack.c.l.s4 1966171168
    %v4964 = vunpack.c.0.s8 %v4963
    %v4965 = vlaneseq
    %v4966 = vshrl.u32 %v4965, 7
    %v4967 = vsub.s32 %v4964, %v4966
    %v4968 = vrot.slane %v4946, %v4967
    %v4970 = vunpack.c.l.s4 1966171168
    %v4971 = vunpack.c.0.s8 %v4970
    %v4972 = vlaneseq
    %v4973 = vshrl.u32 %v4972, 7
    %v4974 = vsub.s32 %v4971, %v4973
    %v4975 = vrot.slane %v4947, %v4974
    %v4976 = vcombine.low %v4954, %v4961
    %v4977 = vcombine.low %v4968, %v4975
    %v4979 = vunpack.c.l.s4 1966171168
    %v4980 = vunpack.c.0.s8 %v4979
    %v4981 = vlaneseq
    %v4982 = vshrl.u32 %v4981, 7
    %v4983 = vsub.s32 %v4980, %v4982
    %v4984 = vrot.slane %v4976, %v4983
    %v4986 = vunpack.c.l.s4 1966171168
    %v4987 = vunpack.c.0.s8 %v4986
    %v4988 = vlaneseq
    %v4989 = vshrl.u32 %v4988, 7
    %v4990 = vsub.s32 %v4987, %v4989
    %v4991 = vrot.slane %v4977, %v4990
    %v4992 = vcombine.low %v4984, %v4991
    %v4994 = vadd.f32 %v4651, %v4992
    %v4995 = vxor.u32 %v4994, 2147483648
    %v4996 = vmul.f32 %v4995, 1.442695
    %v4997 = vpow.pop %v4996
    %v4998 = vadd.f32 %v4997, 1.0
    %v4999 = vrcp.pop %v4998
    %v5000 = vmul.f32 1.0, %v4999
    %v5002 = vrot.slane %v4994, 2
    %v5004 = vxor.u32 %v5002, 2147483648
    %v5005 = vmul.f32 %v5004, 1.442695
    %v5006 = vpow.pop %v5005
    %v5007 = vadd.f32 %v5006, 1.0
    %v5008 = vrcp.pop %v5007
    %v5009 = vmul.f32 1.0, %v5008
    %v5010 = vrot.slane %v4994, 4
    %v5012 = vtanh.pop %v5010
    %v5013 = vrot.slane %v4994, 6
    %v5015 = vxor.u32 %v5013, 2147483648
    %v5016 = vmul.f32 %v5015, 1.442695
    %v5017 = vpow.pop %v5016
    %v5018 = vadd.f32 %v5017, 1.0
    %v5019 = vrcp.pop %v5018
    %v5020 = vmul.f32 1.0, %v5019
    %v5021 = vmul.f32 %v5009, 0.0
    %v5022 = vmul.f32 %v5000, %v5012
    %v5023 = vadd.f32 %v5021, %v5022
    %v5024 = vtanh.pop %v5023
    %v5025 = vmul.f32 %v5020, %v5024
    %5026 = vst [vmem:[#allocation19] sm:$0x1] %v5025
    %v5028 = vlaneseq
    %v5029 = vshrl.u32 %v5028, 7
    %v5030 = vsub.s32 1, %v5029
    %v5031 = vrot.slane %v5025, %v5030
    %5033 = vst [vmem:[#allocation19 + $0xf] sm:$0x1] %v5031
    %v5034 = vld [vmem:[%s1181] ss:$8 sm:$0xf]
    %v5035 = vld [vmem:[%s1181] ss:$8 sm:$0xf0]
    %v5036 = vor.u32 %v5034, %v5035
    %v5037 = vlaneseq
    %v5038 = vshrl.u32 %v5037, 7
    %v5039 = vsub.s32 0, %v5038
    %v5040 = vrot.slane %v5025, %v5039
    %5042 = vmatprep.subr.mxu0 %v4178
    %5043 = vmatpush1.msra.mxu0 %v4177
    %5044 = vmatprep.subr.mxu0 %v4170
    %5045 = vmatpush1.msra.mxu0 %v4169
    %5046 = vmatprep.subr.mxu0 %v4162
    %5047 = vmatpush1.msra.mxu0 %v4161
    %5048 = vmatprep.subr.mxu0 %v4154
    %5049 = vmatpush1.msra.mxu0 %v4153
    %5050 = vmatprep.subr.mxu0 %v4146
    %5051 = vmatpush1.msra.mxu0 %v4145
    %5052 = vmatprep.subr.mxu0 %v4138
    %5053 = vmatpush1.msra.mxu0 %v4137
    %5054 = vmatprep.subr.mxu0 %v4130
    %5055 = vmatpush1.msra.mxu0 %v4129
    %5056 = vmatprep.subr.mxu0 %v4122
    %5057 = vmatpush1.msra.mxu0 %v4121
    %5058 = vmatprep.subr.mxu0 %v4114
    %5059 = vmatpush1.msra.mxu0 %v4113
    %5060 = vmatprep.subr.mxu0 %v4106
    %5061 = vmatpush1.msra.mxu0 %v4105
    %5062 = vmatprep.subr.mxu0 %v4098
    %5063 = vmatpush1.msra.mxu0 %v4097
    %5064 = vmatprep.subr.mxu0 %v4090
    %5065 = vmatpush1.msra.mxu0 %v4089
    %5066 = vmatprep.subr.mxu0 %v4082
    %5067 = vmatpush1.msra.mxu0 %v4081
    %5068 = vmatprep.subr.mxu0 %v4074
    %5069 = vmatpush1.msra.mxu0 %v4073
    %5070 = vmatprep.subr.mxu0 %v4066
    %5071 = vmatpush1.msra.mxu0 %v4065
    %5072 = vmatprep.subr.mxu0 %v4058
    %5073 = vmatpush1.msra.mxu0 %v4057
    %5074 = vmatprep.subr.mxu0 %v4306
    %5075 = vmatpush2.msra.mxu0 %v4305
    %5076 = vmatprep.subr.mxu0 %v4298
    %5077 = vmatpush2.msra.mxu0 %v4297
    %5078 = vmatprep.subr.mxu0 %v4290
    %5079 = vmatpush2.msra.mxu0 %v4289
    %5080 = vmatprep.subr.mxu0 %v4282
    %5081 = vmatpush2.msra.mxu0 %v4281
    %5082 = vmatprep.subr.mxu0 %v4274
    %5083 = vmatpush2.msra.mxu0 %v4273
    %5084 = vmatprep.subr.mxu0 %v4266
    %5085 = vmatpush2.msra.mxu0 %v4265
    %5086 = vmatprep.subr.mxu0 %v4258
    %5087 = vmatpush2.msra.mxu0 %v4257
    %5088 = vmatprep.subr.mxu0 %v4250
    %5089 = vmatpush2.msra.mxu0 %v4249
    %5090 = vmatprep.subr.mxu0 %v4242
    %5091 = vmatpush2.msra.mxu0 %v4241
    %5092 = vmatprep.subr.mxu0 %v4234
    %5093 = vmatpush2.msra.mxu0 %v4233
    %5094 = vmatprep.subr.mxu0 %v4226
    %5095 = vmatpush2.msra.mxu0 %v4225
    %5096 = vmatprep.subr.mxu0 %v4218
    %5097 = vmatpush2.msra.mxu0 %v4217
    %5098 = vmatprep.subr.mxu0 %v4210
    %5099 = vmatpush2.msra.mxu0 %v4209
    %5100 = vmatprep.subr.mxu0 %v4202
    %5101 = vmatpush2.msra.mxu0 %v4201
    %5102 = vmatprep.subr.mxu0 %v4194
    %5103 = vmatpush2.msra.mxu0 %v4193
    %5104 = vmatprep.subr.mxu0 %v4186
    %5105 = vmatpush2.msra.mxu0 %v4185
    %5106 = vmatprep.mubr.f32.mxu0 %v5031
    %5107 = vmatmul.mubr.f32.gmra.mxu0 %v5040
    %v5108 = vpop.f32.mrf.mxu0
    %v5109 = vadd.f32 0.0, %v5108
    %v5110 = vpop.f32.mrf.mxu0
    %v5111 = vadd.f32 0.0, %v5110
    %5112 = vdwg.mxu0
    %5113 = vmatprep.subr.mxu0 %v4180
    %5114 = vmatpush1.msra.mxu0 %v4179
    %5115 = vmatprep.subr.mxu0 %v4172
    %5116 = vmatpush1.msra.mxu0 %v4171
    %5117 = vmatprep.subr.mxu0 %v4164
    %5118 = vmatpush1.msra.mxu0 %v4163
    %5119 = vmatprep.subr.mxu0 %v4156
    %5120 = vmatpush1.msra.mxu0 %v4155
    %5121 = vmatprep.subr.mxu0 %v4148
    %5122 = vmatpush1.msra.mxu0 %v4147
    %5123 = vmatprep.subr.mxu0 %v4140
    %5124 = vmatpush1.msra.mxu0 %v4139
    %5125 = vmatprep.subr.mxu0 %v4132
    %5126 = vmatpush1.msra.mxu0 %v4131
    %5127 = vmatprep.subr.mxu0 %v4124
    %5128 = vmatpush1.msra.mxu0 %v4123
    %5129 = vmatprep.subr.mxu0 %v4116
    %5130 = vmatpush1.msra.mxu0 %v4115
    %5131 = vmatprep.subr.mxu0 %v4108
    %5132 = vmatpush1.msra.mxu0 %v4107
    %5133 = vmatprep.subr.mxu0 %v4100
    %5134 = vmatpush1.msra.mxu0 %v4099
    %5135 = vmatprep.subr.mxu0 %v4092
    %5136 = vmatpush1.msra.mxu0 %v4091
    %5137 = vmatprep.subr.mxu0 %v4084
    %5138 = vmatpush1.msra.mxu0 %v4083
    %5139 = vmatprep.subr.mxu0 %v4076
    %5140 = vmatpush1.msra.mxu0 %v4075
    %5141 = vmatprep.subr.mxu0 %v4068
    %5142 = vmatpush1.msra.mxu0 %v4067
    %5143 = vmatprep.subr.mxu0 %v4060
    %5144 = vmatpush1.msra.mxu0 %v4059
    %5145 = vmatprep.subr.mxu0 %v4308
    %5146 = vmatpush2.msra.mxu0 %v4307
    %5147 = vmatprep.subr.mxu0 %v4300
    %5148 = vmatpush2.msra.mxu0 %v4299
    %5149 = vmatprep.subr.mxu0 %v4292
    %5150 = vmatpush2.msra.mxu0 %v4291
    %5151 = vmatprep.subr.mxu0 %v4284
    %5152 = vmatpush2.msra.mxu0 %v4283
    %5153 = vmatprep.subr.mxu0 %v4276
    %5154 = vmatpush2.msra.mxu0 %v4275
    %5155 = vmatprep.subr.mxu0 %v4268
    %5156 = vmatpush2.msra.mxu0 %v4267
    %5157 = vmatprep.subr.mxu0 %v4260
    %5158 = vmatpush2.msra.mxu0 %v4259
    %5159 = vmatprep.subr.mxu0 %v4252
    %5160 = vmatpush2.msra.mxu0 %v4251
    %5161 = vmatprep.subr.mxu0 %v4244
    %5162 = vmatpush2.msra.mxu0 %v4243
    %5163 = vmatprep.subr.mxu0 %v4236
    %5164 = vmatpush2.msra.mxu0 %v4235
    %5165 = vmatprep.subr.mxu0 %v4228
    %5166 = vmatpush2.msra.mxu0 %v4227
    %5167 = vmatprep.subr.mxu0 %v4220
    %5168 = vmatpush2.msra.mxu0 %v4219
    %5169 = vmatprep.subr.mxu0 %v4212
    %5170 = vmatpush2.msra.mxu0 %v4211
    %5171 = vmatprep.subr.mxu0 %v4204
    %5172 = vmatpush2.msra.mxu0 %v4203
    %5173 = vmatprep.subr.mxu0 %v4196
    %5174 = vmatpush2.msra.mxu0 %v4195
    %5175 = vmatprep.subr.mxu0 %v4188
    %5176 = vmatpush2.msra.mxu0 %v4187
    %5177 = vmatprep.mubr.f32.mxu0 %v5031
    %5178 = vmatmul.mubr.f32.gmra.mxu0 %v5040
    %v5179 = vpop.f32.mrf.mxu0
    %v5180 = vadd.f32 0.0, %v5179
    %v5181 = vpop.f32.mrf.mxu0
    %v5182 = vadd.f32 0.0, %v5181
    %5183 = vdwg.mxu0
    %5184 = vmatprep.subr.mxu0 %v4182
    %5185 = vmatpush1.msra.mxu0 %v4181
    %5186 = vmatprep.subr.mxu0 %v4174
    %5187 = vmatpush1.msra.mxu0 %v4173
    %5188 = vmatprep.subr.mxu0 %v4166
    %5189 = vmatpush1.msra.mxu0 %v4165
    %5190 = vmatprep.subr.mxu0 %v4158
    %5191 = vmatpush1.msra.mxu0 %v4157
    %5192 = vmatprep.subr.mxu0 %v4150
    %5193 = vmatpush1.msra.mxu0 %v4149
    %5194 = vmatprep.subr.mxu0 %v4142
    %5195 = vmatpush1.msra.mxu0 %v4141
    %5196 = vmatprep.subr.mxu0 %v4134
    %5197 = vmatpush1.msra.mxu0 %v4133
    %5198 = vmatprep.subr.mxu0 %v4126
    %5199 = vmatpush1.msra.mxu0 %v4125
    %5200 = vmatprep.subr.mxu0 %v4118
    %5201 = vmatpush1.msra.mxu0 %v4117
    %5202 = vmatprep.subr.mxu0 %v4110
    %5203 = vmatpush1.msra.mxu0 %v4109
    %5204 = vmatprep.subr.mxu0 %v4102
    %5205 = vmatpush1.msra.mxu0 %v4101
    %5206 = vmatprep.subr.mxu0 %v4094
    %5207 = vmatpush1.msra.mxu0 %v4093
    %5208 = vmatprep.subr.mxu0 %v4086
    %5209 = vmatpush1.msra.mxu0 %v4085
    %5210 = vmatprep.subr.mxu0 %v4078
    %5211 = vmatpush1.msra.mxu0 %v4077
    %5212 = vmatprep.subr.mxu0 %v4070
    %5213 = vmatpush1.msra.mxu0 %v4069
    %5214 = vmatprep.subr.mxu0 %v4062
    %5215 = vmatpush1.msra.mxu0 %v4061
    %5216 = vmatprep.subr.mxu0 %v4310
    %5217 = vmatpush2.msra.mxu0 %v4309
    %5218 = vmatprep.subr.mxu0 %v4302
    %5219 = vmatpush2.msra.mxu0 %v4301
    %5220 = vmatprep.subr.mxu0 %v4294
    %5221 = vmatpush2.msra.mxu0 %v4293
    %5222 = vmatprep.subr.mxu0 %v4286
    %5223 = vmatpush2.msra.mxu0 %v4285
    %5224 = vmatprep.subr.mxu0 %v4278
    %5225 = vmatpush2.msra.mxu0 %v4277
    %5226 = vmatprep.subr.mxu0 %v4270
    %5227 = vmatpush2.msra.mxu0 %v4269
    %5228 = vmatprep.subr.mxu0 %v4262
    %5229 = vmatpush2.msra.mxu0 %v4261
    %5230 = vmatprep.subr.mxu0 %v4254
    %5231 = vmatpush2.msra.mxu0 %v4253
    %5232 = vmatprep.subr.mxu0 %v4246
    %5233 = vmatpush2.msra.mxu0 %v4245
    %5234 = vmatprep.subr.mxu0 %v4238
    %5235 = vmatpush2.msra.mxu0 %v4237
    %5236 = vmatprep.subr.mxu0 %v4230
    %5237 = vmatpush2.msra.mxu0 %v4229
    %5238 = vmatprep.subr.mxu0 %v4222
    %5239 = vmatpush2.msra.mxu0 %v4221
    %5240 = vmatprep.subr.mxu0 %v4214
    %5241 = vmatpush2.msra.mxu0 %v4213
    %5242 = vmatprep.subr.mxu0 %v4206
    %5243 = vmatpush2.msra.mxu0 %v4205
    %5244 = vmatprep.subr.mxu0 %v4198
    %5245 = vmatpush2.msra.mxu0 %v4197
    %5246 = vmatprep.subr.mxu0 %v4190
    %5247 = vmatpush2.msra.mxu0 %v4189
    %5248 = vmatprep.mubr.f32.mxu0 %v5031
    %5249 = vmatmul.mubr.f32.gmra.mxu0 %v5040
    %v5250 = vpop.f32.mrf.mxu0
    %v5251 = vadd.f32 0.0, %v5250
    %v5252 = vpop.f32.mrf.mxu0
    %v5253 = vadd.f32 0.0, %v5252
    %5254 = vdwg.mxu0
    %5255 = vmatprep.subr.mxu0 %v4184
    %5256 = vmatpush1.msra.mxu0 %v4183
    %5257 = vmatprep.subr.mxu0 %v4176
    %5258 = vmatpush1.msra.mxu0 %v4175
    %5259 = vmatprep.subr.mxu0 %v4168
    %5260 = vmatpush1.msra.mxu0 %v4167
    %5261 = vmatprep.subr.mxu0 %v4160
    %5262 = vmatpush1.msra.mxu0 %v4159
    %5263 = vmatprep.subr.mxu0 %v4152
    %5264 = vmatpush1.msra.mxu0 %v4151
    %5265 = vmatprep.subr.mxu0 %v4144
    %5266 = vmatpush1.msra.mxu0 %v4143
    %5267 = vmatprep.subr.mxu0 %v4136
    %5268 = vmatpush1.msra.mxu0 %v4135
    %5269 = vmatprep.subr.mxu0 %v4128
    %5270 = vmatpush1.msra.mxu0 %v4127
    %5271 = vmatprep.subr.mxu0 %v4120
    %5272 = vmatpush1.msra.mxu0 %v4119
    %5273 = vmatprep.subr.mxu0 %v4112
    %5274 = vmatpush1.msra.mxu0 %v4111
    %5275 = vmatprep.subr.mxu0 %v4104
    %5276 = vmatpush1.msra.mxu0 %v4103
    %5277 = vmatprep.subr.mxu0 %v4096
    %5278 = vmatpush1.msra.mxu0 %v4095
    %5279 = vmatprep.subr.mxu0 %v4088
    %5280 = vmatpush1.msra.mxu0 %v4087
    %5281 = vmatprep.subr.mxu0 %v4080
    %5282 = vmatpush1.msra.mxu0 %v4079
    %5283 = vmatprep.subr.mxu0 %v4072
    %5284 = vmatpush1.msra.mxu0 %v4071
    %5285 = vmatprep.subr.mxu0 %v4064
    %5286 = vmatpush1.msra.mxu0 %v4063
    %5287 = vmatprep.subr.mxu0 %v4312
    %5288 = vmatpush2.msra.mxu0 %v4311
    %5289 = vmatprep.subr.mxu0 %v4304
    %5290 = vmatpush2.msra.mxu0 %v4303
    %5291 = vmatprep.subr.mxu0 %v4296
    %5292 = vmatpush2.msra.mxu0 %v4295
    %5293 = vmatprep.subr.mxu0 %v4288
    %5294 = vmatpush2.msra.mxu0 %v4287
    %5295 = vmatprep.subr.mxu0 %v4280
    %5296 = vmatpush2.msra.mxu0 %v4279
    %5297 = vmatprep.subr.mxu0 %v4272
    %5298 = vmatpush2.msra.mxu0 %v4271
    %5299 = vmatprep.subr.mxu0 %v4264
    %5300 = vmatpush2.msra.mxu0 %v4263
    %5301 = vmatprep.subr.mxu0 %v4256
    %5302 = vmatpush2.msra.mxu0 %v4255
    %5303 = vmatprep.subr.mxu0 %v4248
    %5304 = vmatpush2.msra.mxu0 %v4247
    %5305 = vmatprep.subr.mxu0 %v4240
    %5306 = vmatpush2.msra.mxu0 %v4239
    %5307 = vmatprep.subr.mxu0 %v4232
    %5308 = vmatpush2.msra.mxu0 %v4231
    %5309 = vmatprep.subr.mxu0 %v4224
    %5310 = vmatpush2.msra.mxu0 %v4223
    %5311 = vmatprep.subr.mxu0 %v4216
    %5312 = vmatpush2.msra.mxu0 %v4215
    %5313 = vmatprep.subr.mxu0 %v4208
    %5314 = vmatpush2.msra.mxu0 %v4207
    %5315 = vmatprep.subr.mxu0 %v4200
    %5316 = vmatpush2.msra.mxu0 %v4199
    %5317 = vmatprep.subr.mxu0 %v4192
    %5318 = vmatpush2.msra.mxu0 %v4191
    %5319 = vmatprep.mubr.f32.mxu0 %v5031
    %5320 = vmatmul.mubr.f32.gmra.mxu0 %v5040
    %v5321 = vpop.f32.mrf.mxu0
    %v5322 = vadd.f32 0.0, %v5321
    %v5323 = vpop.f32.mrf.mxu0
    %v5324 = vadd.f32 0.0, %v5323
    %5325 = vdwg.mxu0
    %v5334 = vcombine.low %v5109, %v5111
    %v5335 = vcombine.low %v5180, %v5182
    %v5336 = vcombine.low %v5251, %v5253
    %v5337 = vcombine.low %v5322, %v5324
    %v5339 = vunpack.c.l.s4 1966171168
    %v5340 = vunpack.c.0.s8 %v5339
    %v5341 = vlaneseq
    %v5342 = vshrl.u32 %v5341, 7
    %v5343 = vsub.s32 %v5340, %v5342
    %v5344 = vrot.slane %v5334, %v5343
    %v5346 = vunpack.c.l.s4 1966171168
    %v5347 = vunpack.c.0.s8 %v5346
    %v5348 = vlaneseq
    %v5349 = vshrl.u32 %v5348, 7
    %v5350 = vsub.s32 %v5347, %v5349
    %v5351 = vrot.slane %v5335, %v5350
    %v5353 = vunpack.c.l.s4 1966171168
    %v5354 = vunpack.c.0.s8 %v5353
    %v5355 = vlaneseq
    %v5356 = vshrl.u32 %v5355, 7
    %v5357 = vsub.s32 %v5354, %v5356
    %v5358 = vrot.slane %v5336, %v5357
    %v5360 = vunpack.c.l.s4 1966171168
    %v5361 = vunpack.c.0.s8 %v5360
    %v5362 = vlaneseq
    %v5363 = vshrl.u32 %v5362, 7
    %v5364 = vsub.s32 %v5361, %v5363
    %v5365 = vrot.slane %v5337, %v5364
    %v5366 = vcombine.low %v5344, %v5351
    %v5367 = vcombine.low %v5358, %v5365
    %v5369 = vunpack.c.l.s4 1966171168
    %v5370 = vunpack.c.0.s8 %v5369
    %v5371 = vlaneseq
    %v5372 = vshrl.u32 %v5371, 7
    %v5373 = vsub.s32 %v5370, %v5372
    %v5374 = vrot.slane %v5366, %v5373
    %v5376 = vunpack.c.l.s4 1966171168
    %v5377 = vunpack.c.0.s8 %v5376
    %v5378 = vlaneseq
    %v5379 = vshrl.u32 %v5378, 7
    %v5380 = vsub.s32 %v5377, %v5379
    %v5381 = vrot.slane %v5367, %v5380
    %v5382 = vcombine.low %v5374, %v5381
    %v5384 = vadd.f32 %v5036, %v5382
    %v5385 = vxor.u32 %v5384, 2147483648
    %v5386 = vmul.f32 %v5385, 1.442695
    %v5387 = vpow.pop %v5386
    %v5388 = vadd.f32 %v5387, 1.0
    %v5389 = vrcp.pop %v5388
    %v5390 = vmul.f32 1.0, %v5389
    %v5392 = vrot.slane %v5384, 2
    %v5394 = vxor.u32 %v5392, 2147483648
    %v5395 = vmul.f32 %v5394, 1.442695
    %v5396 = vpow.pop %v5395
    %v5397 = vadd.f32 %v5396, 1.0
    %v5398 = vrcp.pop %v5397
    %v5399 = vmul.f32 1.0, %v5398
    %v5400 = vrot.slane %v5384, 4
    %v5402 = vtanh.pop %v5400
    %v5403 = vrot.slane %v5384, 6
    %v5405 = vxor.u32 %v5403, 2147483648
    %v5406 = vmul.f32 %v5405, 1.442695
    %v5407 = vpow.pop %v5406
    %v5408 = vadd.f32 %v5407, 1.0
    %v5409 = vrcp.pop %v5408
    %v5410 = vmul.f32 1.0, %v5409
    %v5411 = vmul.f32 %v5399, %v5023
    %v5412 = vmul.f32 %v5390, %v5402
    %v5413 = vadd.f32 %v5411, %v5412
    %v5414 = vtanh.pop %v5413
    %v5415 = vmul.f32 %v5410, %v5414
    %5416 = vst [vmem:[#allocation19 + $0x1] sm:$0x1] %v5415
    %v5418 = vlaneseq
    %v5419 = vshrl.u32 %v5418, 7
    %v5420 = vsub.s32 1, %v5419
    %v5421 = vrot.slane %v5415, %v5420
    %5423 = vst [vmem:[#allocation19 + $0xe] sm:$0x1] %v5421
    %v5424 = vld [vmem:[%s1573] ss:$8 sm:$0xf]
    %v5425 = vld [vmem:[%s1573] ss:$8 sm:$0xf0]
    %v5426 = vor.u32 %v5424, %v5425
    %v5427 = vlaneseq
    %v5428 = vshrl.u32 %v5427, 7
    %v5429 = vsub.s32 0, %v5428
    %v5430 = vrot.slane %v5415, %v5429
    %5432 = vmatprep.subr.mxu0 %v4178
    %5433 = vmatpush1.msra.mxu0 %v4177
    %5434 = vmatprep.subr.mxu0 %v4170
    %5435 = vmatpush1.msra.mxu0 %v4169
    %5436 = vmatprep.subr.mxu0 %v4162
    %5437 = vmatpush1.msra.mxu0 %v4161
    %5438 = vmatprep.subr.mxu0 %v4154
    %5439 = vmatpush1.msra.mxu0 %v4153
    %5440 = vmatprep.subr.mxu0 %v4146
    %5441 = vmatpush1.msra.mxu0 %v4145
    %5442 = vmatprep.subr.mxu0 %v4138
    %5443 = vmatpush1.msra.mxu0 %v4137
    %5444 = vmatprep.subr.mxu0 %v4130
    %5445 = vmatpush1.msra.mxu0 %v4129
    %5446 = vmatprep.subr.mxu0 %v4122
    %5447 = vmatpush1.msra.mxu0 %v4121
    %5448 = vmatprep.subr.mxu0 %v4114
    %5449 = vmatpush1.msra.mxu0 %v4113
    %5450 = vmatprep.subr.mxu0 %v4106
    %5451 = vmatpush1.msra.mxu0 %v4105
    %5452 = vmatprep.subr.mxu0 %v4098
    %5453 = vmatpush1.msra.mxu0 %v4097
    %5454 = vmatprep.subr.mxu0 %v4090
    %5455 = vmatpush1.msra.mxu0 %v4089
    %5456 = vmatprep.subr.mxu0 %v4082
    %5457 = vmatpush1.msra.mxu0 %v4081
    %5458 = vmatprep.subr.mxu0 %v4074
    %5459 = vmatpush1.msra.mxu0 %v4073
    %5460 = vmatprep.subr.mxu0 %v4066
    %5461 = vmatpush1.msra.mxu0 %v4065
    %5462 = vmatprep.subr.mxu0 %v4058
    %5463 = vmatpush1.msra.mxu0 %v4057
    %5464 = vmatprep.subr.mxu0 %v4306
    %5465 = vmatpush2.msra.mxu0 %v4305
    %5466 = vmatprep.subr.mxu0 %v4298
    %5467 = vmatpush2.msra.mxu0 %v4297
    %5468 = vmatprep.subr.mxu0 %v4290
    %5469 = vmatpush2.msra.mxu0 %v4289
    %5470 = vmatprep.subr.mxu0 %v4282
    %5471 = vmatpush2.msra.mxu0 %v4281
    %5472 = vmatprep.subr.mxu0 %v4274
    %5473 = vmatpush2.msra.mxu0 %v4273
    %5474 = vmatprep.subr.mxu0 %v4266
    %5475 = vmatpush2.msra.mxu0 %v4265
    %5476 = vmatprep.subr.mxu0 %v4258
    %5477 = vmatpush2.msra.mxu0 %v4257
    %5478 = vmatprep.subr.mxu0 %v4250
    %5479 = vmatpush2.msra.mxu0 %v4249
    %5480 = vmatprep.subr.mxu0 %v4242
    %5481 = vmatpush2.msra.mxu0 %v4241
    %5482 = vmatprep.subr.mxu0 %v4234
    %5483 = vmatpush2.msra.mxu0 %v4233
    %5484 = vmatprep.subr.mxu0 %v4226
    %5485 = vmatpush2.msra.mxu0 %v4225
    %5486 = vmatprep.subr.mxu0 %v4218
    %5487 = vmatpush2.msra.mxu0 %v4217
    %5488 = vmatprep.subr.mxu0 %v4210
    %5489 = vmatpush2.msra.mxu0 %v4209
    %5490 = vmatprep.subr.mxu0 %v4202
    %5491 = vmatpush2.msra.mxu0 %v4201
    %5492 = vmatprep.subr.mxu0 %v4194
    %5493 = vmatpush2.msra.mxu0 %v4193
    %5494 = vmatprep.subr.mxu0 %v4186
    %5495 = vmatpush2.msra.mxu0 %v4185
    %5496 = vmatprep.mubr.f32.mxu0 %v5421
    %5497 = vmatmul.mubr.f32.gmra.mxu0 %v5430
    %v5498 = vpop.f32.mrf.mxu0
    %v5499 = vadd.f32 0.0, %v5498
    %v5500 = vpop.f32.mrf.mxu0
    %v5501 = vadd.f32 0.0, %v5500
    %5502 = vdwg.mxu0
    %5503 = vmatprep.subr.mxu0 %v4180
    %5504 = vmatpush1.msra.mxu0 %v4179
    %5505 = vmatprep.subr.mxu0 %v4172
    %5506 = vmatpush1.msra.mxu0 %v4171
    %5507 = vmatprep.subr.mxu0 %v4164
    %5508 = vmatpush1.msra.mxu0 %v4163
    %5509 = vmatprep.subr.mxu0 %v4156
    %5510 = vmatpush1.msra.mxu0 %v4155
    %5511 = vmatprep.subr.mxu0 %v4148
    %5512 = vmatpush1.msra.mxu0 %v4147
    %5513 = vmatprep.subr.mxu0 %v4140
    %5514 = vmatpush1.msra.mxu0 %v4139
    %5515 = vmatprep.subr.mxu0 %v4132
    %5516 = vmatpush1.msra.mxu0 %v4131
    %5517 = vmatprep.subr.mxu0 %v4124
    %5518 = vmatpush1.msra.mxu0 %v4123
    %5519 = vmatprep.subr.mxu0 %v4116
    %5520 = vmatpush1.msra.mxu0 %v4115
    %5521 = vmatprep.subr.mxu0 %v4108
    %5522 = vmatpush1.msra.mxu0 %v4107
    %5523 = vmatprep.subr.mxu0 %v4100
    %5524 = vmatpush1.msra.mxu0 %v4099
    %5525 = vmatprep.subr.mxu0 %v4092
    %5526 = vmatpush1.msra.mxu0 %v4091
    %5527 = vmatprep.subr.mxu0 %v4084
    %5528 = vmatpush1.msra.mxu0 %v4083
    %5529 = vmatprep.subr.mxu0 %v4076
    %5530 = vmatpush1.msra.mxu0 %v4075
    %5531 = vmatprep.subr.mxu0 %v4068
    %5532 = vmatpush1.msra.mxu0 %v4067
    %5533 = vmatprep.subr.mxu0 %v4060
    %5534 = vmatpush1.msra.mxu0 %v4059
    %5535 = vmatprep.subr.mxu0 %v4308
    %5536 = vmatpush2.msra.mxu0 %v4307
    %5537 = vmatprep.subr.mxu0 %v4300
    %5538 = vmatpush2.msra.mxu0 %v4299
    %5539 = vmatprep.subr.mxu0 %v4292
    %5540 = vmatpush2.msra.mxu0 %v4291
    %5541 = vmatprep.subr.mxu0 %v4284
    %5542 = vmatpush2.msra.mxu0 %v4283
    %5543 = vmatprep.subr.mxu0 %v4276
    %5544 = vmatpush2.msra.mxu0 %v4275
    %5545 = vmatprep.subr.mxu0 %v4268
    %5546 = vmatpush2.msra.mxu0 %v4267
    %5547 = vmatprep.subr.mxu0 %v4260
    %5548 = vmatpush2.msra.mxu0 %v4259
    %5549 = vmatprep.subr.mxu0 %v4252
    %5550 = vmatpush2.msra.mxu0 %v4251
    %5551 = vmatprep.subr.mxu0 %v4244
    %5552 = vmatpush2.msra.mxu0 %v4243
    %5553 = vmatprep.subr.mxu0 %v4236
    %5554 = vmatpush2.msra.mxu0 %v4235
    %5555 = vmatprep.subr.mxu0 %v4228
    %5556 = vmatpush2.msra.mxu0 %v4227
    %5557 = vmatprep.subr.mxu0 %v4220
    %5558 = vmatpush2.msra.mxu0 %v4219
    %5559 = vmatprep.subr.mxu0 %v4212
    %5560 = vmatpush2.msra.mxu0 %v4211
    %5561 = vmatprep.subr.mxu0 %v4204
    %5562 = vmatpush2.msra.mxu0 %v4203
    %5563 = vmatprep.subr.mxu0 %v4196
    %5564 = vmatpush2.msra.mxu0 %v4195
    %5565 = vmatprep.subr.mxu0 %v4188
    %5566 = vmatpush2.msra.mxu0 %v4187
    %5567 = vmatprep.mubr.f32.mxu0 %v5421
    %5568 = vmatmul.mubr.f32.gmra.mxu0 %v5430
    %v5569 = vpop.f32.mrf.mxu0
    %v5570 = vadd.f32 0.0, %v5569
    %v5571 = vpop.f32.mrf.mxu0
    %v5572 = vadd.f32 0.0, %v5571
    %5573 = vdwg.mxu0
    %5574 = vmatprep.subr.mxu0 %v4182
    %5575 = vmatpush1.msra.mxu0 %v4181
    %5576 = vmatprep.subr.mxu0 %v4174
    %5577 = vmatpush1.msra.mxu0 %v4173
    %5578 = vmatprep.subr.mxu0 %v4166
    %5579 = vmatpush1.msra.mxu0 %v4165
    %5580 = vmatprep.subr.mxu0 %v4158
    %5581 = vmatpush1.msra.mxu0 %v4157
    %5582 = vmatprep.subr.mxu0 %v4150
    %5583 = vmatpush1.msra.mxu0 %v4149
    %5584 = vmatprep.subr.mxu0 %v4142
    %5585 = vmatpush1.msra.mxu0 %v4141
    %5586 = vmatprep.subr.mxu0 %v4134
    %5587 = vmatpush1.msra.mxu0 %v4133
    %5588 = vmatprep.subr.mxu0 %v4126
    %5589 = vmatpush1.msra.mxu0 %v4125
    %5590 = vmatprep.subr.mxu0 %v4118
    %5591 = vmatpush1.msra.mxu0 %v4117
    %5592 = vmatprep.subr.mxu0 %v4110
    %5593 = vmatpush1.msra.mxu0 %v4109
    %5594 = vmatprep.subr.mxu0 %v4102
    %5595 = vmatpush1.msra.mxu0 %v4101
    %5596 = vmatprep.subr.mxu0 %v4094
    %5597 = vmatpush1.msra.mxu0 %v4093
    %5598 = vmatprep.subr.mxu0 %v4086
    %5599 = vmatpush1.msra.mxu0 %v4085
    %5600 = vmatprep.subr.mxu0 %v4078
    %5601 = vmatpush1.msra.mxu0 %v4077
    %5602 = vmatprep.subr.mxu0 %v4070
    %5603 = vmatpush1.msra.mxu0 %v4069
    %5604 = vmatprep.subr.mxu0 %v4062
    %5605 = vmatpush1.msra.mxu0 %v4061
    %5606 = vmatprep.subr.mxu0 %v4310
    %5607 = vmatpush2.msra.mxu0 %v4309
    %5608 = vmatprep.subr.mxu0 %v4302
    %5609 = vmatpush2.msra.mxu0 %v4301
    %5610 = vmatprep.subr.mxu0 %v4294
    %5611 = vmatpush2.msra.mxu0 %v4293
    %5612 = vmatprep.subr.mxu0 %v4286
    %5613 = vmatpush2.msra.mxu0 %v4285
    %5614 = vmatprep.subr.mxu0 %v4278
    %5615 = vmatpush2.msra.mxu0 %v4277
    %5616 = vmatprep.subr.mxu0 %v4270
    %5617 = vmatpush2.msra.mxu0 %v4269
    %5618 = vmatprep.subr.mxu0 %v4262
    %5619 = vmatpush2.msra.mxu0 %v4261
    %5620 = vmatprep.subr.mxu0 %v4254
    %5621 = vmatpush2.msra.mxu0 %v4253
    %5622 = vmatprep.subr.mxu0 %v4246
    %5623 = vmatpush2.msra.mxu0 %v4245
    %5624 = vmatprep.subr.mxu0 %v4238
    %5625 = vmatpush2.msra.mxu0 %v4237
    %5626 = vmatprep.subr.mxu0 %v4230
    %5627 = vmatpush2.msra.mxu0 %v4229
    %5628 = vmatprep.subr.mxu0 %v4222
    %5629 = vmatpush2.msra.mxu0 %v4221
    %5630 = vmatprep.subr.mxu0 %v4214
    %5631 = vmatpush2.msra.mxu0 %v4213
    %5632 = vmatprep.subr.mxu0 %v4206
    %5633 = vmatpush2.msra.mxu0 %v4205
    %5634 = vmatprep.subr.mxu0 %v4198
    %5635 = vmatpush2.msra.mxu0 %v4197
    %5636 = vmatprep.subr.mxu0 %v4190
    %5637 = vmatpush2.msra.mxu0 %v4189
    %5638 = vmatprep.mubr.f32.mxu0 %v5421
    %5639 = vmatmul.mubr.f32.gmra.mxu0 %v5430
    %v5640 = vpop.f32.mrf.mxu0
    %v5641 = vadd.f32 0.0, %v5640
    %v5642 = vpop.f32.mrf.mxu0
    %v5643 = vadd.f32 0.0, %v5642
    %5644 = vdwg.mxu0
    %5645 = vmatprep.subr.mxu0 %v4184
    %5646 = vmatpush1.msra.mxu0 %v4183
    %5647 = vmatprep.subr.mxu0 %v4176
    %5648 = vmatpush1.msra.mxu0 %v4175
    %5649 = vmatprep.subr.mxu0 %v4168
    %5650 = vmatpush1.msra.mxu0 %v4167
    %5651 = vmatprep.subr.mxu0 %v4160
    %5652 = vmatpush1.msra.mxu0 %v4159
    %5653 = vmatprep.subr.mxu0 %v4152
    %5654 = vmatpush1.msra.mxu0 %v4151
    %5655 = vmatprep.subr.mxu0 %v4144
    %5656 = vmatpush1.msra.mxu0 %v4143
    %5657 = vmatprep.subr.mxu0 %v4136
    %5658 = vmatpush1.msra.mxu0 %v4135
    %5659 = vmatprep.subr.mxu0 %v4128
    %5660 = vmatpush1.msra.mxu0 %v4127
    %5661 = vmatprep.subr.mxu0 %v4120
    %5662 = vmatpush1.msra.mxu0 %v4119
    %5663 = vmatprep.subr.mxu0 %v4112
    %5664 = vmatpush1.msra.mxu0 %v4111
    %5665 = vmatprep.subr.mxu0 %v4104
    %5666 = vmatpush1.msra.mxu0 %v4103
    %5667 = vmatprep.subr.mxu0 %v4096
    %5668 = vmatpush1.msra.mxu0 %v4095
    %5669 = vmatprep.subr.mxu0 %v4088
    %5670 = vmatpush1.msra.mxu0 %v4087
    %5671 = vmatprep.subr.mxu0 %v4080
    %5672 = vmatpush1.msra.mxu0 %v4079
    %5673 = vmatprep.subr.mxu0 %v4072
    %5674 = vmatpush1.msra.mxu0 %v4071
    %5675 = vmatprep.subr.mxu0 %v4064
    %5676 = vmatpush1.msra.mxu0 %v4063
    %5677 = vmatprep.subr.mxu0 %v4312
    %5678 = vmatpush2.msra.mxu0 %v4311
    %5679 = vmatprep.subr.mxu0 %v4304
    %5680 = vmatpush2.msra.mxu0 %v4303
    %5681 = vmatprep.subr.mxu0 %v4296
    %5682 = vmatpush2.msra.mxu0 %v4295
    %5683 = vmatprep.subr.mxu0 %v4288
    %5684 = vmatpush2.msra.mxu0 %v4287
    %5685 = vmatprep.subr.mxu0 %v4280
    %5686 = vmatpush2.msra.mxu0 %v4279
    %5687 = vmatprep.subr.mxu0 %v4272
    %5688 = vmatpush2.msra.mxu0 %v4271
    %5689 = vmatprep.subr.mxu0 %v4264
    %5690 = vmatpush2.msra.mxu0 %v4263
    %5691 = vmatprep.subr.mxu0 %v4256
    %5692 = vmatpush2.msra.mxu0 %v4255
    %5693 = vmatprep.subr.mxu0 %v4248
    %5694 = vmatpush2.msra.mxu0 %v4247
    %5695 = vmatprep.subr.mxu0 %v4240
    %5696 = vmatpush2.msra.mxu0 %v4239
    %5697 = vmatprep.subr.mxu0 %v4232
    %5698 = vmatpush2.msra.mxu0 %v4231
    %5699 = vmatprep.subr.mxu0 %v4224
    %5700 = vmatpush2.msra.mxu0 %v4223
    %5701 = vmatprep.subr.mxu0 %v4216
    %5702 = vmatpush2.msra.mxu0 %v4215
    %5703 = vmatprep.subr.mxu0 %v4208
    %5704 = vmatpush2.msra.mxu0 %v4207
    %5705 = vmatprep.subr.mxu0 %v4200
    %5706 = vmatpush2.msra.mxu0 %v4199
    %5707 = vmatprep.subr.mxu0 %v4192
    %5708 = vmatpush2.msra.mxu0 %v4191
    %5709 = vmatprep.mubr.f32.mxu0 %v5421
    %5710 = vmatmul.mubr.f32.gmra.mxu0 %v5430
    %v5711 = vpop.f32.mrf.mxu0
    %v5712 = vadd.f32 0.0, %v5711
    %v5713 = vpop.f32.mrf.mxu0
    %v5714 = vadd.f32 0.0, %v5713
    %5715 = vdwg.mxu0
    %v5724 = vcombine.low %v5499, %v5501
    %v5725 = vcombine.low %v5570, %v5572
    %v5726 = vcombine.low %v5641, %v5643
    %v5727 = vcombine.low %v5712, %v5714
    %v5729 = vunpack.c.l.s4 1966171168
    %v5730 = vunpack.c.0.s8 %v5729
    %v5731 = vlaneseq
    %v5732 = vshrl.u32 %v5731, 7
    %v5733 = vsub.s32 %v5730, %v5732
    %v5734 = vrot.slane %v5724, %v5733
    %v5736 = vunpack.c.l.s4 1966171168
    %v5737 = vunpack.c.0.s8 %v5736
    %v5738 = vlaneseq
    %v5739 = vshrl.u32 %v5738, 7
    %v5740 = vsub.s32 %v5737, %v5739
    %v5741 = vrot.slane %v5725, %v5740
    %v5743 = vunpack.c.l.s4 1966171168
    %v5744 = vunpack.c.0.s8 %v5743
    %v5745 = vlaneseq
    %v5746 = vshrl.u32 %v5745, 7
    %v5747 = vsub.s32 %v5744, %v5746
    %v5748 = vrot.slane %v5726, %v5747
    %v5750 = vunpack.c.l.s4 1966171168
    %v5751 = vunpack.c.0.s8 %v5750
    %v5752 = vlaneseq
    %v5753 = vshrl.u32 %v5752, 7
    %v5754 = vsub.s32 %v5751, %v5753
    %v5755 = vrot.slane %v5727, %v5754
    %v5756 = vcombine.low %v5734, %v5741
    %v5757 = vcombine.low %v5748, %v5755
    %v5759 = vunpack.c.l.s4 1966171168
    %v5760 = vunpack.c.0.s8 %v5759
    %v5761 = vlaneseq
    %v5762 = vshrl.u32 %v5761, 7
    %v5763 = vsub.s32 %v5760, %v5762
    %v5764 = vrot.slane %v5756, %v5763
    %v5766 = vunpack.c.l.s4 1966171168
    %v5767 = vunpack.c.0.s8 %v5766
    %v5768 = vlaneseq
    %v5769 = vshrl.u32 %v5768, 7
    %v5770 = vsub.s32 %v5767, %v5769
    %v5771 = vrot.slane %v5757, %v5770
    %v5772 = vcombine.low %v5764, %v5771
    %v5774 = vadd.f32 %v5426, %v5772
    %v5775 = vxor.u32 %v5774, 2147483648
    %v5776 = vmul.f32 %v5775, 1.442695
    %v5777 = vpow.pop %v5776
    %v5778 = vadd.f32 %v5777, 1.0
    %v5779 = vrcp.pop %v5778
    %v5780 = vmul.f32 1.0, %v5779
    %v5782 = vrot.slane %v5774, 2
    %v5784 = vxor.u32 %v5782, 2147483648
    %v5785 = vmul.f32 %v5784, 1.442695
    %v5786 = vpow.pop %v5785
    %v5787 = vadd.f32 %v5786, 1.0
    %v5788 = vrcp.pop %v5787
    %v5789 = vmul.f32 1.0, %v5788
    %v5790 = vrot.slane %v5774, 4
    %v5792 = vtanh.pop %v5790
    %v5793 = vrot.slane %v5774, 6
    %v5795 = vxor.u32 %v5793, 2147483648
    %v5796 = vmul.f32 %v5795, 1.442695
    %v5797 = vpow.pop %v5796
    %v5798 = vadd.f32 %v5797, 1.0
    %v5799 = vrcp.pop %v5798
    %v5800 = vmul.f32 1.0, %v5799
    %v5801 = vmul.f32 %v5789, %v5413
    %v5802 = vmul.f32 %v5780, %v5792
    %v5803 = vadd.f32 %v5801, %v5802
    %v5804 = vtanh.pop %v5803
    %v5805 = vmul.f32 %v5800, %v5804
    %5806 = vst [vmem:[#allocation19 + $0x2] sm:$0x1] %v5805
    %v5808 = vlaneseq
    %v5809 = vshrl.u32 %v5808, 7
    %v5810 = vsub.s32 1, %v5809
    %v5811 = vrot.slane %v5805, %v5810
    %5813 = vst [vmem:[#allocation19 + $0xd] sm:$0x1] %v5811
    %v5814 = vld [vmem:[%s1965] ss:$8 sm:$0xf]
    %v5815 = vld [vmem:[%s1965] ss:$8 sm:$0xf0]
    %v5816 = vor.u32 %v5814, %v5815
    %v5817 = vlaneseq
    %v5818 = vshrl.u32 %v5817, 7
    %v5819 = vsub.s32 0, %v5818
    %v5820 = vrot.slane %v5805, %v5819
    %5822 = vmatprep.subr.mxu0 %v4178
    %5823 = vmatpush1.msra.mxu0 %v4177
    %5824 = vmatprep.subr.mxu0 %v4170
    %5825 = vmatpush1.msra.mxu0 %v4169
    %5826 = vmatprep.subr.mxu0 %v4162
    %5827 = vmatpush1.msra.mxu0 %v4161
    %5828 = vmatprep.subr.mxu0 %v4154
    %5829 = vmatpush1.msra.mxu0 %v4153
    %5830 = vmatprep.subr.mxu0 %v4146
    %5831 = vmatpush1.msra.mxu0 %v4145
    %5832 = vmatprep.subr.mxu0 %v4138
    %5833 = vmatpush1.msra.mxu0 %v4137
    %5834 = vmatprep.subr.mxu0 %v4130
    %5835 = vmatpush1.msra.mxu0 %v4129
    %5836 = vmatprep.subr.mxu0 %v4122
    %5837 = vmatpush1.msra.mxu0 %v4121
    %5838 = vmatprep.subr.mxu0 %v4114
    %5839 = vmatpush1.msra.mxu0 %v4113
    %5840 = vmatprep.subr.mxu0 %v4106
    %5841 = vmatpush1.msra.mxu0 %v4105
    %5842 = vmatprep.subr.mxu0 %v4098
    %5843 = vmatpush1.msra.mxu0 %v4097
    %5844 = vmatprep.subr.mxu0 %v4090
    %5845 = vmatpush1.msra.mxu0 %v4089
    %5846 = vmatprep.subr.mxu0 %v4082
    %5847 = vmatpush1.msra.mxu0 %v4081
    %5848 = vmatprep.subr.mxu0 %v4074
    %5849 = vmatpush1.msra.mxu0 %v4073
    %5850 = vmatprep.subr.mxu0 %v4066
    %5851 = vmatpush1.msra.mxu0 %v4065
    %5852 = vmatprep.subr.mxu0 %v4058
    %5853 = vmatpush1.msra.mxu0 %v4057
    %5854 = vmatprep.subr.mxu0 %v4306
    %5855 = vmatpush2.msra.mxu0 %v4305
    %5856 = vmatprep.subr.mxu0 %v4298
    %5857 = vmatpush2.msra.mxu0 %v4297
    %5858 = vmatprep.subr.mxu0 %v4290
    %5859 = vmatpush2.msra.mxu0 %v4289
    %5860 = vmatprep.subr.mxu0 %v4282
    %5861 = vmatpush2.msra.mxu0 %v4281
    %5862 = vmatprep.subr.mxu0 %v4274
    %5863 = vmatpush2.msra.mxu0 %v4273
    %5864 = vmatprep.subr.mxu0 %v4266
    %5865 = vmatpush2.msra.mxu0 %v4265
    %5866 = vmatprep.subr.mxu0 %v4258
    %5867 = vmatpush2.msra.mxu0 %v4257
    %5868 = vmatprep.subr.mxu0 %v4250
    %5869 = vmatpush2.msra.mxu0 %v4249
    %5870 = vmatprep.subr.mxu0 %v4242
    %5871 = vmatpush2.msra.mxu0 %v4241
    %5872 = vmatprep.subr.mxu0 %v4234
    %5873 = vmatpush2.msra.mxu0 %v4233
    %5874 = vmatprep.subr.mxu0 %v4226
    %5875 = vmatpush2.msra.mxu0 %v4225
    %5876 = vmatprep.subr.mxu0 %v4218
    %5877 = vmatpush2.msra.mxu0 %v4217
    %5878 = vmatprep.subr.mxu0 %v4210
    %5879 = vmatpush2.msra.mxu0 %v4209
    %5880 = vmatprep.subr.mxu0 %v4202
    %5881 = vmatpush2.msra.mxu0 %v4201
    %5882 = vmatprep.subr.mxu0 %v4194
    %5883 = vmatpush2.msra.mxu0 %v4193
    %5884 = vmatprep.subr.mxu0 %v4186
    %5885 = vmatpush2.msra.mxu0 %v4185
    %5886 = vmatprep.mubr.f32.mxu0 %v5811
    %5887 = vmatmul.mubr.f32.gmra.mxu0 %v5820
    %v5888 = vpop.f32.mrf.mxu0
    %v5889 = vadd.f32 0.0, %v5888
    %v5890 = vpop.f32.mrf.mxu0
    %v5891 = vadd.f32 0.0, %v5890
    %5892 = vdwg.mxu0
    %5893 = vmatprep.subr.mxu0 %v4180
    %5894 = vmatpush1.msra.mxu0 %v4179
    %5895 = vmatprep.subr.mxu0 %v4172
    %5896 = vmatpush1.msra.mxu0 %v4171
    %5897 = vmatprep.subr.mxu0 %v4164
    %5898 = vmatpush1.msra.mxu0 %v4163
    %5899 = vmatprep.subr.mxu0 %v4156
    %5900 = vmatpush1.msra.mxu0 %v4155
    %5901 = vmatprep.subr.mxu0 %v4148
    %5902 = vmatpush1.msra.mxu0 %v4147
    %5903 = vmatprep.subr.mxu0 %v4140
    %5904 = vmatpush1.msra.mxu0 %v4139
    %5905 = vmatprep.subr.mxu0 %v4132
    %5906 = vmatpush1.msra.mxu0 %v4131
    %5907 = vmatprep.subr.mxu0 %v4124
    %5908 = vmatpush1.msra.mxu0 %v4123
    %5909 = vmatprep.subr.mxu0 %v4116
    %5910 = vmatpush1.msra.mxu0 %v4115
    %5911 = vmatprep.subr.mxu0 %v4108
    %5912 = vmatpush1.msra.mxu0 %v4107
    %5913 = vmatprep.subr.mxu0 %v4100
    %5914 = vmatpush1.msra.mxu0 %v4099
    %5915 = vmatprep.subr.mxu0 %v4092
    %5916 = vmatpush1.msra.mxu0 %v4091
    %5917 = vmatprep.subr.mxu0 %v4084
    %5918 = vmatpush1.msra.mxu0 %v4083
    %5919 = vmatprep.subr.mxu0 %v4076
    %5920 = vmatpush1.msra.mxu0 %v4075
    %5921 = vmatprep.subr.mxu0 %v4068
    %5922 = vmatpush1.msra.mxu0 %v4067
    %5923 = vmatprep.subr.mxu0 %v4060
    %5924 = vmatpush1.msra.mxu0 %v4059
    %5925 = vmatprep.subr.mxu0 %v4308
    %5926 = vmatpush2.msra.mxu0 %v4307
    %5927 = vmatprep.subr.mxu0 %v4300
    %5928 = vmatpush2.msra.mxu0 %v4299
    %5929 = vmatprep.subr.mxu0 %v4292
    %5930 = vmatpush2.msra.mxu0 %v4291
    %5931 = vmatprep.subr.mxu0 %v4284
    %5932 = vmatpush2.msra.mxu0 %v4283
    %5933 = vmatprep.subr.mxu0 %v4276
    %5934 = vmatpush2.msra.mxu0 %v4275
    %5935 = vmatprep.subr.mxu0 %v4268
    %5936 = vmatpush2.msra.mxu0 %v4267
    %5937 = vmatprep.subr.mxu0 %v4260
    %5938 = vmatpush2.msra.mxu0 %v4259
    %5939 = vmatprep.subr.mxu0 %v4252
    %5940 = vmatpush2.msra.mxu0 %v4251
    %5941 = vmatprep.subr.mxu0 %v4244
    %5942 = vmatpush2.msra.mxu0 %v4243
    %5943 = vmatprep.subr.mxu0 %v4236
    %5944 = vmatpush2.msra.mxu0 %v4235
    %5945 = vmatprep.subr.mxu0 %v4228
    %5946 = vmatpush2.msra.mxu0 %v4227
    %5947 = vmatprep.subr.mxu0 %v4220
    %5948 = vmatpush2.msra.mxu0 %v4219
    %5949 = vmatprep.subr.mxu0 %v4212
    %5950 = vmatpush2.msra.mxu0 %v4211
    %5951 = vmatprep.subr.mxu0 %v4204
    %5952 = vmatpush2.msra.mxu0 %v4203
    %5953 = vmatprep.subr.mxu0 %v4196
    %5954 = vmatpush2.msra.mxu0 %v4195
    %5955 = vmatprep.subr.mxu0 %v4188
    %5956 = vmatpush2.msra.mxu0 %v4187
    %5957 = vmatprep.mubr.f32.mxu0 %v5811
    %5958 = vmatmul.mubr.f32.gmra.mxu0 %v5820
    %v5959 = vpop.f32.mrf.mxu0
    %v5960 = vadd.f32 0.0, %v5959
    %v5961 = vpop.f32.mrf.mxu0
    %v5962 = vadd.f32 0.0, %v5961
    %5963 = vdwg.mxu0
    %5964 = vmatprep.subr.mxu0 %v4182
    %5965 = vmatpush1.msra.mxu0 %v4181
    %5966 = vmatprep.subr.mxu0 %v4174
    %5967 = vmatpush1.msra.mxu0 %v4173
    %5968 = vmatprep.subr.mxu0 %v4166
    %5969 = vmatpush1.msra.mxu0 %v4165
    %5970 = vmatprep.subr.mxu0 %v4158
    %5971 = vmatpush1.msra.mxu0 %v4157
    %5972 = vmatprep.subr.mxu0 %v4150
    %5973 = vmatpush1.msra.mxu0 %v4149
    %5974 = vmatprep.subr.mxu0 %v4142
    %5975 = vmatpush1.msra.mxu0 %v4141
    %5976 = vmatprep.subr.mxu0 %v4134
    %5977 = vmatpush1.msra.mxu0 %v4133
    %5978 = vmatprep.subr.mxu0 %v4126
    %5979 = vmatpush1.msra.mxu0 %v4125
    %5980 = vmatprep.subr.mxu0 %v4118
    %5981 = vmatpush1.msra.mxu0 %v4117
    %5982 = vmatprep.subr.mxu0 %v4110
    %5983 = vmatpush1.msra.mxu0 %v4109
    %5984 = vmatprep.subr.mxu0 %v4102
    %5985 = vmatpush1.msra.mxu0 %v4101
    %5986 = vmatprep.subr.mxu0 %v4094
    %5987 = vmatpush1.msra.mxu0 %v4093
    %5988 = vmatprep.subr.mxu0 %v4086
    %5989 = vmatpush1.msra.mxu0 %v4085
    %5990 = vmatprep.subr.mxu0 %v4078
    %5991 = vmatpush1.msra.mxu0 %v4077
    %5992 = vmatprep.subr.mxu0 %v4070
    %5993 = vmatpush1.msra.mxu0 %v4069
    %5994 = vmatprep.subr.mxu0 %v4062
    %5995 = vmatpush1.msra.mxu0 %v4061
    %5996 = vmatprep.subr.mxu0 %v4310
    %5997 = vmatpush2.msra.mxu0 %v4309
    %5998 = vmatprep.subr.mxu0 %v4302
    %5999 = vmatpush2.msra.mxu0 %v4301
    %6000 = vmatprep.subr.mxu0 %v4294
    %6001 = vmatpush2.msra.mxu0 %v4293
    %6002 = vmatprep.subr.mxu0 %v4286
    %6003 = vmatpush2.msra.mxu0 %v4285
    %6004 = vmatprep.subr.mxu0 %v4278
    %6005 = vmatpush2.msra.mxu0 %v4277
    %6006 = vmatprep.subr.mxu0 %v4270
    %6007 = vmatpush2.msra.mxu0 %v4269
    %6008 = vmatprep.subr.mxu0 %v4262
    %6009 = vmatpush2.msra.mxu0 %v4261
    %6010 = vmatprep.subr.mxu0 %v4254
    %6011 = vmatpush2.msra.mxu0 %v4253
    %6012 = vmatprep.subr.mxu0 %v4246
    %6013 = vmatpush2.msra.mxu0 %v4245
    %6014 = vmatprep.subr.mxu0 %v4238
    %6015 = vmatpush2.msra.mxu0 %v4237
    %6016 = vmatprep.subr.mxu0 %v4230
    %6017 = vmatpush2.msra.mxu0 %v4229
    %6018 = vmatprep.subr.mxu0 %v4222
    %6019 = vmatpush2.msra.mxu0 %v4221
    %6020 = vmatprep.subr.mxu0 %v4214
    %6021 = vmatpush2.msra.mxu0 %v4213
    %6022 = vmatprep.subr.mxu0 %v4206
    %6023 = vmatpush2.msra.mxu0 %v4205
    %6024 = vmatprep.subr.mxu0 %v4198
    %6025 = vmatpush2.msra.mxu0 %v4197
    %6026 = vmatprep.subr.mxu0 %v4190
    %6027 = vmatpush2.msra.mxu0 %v4189
    %6028 = vmatprep.mubr.f32.mxu0 %v5811
    %6029 = vmatmul.mubr.f32.gmra.mxu0 %v5820
    %v6030 = vpop.f32.mrf.mxu0
    %v6031 = vadd.f32 0.0, %v6030
    %v6032 = vpop.f32.mrf.mxu0
    %v6033 = vadd.f32 0.0, %v6032
    %6034 = vdwg.mxu0
    %6035 = vmatprep.subr.mxu0 %v4184
    %6036 = vmatpush1.msra.mxu0 %v4183
    %6037 = vmatprep.subr.mxu0 %v4176
    %6038 = vmatpush1.msra.mxu0 %v4175
    %6039 = vmatprep.subr.mxu0 %v4168
    %6040 = vmatpush1.msra.mxu0 %v4167
    %6041 = vmatprep.subr.mxu0 %v4160
    %6042 = vmatpush1.msra.mxu0 %v4159
    %6043 = vmatprep.subr.mxu0 %v4152
    %6044 = vmatpush1.msra.mxu0 %v4151
    %6045 = vmatprep.subr.mxu0 %v4144
    %6046 = vmatpush1.msra.mxu0 %v4143
    %6047 = vmatprep.subr.mxu0 %v4136
    %6048 = vmatpush1.msra.mxu0 %v4135
    %6049 = vmatprep.subr.mxu0 %v4128
    %6050 = vmatpush1.msra.mxu0 %v4127
    %6051 = vmatprep.subr.mxu0 %v4120
    %6052 = vmatpush1.msra.mxu0 %v4119
    %6053 = vmatprep.subr.mxu0 %v4112
    %6054 = vmatpush1.msra.mxu0 %v4111
    %6055 = vmatprep.subr.mxu0 %v4104
    %6056 = vmatpush1.msra.mxu0 %v4103
    %6057 = vmatprep.subr.mxu0 %v4096
    %6058 = vmatpush1.msra.mxu0 %v4095
    %6059 = vmatprep.subr.mxu0 %v4088
    %6060 = vmatpush1.msra.mxu0 %v4087
    %6061 = vmatprep.subr.mxu0 %v4080
    %6062 = vmatpush1.msra.mxu0 %v4079
    %6063 = vmatprep.subr.mxu0 %v4072
    %6064 = vmatpush1.msra.mxu0 %v4071
    %6065 = vmatprep.subr.mxu0 %v4064
    %6066 = vmatpush1.msra.mxu0 %v4063
    %6067 = vmatprep.subr.mxu0 %v4312
    %6068 = vmatpush2.msra.mxu0 %v4311
    %6069 = vmatprep.subr.mxu0 %v4304
    %6070 = vmatpush2.msra.mxu0 %v4303
    %6071 = vmatprep.subr.mxu0 %v4296
    %6072 = vmatpush2.msra.mxu0 %v4295
    %6073 = vmatprep.subr.mxu0 %v4288
    %6074 = vmatpush2.msra.mxu0 %v4287
    %6075 = vmatprep.subr.mxu0 %v4280
    %6076 = vmatpush2.msra.mxu0 %v4279
    %6077 = vmatprep.subr.mxu0 %v4272
    %6078 = vmatpush2.msra.mxu0 %v4271
    %6079 = vmatprep.subr.mxu0 %v4264
    %6080 = vmatpush2.msra.mxu0 %v4263
    %6081 = vmatprep.subr.mxu0 %v4256
    %6082 = vmatpush2.msra.mxu0 %v4255
    %6083 = vmatprep.subr.mxu0 %v4248
    %6084 = vmatpush2.msra.mxu0 %v4247
    %6085 = vmatprep.subr.mxu0 %v4240
    %6086 = vmatpush2.msra.mxu0 %v4239
    %6087 = vmatprep.subr.mxu0 %v4232
    %6088 = vmatpush2.msra.mxu0 %v4231
    %6089 = vmatprep.subr.mxu0 %v4224
    %6090 = vmatpush2.msra.mxu0 %v4223
    %6091 = vmatprep.subr.mxu0 %v4216
    %6092 = vmatpush2.msra.mxu0 %v4215
    %6093 = vmatprep.subr.mxu0 %v4208
    %6094 = vmatpush2.msra.mxu0 %v4207
    %6095 = vmatprep.subr.mxu0 %v4200
    %6096 = vmatpush2.msra.mxu0 %v4199
    %6097 = vmatprep.subr.mxu0 %v4192
    %6098 = vmatpush2.msra.mxu0 %v4191
    %6099 = vmatprep.mubr.f32.mxu0 %v5811
    %6100 = vmatmul.mubr.f32.gmra.mxu0 %v5820
    %v6101 = vpop.f32.mrf.mxu0
    %v6102 = vadd.f32 0.0, %v6101
    %v6103 = vpop.f32.mrf.mxu0
    %v6104 = vadd.f32 0.0, %v6103
    %6105 = vdwg.mxu0
    %v6114 = vcombine.low %v5889, %v5891
    %v6115 = vcombine.low %v5960, %v5962
    %v6116 = vcombine.low %v6031, %v6033
    %v6117 = vcombine.low %v6102, %v6104
    %v6119 = vunpack.c.l.s4 1966171168
    %v6120 = vunpack.c.0.s8 %v6119
    %v6121 = vlaneseq
    %v6122 = vshrl.u32 %v6121, 7
    %v6123 = vsub.s32 %v6120, %v6122
    %v6124 = vrot.slane %v6114, %v6123
    %v6126 = vunpack.c.l.s4 1966171168
    %v6127 = vunpack.c.0.s8 %v6126
    %v6128 = vlaneseq
    %v6129 = vshrl.u32 %v6128, 7
    %v6130 = vsub.s32 %v6127, %v6129
    %v6131 = vrot.slane %v6115, %v6130
    %v6133 = vunpack.c.l.s4 1966171168
    %v6134 = vunpack.c.0.s8 %v6133
    %v6135 = vlaneseq
    %v6136 = vshrl.u32 %v6135, 7
    %v6137 = vsub.s32 %v6134, %v6136
    %v6138 = vrot.slane %v6116, %v6137
    %v6140 = vunpack.c.l.s4 1966171168
    %v6141 = vunpack.c.0.s8 %v6140
    %v6142 = vlaneseq
    %v6143 = vshrl.u32 %v6142, 7
    %v6144 = vsub.s32 %v6141, %v6143
    %v6145 = vrot.slane %v6117, %v6144
    %v6146 = vcombine.low %v6124, %v6131
    %v6147 = vcombine.low %v6138, %v6145
    %v6149 = vunpack.c.l.s4 1966171168
    %v6150 = vunpack.c.0.s8 %v6149
    %v6151 = vlaneseq
    %v6152 = vshrl.u32 %v6151, 7
    %v6153 = vsub.s32 %v6150, %v6152
    %v6154 = vrot.slane %v6146, %v6153
    %v6156 = vunpack.c.l.s4 1966171168
    %v6157 = vunpack.c.0.s8 %v6156
    %v6158 = vlaneseq
    %v6159 = vshrl.u32 %v6158, 7
    %v6160 = vsub.s32 %v6157, %v6159
    %v6161 = vrot.slane %v6147, %v6160
    %v6162 = vcombine.low %v6154, %v6161
    %v6164 = vadd.f32 %v5816, %v6162
    %v6165 = vxor.u32 %v6164, 2147483648
    %v6166 = vmul.f32 %v6165, 1.442695
    %v6167 = vpow.pop %v6166
    %v6168 = vadd.f32 %v6167, 1.0
    %v6169 = vrcp.pop %v6168
    %v6170 = vmul.f32 1.0, %v6169
    %v6172 = vrot.slane %v6164, 2
    %v6174 = vxor.u32 %v6172, 2147483648
    %v6175 = vmul.f32 %v6174, 1.442695
    %v6176 = vpow.pop %v6175
    %v6177 = vadd.f32 %v6176, 1.0
    %v6178 = vrcp.pop %v6177
    %v6179 = vmul.f32 1.0, %v6178
    %v6180 = vrot.slane %v6164, 4
    %v6182 = vtanh.pop %v6180
    %v6183 = vrot.slane %v6164, 6
    %v6185 = vxor.u32 %v6183, 2147483648
    %v6186 = vmul.f32 %v6185, 1.442695
    %v6187 = vpow.pop %v6186
    %v6188 = vadd.f32 %v6187, 1.0
    %v6189 = vrcp.pop %v6188
    %v6190 = vmul.f32 1.0, %v6189
    %v6191 = vmul.f32 %v6179, %v5803
    %v6192 = vmul.f32 %v6170, %v6182
    %v6193 = vadd.f32 %v6191, %v6192
    %v6194 = vtanh.pop %v6193
    %v6195 = vmul.f32 %v6190, %v6194
    %6196 = vst [vmem:[#allocation19 + $0x3] sm:$0x1] %v6195
    %v6198 = vlaneseq
    %v6199 = vshrl.u32 %v6198, 7
    %v6200 = vsub.s32 1, %v6199
    %v6201 = vrot.slane %v6195, %v6200
    %6203 = vst [vmem:[#allocation19 + $0xc] sm:$0x1] %v6201
    %v6204 = vld [vmem:[%s2357] ss:$8 sm:$0xf]
    %v6205 = vld [vmem:[%s2357] ss:$8 sm:$0xf0]
    %v6206 = vor.u32 %v6204, %v6205
    %v6207 = vlaneseq
    %v6208 = vshrl.u32 %v6207, 7
    %v6209 = vsub.s32 0, %v6208
    %v6210 = vrot.slane %v6195, %v6209
    %6212 = vmatprep.subr.mxu0 %v4178
    %6213 = vmatpush1.msra.mxu0 %v4177
    %6214 = vmatprep.subr.mxu0 %v4170
    %6215 = vmatpush1.msra.mxu0 %v4169
    %6216 = vmatprep.subr.mxu0 %v4162
    %6217 = vmatpush1.msra.mxu0 %v4161
    %6218 = vmatprep.subr.mxu0 %v4154
    %6219 = vmatpush1.msra.mxu0 %v4153
    %6220 = vmatprep.subr.mxu0 %v4146
    %6221 = vmatpush1.msra.mxu0 %v4145
    %6222 = vmatprep.subr.mxu0 %v4138
    %6223 = vmatpush1.msra.mxu0 %v4137
    %6224 = vmatprep.subr.mxu0 %v4130
    %6225 = vmatpush1.msra.mxu0 %v4129
    %6226 = vmatprep.subr.mxu0 %v4122
    %6227 = vmatpush1.msra.mxu0 %v4121
    %6228 = vmatprep.subr.mxu0 %v4114
    %6229 = vmatpush1.msra.mxu0 %v4113
    %6230 = vmatprep.subr.mxu0 %v4106
    %6231 = vmatpush1.msra.mxu0 %v4105
    %6232 = vmatprep.subr.mxu0 %v4098
    %6233 = vmatpush1.msra.mxu0 %v4097
    %6234 = vmatprep.subr.mxu0 %v4090
    %6235 = vmatpush1.msra.mxu0 %v4089
    %6236 = vmatprep.subr.mxu0 %v4082
    %6237 = vmatpush1.msra.mxu0 %v4081
    %6238 = vmatprep.subr.mxu0 %v4074
    %6239 = vmatpush1.msra.mxu0 %v4073
    %6240 = vmatprep.subr.mxu0 %v4066
    %6241 = vmatpush1.msra.mxu0 %v4065
    %6242 = vmatprep.subr.mxu0 %v4058
    %6243 = vmatpush1.msra.mxu0 %v4057
    %6244 = vmatprep.subr.mxu0 %v4306
    %6245 = vmatpush2.msra.mxu0 %v4305
    %6246 = vmatprep.subr.mxu0 %v4298
    %6247 = vmatpush2.msra.mxu0 %v4297
    %6248 = vmatprep.subr.mxu0 %v4290
    %6249 = vmatpush2.msra.mxu0 %v4289
    %6250 = vmatprep.subr.mxu0 %v4282
    %6251 = vmatpush2.msra.mxu0 %v4281
    %6252 = vmatprep.subr.mxu0 %v4274
    %6253 = vmatpush2.msra.mxu0 %v4273
    %6254 = vmatprep.subr.mxu0 %v4266
    %6255 = vmatpush2.msra.mxu0 %v4265
    %6256 = vmatprep.subr.mxu0 %v4258
    %6257 = vmatpush2.msra.mxu0 %v4257
    %6258 = vmatprep.subr.mxu0 %v4250
    %6259 = vmatpush2.msra.mxu0 %v4249
    %6260 = vmatprep.subr.mxu0 %v4242
    %6261 = vmatpush2.msra.mxu0 %v4241
    %6262 = vmatprep.subr.mxu0 %v4234
    %6263 = vmatpush2.msra.mxu0 %v4233
    %6264 = vmatprep.subr.mxu0 %v4226
    %6265 = vmatpush2.msra.mxu0 %v4225
    %6266 = vmatprep.subr.mxu0 %v4218
    %6267 = vmatpush2.msra.mxu0 %v4217
    %6268 = vmatprep.subr.mxu0 %v4210
    %6269 = vmatpush2.msra.mxu0 %v4209
    %6270 = vmatprep.subr.mxu0 %v4202
    %6271 = vmatpush2.msra.mxu0 %v4201
    %6272 = vmatprep.subr.mxu0 %v4194
    %6273 = vmatpush2.msra.mxu0 %v4193
    %6274 = vmatprep.subr.mxu0 %v4186
    %6275 = vmatpush2.msra.mxu0 %v4185
    %6276 = vmatprep.mubr.f32.mxu0 %v6201
    %6277 = vmatmul.mubr.f32.gmra.mxu0 %v6210
    %v6278 = vpop.f32.mrf.mxu0
    %v6279 = vadd.f32 0.0, %v6278
    %v6280 = vpop.f32.mrf.mxu0
    %v6281 = vadd.f32 0.0, %v6280
    %6282 = vdwg.mxu0
    %6283 = vmatprep.subr.mxu0 %v4180
    %6284 = vmatpush1.msra.mxu0 %v4179
    %6285 = vmatprep.subr.mxu0 %v4172
    %6286 = vmatpush1.msra.mxu0 %v4171
    %6287 = vmatprep.subr.mxu0 %v4164
    %6288 = vmatpush1.msra.mxu0 %v4163
    %6289 = vmatprep.subr.mxu0 %v4156
    %6290 = vmatpush1.msra.mxu0 %v4155
    %6291 = vmatprep.subr.mxu0 %v4148
    %6292 = vmatpush1.msra.mxu0 %v4147
    %6293 = vmatprep.subr.mxu0 %v4140
    %6294 = vmatpush1.msra.mxu0 %v4139
    %6295 = vmatprep.subr.mxu0 %v4132
    %6296 = vmatpush1.msra.mxu0 %v4131
    %6297 = vmatprep.subr.mxu0 %v4124
    %6298 = vmatpush1.msra.mxu0 %v4123
    %6299 = vmatprep.subr.mxu0 %v4116
    %6300 = vmatpush1.msra.mxu0 %v4115
    %6301 = vmatprep.subr.mxu0 %v4108
    %6302 = vmatpush1.msra.mxu0 %v4107
    %6303 = vmatprep.subr.mxu0 %v4100
    %6304 = vmatpush1.msra.mxu0 %v4099
    %6305 = vmatprep.subr.mxu0 %v4092
    %6306 = vmatpush1.msra.mxu0 %v4091
    %6307 = vmatprep.subr.mxu0 %v4084
    %6308 = vmatpush1.msra.mxu0 %v4083
    %6309 = vmatprep.subr.mxu0 %v4076
    %6310 = vmatpush1.msra.mxu0 %v4075
    %6311 = vmatprep.subr.mxu0 %v4068
    %6312 = vmatpush1.msra.mxu0 %v4067
    %6313 = vmatprep.subr.mxu0 %v4060
    %6314 = vmatpush1.msra.mxu0 %v4059
    %6315 = vmatprep.subr.mxu0 %v4308
    %6316 = vmatpush2.msra.mxu0 %v4307
    %6317 = vmatprep.subr.mxu0 %v4300
    %6318 = vmatpush2.msra.mxu0 %v4299
    %6319 = vmatprep.subr.mxu0 %v4292
    %6320 = vmatpush2.msra.mxu0 %v4291
    %6321 = vmatprep.subr.mxu0 %v4284
    %6322 = vmatpush2.msra.mxu0 %v4283
    %6323 = vmatprep.subr.mxu0 %v4276
    %6324 = vmatpush2.msra.mxu0 %v4275
    %6325 = vmatprep.subr.mxu0 %v4268
    %6326 = vmatpush2.msra.mxu0 %v4267
    %6327 = vmatprep.subr.mxu0 %v4260
    %6328 = vmatpush2.msra.mxu0 %v4259
    %6329 = vmatprep.subr.mxu0 %v4252
    %6330 = vmatpush2.msra.mxu0 %v4251
    %6331 = vmatprep.subr.mxu0 %v4244
    %6332 = vmatpush2.msra.mxu0 %v4243
    %6333 = vmatprep.subr.mxu0 %v4236
    %6334 = vmatpush2.msra.mxu0 %v4235
    %6335 = vmatprep.subr.mxu0 %v4228
    %6336 = vmatpush2.msra.mxu0 %v4227
    %6337 = vmatprep.subr.mxu0 %v4220
    %6338 = vmatpush2.msra.mxu0 %v4219
    %6339 = vmatprep.subr.mxu0 %v4212
    %6340 = vmatpush2.msra.mxu0 %v4211
    %6341 = vmatprep.subr.mxu0 %v4204
    %6342 = vmatpush2.msra.mxu0 %v4203
    %6343 = vmatprep.subr.mxu0 %v4196
    %6344 = vmatpush2.msra.mxu0 %v4195
    %6345 = vmatprep.subr.mxu0 %v4188
    %6346 = vmatpush2.msra.mxu0 %v4187
    %6347 = vmatprep.mubr.f32.mxu0 %v6201
    %6348 = vmatmul.mubr.f32.gmra.mxu0 %v6210
    %v6349 = vpop.f32.mrf.mxu0
    %v6350 = vadd.f32 0.0, %v6349
    %v6351 = vpop.f32.mrf.mxu0
    %v6352 = vadd.f32 0.0, %v6351
    %6353 = vdwg.mxu0
    %6354 = vmatprep.subr.mxu0 %v4182
    %6355 = vmatpush1.msra.mxu0 %v4181
    %6356 = vmatprep.subr.mxu0 %v4174
    %6357 = vmatpush1.msra.mxu0 %v4173
    %6358 = vmatprep.subr.mxu0 %v4166
    %6359 = vmatpush1.msra.mxu0 %v4165
    %6360 = vmatprep.subr.mxu0 %v4158
    %6361 = vmatpush1.msra.mxu0 %v4157
    %6362 = vmatprep.subr.mxu0 %v4150
    %6363 = vmatpush1.msra.mxu0 %v4149
    %6364 = vmatprep.subr.mxu0 %v4142
    %6365 = vmatpush1.msra.mxu0 %v4141
    %6366 = vmatprep.subr.mxu0 %v4134
    %6367 = vmatpush1.msra.mxu0 %v4133
    %6368 = vmatprep.subr.mxu0 %v4126
    %6369 = vmatpush1.msra.mxu0 %v4125
    %6370 = vmatprep.subr.mxu0 %v4118
    %6371 = vmatpush1.msra.mxu0 %v4117
    %6372 = vmatprep.subr.mxu0 %v4110
    %6373 = vmatpush1.msra.mxu0 %v4109
    %6374 = vmatprep.subr.mxu0 %v4102
    %6375 = vmatpush1.msra.mxu0 %v4101
    %6376 = vmatprep.subr.mxu0 %v4094
    %6377 = vmatpush1.msra.mxu0 %v4093
    %6378 = vmatprep.subr.mxu0 %v4086
    %6379 = vmatpush1.msra.mxu0 %v4085
    %6380 = vmatprep.subr.mxu0 %v4078
    %6381 = vmatpush1.msra.mxu0 %v4077
    %6382 = vmatprep.subr.mxu0 %v4070
    %6383 = vmatpush1.msra.mxu0 %v4069
    %6384 = vmatprep.subr.mxu0 %v4062
    %6385 = vmatpush1.msra.mxu0 %v4061
    %6386 = vmatprep.subr.mxu0 %v4310
    %6387 = vmatpush2.msra.mxu0 %v4309
    %6388 = vmatprep.subr.mxu0 %v4302
    %6389 = vmatpush2.msra.mxu0 %v4301
    %6390 = vmatprep.subr.mxu0 %v4294
    %6391 = vmatpush2.msra.mxu0 %v4293
    %6392 = vmatprep.subr.mxu0 %v4286
    %6393 = vmatpush2.msra.mxu0 %v4285
    %6394 = vmatprep.subr.mxu0 %v4278
    %6395 = vmatpush2.msra.mxu0 %v4277
    %6396 = vmatprep.subr.mxu0 %v4270
    %6397 = vmatpush2.msra.mxu0 %v4269
    %6398 = vmatprep.subr.mxu0 %v4262
    %6399 = vmatpush2.msra.mxu0 %v4261
    %6400 = vmatprep.subr.mxu0 %v4254
    %6401 = vmatpush2.msra.mxu0 %v4253
    %6402 = vmatprep.subr.mxu0 %v4246
    %6403 = vmatpush2.msra.mxu0 %v4245
    %6404 = vmatprep.subr.mxu0 %v4238
    %6405 = vmatpush2.msra.mxu0 %v4237
    %6406 = vmatprep.subr.mxu0 %v4230
    %6407 = vmatpush2.msra.mxu0 %v4229
    %6408 = vmatprep.subr.mxu0 %v4222
    %6409 = vmatpush2.msra.mxu0 %v4221
    %6410 = vmatprep.subr.mxu0 %v4214
    %6411 = vmatpush2.msra.mxu0 %v4213
    %6412 = vmatprep.subr.mxu0 %v4206
    %6413 = vmatpush2.msra.mxu0 %v4205
    %6414 = vmatprep.subr.mxu0 %v4198
    %6415 = vmatpush2.msra.mxu0 %v4197
    %6416 = vmatprep.subr.mxu0 %v4190
    %6417 = vmatpush2.msra.mxu0 %v4189
    %6418 = vmatprep.mubr.f32.mxu0 %v6201
    %6419 = vmatmul.mubr.f32.gmra.mxu0 %v6210
    %v6420 = vpop.f32.mrf.mxu0
    %v6421 = vadd.f32 0.0, %v6420
    %v6422 = vpop.f32.mrf.mxu0
    %v6423 = vadd.f32 0.0, %v6422
    %6424 = vdwg.mxu0
    %6425 = vmatprep.subr.mxu0 %v4184
    %6426 = vmatpush1.msra.mxu0 %v4183
    %6427 = vmatprep.subr.mxu0 %v4176
    %6428 = vmatpush1.msra.mxu0 %v4175
    %6429 = vmatprep.subr.mxu0 %v4168
    %6430 = vmatpush1.msra.mxu0 %v4167
    %6431 = vmatprep.subr.mxu0 %v4160
    %6432 = vmatpush1.msra.mxu0 %v4159
    %6433 = vmatprep.subr.mxu0 %v4152
    %6434 = vmatpush1.msra.mxu0 %v4151
    %6435 = vmatprep.subr.mxu0 %v4144
    %6436 = vmatpush1.msra.mxu0 %v4143
    %6437 = vmatprep.subr.mxu0 %v4136
    %6438 = vmatpush1.msra.mxu0 %v4135
    %6439 = vmatprep.subr.mxu0 %v4128
    %6440 = vmatpush1.msra.mxu0 %v4127
    %6441 = vmatprep.subr.mxu0 %v4120
    %6442 = vmatpush1.msra.mxu0 %v4119
    %6443 = vmatprep.subr.mxu0 %v4112
    %6444 = vmatpush1.msra.mxu0 %v4111
    %6445 = vmatprep.subr.mxu0 %v4104
    %6446 = vmatpush1.msra.mxu0 %v4103
    %6447 = vmatprep.subr.mxu0 %v4096
    %6448 = vmatpush1.msra.mxu0 %v4095
    %6449 = vmatprep.subr.mxu0 %v4088
    %6450 = vmatpush1.msra.mxu0 %v4087
    %6451 = vmatprep.subr.mxu0 %v4080
    %6452 = vmatpush1.msra.mxu0 %v4079
    %6453 = vmatprep.subr.mxu0 %v4072
    %6454 = vmatpush1.msra.mxu0 %v4071
    %6455 = vmatprep.subr.mxu0 %v4064
    %6456 = vmatpush1.msra.mxu0 %v4063
    %6457 = vmatprep.subr.mxu0 %v4312
    %6458 = vmatpush2.msra.mxu0 %v4311
    %6459 = vmatprep.subr.mxu0 %v4304
    %6460 = vmatpush2.msra.mxu0 %v4303
    %6461 = vmatprep.subr.mxu0 %v4296
    %6462 = vmatpush2.msra.mxu0 %v4295
    %6463 = vmatprep.subr.mxu0 %v4288
    %6464 = vmatpush2.msra.mxu0 %v4287
    %6465 = vmatprep.subr.mxu0 %v4280
    %6466 = vmatpush2.msra.mxu0 %v4279
    %6467 = vmatprep.subr.mxu0 %v4272
    %6468 = vmatpush2.msra.mxu0 %v4271
    %6469 = vmatprep.subr.mxu0 %v4264
    %6470 = vmatpush2.msra.mxu0 %v4263
    %6471 = vmatprep.subr.mxu0 %v4256
    %6472 = vmatpush2.msra.mxu0 %v4255
    %6473 = vmatprep.subr.mxu0 %v4248
    %6474 = vmatpush2.msra.mxu0 %v4247
    %6475 = vmatprep.subr.mxu0 %v4240
    %6476 = vmatpush2.msra.mxu0 %v4239
    %6477 = vmatprep.subr.mxu0 %v4232
    %6478 = vmatpush2.msra.mxu0 %v4231
    %6479 = vmatprep.subr.mxu0 %v4224
    %6480 = vmatpush2.msra.mxu0 %v4223
    %6481 = vmatprep.subr.mxu0 %v4216
    %6482 = vmatpush2.msra.mxu0 %v4215
    %6483 = vmatprep.subr.mxu0 %v4208
    %6484 = vmatpush2.msra.mxu0 %v4207
    %6485 = vmatprep.subr.mxu0 %v4200
    %6486 = vmatpush2.msra.mxu0 %v4199
    %6487 = vmatprep.subr.mxu0 %v4192
    %6488 = vmatpush2.msra.mxu0 %v4191
    %6489 = vmatprep.mubr.f32.mxu0 %v6201
    %6490 = vmatmul.mubr.f32.gmra.mxu0 %v6210
    %v6491 = vpop.f32.mrf.mxu0
    %v6492 = vadd.f32 0.0, %v6491
    %v6493 = vpop.f32.mrf.mxu0
    %v6494 = vadd.f32 0.0, %v6493
    %6495 = vdwg.mxu0
    %v6504 = vcombine.low %v6279, %v6281
    %v6505 = vcombine.low %v6350, %v6352
    %v6506 = vcombine.low %v6421, %v6423
    %v6507 = vcombine.low %v6492, %v6494
    %v6509 = vunpack.c.l.s4 1966171168
    %v6510 = vunpack.c.0.s8 %v6509
    %v6511 = vlaneseq
    %v6512 = vshrl.u32 %v6511, 7
    %v6513 = vsub.s32 %v6510, %v6512
    %v6514 = vrot.slane %v6504, %v6513
    %v6516 = vunpack.c.l.s4 1966171168
    %v6517 = vunpack.c.0.s8 %v6516
    %v6518 = vlaneseq
    %v6519 = vshrl.u32 %v6518, 7
    %v6520 = vsub.s32 %v6517, %v6519
    %v6521 = vrot.slane %v6505, %v6520
    %v6523 = vunpack.c.l.s4 1966171168
    %v6524 = vunpack.c.0.s8 %v6523
    %v6525 = vlaneseq
    %v6526 = vshrl.u32 %v6525, 7
    %v6527 = vsub.s32 %v6524, %v6526
    %v6528 = vrot.slane %v6506, %v6527
    %v6530 = vunpack.c.l.s4 1966171168
    %v6531 = vunpack.c.0.s8 %v6530
    %v6532 = vlaneseq
    %v6533 = vshrl.u32 %v6532, 7
    %v6534 = vsub.s32 %v6531, %v6533
    %v6535 = vrot.slane %v6507, %v6534
    %v6536 = vcombine.low %v6514, %v6521
    %v6537 = vcombine.low %v6528, %v6535
    %v6539 = vunpack.c.l.s4 1966171168
    %v6540 = vunpack.c.0.s8 %v6539
    %v6541 = vlaneseq
    %v6542 = vshrl.u32 %v6541, 7
    %v6543 = vsub.s32 %v6540, %v6542
    %v6544 = vrot.slane %v6536, %v6543
    %v6546 = vunpack.c.l.s4 1966171168
    %v6547 = vunpack.c.0.s8 %v6546
    %v6548 = vlaneseq
    %v6549 = vshrl.u32 %v6548, 7
    %v6550 = vsub.s32 %v6547, %v6549
    %v6551 = vrot.slane %v6537, %v6550
    %v6552 = vcombine.low %v6544, %v6551
    %v6554 = vadd.f32 %v6206, %v6552
    %v6555 = vxor.u32 %v6554, 2147483648
    %v6556 = vmul.f32 %v6555, 1.442695
    %v6557 = vpow.pop %v6556
    %v6558 = vadd.f32 %v6557, 1.0
    %v6559 = vrcp.pop %v6558
    %v6560 = vmul.f32 1.0, %v6559
    %v6562 = vrot.slane %v6554, 2
    %v6564 = vxor.u32 %v6562, 2147483648
    %v6565 = vmul.f32 %v6564, 1.442695
    %v6566 = vpow.pop %v6565
    %v6567 = vadd.f32 %v6566, 1.0
    %v6568 = vrcp.pop %v6567
    %v6569 = vmul.f32 1.0, %v6568
    %v6570 = vrot.slane %v6554, 4
    %v6572 = vtanh.pop %v6570
    %v6573 = vrot.slane %v6554, 6
    %v6575 = vxor.u32 %v6573, 2147483648
    %v6576 = vmul.f32 %v6575, 1.442695
    %v6577 = vpow.pop %v6576
    %v6578 = vadd.f32 %v6577, 1.0
    %v6579 = vrcp.pop %v6578
    %v6580 = vmul.f32 1.0, %v6579
    %v6581 = vmul.f32 %v6569, %v6193
    %v6582 = vmul.f32 %v6560, %v6572
    %v6583 = vadd.f32 %v6581, %v6582
    %v6584 = vtanh.pop %v6583
    %v6585 = vmul.f32 %v6580, %v6584
    %6586 = vst [vmem:[#allocation19 + $0x4] sm:$0x1] %v6585
    %v6588 = vlaneseq
    %v6589 = vshrl.u32 %v6588, 7
    %v6590 = vsub.s32 1, %v6589
    %v6591 = vrot.slane %v6585, %v6590
    %6593 = vst [vmem:[#allocation19 + $0xb] sm:$0x1] %v6591
    %v6594 = vld [vmem:[%s2749] ss:$8 sm:$0xf]
    %v6595 = vld [vmem:[%s2749] ss:$8 sm:$0xf0]
    %v6596 = vor.u32 %v6594, %v6595
    %v6597 = vlaneseq
    %v6598 = vshrl.u32 %v6597, 7
    %v6599 = vsub.s32 0, %v6598
    %v6600 = vrot.slane %v6585, %v6599
    %6602 = vmatprep.subr.mxu0 %v4178
    %6603 = vmatpush1.msra.mxu0 %v4177
    %6604 = vmatprep.subr.mxu0 %v4170
    %6605 = vmatpush1.msra.mxu0 %v4169
    %6606 = vmatprep.subr.mxu0 %v4162
    %6607 = vmatpush1.msra.mxu0 %v4161
    %6608 = vmatprep.subr.mxu0 %v4154
    %6609 = vmatpush1.msra.mxu0 %v4153
    %6610 = vmatprep.subr.mxu0 %v4146
    %6611 = vmatpush1.msra.mxu0 %v4145
    %6612 = vmatprep.subr.mxu0 %v4138
    %6613 = vmatpush1.msra.mxu0 %v4137
    %6614 = vmatprep.subr.mxu0 %v4130
    %6615 = vmatpush1.msra.mxu0 %v4129
    %6616 = vmatprep.subr.mxu0 %v4122
    %6617 = vmatpush1.msra.mxu0 %v4121
    %6618 = vmatprep.subr.mxu0 %v4114
    %6619 = vmatpush1.msra.mxu0 %v4113
    %6620 = vmatprep.subr.mxu0 %v4106
    %6621 = vmatpush1.msra.mxu0 %v4105
    %6622 = vmatprep.subr.mxu0 %v4098
    %6623 = vmatpush1.msra.mxu0 %v4097
    %6624 = vmatprep.subr.mxu0 %v4090
    %6625 = vmatpush1.msra.mxu0 %v4089
    %6626 = vmatprep.subr.mxu0 %v4082
    %6627 = vmatpush1.msra.mxu0 %v4081
    %6628 = vmatprep.subr.mxu0 %v4074
    %6629 = vmatpush1.msra.mxu0 %v4073
    %6630 = vmatprep.subr.mxu0 %v4066
    %6631 = vmatpush1.msra.mxu0 %v4065
    %6632 = vmatprep.subr.mxu0 %v4058
    %6633 = vmatpush1.msra.mxu0 %v4057
    %6634 = vmatprep.subr.mxu0 %v4306
    %6635 = vmatpush2.msra.mxu0 %v4305
    %6636 = vmatprep.subr.mxu0 %v4298
    %6637 = vmatpush2.msra.mxu0 %v4297
    %6638 = vmatprep.subr.mxu0 %v4290
    %6639 = vmatpush2.msra.mxu0 %v4289
    %6640 = vmatprep.subr.mxu0 %v4282
    %6641 = vmatpush2.msra.mxu0 %v4281
    %6642 = vmatprep.subr.mxu0 %v4274
    %6643 = vmatpush2.msra.mxu0 %v4273
    %6644 = vmatprep.subr.mxu0 %v4266
    %6645 = vmatpush2.msra.mxu0 %v4265
    %6646 = vmatprep.subr.mxu0 %v4258
    %6647 = vmatpush2.msra.mxu0 %v4257
    %6648 = vmatprep.subr.mxu0 %v4250
    %6649 = vmatpush2.msra.mxu0 %v4249
    %6650 = vmatprep.subr.mxu0 %v4242
    %6651 = vmatpush2.msra.mxu0 %v4241
    %6652 = vmatprep.subr.mxu0 %v4234
    %6653 = vmatpush2.msra.mxu0 %v4233
    %6654 = vmatprep.subr.mxu0 %v4226
    %6655 = vmatpush2.msra.mxu0 %v4225
    %6656 = vmatprep.subr.mxu0 %v4218
    %6657 = vmatpush2.msra.mxu0 %v4217
    %6658 = vmatprep.subr.mxu0 %v4210
    %6659 = vmatpush2.msra.mxu0 %v4209
    %6660 = vmatprep.subr.mxu0 %v4202
    %6661 = vmatpush2.msra.mxu0 %v4201
    %6662 = vmatprep.subr.mxu0 %v4194
    %6663 = vmatpush2.msra.mxu0 %v4193
    %6664 = vmatprep.subr.mxu0 %v4186
    %6665 = vmatpush2.msra.mxu0 %v4185
    %6666 = vmatprep.mubr.f32.mxu0 %v6591
    %6667 = vmatmul.mubr.f32.gmra.mxu0 %v6600
    %v6668 = vpop.f32.mrf.mxu0
    %v6669 = vadd.f32 0.0, %v6668
    %v6670 = vpop.f32.mrf.mxu0
    %v6671 = vadd.f32 0.0, %v6670
    %6672 = vdwg.mxu0
    %6673 = vmatprep.subr.mxu0 %v4180
    %6674 = vmatpush1.msra.mxu0 %v4179
    %6675 = vmatprep.subr.mxu0 %v4172
    %6676 = vmatpush1.msra.mxu0 %v4171
    %6677 = vmatprep.subr.mxu0 %v4164
    %6678 = vmatpush1.msra.mxu0 %v4163
    %6679 = vmatprep.subr.mxu0 %v4156
    %6680 = vmatpush1.msra.mxu0 %v4155
    %6681 = vmatprep.subr.mxu0 %v4148
    %6682 = vmatpush1.msra.mxu0 %v4147
    %6683 = vmatprep.subr.mxu0 %v4140
    %6684 = vmatpush1.msra.mxu0 %v4139
    %6685 = vmatprep.subr.mxu0 %v4132
    %6686 = vmatpush1.msra.mxu0 %v4131
    %6687 = vmatprep.subr.mxu0 %v4124
    %6688 = vmatpush1.msra.mxu0 %v4123
    %6689 = vmatprep.subr.mxu0 %v4116
    %6690 = vmatpush1.msra.mxu0 %v4115
    %6691 = vmatprep.subr.mxu0 %v4108
    %6692 = vmatpush1.msra.mxu0 %v4107
    %6693 = vmatprep.subr.mxu0 %v4100
    %6694 = vmatpush1.msra.mxu0 %v4099
    %6695 = vmatprep.subr.mxu0 %v4092
    %6696 = vmatpush1.msra.mxu0 %v4091
    %6697 = vmatprep.subr.mxu0 %v4084
    %6698 = vmatpush1.msra.mxu0 %v4083
    %6699 = vmatprep.subr.mxu0 %v4076
    %6700 = vmatpush1.msra.mxu0 %v4075
    %6701 = vmatprep.subr.mxu0 %v4068
    %6702 = vmatpush1.msra.mxu0 %v4067
    %6703 = vmatprep.subr.mxu0 %v4060
    %6704 = vmatpush1.msra.mxu0 %v4059
    %6705 = vmatprep.subr.mxu0 %v4308
    %6706 = vmatpush2.msra.mxu0 %v4307
    %6707 = vmatprep.subr.mxu0 %v4300
    %6708 = vmatpush2.msra.mxu0 %v4299
    %6709 = vmatprep.subr.mxu0 %v4292
    %6710 = vmatpush2.msra.mxu0 %v4291
    %6711 = vmatprep.subr.mxu0 %v4284
    %6712 = vmatpush2.msra.mxu0 %v4283
    %6713 = vmatprep.subr.mxu0 %v4276
    %6714 = vmatpush2.msra.mxu0 %v4275
    %6715 = vmatprep.subr.mxu0 %v4268
    %6716 = vmatpush2.msra.mxu0 %v4267
    %6717 = vmatprep.subr.mxu0 %v4260
    %6718 = vmatpush2.msra.mxu0 %v4259
    %6719 = vmatprep.subr.mxu0 %v4252
    %6720 = vmatpush2.msra.mxu0 %v4251
    %6721 = vmatprep.subr.mxu0 %v4244
    %6722 = vmatpush2.msra.mxu0 %v4243
    %6723 = vmatprep.subr.mxu0 %v4236
    %6724 = vmatpush2.msra.mxu0 %v4235
    %6725 = vmatprep.subr.mxu0 %v4228
    %6726 = vmatpush2.msra.mxu0 %v4227
    %6727 = vmatprep.subr.mxu0 %v4220
    %6728 = vmatpush2.msra.mxu0 %v4219
    %6729 = vmatprep.subr.mxu0 %v4212
    %6730 = vmatpush2.msra.mxu0 %v4211
    %6731 = vmatprep.subr.mxu0 %v4204
    %6732 = vmatpush2.msra.mxu0 %v4203
    %6733 = vmatprep.subr.mxu0 %v4196
    %6734 = vmatpush2.msra.mxu0 %v4195
    %6735 = vmatprep.subr.mxu0 %v4188
    %6736 = vmatpush2.msra.mxu0 %v4187
    %6737 = vmatprep.mubr.f32.mxu0 %v6591
    %6738 = vmatmul.mubr.f32.gmra.mxu0 %v6600
    %v6739 = vpop.f32.mrf.mxu0
    %v6740 = vadd.f32 0.0, %v6739
    %v6741 = vpop.f32.mrf.mxu0
    %v6742 = vadd.f32 0.0, %v6741
    %6743 = vdwg.mxu0
    %6744 = vmatprep.subr.mxu0 %v4182
    %6745 = vmatpush1.msra.mxu0 %v4181
    %6746 = vmatprep.subr.mxu0 %v4174
    %6747 = vmatpush1.msra.mxu0 %v4173
    %6748 = vmatprep.subr.mxu0 %v4166
    %6749 = vmatpush1.msra.mxu0 %v4165
    %6750 = vmatprep.subr.mxu0 %v4158
    %6751 = vmatpush1.msra.mxu0 %v4157
    %6752 = vmatprep.subr.mxu0 %v4150
    %6753 = vmatpush1.msra.mxu0 %v4149
    %6754 = vmatprep.subr.mxu0 %v4142
    %6755 = vmatpush1.msra.mxu0 %v4141
    %6756 = vmatprep.subr.mxu0 %v4134
    %6757 = vmatpush1.msra.mxu0 %v4133
    %6758 = vmatprep.subr.mxu0 %v4126
    %6759 = vmatpush1.msra.mxu0 %v4125
    %6760 = vmatprep.subr.mxu0 %v4118
    %6761 = vmatpush1.msra.mxu0 %v4117
    %6762 = vmatprep.subr.mxu0 %v4110
    %6763 = vmatpush1.msra.mxu0 %v4109
    %6764 = vmatprep.subr.mxu0 %v4102
    %6765 = vmatpush1.msra.mxu0 %v4101
    %6766 = vmatprep.subr.mxu0 %v4094
    %6767 = vmatpush1.msra.mxu0 %v4093
    %6768 = vmatprep.subr.mxu0 %v4086
    %6769 = vmatpush1.msra.mxu0 %v4085
    %6770 = vmatprep.subr.mxu0 %v4078
    %6771 = vmatpush1.msra.mxu0 %v4077
    %6772 = vmatprep.subr.mxu0 %v4070
    %6773 = vmatpush1.msra.mxu0 %v4069
    %6774 = vmatprep.subr.mxu0 %v4062
    %6775 = vmatpush1.msra.mxu0 %v4061
    %6776 = vmatprep.subr.mxu0 %v4310
    %6777 = vmatpush2.msra.mxu0 %v4309
    %6778 = vmatprep.subr.mxu0 %v4302
    %6779 = vmatpush2.msra.mxu0 %v4301
    %6780 = vmatprep.subr.mxu0 %v4294
    %6781 = vmatpush2.msra.mxu0 %v4293
    %6782 = vmatprep.subr.mxu0 %v4286
    %6783 = vmatpush2.msra.mxu0 %v4285
    %6784 = vmatprep.subr.mxu0 %v4278
    %6785 = vmatpush2.msra.mxu0 %v4277
    %6786 = vmatprep.subr.mxu0 %v4270
    %6787 = vmatpush2.msra.mxu0 %v4269
    %6788 = vmatprep.subr.mxu0 %v4262
    %6789 = vmatpush2.msra.mxu0 %v4261
    %6790 = vmatprep.subr.mxu0 %v4254
    %6791 = vmatpush2.msra.mxu0 %v4253
    %6792 = vmatprep.subr.mxu0 %v4246
    %6793 = vmatpush2.msra.mxu0 %v4245
    %6794 = vmatprep.subr.mxu0 %v4238
    %6795 = vmatpush2.msra.mxu0 %v4237
    %6796 = vmatprep.subr.mxu0 %v4230
    %6797 = vmatpush2.msra.mxu0 %v4229
    %6798 = vmatprep.subr.mxu0 %v4222
    %6799 = vmatpush2.msra.mxu0 %v4221
    %6800 = vmatprep.subr.mxu0 %v4214
    %6801 = vmatpush2.msra.mxu0 %v4213
    %6802 = vmatprep.subr.mxu0 %v4206
    %6803 = vmatpush2.msra.mxu0 %v4205
    %6804 = vmatprep.subr.mxu0 %v4198
    %6805 = vmatpush2.msra.mxu0 %v4197
    %6806 = vmatprep.subr.mxu0 %v4190
    %6807 = vmatpush2.msra.mxu0 %v4189
    %6808 = vmatprep.mubr.f32.mxu0 %v6591
    %6809 = vmatmul.mubr.f32.gmra.mxu0 %v6600
    %v6810 = vpop.f32.mrf.mxu0
    %v6811 = vadd.f32 0.0, %v6810
    %v6812 = vpop.f32.mrf.mxu0
    %v6813 = vadd.f32 0.0, %v6812
    %6814 = vdwg.mxu0
    %6815 = vmatprep.subr.mxu0 %v4184
    %6816 = vmatpush1.msra.mxu0 %v4183
    %6817 = vmatprep.subr.mxu0 %v4176
    %6818 = vmatpush1.msra.mxu0 %v4175
    %6819 = vmatprep.subr.mxu0 %v4168
    %6820 = vmatpush1.msra.mxu0 %v4167
    %6821 = vmatprep.subr.mxu0 %v4160
    %6822 = vmatpush1.msra.mxu0 %v4159
    %6823 = vmatprep.subr.mxu0 %v4152
    %6824 = vmatpush1.msra.mxu0 %v4151
    %6825 = vmatprep.subr.mxu0 %v4144
    %6826 = vmatpush1.msra.mxu0 %v4143
    %6827 = vmatprep.subr.mxu0 %v4136
    %6828 = vmatpush1.msra.mxu0 %v4135
    %6829 = vmatprep.subr.mxu0 %v4128
    %6830 = vmatpush1.msra.mxu0 %v4127
    %6831 = vmatprep.subr.mxu0 %v4120
    %6832 = vmatpush1.msra.mxu0 %v4119
    %6833 = vmatprep.subr.mxu0 %v4112
    %6834 = vmatpush1.msra.mxu0 %v4111
    %6835 = vmatprep.subr.mxu0 %v4104
    %6836 = vmatpush1.msra.mxu0 %v4103
    %6837 = vmatprep.subr.mxu0 %v4096
    %6838 = vmatpush1.msra.mxu0 %v4095
    %6839 = vmatprep.subr.mxu0 %v4088
    %6840 = vmatpush1.msra.mxu0 %v4087
    %6841 = vmatprep.subr.mxu0 %v4080
    %6842 = vmatpush1.msra.mxu0 %v4079
    %6843 = vmatprep.subr.mxu0 %v4072
    %6844 = vmatpush1.msra.mxu0 %v4071
    %6845 = vmatprep.subr.mxu0 %v4064
    %6846 = vmatpush1.msra.mxu0 %v4063
    %6847 = vmatprep.subr.mxu0 %v4312
    %6848 = vmatpush2.msra.mxu0 %v4311
    %6849 = vmatprep.subr.mxu0 %v4304
    %6850 = vmatpush2.msra.mxu0 %v4303
    %6851 = vmatprep.subr.mxu0 %v4296
    %6852 = vmatpush2.msra.mxu0 %v4295
    %6853 = vmatprep.subr.mxu0 %v4288
    %6854 = vmatpush2.msra.mxu0 %v4287
    %6855 = vmatprep.subr.mxu0 %v4280
    %6856 = vmatpush2.msra.mxu0 %v4279
    %6857 = vmatprep.subr.mxu0 %v4272
    %6858 = vmatpush2.msra.mxu0 %v4271
    %6859 = vmatprep.subr.mxu0 %v4264
    %6860 = vmatpush2.msra.mxu0 %v4263
    %6861 = vmatprep.subr.mxu0 %v4256
    %6862 = vmatpush2.msra.mxu0 %v4255
    %6863 = vmatprep.subr.mxu0 %v4248
    %6864 = vmatpush2.msra.mxu0 %v4247
    %6865 = vmatprep.subr.mxu0 %v4240
    %6866 = vmatpush2.msra.mxu0 %v4239
    %6867 = vmatprep.subr.mxu0 %v4232
    %6868 = vmatpush2.msra.mxu0 %v4231
    %6869 = vmatprep.subr.mxu0 %v4224
    %6870 = vmatpush2.msra.mxu0 %v4223
    %6871 = vmatprep.subr.mxu0 %v4216
    %6872 = vmatpush2.msra.mxu0 %v4215
    %6873 = vmatprep.subr.mxu0 %v4208
    %6874 = vmatpush2.msra.mxu0 %v4207
    %6875 = vmatprep.subr.mxu0 %v4200
    %6876 = vmatpush2.msra.mxu0 %v4199
    %6877 = vmatprep.subr.mxu0 %v4192
    %6878 = vmatpush2.msra.mxu0 %v4191
    %6879 = vmatprep.mubr.f32.mxu0 %v6591
    %6880 = vmatmul.mubr.f32.gmra.mxu0 %v6600
    %v6881 = vpop.f32.mrf.mxu0
    %v6882 = vadd.f32 0.0, %v6881
    %v6883 = vpop.f32.mrf.mxu0
    %v6884 = vadd.f32 0.0, %v6883
    %6885 = vdwg.mxu0
    %v6894 = vcombine.low %v6669, %v6671
    %v6895 = vcombine.low %v6740, %v6742
    %v6896 = vcombine.low %v6811, %v6813
    %v6897 = vcombine.low %v6882, %v6884
    %v6899 = vunpack.c.l.s4 1966171168
    %v6900 = vunpack.c.0.s8 %v6899
    %v6901 = vlaneseq
    %v6902 = vshrl.u32 %v6901, 7
    %v6903 = vsub.s32 %v6900, %v6902
    %v6904 = vrot.slane %v6894, %v6903
    %v6906 = vunpack.c.l.s4 1966171168
    %v6907 = vunpack.c.0.s8 %v6906
    %v6908 = vlaneseq
    %v6909 = vshrl.u32 %v6908, 7
    %v6910 = vsub.s32 %v6907, %v6909
    %v6911 = vrot.slane %v6895, %v6910
    %v6913 = vunpack.c.l.s4 1966171168
    %v6914 = vunpack.c.0.s8 %v6913
    %v6915 = vlaneseq
    %v6916 = vshrl.u32 %v6915, 7
    %v6917 = vsub.s32 %v6914, %v6916
    %v6918 = vrot.slane %v6896, %v6917
    %v6920 = vunpack.c.l.s4 1966171168
    %v6921 = vunpack.c.0.s8 %v6920
    %v6922 = vlaneseq
    %v6923 = vshrl.u32 %v6922, 7
    %v6924 = vsub.s32 %v6921, %v6923
    %v6925 = vrot.slane %v6897, %v6924
    %v6926 = vcombine.low %v6904, %v6911
    %v6927 = vcombine.low %v6918, %v6925
    %v6929 = vunpack.c.l.s4 1966171168
    %v6930 = vunpack.c.0.s8 %v6929
    %v6931 = vlaneseq
    %v6932 = vshrl.u32 %v6931, 7
    %v6933 = vsub.s32 %v6930, %v6932
    %v6934 = vrot.slane %v6926, %v6933
    %v6936 = vunpack.c.l.s4 1966171168
    %v6937 = vunpack.c.0.s8 %v6936
    %v6938 = vlaneseq
    %v6939 = vshrl.u32 %v6938, 7
    %v6940 = vsub.s32 %v6937, %v6939
    %v6941 = vrot.slane %v6927, %v6940
    %v6942 = vcombine.low %v6934, %v6941
    %v6944 = vadd.f32 %v6596, %v6942
    %v6945 = vxor.u32 %v6944, 2147483648
    %v6946 = vmul.f32 %v6945, 1.442695
    %v6947 = vpow.pop %v6946
    %v6948 = vadd.f32 %v6947, 1.0
    %v6949 = vrcp.pop %v6948
    %v6950 = vmul.f32 1.0, %v6949
    %v6952 = vrot.slane %v6944, 2
    %v6954 = vxor.u32 %v6952, 2147483648
    %v6955 = vmul.f32 %v6954, 1.442695
    %v6956 = vpow.pop %v6955
    %v6957 = vadd.f32 %v6956, 1.0
    %v6958 = vrcp.pop %v6957
    %v6959 = vmul.f32 1.0, %v6958
    %v6960 = vrot.slane %v6944, 4
    %v6962 = vtanh.pop %v6960
    %v6963 = vrot.slane %v6944, 6
    %v6965 = vxor.u32 %v6963, 2147483648
    %v6966 = vmul.f32 %v6965, 1.442695
    %v6967 = vpow.pop %v6966
    %v6968 = vadd.f32 %v6967, 1.0
    %v6969 = vrcp.pop %v6968
    %v6970 = vmul.f32 1.0, %v6969
    %v6971 = vmul.f32 %v6959, %v6583
    %v6972 = vmul.f32 %v6950, %v6962
    %v6973 = vadd.f32 %v6971, %v6972
    %v6974 = vtanh.pop %v6973
    %v6975 = vmul.f32 %v6970, %v6974
    %6976 = vst [vmem:[#allocation19 + $0x5] sm:$0x1] %v6975
    %v6978 = vlaneseq
    %v6979 = vshrl.u32 %v6978, 7
    %v6980 = vsub.s32 1, %v6979
    %v6981 = vrot.slane %v6975, %v6980
    %6983 = vst [vmem:[#allocation19 + $0xa] sm:$0x1] %v6981
    %v6984 = vld [vmem:[%s3141] ss:$8 sm:$0xf]
    %v6985 = vld [vmem:[%s3141] ss:$8 sm:$0xf0]
    %v6986 = vor.u32 %v6984, %v6985
    %v6987 = vlaneseq
    %v6988 = vshrl.u32 %v6987, 7
    %v6989 = vsub.s32 0, %v6988
    %v6990 = vrot.slane %v6975, %v6989
    %6992 = vmatprep.subr.mxu0 %v4178
    %6993 = vmatpush1.msra.mxu0 %v4177
    %6994 = vmatprep.subr.mxu0 %v4170
    %6995 = vmatpush1.msra.mxu0 %v4169
    %6996 = vmatprep.subr.mxu0 %v4162
    %6997 = vmatpush1.msra.mxu0 %v4161
    %6998 = vmatprep.subr.mxu0 %v4154
    %6999 = vmatpush1.msra.mxu0 %v4153
    %7000 = vmatprep.subr.mxu0 %v4146
    %7001 = vmatpush1.msra.mxu0 %v4145
    %7002 = vmatprep.subr.mxu0 %v4138
    %7003 = vmatpush1.msra.mxu0 %v4137
    %7004 = vmatprep.subr.mxu0 %v4130
    %7005 = vmatpush1.msra.mxu0 %v4129
    %7006 = vmatprep.subr.mxu0 %v4122
    %7007 = vmatpush1.msra.mxu0 %v4121
    %7008 = vmatprep.subr.mxu0 %v4114
    %7009 = vmatpush1.msra.mxu0 %v4113
    %7010 = vmatprep.subr.mxu0 %v4106
    %7011 = vmatpush1.msra.mxu0 %v4105
    %7012 = vmatprep.subr.mxu0 %v4098
    %7013 = vmatpush1.msra.mxu0 %v4097
    %7014 = vmatprep.subr.mxu0 %v4090
    %7015 = vmatpush1.msra.mxu0 %v4089
    %7016 = vmatprep.subr.mxu0 %v4082
    %7017 = vmatpush1.msra.mxu0 %v4081
    %7018 = vmatprep.subr.mxu0 %v4074
    %7019 = vmatpush1.msra.mxu0 %v4073
    %7020 = vmatprep.subr.mxu0 %v4066
    %7021 = vmatpush1.msra.mxu0 %v4065
    %7022 = vmatprep.subr.mxu0 %v4058
    %7023 = vmatpush1.msra.mxu0 %v4057
    %7024 = vmatprep.subr.mxu0 %v4306
    %7025 = vmatpush2.msra.mxu0 %v4305
    %7026 = vmatprep.subr.mxu0 %v4298
    %7027 = vmatpush2.msra.mxu0 %v4297
    %7028 = vmatprep.subr.mxu0 %v4290
    %7029 = vmatpush2.msra.mxu0 %v4289
    %7030 = vmatprep.subr.mxu0 %v4282
    %7031 = vmatpush2.msra.mxu0 %v4281
    %7032 = vmatprep.subr.mxu0 %v4274
    %7033 = vmatpush2.msra.mxu0 %v4273
    %7034 = vmatprep.subr.mxu0 %v4266
    %7035 = vmatpush2.msra.mxu0 %v4265
    %7036 = vmatprep.subr.mxu0 %v4258
    %7037 = vmatpush2.msra.mxu0 %v4257
    %7038 = vmatprep.subr.mxu0 %v4250
    %7039 = vmatpush2.msra.mxu0 %v4249
    %7040 = vmatprep.subr.mxu0 %v4242
    %7041 = vmatpush2.msra.mxu0 %v4241
    %7042 = vmatprep.subr.mxu0 %v4234
    %7043 = vmatpush2.msra.mxu0 %v4233
    %7044 = vmatprep.subr.mxu0 %v4226
    %7045 = vmatpush2.msra.mxu0 %v4225
    %7046 = vmatprep.subr.mxu0 %v4218
    %7047 = vmatpush2.msra.mxu0 %v4217
    %7048 = vmatprep.subr.mxu0 %v4210
    %7049 = vmatpush2.msra.mxu0 %v4209
    %7050 = vmatprep.subr.mxu0 %v4202
    %7051 = vmatpush2.msra.mxu0 %v4201
    %7052 = vmatprep.subr.mxu0 %v4194
    %7053 = vmatpush2.msra.mxu0 %v4193
    %7054 = vmatprep.subr.mxu0 %v4186
    %7055 = vmatpush2.msra.mxu0 %v4185
    %7056 = vmatprep.mubr.f32.mxu0 %v6981
    %7057 = vmatmul.mubr.f32.gmra.mxu0 %v6990
    %v7058 = vpop.f32.mrf.mxu0
    %v7059 = vadd.f32 0.0, %v7058
    %v7060 = vpop.f32.mrf.mxu0
    %v7061 = vadd.f32 0.0, %v7060
    %7062 = vdwg.mxu0
    %7063 = vmatprep.subr.mxu0 %v4180
    %7064 = vmatpush1.msra.mxu0 %v4179
    %7065 = vmatprep.subr.mxu0 %v4172
    %7066 = vmatpush1.msra.mxu0 %v4171
    %7067 = vmatprep.subr.mxu0 %v4164
    %7068 = vmatpush1.msra.mxu0 %v4163
    %7069 = vmatprep.subr.mxu0 %v4156
    %7070 = vmatpush1.msra.mxu0 %v4155
    %7071 = vmatprep.subr.mxu0 %v4148
    %7072 = vmatpush1.msra.mxu0 %v4147
    %7073 = vmatprep.subr.mxu0 %v4140
    %7074 = vmatpush1.msra.mxu0 %v4139
    %7075 = vmatprep.subr.mxu0 %v4132
    %7076 = vmatpush1.msra.mxu0 %v4131
    %7077 = vmatprep.subr.mxu0 %v4124
    %7078 = vmatpush1.msra.mxu0 %v4123
    %7079 = vmatprep.subr.mxu0 %v4116
    %7080 = vmatpush1.msra.mxu0 %v4115
    %7081 = vmatprep.subr.mxu0 %v4108
    %7082 = vmatpush1.msra.mxu0 %v4107
    %7083 = vmatprep.subr.mxu0 %v4100
    %7084 = vmatpush1.msra.mxu0 %v4099
    %7085 = vmatprep.subr.mxu0 %v4092
    %7086 = vmatpush1.msra.mxu0 %v4091
    %7087 = vmatprep.subr.mxu0 %v4084
    %7088 = vmatpush1.msra.mxu0 %v4083
    %7089 = vmatprep.subr.mxu0 %v4076
    %7090 = vmatpush1.msra.mxu0 %v4075
    %7091 = vmatprep.subr.mxu0 %v4068
    %7092 = vmatpush1.msra.mxu0 %v4067
    %7093 = vmatprep.subr.mxu0 %v4060
    %7094 = vmatpush1.msra.mxu0 %v4059
    %7095 = vmatprep.subr.mxu0 %v4308
    %7096 = vmatpush2.msra.mxu0 %v4307
    %7097 = vmatprep.subr.mxu0 %v4300
    %7098 = vmatpush2.msra.mxu0 %v4299
    %7099 = vmatprep.subr.mxu0 %v4292
    %7100 = vmatpush2.msra.mxu0 %v4291
    %7101 = vmatprep.subr.mxu0 %v4284
    %7102 = vmatpush2.msra.mxu0 %v4283
    %7103 = vmatprep.subr.mxu0 %v4276
    %7104 = vmatpush2.msra.mxu0 %v4275
    %7105 = vmatprep.subr.mxu0 %v4268
    %7106 = vmatpush2.msra.mxu0 %v4267
    %7107 = vmatprep.subr.mxu0 %v4260
    %7108 = vmatpush2.msra.mxu0 %v4259
    %7109 = vmatprep.subr.mxu0 %v4252
    %7110 = vmatpush2.msra.mxu0 %v4251
    %7111 = vmatprep.subr.mxu0 %v4244
    %7112 = vmatpush2.msra.mxu0 %v4243
    %7113 = vmatprep.subr.mxu0 %v4236
    %7114 = vmatpush2.msra.mxu0 %v4235
    %7115 = vmatprep.subr.mxu0 %v4228
    %7116 = vmatpush2.msra.mxu0 %v4227
    %7117 = vmatprep.subr.mxu0 %v4220
    %7118 = vmatpush2.msra.mxu0 %v4219
    %7119 = vmatprep.subr.mxu0 %v4212
    %7120 = vmatpush2.msra.mxu0 %v4211
    %7121 = vmatprep.subr.mxu0 %v4204
    %7122 = vmatpush2.msra.mxu0 %v4203
    %7123 = vmatprep.subr.mxu0 %v4196
    %7124 = vmatpush2.msra.mxu0 %v4195
    %7125 = vmatprep.subr.mxu0 %v4188
    %7126 = vmatpush2.msra.mxu0 %v4187
    %7127 = vmatprep.mubr.f32.mxu0 %v6981
    %7128 = vmatmul.mubr.f32.gmra.mxu0 %v6990
    %v7129 = vpop.f32.mrf.mxu0
    %v7130 = vadd.f32 0.0, %v7129
    %v7131 = vpop.f32.mrf.mxu0
    %v7132 = vadd.f32 0.0, %v7131
    %7133 = vdwg.mxu0
    %7134 = vmatprep.subr.mxu0 %v4182
    %7135 = vmatpush1.msra.mxu0 %v4181
    %7136 = vmatprep.subr.mxu0 %v4174
    %7137 = vmatpush1.msra.mxu0 %v4173
    %7138 = vmatprep.subr.mxu0 %v4166
    %7139 = vmatpush1.msra.mxu0 %v4165
    %7140 = vmatprep.subr.mxu0 %v4158
    %7141 = vmatpush1.msra.mxu0 %v4157
    %7142 = vmatprep.subr.mxu0 %v4150
    %7143 = vmatpush1.msra.mxu0 %v4149
    %7144 = vmatprep.subr.mxu0 %v4142
    %7145 = vmatpush1.msra.mxu0 %v4141
    %7146 = vmatprep.subr.mxu0 %v4134
    %7147 = vmatpush1.msra.mxu0 %v4133
    %7148 = vmatprep.subr.mxu0 %v4126
    %7149 = vmatpush1.msra.mxu0 %v4125
    %7150 = vmatprep.subr.mxu0 %v4118
    %7151 = vmatpush1.msra.mxu0 %v4117
    %7152 = vmatprep.subr.mxu0 %v4110
    %7153 = vmatpush1.msra.mxu0 %v4109
    %7154 = vmatprep.subr.mxu0 %v4102
    %7155 = vmatpush1.msra.mxu0 %v4101
    %7156 = vmatprep.subr.mxu0 %v4094
    %7157 = vmatpush1.msra.mxu0 %v4093
    %7158 = vmatprep.subr.mxu0 %v4086
    %7159 = vmatpush1.msra.mxu0 %v4085
    %7160 = vmatprep.subr.mxu0 %v4078
    %7161 = vmatpush1.msra.mxu0 %v4077
    %7162 = vmatprep.subr.mxu0 %v4070
    %7163 = vmatpush1.msra.mxu0 %v4069
    %7164 = vmatprep.subr.mxu0 %v4062
    %7165 = vmatpush1.msra.mxu0 %v4061
    %7166 = vmatprep.subr.mxu0 %v4310
    %7167 = vmatpush2.msra.mxu0 %v4309
    %7168 = vmatprep.subr.mxu0 %v4302
    %7169 = vmatpush2.msra.mxu0 %v4301
    %7170 = vmatprep.subr.mxu0 %v4294
    %7171 = vmatpush2.msra.mxu0 %v4293
    %7172 = vmatprep.subr.mxu0 %v4286
    %7173 = vmatpush2.msra.mxu0 %v4285
    %7174 = vmatprep.subr.mxu0 %v4278
    %7175 = vmatpush2.msra.mxu0 %v4277
    %7176 = vmatprep.subr.mxu0 %v4270
    %7177 = vmatpush2.msra.mxu0 %v4269
    %7178 = vmatprep.subr.mxu0 %v4262
    %7179 = vmatpush2.msra.mxu0 %v4261
    %7180 = vmatprep.subr.mxu0 %v4254
    %7181 = vmatpush2.msra.mxu0 %v4253
    %7182 = vmatprep.subr.mxu0 %v4246
    %7183 = vmatpush2.msra.mxu0 %v4245
    %7184 = vmatprep.subr.mxu0 %v4238
    %7185 = vmatpush2.msra.mxu0 %v4237
    %7186 = vmatprep.subr.mxu0 %v4230
    %7187 = vmatpush2.msra.mxu0 %v4229
    %7188 = vmatprep.subr.mxu0 %v4222
    %7189 = vmatpush2.msra.mxu0 %v4221
    %7190 = vmatprep.subr.mxu0 %v4214
    %7191 = vmatpush2.msra.mxu0 %v4213
    %7192 = vmatprep.subr.mxu0 %v4206
    %7193 = vmatpush2.msra.mxu0 %v4205
    %7194 = vmatprep.subr.mxu0 %v4198
    %7195 = vmatpush2.msra.mxu0 %v4197
    %7196 = vmatprep.subr.mxu0 %v4190
    %7197 = vmatpush2.msra.mxu0 %v4189
    %7198 = vmatprep.mubr.f32.mxu0 %v6981
    %7199 = vmatmul.mubr.f32.gmra.mxu0 %v6990
    %v7200 = vpop.f32.mrf.mxu0
    %v7201 = vadd.f32 0.0, %v7200
    %v7202 = vpop.f32.mrf.mxu0
    %v7203 = vadd.f32 0.0, %v7202
    %7204 = vdwg.mxu0
    %7205 = vmatprep.subr.mxu0 %v4184
    %7206 = vmatpush1.msra.mxu0 %v4183
    %7207 = vmatprep.subr.mxu0 %v4176
    %7208 = vmatpush1.msra.mxu0 %v4175
    %7209 = vmatprep.subr.mxu0 %v4168
    %7210 = vmatpush1.msra.mxu0 %v4167
    %7211 = vmatprep.subr.mxu0 %v4160
    %7212 = vmatpush1.msra.mxu0 %v4159
    %7213 = vmatprep.subr.mxu0 %v4152
    %7214 = vmatpush1.msra.mxu0 %v4151
    %7215 = vmatprep.subr.mxu0 %v4144
    %7216 = vmatpush1.msra.mxu0 %v4143
    %7217 = vmatprep.subr.mxu0 %v4136
    %7218 = vmatpush1.msra.mxu0 %v4135
    %7219 = vmatprep.subr.mxu0 %v4128
    %7220 = vmatpush1.msra.mxu0 %v4127
    %7221 = vmatprep.subr.mxu0 %v4120
    %7222 = vmatpush1.msra.mxu0 %v4119
    %7223 = vmatprep.subr.mxu0 %v4112
    %7224 = vmatpush1.msra.mxu0 %v4111
    %7225 = vmatprep.subr.mxu0 %v4104
    %7226 = vmatpush1.msra.mxu0 %v4103
    %7227 = vmatprep.subr.mxu0 %v4096
    %7228 = vmatpush1.msra.mxu0 %v4095
    %7229 = vmatprep.subr.mxu0 %v4088
    %7230 = vmatpush1.msra.mxu0 %v4087
    %7231 = vmatprep.subr.mxu0 %v4080
    %7232 = vmatpush1.msra.mxu0 %v4079
    %7233 = vmatprep.subr.mxu0 %v4072
    %7234 = vmatpush1.msra.mxu0 %v4071
    %7235 = vmatprep.subr.mxu0 %v4064
    %7236 = vmatpush1.msra.mxu0 %v4063
    %7237 = vmatprep.subr.mxu0 %v4312
    %7238 = vmatpush2.msra.mxu0 %v4311
    %7239 = vmatprep.subr.mxu0 %v4304
    %7240 = vmatpush2.msra.mxu0 %v4303
    %7241 = vmatprep.subr.mxu0 %v4296
    %7242 = vmatpush2.msra.mxu0 %v4295
    %7243 = vmatprep.subr.mxu0 %v4288
    %7244 = vmatpush2.msra.mxu0 %v4287
    %7245 = vmatprep.subr.mxu0 %v4280
    %7246 = vmatpush2.msra.mxu0 %v4279
    %7247 = vmatprep.subr.mxu0 %v4272
    %7248 = vmatpush2.msra.mxu0 %v4271
    %7249 = vmatprep.subr.mxu0 %v4264
    %7250 = vmatpush2.msra.mxu0 %v4263
    %7251 = vmatprep.subr.mxu0 %v4256
    %7252 = vmatpush2.msra.mxu0 %v4255
    %7253 = vmatprep.subr.mxu0 %v4248
    %7254 = vmatpush2.msra.mxu0 %v4247
    %7255 = vmatprep.subr.mxu0 %v4240
    %7256 = vmatpush2.msra.mxu0 %v4239
    %7257 = vmatprep.subr.mxu0 %v4232
    %7258 = vmatpush2.msra.mxu0 %v4231
    %7259 = vmatprep.subr.mxu0 %v4224
    %7260 = vmatpush2.msra.mxu0 %v4223
    %7261 = vmatprep.subr.mxu0 %v4216
    %7262 = vmatpush2.msra.mxu0 %v4215
    %7263 = vmatprep.subr.mxu0 %v4208
    %7264 = vmatpush2.msra.mxu0 %v4207
    %7265 = vmatprep.subr.mxu0 %v4200
    %7266 = vmatpush2.msra.mxu0 %v4199
    %7267 = vmatprep.subr.mxu0 %v4192
    %7268 = vmatpush2.msra.mxu0 %v4191
    %7269 = vmatprep.mubr.f32.mxu0 %v6981
    %7270 = vmatmul.mubr.f32.gmra.mxu0 %v6990
    %v7271 = vpop.f32.mrf.mxu0
    %v7272 = vadd.f32 0.0, %v7271
    %v7273 = vpop.f32.mrf.mxu0
    %v7274 = vadd.f32 0.0, %v7273
    %7275 = vdwg.mxu0
    %v7284 = vcombine.low %v7059, %v7061
    %v7285 = vcombine.low %v7130, %v7132
    %v7286 = vcombine.low %v7201, %v7203
    %v7287 = vcombine.low %v7272, %v7274
    %v7289 = vunpack.c.l.s4 1966171168
    %v7290 = vunpack.c.0.s8 %v7289
    %v7291 = vlaneseq
    %v7292 = vshrl.u32 %v7291, 7
    %v7293 = vsub.s32 %v7290, %v7292
    %v7294 = vrot.slane %v7284, %v7293
    %v7296 = vunpack.c.l.s4 1966171168
    %v7297 = vunpack.c.0.s8 %v7296
    %v7298 = vlaneseq
    %v7299 = vshrl.u32 %v7298, 7
    %v7300 = vsub.s32 %v7297, %v7299
    %v7301 = vrot.slane %v7285, %v7300
    %v7303 = vunpack.c.l.s4 1966171168
    %v7304 = vunpack.c.0.s8 %v7303
    %v7305 = vlaneseq
    %v7306 = vshrl.u32 %v7305, 7
    %v7307 = vsub.s32 %v7304, %v7306
    %v7308 = vrot.slane %v7286, %v7307
    %v7310 = vunpack.c.l.s4 1966171168
    %v7311 = vunpack.c.0.s8 %v7310
    %v7312 = vlaneseq
    %v7313 = vshrl.u32 %v7312, 7
    %v7314 = vsub.s32 %v7311, %v7313
    %v7315 = vrot.slane %v7287, %v7314
    %v7316 = vcombine.low %v7294, %v7301
    %v7317 = vcombine.low %v7308, %v7315
    %v7319 = vunpack.c.l.s4 1966171168
    %v7320 = vunpack.c.0.s8 %v7319
    %v7321 = vlaneseq
    %v7322 = vshrl.u32 %v7321, 7
    %v7323 = vsub.s32 %v7320, %v7322
    %v7324 = vrot.slane %v7316, %v7323
    %v7326 = vunpack.c.l.s4 1966171168
    %v7327 = vunpack.c.0.s8 %v7326
    %v7328 = vlaneseq
    %v7329 = vshrl.u32 %v7328, 7
    %v7330 = vsub.s32 %v7327, %v7329
    %v7331 = vrot.slane %v7317, %v7330
    %v7332 = vcombine.low %v7324, %v7331
    %v7334 = vadd.f32 %v6986, %v7332
    %v7335 = vxor.u32 %v7334, 2147483648
    %v7336 = vmul.f32 %v7335, 1.442695
    %v7337 = vpow.pop %v7336
    %v7338 = vadd.f32 %v7337, 1.0
    %v7339 = vrcp.pop %v7338
    %v7340 = vmul.f32 1.0, %v7339
    %v7342 = vrot.slane %v7334, 2
    %v7344 = vxor.u32 %v7342, 2147483648
    %v7345 = vmul.f32 %v7344, 1.442695
    %v7346 = vpow.pop %v7345
    %v7347 = vadd.f32 %v7346, 1.0
    %v7348 = vrcp.pop %v7347
    %v7349 = vmul.f32 1.0, %v7348
    %v7350 = vrot.slane %v7334, 4
    %v7352 = vtanh.pop %v7350
    %v7353 = vrot.slane %v7334, 6
    %v7355 = vxor.u32 %v7353, 2147483648
    %v7356 = vmul.f32 %v7355, 1.442695
    %v7357 = vpow.pop %v7356
    %v7358 = vadd.f32 %v7357, 1.0
    %v7359 = vrcp.pop %v7358
    %v7360 = vmul.f32 1.0, %v7359
    %v7361 = vmul.f32 %v7349, %v6973
    %v7362 = vmul.f32 %v7340, %v7352
    %v7363 = vadd.f32 %v7361, %v7362
    %v7364 = vtanh.pop %v7363
    %v7365 = vmul.f32 %v7360, %v7364
    %7366 = vst [vmem:[#allocation19 + $0x6] sm:$0x1] %v7365
    %v7368 = vlaneseq
    %v7369 = vshrl.u32 %v7368, 7
    %v7370 = vsub.s32 1, %v7369
    %v7371 = vrot.slane %v7365, %v7370
    %7373 = vst [vmem:[#allocation19 + $0x9] sm:$0x1] %v7371
    %v7374 = vld [vmem:[%s3533] ss:$8 sm:$0xf]
    %v7375 = vld [vmem:[%s3533] ss:$8 sm:$0xf0]
    %v7376 = vor.u32 %v7374, %v7375
    %v7377 = vlaneseq
    %v7378 = vshrl.u32 %v7377, 7
    %v7379 = vsub.s32 0, %v7378
    %v7380 = vrot.slane %v7365, %v7379
    %7382 = vmatprep.subr.mxu0 %v4178
    %7383 = vmatpush1.msra.mxu0 %v4177
    %7384 = vmatprep.subr.mxu0 %v4170
    %7385 = vmatpush1.msra.mxu0 %v4169
    %7386 = vmatprep.subr.mxu0 %v4162
    %7387 = vmatpush1.msra.mxu0 %v4161
    %7388 = vmatprep.subr.mxu0 %v4154
    %7389 = vmatpush1.msra.mxu0 %v4153
    %7390 = vmatprep.subr.mxu0 %v4146
    %7391 = vmatpush1.msra.mxu0 %v4145
    %7392 = vmatprep.subr.mxu0 %v4138
    %7393 = vmatpush1.msra.mxu0 %v4137
    %7394 = vmatprep.subr.mxu0 %v4130
    %7395 = vmatpush1.msra.mxu0 %v4129
    %7396 = vmatprep.subr.mxu0 %v4122
    %7397 = vmatpush1.msra.mxu0 %v4121
    %7398 = vmatprep.subr.mxu0 %v4114
    %7399 = vmatpush1.msra.mxu0 %v4113
    %7400 = vmatprep.subr.mxu0 %v4106
    %7401 = vmatpush1.msra.mxu0 %v4105
    %7402 = vmatprep.subr.mxu0 %v4098
    %7403 = vmatpush1.msra.mxu0 %v4097
    %7404 = vmatprep.subr.mxu0 %v4090
    %7405 = vmatpush1.msra.mxu0 %v4089
    %7406 = vmatprep.subr.mxu0 %v4082
    %7407 = vmatpush1.msra.mxu0 %v4081
    %7408 = vmatprep.subr.mxu0 %v4074
    %7409 = vmatpush1.msra.mxu0 %v4073
    %7410 = vmatprep.subr.mxu0 %v4066
    %7411 = vmatpush1.msra.mxu0 %v4065
    %7412 = vmatprep.subr.mxu0 %v4058
    %7413 = vmatpush1.msra.mxu0 %v4057
    %7414 = vmatprep.subr.mxu0 %v4306
    %7415 = vmatpush2.msra.mxu0 %v4305
    %7416 = vmatprep.subr.mxu0 %v4298
    %7417 = vmatpush2.msra.mxu0 %v4297
    %7418 = vmatprep.subr.mxu0 %v4290
    %7419 = vmatpush2.msra.mxu0 %v4289
    %7420 = vmatprep.subr.mxu0 %v4282
    %7421 = vmatpush2.msra.mxu0 %v4281
    %7422 = vmatprep.subr.mxu0 %v4274
    %7423 = vmatpush2.msra.mxu0 %v4273
    %7424 = vmatprep.subr.mxu0 %v4266
    %7425 = vmatpush2.msra.mxu0 %v4265
    %7426 = vmatprep.subr.mxu0 %v4258
    %7427 = vmatpush2.msra.mxu0 %v4257
    %7428 = vmatprep.subr.mxu0 %v4250
    %7429 = vmatpush2.msra.mxu0 %v4249
    %7430 = vmatprep.subr.mxu0 %v4242
    %7431 = vmatpush2.msra.mxu0 %v4241
    %7432 = vmatprep.subr.mxu0 %v4234
    %7433 = vmatpush2.msra.mxu0 %v4233
    %7434 = vmatprep.subr.mxu0 %v4226
    %7435 = vmatpush2.msra.mxu0 %v4225
    %7436 = vmatprep.subr.mxu0 %v4218
    %7437 = vmatpush2.msra.mxu0 %v4217
    %7438 = vmatprep.subr.mxu0 %v4210
    %7439 = vmatpush2.msra.mxu0 %v4209
    %7440 = vmatprep.subr.mxu0 %v4202
    %7441 = vmatpush2.msra.mxu0 %v4201
    %7442 = vmatprep.subr.mxu0 %v4194
    %7443 = vmatpush2.msra.mxu0 %v4193
    %7444 = vmatprep.subr.mxu0 %v4186
    %7445 = vmatpush2.msra.mxu0 %v4185
    %7446 = vmatprep.mubr.f32.mxu0 %v7371
    %7447 = vmatmul.mubr.f32.gmra.mxu0 %v7380
    %v7448 = vpop.f32.mrf.mxu0
    %v7449 = vadd.f32 0.0, %v7448
    %v7450 = vpop.f32.mrf.mxu0
    %v7451 = vadd.f32 0.0, %v7450
    %7452 = vdwg.mxu0
    %7453 = vmatprep.subr.mxu0 %v4180
    %7454 = vmatpush1.msra.mxu0 %v4179
    %7455 = vmatprep.subr.mxu0 %v4172
    %7456 = vmatpush1.msra.mxu0 %v4171
    %7457 = vmatprep.subr.mxu0 %v4164
    %7458 = vmatpush1.msra.mxu0 %v4163
    %7459 = vmatprep.subr.mxu0 %v4156
    %7460 = vmatpush1.msra.mxu0 %v4155
    %7461 = vmatprep.subr.mxu0 %v4148
    %7462 = vmatpush1.msra.mxu0 %v4147
    %7463 = vmatprep.subr.mxu0 %v4140
    %7464 = vmatpush1.msra.mxu0 %v4139
    %7465 = vmatprep.subr.mxu0 %v4132
    %7466 = vmatpush1.msra.mxu0 %v4131
    %7467 = vmatprep.subr.mxu0 %v4124
    %7468 = vmatpush1.msra.mxu0 %v4123
    %7469 = vmatprep.subr.mxu0 %v4116
    %7470 = vmatpush1.msra.mxu0 %v4115
    %7471 = vmatprep.subr.mxu0 %v4108
    %7472 = vmatpush1.msra.mxu0 %v4107
    %7473 = vmatprep.subr.mxu0 %v4100
    %7474 = vmatpush1.msra.mxu0 %v4099
    %7475 = vmatprep.subr.mxu0 %v4092
    %7476 = vmatpush1.msra.mxu0 %v4091
    %7477 = vmatprep.subr.mxu0 %v4084
    %7478 = vmatpush1.msra.mxu0 %v4083
    %7479 = vmatprep.subr.mxu0 %v4076
    %7480 = vmatpush1.msra.mxu0 %v4075
    %7481 = vmatprep.subr.mxu0 %v4068
    %7482 = vmatpush1.msra.mxu0 %v4067
    %7483 = vmatprep.subr.mxu0 %v4060
    %7484 = vmatpush1.msra.mxu0 %v4059
    %7485 = vmatprep.subr.mxu0 %v4308
    %7486 = vmatpush2.msra.mxu0 %v4307
    %7487 = vmatprep.subr.mxu0 %v4300
    %7488 = vmatpush2.msra.mxu0 %v4299
    %7489 = vmatprep.subr.mxu0 %v4292
    %7490 = vmatpush2.msra.mxu0 %v4291
    %7491 = vmatprep.subr.mxu0 %v4284
    %7492 = vmatpush2.msra.mxu0 %v4283
    %7493 = vmatprep.subr.mxu0 %v4276
    %7494 = vmatpush2.msra.mxu0 %v4275
    %7495 = vmatprep.subr.mxu0 %v4268
    %7496 = vmatpush2.msra.mxu0 %v4267
    %7497 = vmatprep.subr.mxu0 %v4260
    %7498 = vmatpush2.msra.mxu0 %v4259
    %7499 = vmatprep.subr.mxu0 %v4252
    %7500 = vmatpush2.msra.mxu0 %v4251
    %7501 = vmatprep.subr.mxu0 %v4244
    %7502 = vmatpush2.msra.mxu0 %v4243
    %7503 = vmatprep.subr.mxu0 %v4236
    %7504 = vmatpush2.msra.mxu0 %v4235
    %7505 = vmatprep.subr.mxu0 %v4228
    %7506 = vmatpush2.msra.mxu0 %v4227
    %7507 = vmatprep.subr.mxu0 %v4220
    %7508 = vmatpush2.msra.mxu0 %v4219
    %7509 = vmatprep.subr.mxu0 %v4212
    %7510 = vmatpush2.msra.mxu0 %v4211
    %7511 = vmatprep.subr.mxu0 %v4204
    %7512 = vmatpush2.msra.mxu0 %v4203
    %7513 = vmatprep.subr.mxu0 %v4196
    %7514 = vmatpush2.msra.mxu0 %v4195
    %7515 = vmatprep.subr.mxu0 %v4188
    %7516 = vmatpush2.msra.mxu0 %v4187
    %7517 = vmatprep.mubr.f32.mxu0 %v7371
    %7518 = vmatmul.mubr.f32.gmra.mxu0 %v7380
    %v7519 = vpop.f32.mrf.mxu0
    %v7520 = vadd.f32 0.0, %v7519
    %v7521 = vpop.f32.mrf.mxu0
    %v7522 = vadd.f32 0.0, %v7521
    %7523 = vdwg.mxu0
    %7524 = vmatprep.subr.mxu0 %v4182
    %7525 = vmatpush1.msra.mxu0 %v4181
    %7526 = vmatprep.subr.mxu0 %v4174
    %7527 = vmatpush1.msra.mxu0 %v4173
    %7528 = vmatprep.subr.mxu0 %v4166
    %7529 = vmatpush1.msra.mxu0 %v4165
    %7530 = vmatprep.subr.mxu0 %v4158
    %7531 = vmatpush1.msra.mxu0 %v4157
    %7532 = vmatprep.subr.mxu0 %v4150
    %7533 = vmatpush1.msra.mxu0 %v4149
    %7534 = vmatprep.subr.mxu0 %v4142
    %7535 = vmatpush1.msra.mxu0 %v4141
    %7536 = vmatprep.subr.mxu0 %v4134
    %7537 = vmatpush1.msra.mxu0 %v4133
    %7538 = vmatprep.subr.mxu0 %v4126
    %7539 = vmatpush1.msra.mxu0 %v4125
    %7540 = vmatprep.subr.mxu0 %v4118
    %7541 = vmatpush1.msra.mxu0 %v4117
    %7542 = vmatprep.subr.mxu0 %v4110
    %7543 = vmatpush1.msra.mxu0 %v4109
    %7544 = vmatprep.subr.mxu0 %v4102
    %7545 = vmatpush1.msra.mxu0 %v4101
    %7546 = vmatprep.subr.mxu0 %v4094
    %7547 = vmatpush1.msra.mxu0 %v4093
    %7548 = vmatprep.subr.mxu0 %v4086
    %7549 = vmatpush1.msra.mxu0 %v4085
    %7550 = vmatprep.subr.mxu0 %v4078
    %7551 = vmatpush1.msra.mxu0 %v4077
    %7552 = vmatprep.subr.mxu0 %v4070
    %7553 = vmatpush1.msra.mxu0 %v4069
    %7554 = vmatprep.subr.mxu0 %v4062
    %7555 = vmatpush1.msra.mxu0 %v4061
    %7556 = vmatprep.subr.mxu0 %v4310
    %7557 = vmatpush2.msra.mxu0 %v4309
    %7558 = vmatprep.subr.mxu0 %v4302
    %7559 = vmatpush2.msra.mxu0 %v4301
    %7560 = vmatprep.subr.mxu0 %v4294
    %7561 = vmatpush2.msra.mxu0 %v4293
    %7562 = vmatprep.subr.mxu0 %v4286
    %7563 = vmatpush2.msra.mxu0 %v4285
    %7564 = vmatprep.subr.mxu0 %v4278
    %7565 = vmatpush2.msra.mxu0 %v4277
    %7566 = vmatprep.subr.mxu0 %v4270
    %7567 = vmatpush2.msra.mxu0 %v4269
    %7568 = vmatprep.subr.mxu0 %v4262
    %7569 = vmatpush2.msra.mxu0 %v4261
    %7570 = vmatprep.subr.mxu0 %v4254
    %7571 = vmatpush2.msra.mxu0 %v4253
    %7572 = vmatprep.subr.mxu0 %v4246
    %7573 = vmatpush2.msra.mxu0 %v4245
    %7574 = vmatprep.subr.mxu0 %v4238
    %7575 = vmatpush2.msra.mxu0 %v4237
    %7576 = vmatprep.subr.mxu0 %v4230
    %7577 = vmatpush2.msra.mxu0 %v4229
    %7578 = vmatprep.subr.mxu0 %v4222
    %7579 = vmatpush2.msra.mxu0 %v4221
    %7580 = vmatprep.subr.mxu0 %v4214
    %7581 = vmatpush2.msra.mxu0 %v4213
    %7582 = vmatprep.subr.mxu0 %v4206
    %7583 = vmatpush2.msra.mxu0 %v4205
    %7584 = vmatprep.subr.mxu0 %v4198
    %7585 = vmatpush2.msra.mxu0 %v4197
    %7586 = vmatprep.subr.mxu0 %v4190
    %7587 = vmatpush2.msra.mxu0 %v4189
    %7588 = vmatprep.mubr.f32.mxu0 %v7371
    %7589 = vmatmul.mubr.f32.gmra.mxu0 %v7380
    %v7590 = vpop.f32.mrf.mxu0
    %v7591 = vadd.f32 0.0, %v7590
    %v7592 = vpop.f32.mrf.mxu0
    %v7593 = vadd.f32 0.0, %v7592
    %7594 = vdwg.mxu0
    %7595 = vmatprep.subr.mxu0 %v4184
    %7596 = vmatpush1.msra.mxu0 %v4183
    %7597 = vmatprep.subr.mxu0 %v4176
    %7598 = vmatpush1.msra.mxu0 %v4175
    %7599 = vmatprep.subr.mxu0 %v4168
    %7600 = vmatpush1.msra.mxu0 %v4167
    %7601 = vmatprep.subr.mxu0 %v4160
    %7602 = vmatpush1.msra.mxu0 %v4159
    %7603 = vmatprep.subr.mxu0 %v4152
    %7604 = vmatpush1.msra.mxu0 %v4151
    %7605 = vmatprep.subr.mxu0 %v4144
    %7606 = vmatpush1.msra.mxu0 %v4143
    %7607 = vmatprep.subr.mxu0 %v4136
    %7608 = vmatpush1.msra.mxu0 %v4135
    %7609 = vmatprep.subr.mxu0 %v4128
    %7610 = vmatpush1.msra.mxu0 %v4127
    %7611 = vmatprep.subr.mxu0 %v4120
    %7612 = vmatpush1.msra.mxu0 %v4119
    %7613 = vmatprep.subr.mxu0 %v4112
    %7614 = vmatpush1.msra.mxu0 %v4111
    %7615 = vmatprep.subr.mxu0 %v4104
    %7616 = vmatpush1.msra.mxu0 %v4103
    %7617 = vmatprep.subr.mxu0 %v4096
    %7618 = vmatpush1.msra.mxu0 %v4095
    %7619 = vmatprep.subr.mxu0 %v4088
    %7620 = vmatpush1.msra.mxu0 %v4087
    %7621 = vmatprep.subr.mxu0 %v4080
    %7622 = vmatpush1.msra.mxu0 %v4079
    %7623 = vmatprep.subr.mxu0 %v4072
    %7624 = vmatpush1.msra.mxu0 %v4071
    %7625 = vmatprep.subr.mxu0 %v4064
    %7626 = vmatpush1.msra.mxu0 %v4063
    %7627 = vmatprep.subr.mxu0 %v4312
    %7628 = vmatpush2.msra.mxu0 %v4311
    %7629 = vmatprep.subr.mxu0 %v4304
    %7630 = vmatpush2.msra.mxu0 %v4303
    %7631 = vmatprep.subr.mxu0 %v4296
    %7632 = vmatpush2.msra.mxu0 %v4295
    %7633 = vmatprep.subr.mxu0 %v4288
    %7634 = vmatpush2.msra.mxu0 %v4287
    %7635 = vmatprep.subr.mxu0 %v4280
    %7636 = vmatpush2.msra.mxu0 %v4279
    %7637 = vmatprep.subr.mxu0 %v4272
    %7638 = vmatpush2.msra.mxu0 %v4271
    %7639 = vmatprep.subr.mxu0 %v4264
    %7640 = vmatpush2.msra.mxu0 %v4263
    %7641 = vmatprep.subr.mxu0 %v4256
    %7642 = vmatpush2.msra.mxu0 %v4255
    %7643 = vmatprep.subr.mxu0 %v4248
    %7644 = vmatpush2.msra.mxu0 %v4247
    %7645 = vmatprep.subr.mxu0 %v4240
    %7646 = vmatpush2.msra.mxu0 %v4239
    %7647 = vmatprep.subr.mxu0 %v4232
    %7648 = vmatpush2.msra.mxu0 %v4231
    %7649 = vmatprep.subr.mxu0 %v4224
    %7650 = vmatpush2.msra.mxu0 %v4223
    %7651 = vmatprep.subr.mxu0 %v4216
    %7652 = vmatpush2.msra.mxu0 %v4215
    %7653 = vmatprep.subr.mxu0 %v4208
    %7654 = vmatpush2.msra.mxu0 %v4207
    %7655 = vmatprep.subr.mxu0 %v4200
    %7656 = vmatpush2.msra.mxu0 %v4199
    %7657 = vmatprep.subr.mxu0 %v4192
    %7658 = vmatpush2.msra.mxu0 %v4191
    %7659 = vmatprep.mubr.f32.mxu0 %v7371
    %7660 = vmatmul.mubr.f32.gmra.mxu0 %v7380
    %v7661 = vpop.f32.mrf.mxu0
    %v7662 = vadd.f32 0.0, %v7661
    %v7663 = vpop.f32.mrf.mxu0
    %v7664 = vadd.f32 0.0, %v7663
    %7665 = vdwg.mxu0
    %v7674 = vcombine.low %v7449, %v7451
    %v7675 = vcombine.low %v7520, %v7522
    %v7676 = vcombine.low %v7591, %v7593
    %v7677 = vcombine.low %v7662, %v7664
    %v7679 = vunpack.c.l.s4 1966171168
    %v7680 = vunpack.c.0.s8 %v7679
    %v7681 = vlaneseq
    %v7682 = vshrl.u32 %v7681, 7
    %v7683 = vsub.s32 %v7680, %v7682
    %v7684 = vrot.slane %v7674, %v7683
    %v7686 = vunpack.c.l.s4 1966171168
    %v7687 = vunpack.c.0.s8 %v7686
    %v7688 = vlaneseq
    %v7689 = vshrl.u32 %v7688, 7
    %v7690 = vsub.s32 %v7687, %v7689
    %v7691 = vrot.slane %v7675, %v7690
    %v7693 = vunpack.c.l.s4 1966171168
    %v7694 = vunpack.c.0.s8 %v7693
    %v7695 = vlaneseq
    %v7696 = vshrl.u32 %v7695, 7
    %v7697 = vsub.s32 %v7694, %v7696
    %v7698 = vrot.slane %v7676, %v7697
    %v7700 = vunpack.c.l.s4 1966171168
    %v7701 = vunpack.c.0.s8 %v7700
    %v7702 = vlaneseq
    %v7703 = vshrl.u32 %v7702, 7
    %v7704 = vsub.s32 %v7701, %v7703
    %v7705 = vrot.slane %v7677, %v7704
    %v7706 = vcombine.low %v7684, %v7691
    %v7707 = vcombine.low %v7698, %v7705
    %v7709 = vunpack.c.l.s4 1966171168
    %v7710 = vunpack.c.0.s8 %v7709
    %v7711 = vlaneseq
    %v7712 = vshrl.u32 %v7711, 7
    %v7713 = vsub.s32 %v7710, %v7712
    %v7714 = vrot.slane %v7706, %v7713
    %v7716 = vunpack.c.l.s4 1966171168
    %v7717 = vunpack.c.0.s8 %v7716
    %v7718 = vlaneseq
    %v7719 = vshrl.u32 %v7718, 7
    %v7720 = vsub.s32 %v7717, %v7719
    %v7721 = vrot.slane %v7707, %v7720
    %v7722 = vcombine.low %v7714, %v7721
    %v7724 = vadd.f32 %v7376, %v7722
    %v7725 = vxor.u32 %v7724, 2147483648
    %v7726 = vmul.f32 %v7725, 1.442695
    %v7727 = vpow.pop %v7726
    %v7728 = vadd.f32 %v7727, 1.0
    %v7729 = vrcp.pop %v7728
    %v7730 = vmul.f32 1.0, %v7729
    %v7732 = vrot.slane %v7724, 2
    %v7734 = vxor.u32 %v7732, 2147483648
    %v7735 = vmul.f32 %v7734, 1.442695
    %v7736 = vpow.pop %v7735
    %v7737 = vadd.f32 %v7736, 1.0
    %v7738 = vrcp.pop %v7737
    %v7739 = vmul.f32 1.0, %v7738
    %v7740 = vrot.slane %v7724, 4
    %v7742 = vtanh.pop %v7740
    %v7743 = vrot.slane %v7724, 6
    %v7745 = vxor.u32 %v7743, 2147483648
    %v7746 = vmul.f32 %v7745, 1.442695
    %v7747 = vpow.pop %v7746
    %v7748 = vadd.f32 %v7747, 1.0
    %v7749 = vrcp.pop %v7748
    %v7750 = vmul.f32 1.0, %v7749
    %v7751 = vmul.f32 %v7739, %v7363
    %v7752 = vmul.f32 %v7730, %v7742
    %v7753 = vadd.f32 %v7751, %v7752
    %v7754 = vtanh.pop %v7753
    %v7755 = vmul.f32 %v7750, %v7754
    %7756 = vst [vmem:[#allocation19 + $0x7] sm:$0x1] %v7755
    %v7758 = vlaneseq
    %v7759 = vshrl.u32 %v7758, 7
    %v7760 = vsub.s32 1, %v7759
    %v7761 = vrot.slane %v7755, %v7760
    %7763 = vst [vmem:[#allocation19 + $0x8] sm:$0x1] %v7761
    %s7764 = scalar_lea.vmem [#allocation20], 1
    %7765 = vst.msk [vmem:[%s7764] ss:$2 sm:$0x3] %vm1178, %v7755
    %s7766 = scalar_lea.vmem [#allocation22], 1
    %7767 = vst.msk [vmem:[%s7766] ss:$2 sm:$0x3] %vm1178, %v7753
    // Predicated region
    $region78: #{tpu_custom_call.1} parent=1 // pred_check
      _
    $region79: #{tpu_custom_call.1} parent=1 // pred_check_branch
      %7769 = sbr.rel (0) target = $region81
    $region80: #{tpu_custom_call.1} parent=1 // pred_region
      %s7771 = ssub.s32 256, 256
      %7772 = vsyncadd [#allocation7], %s7771
      %s7774 = sshll.u32 [#allocation19], 4
      %s7775 = int_to_ptr.vmem [resolvable:$true] %s7774
      %7777 = dma.vmem_to_hbm [thread:$0]  %s7775, 256, %s11, [#allocation7]
    $region81: #{tpu_custom_call.1} parent=1 // pred_fallthru
      _
    // Predicated region
    $region82: #{tpu_custom_call.1} parent=1 // pred_check
      _
    $region83: #{tpu_custom_call.1} parent=1 // pred_check_branch
      %7779 = sbr.rel (0) target = $region85
    $region84: #{tpu_custom_call.1} parent=1 // pred_region
      %s7781 = ssub.s32 64, 64
      %7782 = vsyncadd [#allocation21], %s7781
      %s7784 = sshll.u32 [#allocation20], 4
      %s7785 = int_to_ptr.vmem [resolvable:$true] %s7784
      %7787 = dma.vmem_to_hbm [thread:$0]  %s7785, 64, %s12, [#allocation21]
    $region85: #{tpu_custom_call.1} parent=1 // pred_fallthru
      _
    // Predicated region
    $region86: #{tpu_custom_call.1} parent=1 // pred_check
      _
    $region87: #{tpu_custom_call.1} parent=1 // pred_check_branch
      %7789 = sbr.rel (0) target = $region89
    $region88: #{tpu_custom_call.1} parent=1 // pred_region
      %s7791 = ssub.s32 64, 64
      %7792 = vsyncadd [#allocation21], %s7791
      %s7794 = sshll.u32 [#allocation22], 4
      %s7795 = int_to_ptr.vmem [resolvable:$true] %s7794
      %7797 = dma.vmem_to_hbm [thread:$0]  %s7795, 64, %s13, [#allocation21]
    $region89: #{tpu_custom_call.1} parent=1 // pred_fallthru
      _
    // Predicated region
    $region90: #{tpu_custom_call.1} parent=1 // pred_check
      _
    $region91: #{tpu_custom_call.1} parent=1 // pred_check_branch
      %7799 = sbr.rel (0) target = $region93
    $region92: #{tpu_custom_call.1} parent=1 // pred_region
      %7800 = dma.done [#allocation7], 256
    $region93: #{tpu_custom_call.1} parent=1 // pred_fallthru
      _
    // Predicated region
    $region94: #{tpu_custom_call.1} parent=1 // pred_check
      _
    $region95: #{tpu_custom_call.1} parent=1 // pred_check_branch
      %7802 = sbr.rel (0) target = $region97
    $region96: #{tpu_custom_call.1} parent=1 // pred_region
      %7803 = dma.done [#allocation21], 64
    $region97: #{tpu_custom_call.1} parent=1 // pred_fallthru
      _
    // Predicated region
    $region98: #{tpu_custom_call.1} parent=1 // pred_check
      _
    $region99: #{tpu_custom_call.1} parent=1 // pred_check_branch
      %7805 = sbr.rel (0) target = $region101
    $region100: #{tpu_custom_call.1} parent=1 // pred_region
      %7806 = dma.done [#allocation21], 64
    $region101: #{tpu_custom_call.1} parent=1 // pred_fallthru
      _
    %7807 = vsyncpa [#allocation6], 1
    %7808 = vsyncpa [#allocation9], 1
    %7809 = vsyncpa [#allocation12], 1
    %7810 = vsyncpa [#allocation15], 1
    %7811 = vsyncpa [#allocation18], 1
    %7812 = vsyncpa [#allocation7], 1
    %7813 = vsyncpa [#allocation21], 1

</llo_original>
